<compile_context>
chip_gen: v7x
topology: tpu7x:2x2x1
jax: 0.10.0
libtpu: 0.0.40
codegen_flags: <defaults>
</compile_context>

<pallas_src>
import jax
import jax.numpy as jnp
from jax.experimental import pallas as pl
from jax.experimental.pallas import tpu as pltpu

_LANES = 128   # lane width: pad channel axes to a multiple of this
_WPAD = 8      # left/right zero halo along W in the conv scratch (sublane aligned)


def _round_up(x, m):
    return ((x + m - 1) // m) * m


# ----------------------------------------------------------------------------
# Fused Down kernel body
# ----------------------------------------------------------------------------
def _down_body(x_ref, w1a_ref, b1a_ref, w1b_ref, b1b_ref,
               wp_ref, bp_ref, w2a_ref, b2a_ref, w2b_ref, b2b_ref,
               o_ref, pad1_ref, pad2_ref):
    Hp, Wp = o_ref.shape[1], o_ref.shape[2]

    # ---- fused MaxPool2d(2): max over the four resident (Hp, Wp, Cin) phases
    x = jnp.maximum(jnp.maximum(x_ref[0, 0, 0], x_ref[0, 0, 1]),
                    jnp.maximum(x_ref[0, 1, 0], x_ref[0, 1, 1]))      # f32
    cin = x.shape[-1]
    x2d = x.reshape(Hp * Wp, cin)

    # ---- zero only the halo border of the conv scratches (interior is fully
    #      overwritten by every conv).  Done every grid step so it stays
    #      correct under megacore grid sharding.
    def zero_border(pad_ref):
        wtot = pad_ref.shape[1]
        c = pad_ref.shape[2]
        pad_ref[0] = jnp.zeros((wtot, c), pad_ref.dtype)
        pad_ref[Hp + 1] = jnp.zeros((wtot, c), pad_ref.dtype)
        zcol = jnp.zeros((Hp, _WPAD, c), pad_ref.dtype)
        pad_ref[1:Hp + 1, 0:_WPAD, :] = zcol
        pad_ref[1:Hp + 1, _WPAD + Wp:_WPAD + Wp + _WPAD, :] = zcol

    zero_border(pad1_ref)
    zero_border(pad2_ref)

    def conv3x3(v2d, pad_ref, w_ref, b_ref):
        """3x3 conv, stride 1, pad 1.  v2d: (Hp*Wp, C) f32.
        w_ref: (9, C, Co) bf16 (tap-major).  b_ref: (1, Co) f32.
        Returns (Hp*Wp, Co) f32.  9 per-tap MXU matmuls, f32 accumulation."""
        c = v2d.shape[-1]
        co = w_ref.shape[-1]
        # Aligned interior store: W offset = _WPAD (sublane multiple).
        pad_ref[1:Hp + 1, _WPAD:_WPAD + Wp, :] = (
            v2d.reshape(Hp, Wp, c).astype(pad_ref.dtype))
        acc = jnp.zeros((Hp * Wp, co), jnp.float32)
        for ky in range(3):
            for kx in range(3):
                tap = pad_ref[ky:ky + Hp,
                              _WPAD - 1 + kx:_WPAD - 1 + kx + Wp,
                              :].reshape(Hp * Wp, c)
                acc = acc + jnp.dot(tap, w_ref[ky * 3 + kx],
                                    preferred_element_type=jnp.float32)
        return acc + b_ref[...]                                        # f32 epilogue

    # ---- ResidualBlock(in_channels) -----------------------------------------
    h = jnp.maximum(conv3x3(x2d, pad1_ref, w1a_ref, b1a_ref), 0.0)
    y = jnp.maximum(conv3x3(h, pad1_ref, w1b_ref, b1b_ref) + x2d, 0.0)

    # ---- ProjectionLayer (1x1 conv) -----------------------------------------
    z = jnp.dot(y.astype(jnp.bfloat16), wp_ref[...],
                preferred_element_type=jnp.float32) + bp_ref[...]

    # ---- ResidualBlock(out_channels) ----------------------------------------
    h2 = jnp.maximum(conv3x3(z, pad2_ref, w2a_ref, b2a_ref), 0.0)
    out = jnp.maximum(conv3x3(h2, pad2_ref, w2b_ref, b2b_ref) + z, 0.0)

    cop = o_ref.shape[-1]
    o_ref[0] = out.reshape(Hp, Wp, cop).astype(o_ref.dtype)


# ----------------------------------------------------------------------------
# Wrapper (matches Down.forward, NCHW in / NCHW out)
# ----------------------------------------------------------------------------
def down_forward(x_nchw, params):
    N, Cin, H, W = x_nchw.shape
    assert H % 2 == 0 and W % 2 == 0, "MaxPool2d(2) path assumes even H, W"
    Hp, Wp = H // 2, W // 2
    assert Wp % 8 == 0, "pooled width must be a sublane (8) multiple"
    Cout = params["proj"]["w"].shape[-1]
    Cip = _round_up(Cin, _LANES)
    Cop = _round_up(Cout, _LANES)

    # Fold NCHW->NHWC *and* the MaxPool2d(2) phase decomposition into one XLA
    # transpose: (N,C,H,W) -> (N, 2, 2, Hp, Wp, C); then lane-pad channels.
    # TODO(synk): if the surrounding model can run NHWC end-to-end, drop these
    #             wrapper transposes (extra HBM passes, largest cost on v5e).
    xph = x_nchw.reshape(N, Cin, Hp, 2, Wp, 2).transpose(0, 3, 5, 2, 4, 1)
    xph = jnp.pad(xph, ((0, 0),) * 5 + ((0, Cip - Cin),))

    def w3(w, ci, co):   # (3,3,Ci,Co) -> (9, ci, co) bf16, zero padded
        _, _, wci, wco = w.shape
        w = jnp.pad(w, ((0, 0), (0, 0), (0, ci - wci), (0, co - wco)))
        return w.reshape(9, ci, co).astype(jnp.bfloat16)

    def b2d(b, co):      # (Co,) -> (1, co) f32, zero padded
        return jnp.pad(b, (0, co - b.shape[0])).reshape(1, co).astype(jnp.float32)

    w1a, b1a = w3(params["rb1"]["w1"], Cip, Cip), b2d(params["rb1"]["b1"], Cip)
    w1b, b1b = w3(params["rb1"]["w2"], Cip, Cip), b2d(params["rb1"]["b2"], Cip)
    wp = jnp.pad(params["proj"]["w"],
                 ((0, Cip - Cin), (0, Cop - Cout))).astype(jnp.bfloat16)
    bp = b2d(params["proj"]["b"], Cop)
    w2a, b2a = w3(params["rb2"]["w1"], Cop, Cop), b2d(params["rb2"]["b1"], Cop)
    w2b, b2b = w3(params["rb2"]["w2"], Cop, Cop), b2d(params["rb2"]["b2"], Cop)

    def full(shape):     # whole-array block, replicated across the batch grid
        return pl.BlockSpec(shape, lambda n: (0,) * len(shape))

    wtot = Wp + 2 * _WPAD
    out_padded = pl.pallas_call(
        _down_body,
        out_shape=jax.ShapeDtypeStruct((N, Hp, Wp, Cop), x_nchw.dtype),
        grid=(N,),
        in_specs=[
            pl.BlockSpec((1, 2, 2, Hp, Wp, Cip), lambda n: (n, 0, 0, 0, 0, 0)),
            full((9, Cip, Cip)), full((1, Cip)),
            full((9, Cip, Cip)), full((1, Cip)),
            full((Cip, Cop)),    full((1, Cop)),
            full((9, Cop, Cop)), full((1, Cop)),
            full((9, Cop, Cop)), full((1, Cop)),
        ],
        out_specs=pl.BlockSpec((1, Hp, Wp, Cop), lambda n: (n, 0, 0, 0)),
        scratch_shapes=[
            pltpu.VMEM((Hp + 2, wtot, Cip), jnp.bfloat16),
            pltpu.VMEM((Hp + 2, wtot, Cop), jnp.bfloat16),
        ],
        compiler_params=pltpu.CompilerParams(
            dimension_semantics=("parallel",),
            vmem_limit_bytes=48 * 1024 * 1024),
    )(xph, w1a, b1a, w1b, b1b, wp, bp, w2a, b2a, w2b, b2b)

    # Strip channel padding, NHWC -> NCHW.
    return out_padded[..., :Cout].transpose(0, 3, 1, 2)


# ----------------------------------------------------------------------------
# Parameter init (HWIO conv weights)
# ----------------------------------------------------------------------------
def init_params(key, in_channels, out_channels):
    ks = jax.random.split(key, 5)

    def cw(k, kh, kw, ci, co):
        fan_in = kh * kw * ci
        return jax.random.normal(k, (kh, kw, ci, co), jnp.float32) / jnp.sqrt(fan_in)

    return {
        "rb1": {
            "w1": cw(ks[0], 3, 3, in_channels, in_channels),
            "b1": jnp.zeros((in_channels,), jnp.float32),
            "w2": cw(ks[1], 3, 3, in_channels, in_channels),
            "b2": jnp.zeros((in_channels,), jnp.float32),
        },
        "proj": {
            "w": jax.random.normal(ks[2], (in_channels, out_channels), jnp.float32)
                 / jnp.sqrt(in_channels),
            "b": jnp.zeros((out_channels,), jnp.float32),
        },
        "rb2": {
            "w1": cw(ks[3], 3, 3, out_channels, out_channels),
            "b1": jnp.zeros((out_channels,), jnp.float32),
            "w2": cw(ks[4], 3, 3, out_channels, out_channels),
            "b2": jnp.zeros((out_channels,), jnp.float32),
        },
    }


if __name__ == "__main__":
    key = jax.random.PRNGKey(0)
    kx, kp = jax.random.split(key)

    N, Cin, H, W = 2, 4, 16, 16
    Cout = 8

    x = jax.random.normal(kx, (N, Cin, H, W), jnp.float32)      # NCHW
    params = init_params(kp, Cin, Cout)

    out = jax.jit(down_forward)(x, params)
    out = jax.block_until_ready(out)
    assert out.shape == (N, Cout, H // 2, W // 2), out.shape
    assert bool(jnp.all(jnp.isfinite(out)))
    print("KERNEL_OK")
</pallas_src>

<mosaic_0001>
module attributes {stable_mosaic.version = 11 : i64} {
  func.func @_down_body(%arg0: i32, %arg1: memref<1x2x2x8x8x128xf32, #tpu.memory_space<vmem>>, %arg2: memref<9x128x128xbf16, #tpu.memory_space<vmem>>, %arg3: memref<1x128xf32, #tpu.memory_space<vmem>>, %arg4: memref<9x128x128xbf16, #tpu.memory_space<vmem>>, %arg5: memref<1x128xf32, #tpu.memory_space<vmem>>, %arg6: memref<128x128xbf16, #tpu.memory_space<vmem>>, %arg7: memref<1x128xf32, #tpu.memory_space<vmem>>, %arg8: memref<9x128x128xbf16, #tpu.memory_space<vmem>>, %arg9: memref<1x128xf32, #tpu.memory_space<vmem>>, %arg10: memref<9x128x128xbf16, #tpu.memory_space<vmem>>, %arg11: memref<1x128xf32, #tpu.memory_space<vmem>>, %arg12: memref<1x8x8x128xf32, #tpu.memory_space<vmem>>, %arg13: memref<10x24x128xbf16, #tpu.memory_space<vmem>>, %arg14: memref<10x24x128xbf16, #tpu.memory_space<vmem>>) attributes {dimension_semantics = [#tpu.dimension_semantics<parallel>], iteration_bounds = array<i64: 2>, scalar_prefetch = 0 : i64, scratch_operands = 2 : i64, tpu.core_type = #tpu.core_type<tc>, window_params = [{transform_indices = @transform_0, window_bounds = array<i64: 1, 2, 2, 8, 8, 128>}, {pipeline_mode = #tpu.pipeline_mode<synchronous>, transform_indices = @transform_1, window_bounds = array<i64: 9, 128, 128>}, {pipeline_mode = #tpu.pipeline_mode<synchronous>, transform_indices = @transform_2, window_bounds = array<i64: 1, 128>}, {pipeline_mode = #tpu.pipeline_mode<synchronous>, transform_indices = @transform_3, window_bounds = array<i64: 9, 128, 128>}, {pipeline_mode = #tpu.pipeline_mode<synchronous>, transform_indices = @transform_4, window_bounds = array<i64: 1, 128>}, {pipeline_mode = #tpu.pipeline_mode<synchronous>, transform_indices = @transform_5, window_bounds = array<i64: 128, 128>}, {pipeline_mode = #tpu.pipeline_mode<synchronous>, transform_indices = @transform_6, window_bounds = array<i64: 1, 128>}, {pipeline_mode = #tpu.pipeline_mode<synchronous>, transform_indices = @transform_7, window_bounds = array<i64: 9, 128, 128>}, {pipeline_mode = #tpu.pipeline_mode<synchronous>, transform_indices = @transform_8, window_bounds = array<i64: 1, 128>}, {pipeline_mode = #tpu.pipeline_mode<synchronous>, transform_indices = @transform_9, window_bounds = array<i64: 9, 128, 128>}, {pipeline_mode = #tpu.pipeline_mode<synchronous>, transform_indices = @transform_10, window_bounds = array<i64: 1, 128>}, {transform_indices = @transform_11, window_bounds = array<i64: 1, 8, 8, 128>}]} {
    %c0 = arith.constant 0 : index
    %c0_0 = arith.constant 0 : index
    %c0_1 = arith.constant 0 : index
    %c0_2 = arith.constant 0 : index
    %c0_3 = arith.constant 0 : index
    %c0_4 = arith.constant 0 : index
    %0 = vector.load %arg1[%c0, %c0_0, %c0_1, %c0_2, %c0_3, %c0_4] : memref<1x2x2x8x8x128xf32, #tpu.memory_space<vmem>>, vector<1x1x1x8x8x128xf32>
    %1 = vector.shape_cast %0 : vector<1x1x1x8x8x128xf32> to vector<8x8x128xf32>
    %c0_5 = arith.constant 0 : index
    %c0_6 = arith.constant 0 : index
    %c1 = arith.constant 1 : index
    %c0_7 = arith.constant 0 : index
    %c0_8 = arith.constant 0 : index
    %c0_9 = arith.constant 0 : index
    %2 = vector.load %arg1[%c0_5, %c0_6, %c1, %c0_7, %c0_8, %c0_9] : memref<1x2x2x8x8x128xf32, #tpu.memory_space<vmem>>, vector<1x1x1x8x8x128xf32>
    %3 = vector.shape_cast %2 : vector<1x1x1x8x8x128xf32> to vector<8x8x128xf32>
    %4 = arith.maximumf %1, %3 : vector<8x8x128xf32>
    %c0_10 = arith.constant 0 : index
    %c1_11 = arith.constant 1 : index
    %c0_12 = arith.constant 0 : index
    %c0_13 = arith.constant 0 : index
    %c0_14 = arith.constant 0 : index
    %c0_15 = arith.constant 0 : index
    %5 = vector.load %arg1[%c0_10, %c1_11, %c0_12, %c0_13, %c0_14, %c0_15] : memref<1x2x2x8x8x128xf32, #tpu.memory_space<vmem>>, vector<1x1x1x8x8x128xf32>
    %6 = vector.shape_cast %5 : vector<1x1x1x8x8x128xf32> to vector<8x8x128xf32>
    %c0_16 = arith.constant 0 : index
    %c1_17 = arith.constant 1 : index
    %c1_18 = arith.constant 1 : index
    %c0_19 = arith.constant 0 : index
    %c0_20 = arith.constant 0 : index
    %c0_21 = arith.constant 0 : index
    %7 = vector.load %arg1[%c0_16, %c1_17, %c1_18, %c0_19, %c0_20, %c0_21] : memref<1x2x2x8x8x128xf32, #tpu.memory_space<vmem>>, vector<1x1x1x8x8x128xf32>
    %8 = vector.shape_cast %7 : vector<1x1x1x8x8x128xf32> to vector<8x8x128xf32>
    %9 = arith.maximumf %6, %8 : vector<8x8x128xf32>
    %10 = arith.maximumf %4, %9 : vector<8x8x128xf32>
    %11 = vector.shape_cast %10 : vector<8x8x128xf32> to vector<64x128xf32>
    %cst = arith.constant 0.000000e+00 : bf16
    %12 = vector.broadcast %cst : bf16 to vector<24x128xbf16>
    %c0_22 = arith.constant 0 : index
    %c0_23 = arith.constant 0 : index
    %c0_24 = arith.constant 0 : index
    %13 = vector.load %arg13[%c0_22, %c0_23, %c0_24] : memref<10x24x128xbf16, #tpu.memory_space<vmem>>, vector<1x24x128xbf16>
    %14 = vector.shape_cast %13 : vector<1x24x128xbf16> to vector<24x128xbf16>
    %15 = vector.shape_cast %12 : vector<24x128xbf16> to vector<1x24x128xbf16>
    tpu.vector_store %arg13[%c0_22, %c0_23, %c0_24], %15 {strides = array<i32>} : memref<10x24x128xbf16, #tpu.memory_space<vmem>>, vector<1x24x128xbf16>,
    %cst_25 = arith.constant 0.000000e+00 : bf16
    %16 = vector.broadcast %cst_25 : bf16 to vector<24x128xbf16>
    %c9 = arith.constant 9 : index
    %c0_26 = arith.constant 0 : index
    %c0_27 = arith.constant 0 : index
    %17 = vector.load %arg13[%c9, %c0_26, %c0_27] : memref<10x24x128xbf16, #tpu.memory_space<vmem>>, vector<1x24x128xbf16>
    %18 = vector.shape_cast %17 : vector<1x24x128xbf16> to vector<24x128xbf16>
    %19 = vector.shape_cast %16 : vector<24x128xbf16> to vector<1x24x128xbf16>
    tpu.vector_store %arg13[%c9, %c0_26, %c0_27], %19 {strides = array<i32>} : memref<10x24x128xbf16, #tpu.memory_space<vmem>>, vector<1x24x128xbf16>,
    %cst_28 = arith.constant 0.000000e+00 : bf16
    %20 = vector.broadcast %cst_28 : bf16 to vector<8x8x128xbf16>
    %c1_29 = arith.constant 1 : index
    %c0_30 = arith.constant 0 : index
    %c0_31 = arith.constant 0 : index
    %21 = vector.load %arg13[%c1_29, %c0_30, %c0_31] : memref<10x24x128xbf16, #tpu.memory_space<vmem>>, vector<8x8x128xbf16>
    tpu.vector_store %arg13[%c1_29, %c0_30, %c0_31], %20 {strides = array<i32>} : memref<10x24x128xbf16, #tpu.memory_space<vmem>>, vector<8x8x128xbf16>,
    %c1_32 = arith.constant 1 : index
    %c16 = arith.constant 16 : index
    %c0_33 = arith.constant 0 : index
    %22 = vector.load %arg13[%c1_32, %c16, %c0_33] : memref<10x24x128xbf16, #tpu.memory_space<vmem>>, vector<8x8x128xbf16>
    tpu.vector_store %arg13[%c1_32, %c16, %c0_33], %20 {strides = array<i32>} : memref<10x24x128xbf16, #tpu.memory_space<vmem>>, vector<8x8x128xbf16>,
    %cst_34 = arith.constant 0.000000e+00 : bf16
    %23 = vector.broadcast %cst_34 : bf16 to vector<24x128xbf16>
    %c0_35 = arith.constant 0 : index
    %c0_36 = arith.constant 0 : index
    %c0_37 = arith.constant 0 : index
    %24 = vector.load %arg14[%c0_35, %c0_36, %c0_37] : memref<10x24x128xbf16, #tpu.memory_space<vmem>>, vector<1x24x128xbf16>
    %25 = vector.shape_cast %24 : vector<1x24x128xbf16> to vector<24x128xbf16>
    %26 = vector.shape_cast %23 : vector<24x128xbf16> to vector<1x24x128xbf16>
    tpu.vector_store %arg14[%c0_35, %c0_36, %c0_37], %26 {strides = array<i32>} : memref<10x24x128xbf16, #tpu.memory_space<vmem>>, vector<1x24x128xbf16>,
    %cst_38 = arith.constant 0.000000e+00 : bf16
    %27 = vector.broadcast %cst_38 : bf16 to vector<24x128xbf16>
    %c9_39 = arith.constant 9 : index
    %c0_40 = arith.constant 0 : index
    %c0_41 = arith.constant 0 : index
    %28 = vector.load %arg14[%c9_39, %c0_40, %c0_41] : memref<10x24x128xbf16, #tpu.memory_space<vmem>>, vector<1x24x128xbf16>
    %29 = vector.shape_cast %28 : vector<1x24x128xbf16> to vector<24x128xbf16>
    %30 = vector.shape_cast %27 : vector<24x128xbf16> to vector<1x24x128xbf16>
    tpu.vector_store %arg14[%c9_39, %c0_40, %c0_41], %30 {strides = array<i32>} : memref<10x24x128xbf16, #tpu.memory_space<vmem>>, vector<1x24x128xbf16>,
    %cst_42 = arith.constant 0.000000e+00 : bf16
    %31 = vector.broadcast %cst_42 : bf16 to vector<8x8x128xbf16>
    %c1_43 = arith.constant 1 : index
    %c0_44 = arith.constant 0 : index
    %c0_45 = arith.constant 0 : index
    %32 = vector.load %arg14[%c1_43, %c0_44, %c0_45] : memref<10x24x128xbf16, #tpu.memory_space<vmem>>, vector<8x8x128xbf16>
    tpu.vector_store %arg14[%c1_43, %c0_44, %c0_45], %31 {strides = array<i32>} : memref<10x24x128xbf16, #tpu.memory_space<vmem>>, vector<8x8x128xbf16>,
    %c1_46 = arith.constant 1 : index
    %c16_47 = arith.constant 16 : index
    %c0_48 = arith.constant 0 : index
    %33 = vector.load %arg14[%c1_46, %c16_47, %c0_48] : memref<10x24x128xbf16, #tpu.memory_space<vmem>>, vector<8x8x128xbf16>
    tpu.vector_store %arg14[%c1_46, %c16_47, %c0_48], %31 {strides = array<i32>} : memref<10x24x128xbf16, #tpu.memory_space<vmem>>, vector<8x8x128xbf16>,
    %34 = vector.shape_cast %11 : vector<64x128xf32> to vector<8x8x128xf32>
    %35 = arith.truncf %34 : vector<8x8x128xf32> to vector<8x8x128xbf16>
    %c1_49 = arith.constant 1 : index
    %c8 = arith.constant 8 : index
    %c0_50 = arith.constant 0 : index
    %36 = vector.load %arg13[%c1_49, %c8, %c0_50] : memref<10x24x128xbf16, #tpu.memory_space<vmem>>, vector<8x8x128xbf16>
    tpu.vector_store %arg13[%c1_49, %c8, %c0_50], %35 {strides = array<i32>} : memref<10x24x128xbf16, #tpu.memory_space<vmem>>, vector<8x8x128xbf16>,
    %cst_51 = arith.constant 0.000000e+00 : f32
    %37 = vector.broadcast %cst_51 : f32 to vector<64x128xf32>
    %c0_52 = arith.constant 0 : index
    %c7 = arith.constant 7 : index
    %c0_53 = arith.constant 0 : index
    %38 = vector.load %arg13[%c0_52, %c7, %c0_53] : memref<10x24x128xbf16, #tpu.memory_space<vmem>>, vector<8x8x128xbf16>
    %39 = vector.shape_cast %38 : vector<8x8x128xbf16> to vector<64x128xbf16>
    %c0_54 = arith.constant 0 : index
    %c0_55 = arith.constant 0 : index
    %c0_56 = arith.constant 0 : index
    %40 = vector.load %arg2[%c0_54, %c0_55, %c0_56] : memref<9x128x128xbf16, #tpu.memory_space<vmem>>, vector<1x128x128xbf16>
    %41 = vector.shape_cast %40 : vector<1x128x128xbf16> to vector<128x128xbf16>
    %cst_57 = arith.constant dense<0.000000e+00> : vector<64x128xf32>
    %42 = tpu.matmul %39, %41, %cst_57 {dimension_numbers = #tpu.dot_dimension_numbers<[1], [0], [0], [1], [0, 0, 1, 1], [], []>} : vector<64x128xbf16>, vector<128x128xbf16>, vector<64x128xf32> -> vector<64x128xf32>
    %43 = arith.addf %37, %42 : vector<64x128xf32>
    %c0_58 = arith.constant 0 : index
    %c8_59 = arith.constant 8 : index
    %c0_60 = arith.constant 0 : index
    %44 = vector.load %arg13[%c0_58, %c8_59, %c0_60] : memref<10x24x128xbf16, #tpu.memory_space<vmem>>, vector<8x8x128xbf16>
    %45 = vector.shape_cast %44 : vector<8x8x128xbf16> to vector<64x128xbf16>
    %c1_61 = arith.constant 1 : index
    %c0_62 = arith.constant 0 : index
    %c0_63 = arith.constant 0 : index
    %46 = vector.load %arg2[%c1_61, %c0_62, %c0_63] : memref<9x128x128xbf16, #tpu.memory_space<vmem>>, vector<1x128x128xbf16>
    %47 = vector.shape_cast %46 : vector<1x128x128xbf16> to vector<128x128xbf16>
    %cst_64 = arith.constant dense<0.000000e+00> : vector<64x128xf32>
    %48 = tpu.matmul %45, %47, %cst_64 {dimension_numbers = #tpu.dot_dimension_numbers<[1], [0], [0], [1], [0, 0, 1, 1], [], []>} : vector<64x128xbf16>, vector<128x128xbf16>, vector<64x128xf32> -> vector<64x128xf32>
    %49 = arith.addf %43, %48 : vector<64x128xf32>
    %c0_65 = arith.constant 0 : index
    %c9_66 = arith.constant 9 : index
    %c0_67 = arith.constant 0 : index
    %50 = vector.load %arg13[%c0_65, %c9_66, %c0_67] : memref<10x24x128xbf16, #tpu.memory_space<vmem>>, vector<8x8x128xbf16>
    %51 = vector.shape_cast %50 : vector<8x8x128xbf16> to vector<64x128xbf16>
    %c2 = arith.constant 2 : index
    %c0_68 = arith.constant 0 : index
    %c0_69 = arith.constant 0 : index
    %52 = vector.load %arg2[%c2, %c0_68, %c0_69] : memref<9x128x128xbf16, #tpu.memory_space<vmem>>, vector<1x128x128xbf16>
    %53 = vector.shape_cast %52 : vector<1x128x128xbf16> to vector<128x128xbf16>
    %cst_70 = arith.constant dense<0.000000e+00> : vector<64x128xf32>
    %54 = tpu.matmul %51, %53, %cst_70 {dimension_numbers = #tpu.dot_dimension_numbers<[1], [0], [0], [1], [0, 0, 1, 1], [], []>} : vector<64x128xbf16>, vector<128x128xbf16>, vector<64x128xf32> -> vector<64x128xf32>
    %55 = arith.addf %49, %54 : vector<64x128xf32>
    %c1_71 = arith.constant 1 : index
    %c7_72 = arith.constant 7 : index
    %c0_73 = arith.constant 0 : index
    %56 = vector.load %arg13[%c1_71, %c7_72, %c0_73] : memref<10x24x128xbf16, #tpu.memory_space<vmem>>, vector<8x8x128xbf16>
    %57 = vector.shape_cast %56 : vector<8x8x128xbf16> to vector<64x128xbf16>
    %c3 = arith.constant 3 : index
    %c0_74 = arith.constant 0 : index
    %c0_75 = arith.constant 0 : index
    %58 = vector.load %arg2[%c3, %c0_74, %c0_75] : memref<9x128x128xbf16, #tpu.memory_space<vmem>>, vector<1x128x128xbf16>
    %59 = vector.shape_cast %58 : vector<1x128x128xbf16> to vector<128x128xbf16>
    %cst_76 = arith.constant dense<0.000000e+00> : vector<64x128xf32>
    %60 = tpu.matmul %57, %59, %cst_76 {dimension_numbers = #tpu.dot_dimension_numbers<[1], [0], [0], [1], [0, 0, 1, 1], [], []>} : vector<64x128xbf16>, vector<128x128xbf16>, vector<64x128xf32> -> vector<64x128xf32>
    %61 = arith.addf %55, %60 : vector<64x128xf32>
    %c1_77 = arith.constant 1 : index
    %c8_78 = arith.constant 8 : index
    %c0_79 = arith.constant 0 : index
    %62 = vector.load %arg13[%c1_77, %c8_78, %c0_79] : memref<10x24x128xbf16, #tpu.memory_space<vmem>>, vector<8x8x128xbf16>
    %63 = vector.shape_cast %62 : vector<8x8x128xbf16> to vector<64x128xbf16>
    %c4 = arith.constant 4 : index
    %c0_80 = arith.constant 0 : index
    %c0_81 = arith.constant 0 : index
    %64 = vector.load %arg2[%c4, %c0_80, %c0_81] : memref<9x128x128xbf16, #tpu.memory_space<vmem>>, vector<1x128x128xbf16>
    %65 = vector.shape_cast %64 : vector<1x128x128xbf16> to vector<128x128xbf16>
    %cst_82 = arith.constant dense<0.000000e+00> : vector<64x128xf32>
    %66 = tpu.matmul %63, %65, %cst_82 {dimension_numbers = #tpu.dot_dimension_numbers<[1], [0], [0], [1], [0, 0, 1, 1], [], []>} : vector<64x128xbf16>, vector<128x128xbf16>, vector<64x128xf32> -> vector<64x128xf32>
    %67 = arith.addf %61, %66 : vector<64x128xf32>
    %c1_83 = arith.constant 1 : index
    %c9_84 = arith.constant 9 : index
    %c0_85 = arith.constant 0 : index
    %68 = vector.load %arg13[%c1_83, %c9_84, %c0_85] : memref<10x24x128xbf16, #tpu.memory_space<vmem>>, vector<8x8x128xbf16>
    %69 = vector.shape_cast %68 : vector<8x8x128xbf16> to vector<64x128xbf16>
    %c5 = arith.constant 5 : index
    %c0_86 = arith.constant 0 : index
    %c0_87 = arith.constant 0 : index
    %70 = vector.load %arg2[%c5, %c0_86, %c0_87] : memref<9x128x128xbf16, #tpu.memory_space<vmem>>, vector<1x128x128xbf16>
    %71 = vector.shape_cast %70 : vector<1x128x128xbf16> to vector<128x128xbf16>
    %cst_88 = arith.constant dense<0.000000e+00> : vector<64x128xf32>
    %72 = tpu.matmul %69, %71, %cst_88 {dimension_numbers = #tpu.dot_dimension_numbers<[1], [0], [0], [1], [0, 0, 1, 1], [], []>} : vector<64x128xbf16>, vector<128x128xbf16>, vector<64x128xf32> -> vector<64x128xf32>
    %73 = arith.addf %67, %72 : vector<64x128xf32>
    %c2_89 = arith.constant 2 : index
    %c7_90 = arith.constant 7 : index
    %c0_91 = arith.constant 0 : index
    %74 = vector.load %arg13[%c2_89, %c7_90, %c0_91] : memref<10x24x128xbf16, #tpu.memory_space<vmem>>, vector<8x8x128xbf16>
    %75 = vector.shape_cast %74 : vector<8x8x128xbf16> to vector<64x128xbf16>
    %c6 = arith.constant 6 : index
    %c0_92 = arith.constant 0 : index
    %c0_93 = arith.constant 0 : index
    %76 = vector.load %arg2[%c6, %c0_92, %c0_93] : memref<9x128x128xbf16, #tpu.memory_space<vmem>>, vector<1x128x128xbf16>
    %77 = vector.shape_cast %76 : vector<1x128x128xbf16> to vector<128x128xbf16>
    %cst_94 = arith.constant dense<0.000000e+00> : vector<64x128xf32>
    %78 = tpu.matmul %75, %77, %cst_94 {dimension_numbers = #tpu.dot_dimension_numbers<[1], [0], [0], [1], [0, 0, 1, 1], [], []>} : vector<64x128xbf16>, vector<128x128xbf16>, vector<64x128xf32> -> vector<64x128xf32>
    %79 = arith.addf %73, %78 : vector<64x128xf32>
    %c2_95 = arith.constant 2 : index
    %c8_96 = arith.constant 8 : index
    %c0_97 = arith.constant 0 : index
    %80 = vector.load %arg13[%c2_95, %c8_96, %c0_97] : memref<10x24x128xbf16, #tpu.memory_space<vmem>>, vector<8x8x128xbf16>
    %81 = vector.shape_cast %80 : vector<8x8x128xbf16> to vector<64x128xbf16>
    %c7_98 = arith.constant 7 : index
    %c0_99 = arith.constant 0 : index
    %c0_100 = arith.constant 0 : index
    %82 = vector.load %arg2[%c7_98, %c0_99, %c0_100] : memref<9x128x128xbf16, #tpu.memory_space<vmem>>, vector<1x128x128xbf16>
    %83 = vector.shape_cast %82 : vector<1x128x128xbf16> to vector<128x128xbf16>
    %cst_101 = arith.constant dense<0.000000e+00> : vector<64x128xf32>
    %84 = tpu.matmul %81, %83, %cst_101 {dimension_numbers = #tpu.dot_dimension_numbers<[1], [0], [0], [1], [0, 0, 1, 1], [], []>} : vector<64x128xbf16>, vector<128x128xbf16>, vector<64x128xf32> -> vector<64x128xf32>
    %85 = arith.addf %79, %84 : vector<64x128xf32>
    %c2_102 = arith.constant 2 : index
    %c9_103 = arith.constant 9 : index
    %c0_104 = arith.constant 0 : index
    %86 = vector.load %arg13[%c2_102, %c9_103, %c0_104] : memref<10x24x128xbf16, #tpu.memory_space<vmem>>, vector<8x8x128xbf16>
    %87 = vector.shape_cast %86 : vector<8x8x128xbf16> to vector<64x128xbf16>
    %c8_105 = arith.constant 8 : index
    %c0_106 = arith.constant 0 : index
    %c0_107 = arith.constant 0 : index
    %88 = vector.load %arg2[%c8_105, %c0_106, %c0_107] : memref<9x128x128xbf16, #tpu.memory_space<vmem>>, vector<1x128x128xbf16>
    %89 = vector.shape_cast %88 : vector<1x128x128xbf16> to vector<128x128xbf16>
    %cst_108 = arith.constant dense<0.000000e+00> : vector<64x128xf32>
    %90 = tpu.matmul %87, %89, %cst_108 {dimension_numbers = #tpu.dot_dimension_numbers<[1], [0], [0], [1], [0, 0, 1, 1], [], []>} : vector<64x128xbf16>, vector<128x128xbf16>, vector<64x128xf32> -> vector<64x128xf32>
    %91 = arith.addf %85, %90 : vector<64x128xf32>
    %c0_109 = arith.constant 0 : index
    %c0_110 = arith.constant 0 : index
    %92 = vector.load %arg3[%c0_109, %c0_110] : memref<1x128xf32, #tpu.memory_space<vmem>>, vector<1x128xf32>
    %93 = vector.broadcast %92 : vector<1x128xf32> to vector<64x128xf32>
    %94 = arith.addf %91, %93 : vector<64x128xf32>
    %cst_111 = arith.constant 0.000000e+00 : f32
    %95 = vector.broadcast %cst_111 : f32 to vector<64x128xf32>
    %96 = arith.maximumf %94, %95 : vector<64x128xf32>
    %97 = vector.shape_cast %96 : vector<64x128xf32> to vector<8x8x128xf32>
    %98 = arith.truncf %97 : vector<8x8x128xf32> to vector<8x8x128xbf16>
    %c1_112 = arith.constant 1 : index
    %c8_113 = arith.constant 8 : index
    %c0_114 = arith.constant 0 : index
    %99 = vector.load %arg13[%c1_112, %c8_113, %c0_114] : memref<10x24x128xbf16, #tpu.memory_space<vmem>>, vector<8x8x128xbf16>
    tpu.vector_store %arg13[%c1_112, %c8_113, %c0_114], %98 {strides = array<i32>} : memref<10x24x128xbf16, #tpu.memory_space<vmem>>, vector<8x8x128xbf16>,
    %cst_115 = arith.constant 0.000000e+00 : f32
    %100 = vector.broadcast %cst_115 : f32 to vector<64x128xf32>
    %c0_116 = arith.constant 0 : index
    %c7_117 = arith.constant 7 : index
    %c0_118 = arith.constant 0 : index
    %101 = vector.load %arg13[%c0_116, %c7_117, %c0_118] : memref<10x24x128xbf16, #tpu.memory_space<vmem>>, vector<8x8x128xbf16>
    %102 = vector.shape_cast %101 : vector<8x8x128xbf16> to vector<64x128xbf16>
    %c0_119 = arith.constant 0 : index
    %c0_120 = arith.constant 0 : index
    %c0_121 = arith.constant 0 : index
    %103 = vector.load %arg4[%c0_119, %c0_120, %c0_121] : memref<9x128x128xbf16, #tpu.memory_space<vmem>>, vector<1x128x128xbf16>
    %104 = vector.shape_cast %103 : vector<1x128x128xbf16> to vector<128x128xbf16>
    %cst_122 = arith.constant dense<0.000000e+00> : vector<64x128xf32>
    %105 = tpu.matmul %102, %104, %cst_122 {dimension_numbers = #tpu.dot_dimension_numbers<[1], [0], [0], [1], [0, 0, 1, 1], [], []>} : vector<64x128xbf16>, vector<128x128xbf16>, vector<64x128xf32> -> vector<64x128xf32>
    %106 = arith.addf %100, %105 : vector<64x128xf32>
    %c0_123 = arith.constant 0 : index
    %c8_124 = arith.constant 8 : index
    %c0_125 = arith.constant 0 : index
    %107 = vector.load %arg13[%c0_123, %c8_124, %c0_125] : memref<10x24x128xbf16, #tpu.memory_space<vmem>>, vector<8x8x128xbf16>
    %108 = vector.shape_cast %107 : vector<8x8x128xbf16> to vector<64x128xbf16>
    %c1_126 = arith.constant 1 : index
    %c0_127 = arith.constant 0 : index
    %c0_128 = arith.constant 0 : index
    %109 = vector.load %arg4[%c1_126, %c0_127, %c0_128] : memref<9x128x128xbf16, #tpu.memory_space<vmem>>, vector<1x128x128xbf16>
    %110 = vector.shape_cast %109 : vector<1x128x128xbf16> to vector<128x128xbf16>
    %cst_129 = arith.constant dense<0.000000e+00> : vector<64x128xf32>
    %111 = tpu.matmul %108, %110, %cst_129 {dimension_numbers = #tpu.dot_dimension_numbers<[1], [0], [0], [1], [0, 0, 1, 1], [], []>} : vector<64x128xbf16>, vector<128x128xbf16>, vector<64x128xf32> -> vector<64x128xf32>
    %112 = arith.addf %106, %111 : vector<64x128xf32>
    %c0_130 = arith.constant 0 : index
    %c9_131 = arith.constant 9 : index
    %c0_132 = arith.constant 0 : index
    %113 = vector.load %arg13[%c0_130, %c9_131, %c0_132] : memref<10x24x128xbf16, #tpu.memory_space<vmem>>, vector<8x8x128xbf16>
    %114 = vector.shape_cast %113 : vector<8x8x128xbf16> to vector<64x128xbf16>
    %c2_133 = arith.constant 2 : index
    %c0_134 = arith.constant 0 : index
    %c0_135 = arith.constant 0 : index
    %115 = vector.load %arg4[%c2_133, %c0_134, %c0_135] : memref<9x128x128xbf16, #tpu.memory_space<vmem>>, vector<1x128x128xbf16>
    %116 = vector.shape_cast %115 : vector<1x128x128xbf16> to vector<128x128xbf16>
    %cst_136 = arith.constant dense<0.000000e+00> : vector<64x128xf32>
    %117 = tpu.matmul %114, %116, %cst_136 {dimension_numbers = #tpu.dot_dimension_numbers<[1], [0], [0], [1], [0, 0, 1, 1], [], []>} : vector<64x128xbf16>, vector<128x128xbf16>, vector<64x128xf32> -> vector<64x128xf32>
    %118 = arith.addf %112, %117 : vector<64x128xf32>
    %c1_137 = arith.constant 1 : index
    %c7_138 = arith.constant 7 : index
    %c0_139 = arith.constant 0 : index
    %119 = vector.load %arg13[%c1_137, %c7_138, %c0_139] : memref<10x24x128xbf16, #tpu.memory_space<vmem>>, vector<8x8x128xbf16>
    %120 = vector.shape_cast %119 : vector<8x8x128xbf16> to vector<64x128xbf16>
    %c3_140 = arith.constant 3 : index
    %c0_141 = arith.constant 0 : index
    %c0_142 = arith.constant 0 : index
    %121 = vector.load %arg4[%c3_140, %c0_141, %c0_142] : memref<9x128x128xbf16, #tpu.memory_space<vmem>>, vector<1x128x128xbf16>
    %122 = vector.shape_cast %121 : vector<1x128x128xbf16> to vector<128x128xbf16>
    %cst_143 = arith.constant dense<0.000000e+00> : vector<64x128xf32>
    %123 = tpu.matmul %120, %122, %cst_143 {dimension_numbers = #tpu.dot_dimension_numbers<[1], [0], [0], [1], [0, 0, 1, 1], [], []>} : vector<64x128xbf16>, vector<128x128xbf16>, vector<64x128xf32> -> vector<64x128xf32>
    %124 = arith.addf %118, %123 : vector<64x128xf32>
    %c1_144 = arith.constant 1 : index
    %c8_145 = arith.constant 8 : index
    %c0_146 = arith.constant 0 : index
    %125 = vector.load %arg13[%c1_144, %c8_145, %c0_146] : memref<10x24x128xbf16, #tpu.memory_space<vmem>>, vector<8x8x128xbf16>
    %126 = vector.shape_cast %125 : vector<8x8x128xbf16> to vector<64x128xbf16>
    %c4_147 = arith.constant 4 : index
    %c0_148 = arith.constant 0 : index
    %c0_149 = arith.constant 0 : index
    %127 = vector.load %arg4[%c4_147, %c0_148, %c0_149] : memref<9x128x128xbf16, #tpu.memory_space<vmem>>, vector<1x128x128xbf16>
    %128 = vector.shape_cast %127 : vector<1x128x128xbf16> to vector<128x128xbf16>
    %cst_150 = arith.constant dense<0.000000e+00> : vector<64x128xf32>
    %129 = tpu.matmul %126, %128, %cst_150 {dimension_numbers = #tpu.dot_dimension_numbers<[1], [0], [0], [1], [0, 0, 1, 1], [], []>} : vector<64x128xbf16>, vector<128x128xbf16>, vector<64x128xf32> -> vector<64x128xf32>
    %130 = arith.addf %124, %129 : vector<64x128xf32>
    %c1_151 = arith.constant 1 : index
    %c9_152 = arith.constant 9 : index
    %c0_153 = arith.constant 0 : index
    %131 = vector.load %arg13[%c1_151, %c9_152, %c0_153] : memref<10x24x128xbf16, #tpu.memory_space<vmem>>, vector<8x8x128xbf16>
    %132 = vector.shape_cast %131 : vector<8x8x128xbf16> to vector<64x128xbf16>
    %c5_154 = arith.constant 5 : index
    %c0_155 = arith.constant 0 : index
    %c0_156 = arith.constant 0 : index
    %133 = vector.load %arg4[%c5_154, %c0_155, %c0_156] : memref<9x128x128xbf16, #tpu.memory_space<vmem>>, vector<1x128x128xbf16>
    %134 = vector.shape_cast %133 : vector<1x128x128xbf16> to vector<128x128xbf16>
    %cst_157 = arith.constant dense<0.000000e+00> : vector<64x128xf32>
    %135 = tpu.matmul %132, %134, %cst_157 {dimension_numbers = #tpu.dot_dimension_numbers<[1], [0], [0], [1], [0, 0, 1, 1], [], []>} : vector<64x128xbf16>, vector<128x128xbf16>, vector<64x128xf32> -> vector<64x128xf32>
    %136 = arith.addf %130, %135 : vector<64x128xf32>
    %c2_158 = arith.constant 2 : index
    %c7_159 = arith.constant 7 : index
    %c0_160 = arith.constant 0 : index
    %137 = vector.load %arg13[%c2_158, %c7_159, %c0_160] : memref<10x24x128xbf16, #tpu.memory_space<vmem>>, vector<8x8x128xbf16>
    %138 = vector.shape_cast %137 : vector<8x8x128xbf16> to vector<64x128xbf16>
    %c6_161 = arith.constant 6 : index
    %c0_162 = arith.constant 0 : index
    %c0_163 = arith.constant 0 : index
    %139 = vector.load %arg4[%c6_161, %c0_162, %c0_163] : memref<9x128x128xbf16, #tpu.memory_space<vmem>>, vector<1x128x128xbf16>
    %140 = vector.shape_cast %139 : vector<1x128x128xbf16> to vector<128x128xbf16>
    %cst_164 = arith.constant dense<0.000000e+00> : vector<64x128xf32>
    %141 = tpu.matmul %138, %140, %cst_164 {dimension_numbers = #tpu.dot_dimension_numbers<[1], [0], [0], [1], [0, 0, 1, 1], [], []>} : vector<64x128xbf16>, vector<128x128xbf16>, vector<64x128xf32> -> vector<64x128xf32>
    %142 = arith.addf %136, %141 : vector<64x128xf32>
    %c2_165 = arith.constant 2 : index
    %c8_166 = arith.constant 8 : index
    %c0_167 = arith.constant 0 : index
    %143 = vector.load %arg13[%c2_165, %c8_166, %c0_167] : memref<10x24x128xbf16, #tpu.memory_space<vmem>>, vector<8x8x128xbf16>
    %144 = vector.shape_cast %143 : vector<8x8x128xbf16> to vector<64x128xbf16>
    %c7_168 = arith.constant 7 : index
    %c0_169 = arith.constant 0 : index
    %c0_170 = arith.constant 0 : index
    %145 = vector.load %arg4[%c7_168, %c0_169, %c0_170] : memref<9x128x128xbf16, #tpu.memory_space<vmem>>, vector<1x128x128xbf16>
    %146 = vector.shape_cast %145 : vector<1x128x128xbf16> to vector<128x128xbf16>
    %cst_171 = arith.constant dense<0.000000e+00> : vector<64x128xf32>
    %147 = tpu.matmul %144, %146, %cst_171 {dimension_numbers = #tpu.dot_dimension_numbers<[1], [0], [0], [1], [0, 0, 1, 1], [], []>} : vector<64x128xbf16>, vector<128x128xbf16>, vector<64x128xf32> -> vector<64x128xf32>
    %148 = arith.addf %142, %147 : vector<64x128xf32>
    %c2_172 = arith.constant 2 : index
    %c9_173 = arith.constant 9 : index
    %c0_174 = arith.constant 0 : index
    %149 = vector.load %arg13[%c2_172, %c9_173, %c0_174] : memref<10x24x128xbf16, #tpu.memory_space<vmem>>, vector<8x8x128xbf16>
    %150 = vector.shape_cast %149 : vector<8x8x128xbf16> to vector<64x128xbf16>
    %c8_175 = arith.constant 8 : index
    %c0_176 = arith.constant 0 : index
    %c0_177 = arith.constant 0 : index
    %151 = vector.load %arg4[%c8_175, %c0_176, %c0_177] : memref<9x128x128xbf16, #tpu.memory_space<vmem>>, vector<1x128x128xbf16>
    %152 = vector.shape_cast %151 : vector<1x128x128xbf16> to vector<128x128xbf16>
    %cst_178 = arith.constant dense<0.000000e+00> : vector<64x128xf32>
    %153 = tpu.matmul %150, %152, %cst_178 {dimension_numbers = #tpu.dot_dimension_numbers<[1], [0], [0], [1], [0, 0, 1, 1], [], []>} : vector<64x128xbf16>, vector<128x128xbf16>, vector<64x128xf32> -> vector<64x128xf32>
    %154 = arith.addf %148, %153 : vector<64x128xf32>
    %c0_179 = arith.constant 0 : index
    %c0_180 = arith.constant 0 : index
    %155 = vector.load %arg5[%c0_179, %c0_180] : memref<1x128xf32, #tpu.memory_space<vmem>>, vector<1x128xf32>
    %156 = vector.broadcast %155 : vector<1x128xf32> to vector<64x128xf32>
    %157 = arith.addf %154, %156 : vector<64x128xf32>
    %158 = arith.addf %157, %11 : vector<64x128xf32>
    %cst_181 = arith.constant 0.000000e+00 : f32
    %159 = vector.broadcast %cst_181 : f32 to vector<64x128xf32>
    %160 = arith.maximumf %158, %159 : vector<64x128xf32>
    %161 = arith.truncf %160 : vector<64x128xf32> to vector<64x128xbf16>
    %c0_182 = arith.constant 0 : index
    %c0_183 = arith.constant 0 : index
    %162 = vector.load %arg6[%c0_182, %c0_183] : memref<128x128xbf16, #tpu.memory_space<vmem>>, vector<128x128xbf16>
    %cst_184 = arith.constant dense<0.000000e+00> : vector<64x128xf32>
    %163 = tpu.matmul %161, %162, %cst_184 {dimension_numbers = #tpu.dot_dimension_numbers<[1], [0], [0], [1], [0, 0, 1, 1], [], []>} : vector<64x128xbf16>, vector<128x128xbf16>, vector<64x128xf32> -> vector<64x128xf32>
    %c0_185 = arith.constant 0 : index
    %c0_186 = arith.constant 0 : index
    %164 = vector.load %arg7[%c0_185, %c0_186] : memref<1x128xf32, #tpu.memory_space<vmem>>, vector<1x128xf32>
    %165 = vector.broadcast %164 : vector<1x128xf32> to vector<64x128xf32>
    %166 = arith.addf %163, %165 : vector<64x128xf32>
    %167 = vector.shape_cast %166 : vector<64x128xf32> to vector<8x8x128xf32>
    %168 = arith.truncf %167 : vector<8x8x128xf32> to vector<8x8x128xbf16>
    %c1_187 = arith.constant 1 : index
    %c8_188 = arith.constant 8 : index
    %c0_189 = arith.constant 0 : index
    %169 = vector.load %arg14[%c1_187, %c8_188, %c0_189] : memref<10x24x128xbf16, #tpu.memory_space<vmem>>, vector<8x8x128xbf16>
    tpu.vector_store %arg14[%c1_187, %c8_188, %c0_189], %168 {strides = array<i32>} : memref<10x24x128xbf16, #tpu.memory_space<vmem>>, vector<8x8x128xbf16>,
    %cst_190 = arith.constant 0.000000e+00 : f32
    %170 = vector.broadcast %cst_190 : f32 to vector<64x128xf32>
    %c0_191 = arith.constant 0 : index
    %c7_192 = arith.constant 7 : index
    %c0_193 = arith.constant 0 : index
    %171 = vector.load %arg14[%c0_191, %c7_192, %c0_193] : memref<10x24x128xbf16, #tpu.memory_space<vmem>>, vector<8x8x128xbf16>
    %172 = vector.shape_cast %171 : vector<8x8x128xbf16> to vector<64x128xbf16>
    %c0_194 = arith.constant 0 : index
    %c0_195 = arith.constant 0 : index
    %c0_196 = arith.constant 0 : index
    %173 = vector.load %arg8[%c0_194, %c0_195, %c0_196] : memref<9x128x128xbf16, #tpu.memory_space<vmem>>, vector<1x128x128xbf16>
    %174 = vector.shape_cast %173 : vector<1x128x128xbf16> to vector<128x128xbf16>
    %cst_197 = arith.constant dense<0.000000e+00> : vector<64x128xf32>
    %175 = tpu.matmul %172, %174, %cst_197 {dimension_numbers = #tpu.dot_dimension_numbers<[1], [0], [0], [1], [0, 0, 1, 1], [], []>} : vector<64x128xbf16>, vector<128x128xbf16>, vector<64x128xf32> -> vector<64x128xf32>
    %176 = arith.addf %170, %175 : vector<64x128xf32>
    %c0_198 = arith.constant 0 : index
    %c8_199 = arith.constant 8 : index
    %c0_200 = arith.constant 0 : index
    %177 = vector.load %arg14[%c0_198, %c8_199, %c0_200] : memref<10x24x128xbf16, #tpu.memory_space<vmem>>, vector<8x8x128xbf16>
    %178 = vector.shape_cast %177 : vector<8x8x128xbf16> to vector<64x128xbf16>
    %c1_201 = arith.constant 1 : index
    %c0_202 = arith.constant 0 : index
    %c0_203 = arith.constant 0 : index
    %179 = vector.load %arg8[%c1_201, %c0_202, %c0_203] : memref<9x128x128xbf16, #tpu.memory_space<vmem>>, vector<1x128x128xbf16>
    %180 = vector.shape_cast %179 : vector<1x128x128xbf16> to vector<128x128xbf16>
    %cst_204 = arith.constant dense<0.000000e+00> : vector<64x128xf32>
    %181 = tpu.matmul %178, %180, %cst_204 {dimension_numbers = #tpu.dot_dimension_numbers<[1], [0], [0], [1], [0, 0, 1, 1], [], []>} : vector<64x128xbf16>, vector<128x128xbf16>, vector<64x128xf32> -> vector<64x128xf32>
    %182 = arith.addf %176, %181 : vector<64x128xf32>
    %c0_205 = arith.constant 0 : index
    %c9_206 = arith.constant 9 : index
    %c0_207 = arith.constant 0 : index
    %183 = vector.load %arg14[%c0_205, %c9_206, %c0_207] : memref<10x24x128xbf16, #tpu.memory_space<vmem>>, vector<8x8x128xbf16>
    %184 = vector.shape_cast %183 : vector<8x8x128xbf16> to vector<64x128xbf16>
    %c2_208 = arith.constant 2 : index
    %c0_209 = arith.constant 0 : index
    %c0_210 = arith.constant 0 : index
    %185 = vector.load %arg8[%c2_208, %c0_209, %c0_210] : memref<9x128x128xbf16, #tpu.memory_space<vmem>>, vector<1x128x128xbf16>
    %186 = vector.shape_cast %185 : vector<1x128x128xbf16> to vector<128x128xbf16>
    %cst_211 = arith.constant dense<0.000000e+00> : vector<64x128xf32>
    %187 = tpu.matmul %184, %186, %cst_211 {dimension_numbers = #tpu.dot_dimension_numbers<[1], [0], [0], [1], [0, 0, 1, 1], [], []>} : vector<64x128xbf16>, vector<128x128xbf16>, vector<64x128xf32> -> vector<64x128xf32>
    %188 = arith.addf %182, %187 : vector<64x128xf32>
    %c1_212 = arith.constant 1 : index
    %c7_213 = arith.constant 7 : index
    %c0_214 = arith.constant 0 : index
    %189 = vector.load %arg14[%c1_212, %c7_213, %c0_214] : memref<10x24x128xbf16, #tpu.memory_space<vmem>>, vector<8x8x128xbf16>
    %190 = vector.shape_cast %189 : vector<8x8x128xbf16> to vector<64x128xbf16>
    %c3_215 = arith.constant 3 : index
    %c0_216 = arith.constant 0 : index
    %c0_217 = arith.constant 0 : index
    %191 = vector.load %arg8[%c3_215, %c0_216, %c0_217] : memref<9x128x128xbf16, #tpu.memory_space<vmem>>, vector<1x128x128xbf16>
    %192 = vector.shape_cast %191 : vector<1x128x128xbf16> to vector<128x128xbf16>
    %cst_218 = arith.constant dense<0.000000e+00> : vector<64x128xf32>
    %193 = tpu.matmul %190, %192, %cst_218 {dimension_numbers = #tpu.dot_dimension_numbers<[1], [0], [0], [1], [0, 0, 1, 1], [], []>} : vector<64x128xbf16>, vector<128x128xbf16>, vector<64x128xf32> -> vector<64x128xf32>
    %194 = arith.addf %188, %193 : vector<64x128xf32>
    %c1_219 = arith.constant 1 : index
    %c8_220 = arith.constant 8 : index
    %c0_221 = arith.constant 0 : index
    %195 = vector.load %arg14[%c1_219, %c8_220, %c0_221] : memref<10x24x128xbf16, #tpu.memory_space<vmem>>, vector<8x8x128xbf16>
    %196 = vector.shape_cast %195 : vector<8x8x128xbf16> to vector<64x128xbf16>
    %c4_222 = arith.constant 4 : index
    %c0_223 = arith.constant 0 : index
    %c0_224 = arith.constant 0 : index
    %197 = vector.load %arg8[%c4_222, %c0_223, %c0_224] : memref<9x128x128xbf16, #tpu.memory_space<vmem>>, vector<1x128x128xbf16>
    %198 = vector.shape_cast %197 : vector<1x128x128xbf16> to vector<128x128xbf16>
    %cst_225 = arith.constant dense<0.000000e+00> : vector<64x128xf32>
    %199 = tpu.matmul %196, %198, %cst_225 {dimension_numbers = #tpu.dot_dimension_numbers<[1], [0], [0], [1], [0, 0, 1, 1], [], []>} : vector<64x128xbf16>, vector<128x128xbf16>, vector<64x128xf32> -> vector<64x128xf32>
    %200 = arith.addf %194, %199 : vector<64x128xf32>
    %c1_226 = arith.constant 1 : index
    %c9_227 = arith.constant 9 : index
    %c0_228 = arith.constant 0 : index
    %201 = vector.load %arg14[%c1_226, %c9_227, %c0_228] : memref<10x24x128xbf16, #tpu.memory_space<vmem>>, vector<8x8x128xbf16>
    %202 = vector.shape_cast %201 : vector<8x8x128xbf16> to vector<64x128xbf16>
    %c5_229 = arith.constant 5 : index
    %c0_230 = arith.constant 0 : index
    %c0_231 = arith.constant 0 : index
    %203 = vector.load %arg8[%c5_229, %c0_230, %c0_231] : memref<9x128x128xbf16, #tpu.memory_space<vmem>>, vector<1x128x128xbf16>
    %204 = vector.shape_cast %203 : vector<1x128x128xbf16> to vector<128x128xbf16>
    %cst_232 = arith.constant dense<0.000000e+00> : vector<64x128xf32>
    %205 = tpu.matmul %202, %204, %cst_232 {dimension_numbers = #tpu.dot_dimension_numbers<[1], [0], [0], [1], [0, 0, 1, 1], [], []>} : vector<64x128xbf16>, vector<128x128xbf16>, vector<64x128xf32> -> vector<64x128xf32>
    %206 = arith.addf %200, %205 : vector<64x128xf32>
    %c2_233 = arith.constant 2 : index
    %c7_234 = arith.constant 7 : index
    %c0_235 = arith.constant 0 : index
    %207 = vector.load %arg14[%c2_233, %c7_234, %c0_235] : memref<10x24x128xbf16, #tpu.memory_space<vmem>>, vector<8x8x128xbf16>
    %208 = vector.shape_cast %207 : vector<8x8x128xbf16> to vector<64x128xbf16>
    %c6_236 = arith.constant 6 : index
    %c0_237 = arith.constant 0 : index
    %c0_238 = arith.constant 0 : index
    %209 = vector.load %arg8[%c6_236, %c0_237, %c0_238] : memref<9x128x128xbf16, #tpu.memory_space<vmem>>, vector<1x128x128xbf16>
    %210 = vector.shape_cast %209 : vector<1x128x128xbf16> to vector<128x128xbf16>
    %cst_239 = arith.constant dense<0.000000e+00> : vector<64x128xf32>
    %211 = tpu.matmul %208, %210, %cst_239 {dimension_numbers = #tpu.dot_dimension_numbers<[1], [0], [0], [1], [0, 0, 1, 1], [], []>} : vector<64x128xbf16>, vector<128x128xbf16>, vector<64x128xf32> -> vector<64x128xf32>
    %212 = arith.addf %206, %211 : vector<64x128xf32>
    %c2_240 = arith.constant 2 : index
    %c8_241 = arith.constant 8 : index
    %c0_242 = arith.constant 0 : index
    %213 = vector.load %arg14[%c2_240, %c8_241, %c0_242] : memref<10x24x128xbf16, #tpu.memory_space<vmem>>, vector<8x8x128xbf16>
    %214 = vector.shape_cast %213 : vector<8x8x128xbf16> to vector<64x128xbf16>
    %c7_243 = arith.constant 7 : index
    %c0_244 = arith.constant 0 : index
    %c0_245 = arith.constant 0 : index
    %215 = vector.load %arg8[%c7_243, %c0_244, %c0_245] : memref<9x128x128xbf16, #tpu.memory_space<vmem>>, vector<1x128x128xbf16>
    %216 = vector.shape_cast %215 : vector<1x128x128xbf16> to vector<128x128xbf16>
    %cst_246 = arith.constant dense<0.000000e+00> : vector<64x128xf32>
    %217 = tpu.matmul %214, %216, %cst_246 {dimension_numbers = #tpu.dot_dimension_numbers<[1], [0], [0], [1], [0, 0, 1, 1], [], []>} : vector<64x128xbf16>, vector<128x128xbf16>, vector<64x128xf32> -> vector<64x128xf32>
    %218 = arith.addf %212, %217 : vector<64x128xf32>
    %c2_247 = arith.constant 2 : index
    %c9_248 = arith.constant 9 : index
    %c0_249 = arith.constant 0 : index
    %219 = vector.load %arg14[%c2_247, %c9_248, %c0_249] : memref<10x24x128xbf16, #tpu.memory_space<vmem>>, vector<8x8x128xbf16>
    %220 = vector.shape_cast %219 : vector<8x8x128xbf16> to vector<64x128xbf16>
    %c8_250 = arith.constant 8 : index
    %c0_251 = arith.constant 0 : index
    %c0_252 = arith.constant 0 : index
    %221 = vector.load %arg8[%c8_250, %c0_251, %c0_252] : memref<9x128x128xbf16, #tpu.memory_space<vmem>>, vector<1x128x128xbf16>
    %222 = vector.shape_cast %221 : vector<1x128x128xbf16> to vector<128x128xbf16>
    %cst_253 = arith.constant dense<0.000000e+00> : vector<64x128xf32>
    %223 = tpu.matmul %220, %222, %cst_253 {dimension_numbers = #tpu.dot_dimension_numbers<[1], [0], [0], [1], [0, 0, 1, 1], [], []>} : vector<64x128xbf16>, vector<128x128xbf16>, vector<64x128xf32> -> vector<64x128xf32>
    %224 = arith.addf %218, %223 : vector<64x128xf32>
    %c0_254 = arith.constant 0 : index
    %c0_255 = arith.constant 0 : index
    %225 = vector.load %arg9[%c0_254, %c0_255] : memref<1x128xf32, #tpu.memory_space<vmem>>, vector<1x128xf32>
    %226 = vector.broadcast %225 : vector<1x128xf32> to vector<64x128xf32>
    %227 = arith.addf %224, %226 : vector<64x128xf32>
    %cst_256 = arith.constant 0.000000e+00 : f32
    %228 = vector.broadcast %cst_256 : f32 to vector<64x128xf32>
    %229 = arith.maximumf %227, %228 : vector<64x128xf32>
    %230 = vector.shape_cast %229 : vector<64x128xf32> to vector<8x8x128xf32>
    %231 = arith.truncf %230 : vector<8x8x128xf32> to vector<8x8x128xbf16>
    %c1_257 = arith.constant 1 : index
    %c8_258 = arith.constant 8 : index
    %c0_259 = arith.constant 0 : index
    %232 = vector.load %arg14[%c1_257, %c8_258, %c0_259] : memref<10x24x128xbf16, #tpu.memory_space<vmem>>, vector<8x8x128xbf16>
    tpu.vector_store %arg14[%c1_257, %c8_258, %c0_259], %231 {strides = array<i32>} : memref<10x24x128xbf16, #tpu.memory_space<vmem>>, vector<8x8x128xbf16>,
    %cst_260 = arith.constant 0.000000e+00 : f32
    %233 = vector.broadcast %cst_260 : f32 to vector<64x128xf32>
    %c0_261 = arith.constant 0 : index
    %c7_262 = arith.constant 7 : index
    %c0_263 = arith.constant 0 : index
    %234 = vector.load %arg14[%c0_261, %c7_262, %c0_263] : memref<10x24x128xbf16, #tpu.memory_space<vmem>>, vector<8x8x128xbf16>
    %235 = vector.shape_cast %234 : vector<8x8x128xbf16> to vector<64x128xbf16>
    %c0_264 = arith.constant 0 : index
    %c0_265 = arith.constant 0 : index
    %c0_266 = arith.constant 0 : index
    %236 = vector.load %arg10[%c0_264, %c0_265, %c0_266] : memref<9x128x128xbf16, #tpu.memory_space<vmem>>, vector<1x128x128xbf16>
    %237 = vector.shape_cast %236 : vector<1x128x128xbf16> to vector<128x128xbf16>
    %cst_267 = arith.constant dense<0.000000e+00> : vector<64x128xf32>
    %238 = tpu.matmul %235, %237, %cst_267 {dimension_numbers = #tpu.dot_dimension_numbers<[1], [0], [0], [1], [0, 0, 1, 1], [], []>} : vector<64x128xbf16>, vector<128x128xbf16>, vector<64x128xf32> -> vector<64x128xf32>
    %239 = arith.addf %233, %238 : vector<64x128xf32>
    %c0_268 = arith.constant 0 : index
    %c8_269 = arith.constant 8 : index
    %c0_270 = arith.constant 0 : index
    %240 = vector.load %arg14[%c0_268, %c8_269, %c0_270] : memref<10x24x128xbf16, #tpu.memory_space<vmem>>, vector<8x8x128xbf16>
    %241 = vector.shape_cast %240 : vector<8x8x128xbf16> to vector<64x128xbf16>
    %c1_271 = arith.constant 1 : index
    %c0_272 = arith.constant 0 : index
    %c0_273 = arith.constant 0 : index
    %242 = vector.load %arg10[%c1_271, %c0_272, %c0_273] : memref<9x128x128xbf16, #tpu.memory_space<vmem>>, vector<1x128x128xbf16>
    %243 = vector.shape_cast %242 : vector<1x128x128xbf16> to vector<128x128xbf16>
    %cst_274 = arith.constant dense<0.000000e+00> : vector<64x128xf32>
    %244 = tpu.matmul %241, %243, %cst_274 {dimension_numbers = #tpu.dot_dimension_numbers<[1], [0], [0], [1], [0, 0, 1, 1], [], []>} : vector<64x128xbf16>, vector<128x128xbf16>, vector<64x128xf32> -> vector<64x128xf32>
    %245 = arith.addf %239, %244 : vector<64x128xf32>
    %c0_275 = arith.constant 0 : index
    %c9_276 = arith.constant 9 : index
    %c0_277 = arith.constant 0 : index
    %246 = vector.load %arg14[%c0_275, %c9_276, %c0_277] : memref<10x24x128xbf16, #tpu.memory_space<vmem>>, vector<8x8x128xbf16>
    %247 = vector.shape_cast %246 : vector<8x8x128xbf16> to vector<64x128xbf16>
    %c2_278 = arith.constant 2 : index
    %c0_279 = arith.constant 0 : index
    %c0_280 = arith.constant 0 : index
    %248 = vector.load %arg10[%c2_278, %c0_279, %c0_280] : memref<9x128x128xbf16, #tpu.memory_space<vmem>>, vector<1x128x128xbf16>
    %249 = vector.shape_cast %248 : vector<1x128x128xbf16> to vector<128x128xbf16>
    %cst_281 = arith.constant dense<0.000000e+00> : vector<64x128xf32>
    %250 = tpu.matmul %247, %249, %cst_281 {dimension_numbers = #tpu.dot_dimension_numbers<[1], [0], [0], [1], [0, 0, 1, 1], [], []>} : vector<64x128xbf16>, vector<128x128xbf16>, vector<64x128xf32> -> vector<64x128xf32>
    %251 = arith.addf %245, %250 : vector<64x128xf32>
    %c1_282 = arith.constant 1 : index
    %c7_283 = arith.constant 7 : index
    %c0_284 = arith.constant 0 : index
    %252 = vector.load %arg14[%c1_282, %c7_283, %c0_284] : memref<10x24x128xbf16, #tpu.memory_space<vmem>>, vector<8x8x128xbf16>
    %253 = vector.shape_cast %252 : vector<8x8x128xbf16> to vector<64x128xbf16>
    %c3_285 = arith.constant 3 : index
    %c0_286 = arith.constant 0 : index
    %c0_287 = arith.constant 0 : index
    %254 = vector.load %arg10[%c3_285, %c0_286, %c0_287] : memref<9x128x128xbf16, #tpu.memory_space<vmem>>, vector<1x128x128xbf16>
    %255 = vector.shape_cast %254 : vector<1x128x128xbf16> to vector<128x128xbf16>
    %cst_288 = arith.constant dense<0.000000e+00> : vector<64x128xf32>
    %256 = tpu.matmul %253, %255, %cst_288 {dimension_numbers = #tpu.dot_dimension_numbers<[1], [0], [0], [1], [0, 0, 1, 1], [], []>} : vector<64x128xbf16>, vector<128x128xbf16>, vector<64x128xf32> -> vector<64x128xf32>
    %257 = arith.addf %251, %256 : vector<64x128xf32>
    %c1_289 = arith.constant 1 : index
    %c8_290 = arith.constant 8 : index
    %c0_291 = arith.constant 0 : index
    %258 = vector.load %arg14[%c1_289, %c8_290, %c0_291] : memref<10x24x128xbf16, #tpu.memory_space<vmem>>, vector<8x8x128xbf16>
    %259 = vector.shape_cast %258 : vector<8x8x128xbf16> to vector<64x128xbf16>
    %c4_292 = arith.constant 4 : index
    %c0_293 = arith.constant 0 : index
    %c0_294 = arith.constant 0 : index
    %260 = vector.load %arg10[%c4_292, %c0_293, %c0_294] : memref<9x128x128xbf16, #tpu.memory_space<vmem>>, vector<1x128x128xbf16>
    %261 = vector.shape_cast %260 : vector<1x128x128xbf16> to vector<128x128xbf16>
    %cst_295 = arith.constant dense<0.000000e+00> : vector<64x128xf32>
    %262 = tpu.matmul %259, %261, %cst_295 {dimension_numbers = #tpu.dot_dimension_numbers<[1], [0], [0], [1], [0, 0, 1, 1], [], []>} : vector<64x128xbf16>, vector<128x128xbf16>, vector<64x128xf32> -> vector<64x128xf32>
    %263 = arith.addf %257, %262 : vector<64x128xf32>
    %c1_296 = arith.constant 1 : index
    %c9_297 = arith.constant 9 : index
    %c0_298 = arith.constant 0 : index
    %264 = vector.load %arg14[%c1_296, %c9_297, %c0_298] : memref<10x24x128xbf16, #tpu.memory_space<vmem>>, vector<8x8x128xbf16>
    %265 = vector.shape_cast %264 : vector<8x8x128xbf16> to vector<64x128xbf16>
    %c5_299 = arith.constant 5 : index
    %c0_300 = arith.constant 0 : index
    %c0_301 = arith.constant 0 : index
    %266 = vector.load %arg10[%c5_299, %c0_300, %c0_301] : memref<9x128x128xbf16, #tpu.memory_space<vmem>>, vector<1x128x128xbf16>
    %267 = vector.shape_cast %266 : vector<1x128x128xbf16> to vector<128x128xbf16>
    %cst_302 = arith.constant dense<0.000000e+00> : vector<64x128xf32>
    %268 = tpu.matmul %265, %267, %cst_302 {dimension_numbers = #tpu.dot_dimension_numbers<[1], [0], [0], [1], [0, 0, 1, 1], [], []>} : vector<64x128xbf16>, vector<128x128xbf16>, vector<64x128xf32> -> vector<64x128xf32>
    %269 = arith.addf %263, %268 : vector<64x128xf32>
    %c2_303 = arith.constant 2 : index
    %c7_304 = arith.constant 7 : index
    %c0_305 = arith.constant 0 : index
    %270 = vector.load %arg14[%c2_303, %c7_304, %c0_305] : memref<10x24x128xbf16, #tpu.memory_space<vmem>>, vector<8x8x128xbf16>
    %271 = vector.shape_cast %270 : vector<8x8x128xbf16> to vector<64x128xbf16>
    %c6_306 = arith.constant 6 : index
    %c0_307 = arith.constant 0 : index
    %c0_308 = arith.constant 0 : index
    %272 = vector.load %arg10[%c6_306, %c0_307, %c0_308] : memref<9x128x128xbf16, #tpu.memory_space<vmem>>, vector<1x128x128xbf16>
    %273 = vector.shape_cast %272 : vector<1x128x128xbf16> to vector<128x128xbf16>
    %cst_309 = arith.constant dense<0.000000e+00> : vector<64x128xf32>
    %274 = tpu.matmul %271, %273, %cst_309 {dimension_numbers = #tpu.dot_dimension_numbers<[1], [0], [0], [1], [0, 0, 1, 1], [], []>} : vector<64x128xbf16>, vector<128x128xbf16>, vector<64x128xf32> -> vector<64x128xf32>
    %275 = arith.addf %269, %274 : vector<64x128xf32>
    %c2_310 = arith.constant 2 : index
    %c8_311 = arith.constant 8 : index
    %c0_312 = arith.constant 0 : index
    %276 = vector.load %arg14[%c2_310, %c8_311, %c0_312] : memref<10x24x128xbf16, #tpu.memory_space<vmem>>, vector<8x8x128xbf16>
    %277 = vector.shape_cast %276 : vector<8x8x128xbf16> to vector<64x128xbf16>
    %c7_313 = arith.constant 7 : index
    %c0_314 = arith.constant 0 : index
    %c0_315 = arith.constant 0 : index
    %278 = vector.load %arg10[%c7_313, %c0_314, %c0_315] : memref<9x128x128xbf16, #tpu.memory_space<vmem>>, vector<1x128x128xbf16>
    %279 = vector.shape_cast %278 : vector<1x128x128xbf16> to vector<128x128xbf16>
    %cst_316 = arith.constant dense<0.000000e+00> : vector<64x128xf32>
    %280 = tpu.matmul %277, %279, %cst_316 {dimension_numbers = #tpu.dot_dimension_numbers<[1], [0], [0], [1], [0, 0, 1, 1], [], []>} : vector<64x128xbf16>, vector<128x128xbf16>, vector<64x128xf32> -> vector<64x128xf32>
    %281 = arith.addf %275, %280 : vector<64x128xf32>
    %c2_317 = arith.constant 2 : index
    %c9_318 = arith.constant 9 : index
    %c0_319 = arith.constant 0 : index
    %282 = vector.load %arg14[%c2_317, %c9_318, %c0_319] : memref<10x24x128xbf16, #tpu.memory_space<vmem>>, vector<8x8x128xbf16>
    %283 = vector.shape_cast %282 : vector<8x8x128xbf16> to vector<64x128xbf16>
    %c8_320 = arith.constant 8 : index
    %c0_321 = arith.constant 0 : index
    %c0_322 = arith.constant 0 : index
    %284 = vector.load %arg10[%c8_320, %c0_321, %c0_322] : memref<9x128x128xbf16, #tpu.memory_space<vmem>>, vector<1x128x128xbf16>
    %285 = vector.shape_cast %284 : vector<1x128x128xbf16> to vector<128x128xbf16>
    %cst_323 = arith.constant dense<0.000000e+00> : vector<64x128xf32>
    %286 = tpu.matmul %283, %285, %cst_323 {dimension_numbers = #tpu.dot_dimension_numbers<[1], [0], [0], [1], [0, 0, 1, 1], [], []>} : vector<64x128xbf16>, vector<128x128xbf16>, vector<64x128xf32> -> vector<64x128xf32>
    %287 = arith.addf %281, %286 : vector<64x128xf32>
    %c0_324 = arith.constant 0 : index
    %c0_325 = arith.constant 0 : index
    %288 = vector.load %arg11[%c0_324, %c0_325] : memref<1x128xf32, #tpu.memory_space<vmem>>, vector<1x128xf32>
    %289 = vector.broadcast %288 : vector<1x128xf32> to vector<64x128xf32>
    %290 = arith.addf %287, %289 : vector<64x128xf32>
    %291 = arith.addf %290, %166 : vector<64x128xf32>
    %cst_326 = arith.constant 0.000000e+00 : f32
    %292 = vector.broadcast %cst_326 : f32 to vector<64x128xf32>
    %293 = arith.maximumf %291, %292 : vector<64x128xf32>
    %294 = vector.shape_cast %293 : vector<64x128xf32> to vector<8x8x128xf32>
    %c0_327 = arith.constant 0 : index
    %c0_328 = arith.constant 0 : index
    %c0_329 = arith.constant 0 : index
    %c0_330 = arith.constant 0 : index
    %295 = vector.load %arg12[%c0_327, %c0_328, %c0_329, %c0_330] : memref<1x8x8x128xf32, #tpu.memory_space<vmem>>, vector<1x8x8x128xf32>
    %296 = vector.shape_cast %295 : vector<1x8x8x128xf32> to vector<8x8x128xf32>
    %297 = vector.shape_cast %294 : vector<8x8x128xf32> to vector<1x8x8x128xf32>
    tpu.vector_store %arg12[%c0_327, %c0_328, %c0_329, %c0_330], %297 {strides = array<i32>} : memref<1x8x8x128xf32, #tpu.memory_space<vmem>>, vector<1x8x8x128xf32>,
    return
  }
  func.func @transform_0(%arg0: i32) -> (i32, i32, i32, i32, i32, i32) {
    %c0_i32 = arith.constant 0 : i32
    %c0_i32_0 = arith.constant 0 : i32
    %c0_i32_1 = arith.constant 0 : i32
    %c0_i32_2 = arith.constant 0 : i32
    %c0_i32_3 = arith.constant 0 : i32
    %c0_i32_4 = arith.constant 0 : i32
    return %arg0, %c0_i32, %c0_i32_0, %c0_i32_1, %c0_i32_2, %c0_i32_3 : i32, i32, i32, i32, i32, i32
  }
  func.func @transform_1(%arg0: i32) -> (i32, i32, i32) {
    %c0_i32 = arith.constant 0 : i32
    %c0_i32_0 = arith.constant 0 : i32
    %c0_i32_1 = arith.constant 0 : i32
    %c0_i32_2 = arith.constant 0 : i32
    return %c0_i32, %c0_i32_0, %c0_i32_1 : i32, i32, i32
  }
  func.func @transform_2(%arg0: i32) -> (i32, i32) {
    %c0_i32 = arith.constant 0 : i32
    %c0_i32_0 = arith.constant 0 : i32
    %c0_i32_1 = arith.constant 0 : i32
    return %c0_i32, %c0_i32_0 : i32, i32
  }
  func.func @transform_3(%arg0: i32) -> (i32, i32, i32) {
    %c0_i32 = arith.constant 0 : i32
    %c0_i32_0 = arith.constant 0 : i32
    %c0_i32_1 = arith.constant 0 : i32
    %c0_i32_2 = arith.constant 0 : i32
    return %c0_i32, %c0_i32_0, %c0_i32_1 : i32, i32, i32
  }
  func.func @transform_4(%arg0: i32) -> (i32, i32) {
    %c0_i32 = arith.constant 0 : i32
    %c0_i32_0 = arith.constant 0 : i32
    %c0_i32_1 = arith.constant 0 : i32
    return %c0_i32, %c0_i32_0 : i32, i32
  }
  func.func @transform_5(%arg0: i32) -> (i32, i32) {
    %c0_i32 = arith.constant 0 : i32
    %c0_i32_0 = arith.constant 0 : i32
    %c0_i32_1 = arith.constant 0 : i32
    return %c0_i32, %c0_i32_0 : i32, i32
  }
  func.func @transform_6(%arg0: i32) -> (i32, i32) {
    %c0_i32 = arith.constant 0 : i32
    %c0_i32_0 = arith.constant 0 : i32
    %c0_i32_1 = arith.constant 0 : i32
    return %c0_i32, %c0_i32_0 : i32, i32
  }
  func.func @transform_7(%arg0: i32) -> (i32, i32, i32) {
    %c0_i32 = arith.constant 0 : i32
    %c0_i32_0 = arith.constant 0 : i32
    %c0_i32_1 = arith.constant 0 : i32
    %c0_i32_2 = arith.constant 0 : i32
    return %c0_i32, %c0_i32_0, %c0_i32_1 : i32, i32, i32
  }
  func.func @transform_8(%arg0: i32) -> (i32, i32) {
    %c0_i32 = arith.constant 0 : i32
    %c0_i32_0 = arith.constant 0 : i32
    %c0_i32_1 = arith.constant 0 : i32
    return %c0_i32, %c0_i32_0 : i32, i32
  }
  func.func @transform_9(%arg0: i32) -> (i32, i32, i32) {
    %c0_i32 = arith.constant 0 : i32
    %c0_i32_0 = arith.constant 0 : i32
    %c0_i32_1 = arith.constant 0 : i32
    %c0_i32_2 = arith.constant 0 : i32
    return %c0_i32, %c0_i32_0, %c0_i32_1 : i32, i32, i32
  }
  func.func @transform_10(%arg0: i32) -> (i32, i32) {
    %c0_i32 = arith.constant 0 : i32
    %c0_i32_0 = arith.constant 0 : i32
    %c0_i32_1 = arith.constant 0 : i32
    return %c0_i32, %c0_i32_0 : i32, i32
  }
  func.func @transform_11(%arg0: i32) -> (i32, i32, i32, i32) {
    %c0_i32 = arith.constant 0 : i32
    %c0_i32_0 = arith.constant 0 : i32
    %c0_i32_1 = arith.constant 0 : i32
    %c0_i32_2 = arith.constant 0 : i32
    return %arg0, %c0_i32, %c0_i32_0, %c0_i32_1 : i32, i32, i32, i32
  }
}

</mosaic_0001>

<llo_original>
// kernel: down_forward.1
$region0: #{down_forward.1}
  #allocation0 [shape = 'u32[]', space=smem, size = 0x4, offset = 0x4, fixed_abs, tag = 'smem constant byte address 0x4 - core index']
  #allocation1 [shape = 'u32[144,128]{1,0:T(1,128)}', space=vmem, size = 0x12000, scoped, tag = 'internal scratch']
  #allocation2 [shape = 'bf16[10,24,128]{2,1,0:T(8,128)(2,1)}', space=vmem, size = 0xf000, scoped, tag = 'scratch operand']
  #allocation3 [shape = 'bf16[10,24,128]{2,1,0:T(8,128)(2,1)}', space=vmem, size = 0xf000, scoped, tag = 'scratch operand']
  %s0 = inlined_call_operand.vmem [shape: f32[2,2,2,8,8,128], index: 0, kind: input, shape index: {}]
  %s1 = inlined_call_operand.vmem [shape: bf16[9,128,128], index: 1, kind: input, shape index: {}]
  %s2 = inlined_call_operand.vmem [shape: f32[1,128], index: 2, kind: input, shape index: {}]
  %s3 = inlined_call_operand.vmem [shape: bf16[9,128,128], index: 3, kind: input, shape index: {}]
  %s4 = inlined_call_operand.vmem [shape: f32[1,128], index: 4, kind: input, shape index: {}]
  %s5 = inlined_call_operand.vmem [shape: bf16[128,128], index: 5, kind: input, shape index: {}]
  %s6 = inlined_call_operand.vmem [shape: f32[1,128], index: 6, kind: input, shape index: {}]
  %s7 = inlined_call_operand.vmem [shape: bf16[9,128,128], index: 7, kind: input, shape index: {}]
  %s8 = inlined_call_operand.vmem [shape: f32[1,128], index: 8, kind: input, shape index: {}]
  %s9 = inlined_call_operand.vmem [shape: bf16[9,128,128], index: 9, kind: input, shape index: {}]
  %s10 = inlined_call_operand.vmem [shape: f32[1,128], index: 10, kind: input, shape index: {}]
  %s11 = inlined_call_operand.vmem [shape: f32[2,8,8,128], index: 11, kind: output, shape index: {}]
  %s12 = sld [smem:[#allocation0]]
  $region77: #{down_forward.1} parent=0
    _
  %s14 = ssub.s32 1, %s12
  %s15 = scalar_select 0, %s14, %s12
  loop: start=0, step=1, limit=4
  $region2: #{down_forward.1} parent=0 // loop_pre_header
    _
  $region3: #{down_forward.1} parent=0 // loop_header
    %s17 = sphi 0, %s21
    %p18 = scmp.ge.s32.totalorder %s17, 4
    %s27 = sphi 0, %s29
    %s30 = sphi 0, %s27
    %s31 = sphi 0, %s30
    %s47 = sphi 0, %s31
    %s51 = sphi 0, %s51
    %s53 = sphi 0, %s51
    %s54 = sphi 0, %s53
    %s68 = sphi 0, %s54
    %s72 = sphi 0, %s72
    %s74 = sphi 0, %s72
    %s75 = sphi 0, %s74
    %s89 = sphi 0, %s75
    %s93 = sphi 0, %s93
    %s95 = sphi 0, %s93
    %s96 = sphi 0, %s95
    %s110 = sphi 0, %s96
    %s114 = sphi 0, %s114
    %s116 = sphi 0, %s114
    %s117 = sphi 0, %s116
    %s131 = sphi 0, %s117
    %s135 = sphi 0, %s135
    %s137 = sphi 0, %s135
    %s138 = sphi 0, %s137
    %s152 = sphi 0, %s138
    %s156 = sphi 0, %s156
    %s158 = sphi 0, %s156
    %s159 = sphi 0, %s158
    %s173 = sphi 0, %s159
    %s177 = sphi 0, %s177
    %s179 = sphi 0, %s177
    %s180 = sphi 0, %s179
    %s194 = sphi 0, %s180
    %s198 = sphi 0, %s198
    %s200 = sphi 0, %s198
    %s201 = sphi 0, %s200
    %s215 = sphi 0, %s201
    %s219 = sphi 0, %s219
    %s221 = sphi 0, %s219
    %s222 = sphi 0, %s221
    %s236 = sphi 0, %s222
    %s240 = sphi 0, %s240
    %s242 = sphi 0, %s240
    %s243 = sphi 0, %s242
    %s257 = sphi 0, %s243
    %s263 = sphi 0, %s265
    %s266 = sphi 0, %s263
    %s267 = sphi 0, %s266
    %s283 = sphi 0, %s267
  $region4: #{down_forward.1} parent=0 // loop_header_branch
    %20 = sbr.rel (%p18) target = $region8
  $region5: #{down_forward.1} parent=0 // loop_body
    %s22 = ssub.s32 %s17, 1
    %s23 = ssub.s32 %s17, 2
    %s24 = sadd.s32 %s17, 1
    %s25 = ssub.s32 %s17, %s24
    %p26 = scmp.eq.s32.totalorder %s25, 0
    %s28 = sadd.s32 %s27, 1
    %s29 = scalar_select %p26, %s27, %s28
    %p32 = pneg %p26
    %p33 = scmp.eq.s32.totalorder %s17, 1
    %p34 = por %p32, %p33
    %p35 = scmp.ne.s32.totalorder %s27, %s30
    %p36 = scmp.eq.s32.totalorder %s17, 0
    %p37 = por %p35, %p36
    %p38 = scmp.ne.s32.totalorder %s27, %s30
    %p39 = scmp.eq.s32.totalorder %s22, 1
    %p40 = por %p38, %p39
    %p41 = scmp.ne.s32.totalorder %s30, %s31
    %p42 = scmp.eq.s32.totalorder %s22, 0
    %p43 = por %p41, %p42
    %p44 = scmp.ne.s32.totalorder %s30, %s31
    %p45 = scmp.eq.s32.totalorder %s23, 1
    %p46 = por %p44, %p45
    %p48 = scmp.ne.s32.totalorder %s31, %s47
    %p49 = scmp.eq.s32.totalorder %s23, 0
    %p50 = por %p48, %p49
    %s52 = sadd.s32 %s51, 1
    %p55 = scmp.eq.s32.totalorder %s17, 1
    %p56 = scmp.ne.s32.totalorder %s51, %s53
    %p57 = scmp.eq.s32.totalorder %s17, 0
    %p58 = por %p56, %p57
    %p59 = scmp.ne.s32.totalorder %s51, %s53
    %p60 = scmp.eq.s32.totalorder %s22, 1
    %p61 = por %p59, %p60
    %p62 = scmp.ne.s32.totalorder %s53, %s54
    %p63 = scmp.eq.s32.totalorder %s22, 0
    %p64 = por %p62, %p63
    %p65 = scmp.ne.s32.totalorder %s53, %s54
    %p66 = scmp.eq.s32.totalorder %s23, 1
    %p67 = por %p65, %p66
    %p69 = scmp.ne.s32.totalorder %s54, %s68
    %p70 = scmp.eq.s32.totalorder %s23, 0
    %p71 = por %p69, %p70
    %s73 = sadd.s32 %s72, 1
    %p76 = scmp.eq.s32.totalorder %s17, 1
    %p77 = scmp.ne.s32.totalorder %s72, %s74
    %p78 = scmp.eq.s32.totalorder %s17, 0
    %p79 = por %p77, %p78
    %p80 = scmp.ne.s32.totalorder %s72, %s74
    %p81 = scmp.eq.s32.totalorder %s22, 1
    %p82 = por %p80, %p81
    %p83 = scmp.ne.s32.totalorder %s74, %s75
    %p84 = scmp.eq.s32.totalorder %s22, 0
    %p85 = por %p83, %p84
    %p86 = scmp.ne.s32.totalorder %s74, %s75
    %p87 = scmp.eq.s32.totalorder %s23, 1
    %p88 = por %p86, %p87
    %p90 = scmp.ne.s32.totalorder %s75, %s89
    %p91 = scmp.eq.s32.totalorder %s23, 0
    %p92 = por %p90, %p91
    %s94 = sadd.s32 %s93, 1
    %p97 = scmp.eq.s32.totalorder %s17, 1
    %p98 = scmp.ne.s32.totalorder %s93, %s95
    %p99 = scmp.eq.s32.totalorder %s17, 0
    %p100 = por %p98, %p99
    %p101 = scmp.ne.s32.totalorder %s93, %s95
    %p102 = scmp.eq.s32.totalorder %s22, 1
    %p103 = por %p101, %p102
    %p104 = scmp.ne.s32.totalorder %s95, %s96
    %p105 = scmp.eq.s32.totalorder %s22, 0
    %p106 = por %p104, %p105
    %p107 = scmp.ne.s32.totalorder %s95, %s96
    %p108 = scmp.eq.s32.totalorder %s23, 1
    %p109 = por %p107, %p108
    %p111 = scmp.ne.s32.totalorder %s96, %s110
    %p112 = scmp.eq.s32.totalorder %s23, 0
    %p113 = por %p111, %p112
    %s115 = sadd.s32 %s114, 1
    %p118 = scmp.eq.s32.totalorder %s17, 1
    %p119 = scmp.ne.s32.totalorder %s114, %s116
    %p120 = scmp.eq.s32.totalorder %s17, 0
    %p121 = por %p119, %p120
    %p122 = scmp.ne.s32.totalorder %s114, %s116
    %p123 = scmp.eq.s32.totalorder %s22, 1
    %p124 = por %p122, %p123
    %p125 = scmp.ne.s32.totalorder %s116, %s117
    %p126 = scmp.eq.s32.totalorder %s22, 0
    %p127 = por %p125, %p126
    %p128 = scmp.ne.s32.totalorder %s116, %s117
    %p129 = scmp.eq.s32.totalorder %s23, 1
    %p130 = por %p128, %p129
    %p132 = scmp.ne.s32.totalorder %s117, %s131
    %p133 = scmp.eq.s32.totalorder %s23, 0
    %p134 = por %p132, %p133
    %s136 = sadd.s32 %s135, 1
    %p139 = scmp.eq.s32.totalorder %s17, 1
    %p140 = scmp.ne.s32.totalorder %s135, %s137
    %p141 = scmp.eq.s32.totalorder %s17, 0
    %p142 = por %p140, %p141
    %p143 = scmp.ne.s32.totalorder %s135, %s137
    %p144 = scmp.eq.s32.totalorder %s22, 1
    %p145 = por %p143, %p144
    %p146 = scmp.ne.s32.totalorder %s137, %s138
    %p147 = scmp.eq.s32.totalorder %s22, 0
    %p148 = por %p146, %p147
    %p149 = scmp.ne.s32.totalorder %s137, %s138
    %p150 = scmp.eq.s32.totalorder %s23, 1
    %p151 = por %p149, %p150
    %p153 = scmp.ne.s32.totalorder %s138, %s152
    %p154 = scmp.eq.s32.totalorder %s23, 0
    %p155 = por %p153, %p154
    %s157 = sadd.s32 %s156, 1
    %p160 = scmp.eq.s32.totalorder %s17, 1
    %p161 = scmp.ne.s32.totalorder %s156, %s158
    %p162 = scmp.eq.s32.totalorder %s17, 0
    %p163 = por %p161, %p162
    %p164 = scmp.ne.s32.totalorder %s156, %s158
    %p165 = scmp.eq.s32.totalorder %s22, 1
    %p166 = por %p164, %p165
    %p167 = scmp.ne.s32.totalorder %s158, %s159
    %p168 = scmp.eq.s32.totalorder %s22, 0
    %p169 = por %p167, %p168
    %p170 = scmp.ne.s32.totalorder %s158, %s159
    %p171 = scmp.eq.s32.totalorder %s23, 1
    %p172 = por %p170, %p171
    %p174 = scmp.ne.s32.totalorder %s159, %s173
    %p175 = scmp.eq.s32.totalorder %s23, 0
    %p176 = por %p174, %p175
    %s178 = sadd.s32 %s177, 1
    %p181 = scmp.eq.s32.totalorder %s17, 1
    %p182 = scmp.ne.s32.totalorder %s177, %s179
    %p183 = scmp.eq.s32.totalorder %s17, 0
    %p184 = por %p182, %p183
    %p185 = scmp.ne.s32.totalorder %s177, %s179
    %p186 = scmp.eq.s32.totalorder %s22, 1
    %p187 = por %p185, %p186
    %p188 = scmp.ne.s32.totalorder %s179, %s180
    %p189 = scmp.eq.s32.totalorder %s22, 0
    %p190 = por %p188, %p189
    %p191 = scmp.ne.s32.totalorder %s179, %s180
    %p192 = scmp.eq.s32.totalorder %s23, 1
    %p193 = por %p191, %p192
    %p195 = scmp.ne.s32.totalorder %s180, %s194
    %p196 = scmp.eq.s32.totalorder %s23, 0
    %p197 = por %p195, %p196
    %s199 = sadd.s32 %s198, 1
    %p202 = scmp.eq.s32.totalorder %s17, 1
    %p203 = scmp.ne.s32.totalorder %s198, %s200
    %p204 = scmp.eq.s32.totalorder %s17, 0
    %p205 = por %p203, %p204
    %p206 = scmp.ne.s32.totalorder %s198, %s200
    %p207 = scmp.eq.s32.totalorder %s22, 1
    %p208 = por %p206, %p207
    %p209 = scmp.ne.s32.totalorder %s200, %s201
    %p210 = scmp.eq.s32.totalorder %s22, 0
    %p211 = por %p209, %p210
    %p212 = scmp.ne.s32.totalorder %s200, %s201
    %p213 = scmp.eq.s32.totalorder %s23, 1
    %p214 = por %p212, %p213
    %p216 = scmp.ne.s32.totalorder %s201, %s215
    %p217 = scmp.eq.s32.totalorder %s23, 0
    %p218 = por %p216, %p217
    %s220 = sadd.s32 %s219, 1
    %p223 = scmp.eq.s32.totalorder %s17, 1
    %p224 = scmp.ne.s32.totalorder %s219, %s221
    %p225 = scmp.eq.s32.totalorder %s17, 0
    %p226 = por %p224, %p225
    %p227 = scmp.ne.s32.totalorder %s219, %s221
    %p228 = scmp.eq.s32.totalorder %s22, 1
    %p229 = por %p227, %p228
    %p230 = scmp.ne.s32.totalorder %s221, %s222
    %p231 = scmp.eq.s32.totalorder %s22, 0
    %p232 = por %p230, %p231
    %p233 = scmp.ne.s32.totalorder %s221, %s222
    %p234 = scmp.eq.s32.totalorder %s23, 1
    %p235 = por %p233, %p234
    %p237 = scmp.ne.s32.totalorder %s222, %s236
    %p238 = scmp.eq.s32.totalorder %s23, 0
    %p239 = por %p237, %p238
    %s241 = sadd.s32 %s240, 1
    %p244 = scmp.eq.s32.totalorder %s17, 1
    %p245 = scmp.ne.s32.totalorder %s240, %s242
    %p246 = scmp.eq.s32.totalorder %s17, 0
    %p247 = por %p245, %p246
    %p248 = scmp.ne.s32.totalorder %s240, %s242
    %p249 = scmp.eq.s32.totalorder %s22, 1
    %p250 = por %p248, %p249
    %p251 = scmp.ne.s32.totalorder %s242, %s243
    %p252 = scmp.eq.s32.totalorder %s22, 0
    %p253 = por %p251, %p252
    %p254 = scmp.ne.s32.totalorder %s242, %s243
    %p255 = scmp.eq.s32.totalorder %s23, 1
    %p256 = por %p254, %p255
    %p258 = scmp.ne.s32.totalorder %s243, %s257
    %p259 = scmp.eq.s32.totalorder %s23, 0
    %p260 = por %p258, %p259
    %s261 = ssub.s32 %s17, %s24
    %p262 = scmp.eq.s32.totalorder %s261, 0
    %s264 = sadd.s32 %s263, 1
    %s265 = scalar_select %p262, %s263, %s264
    %p268 = pneg %p262
    %p269 = scmp.eq.s32.totalorder %s17, 1
    %p270 = por %p268, %p269
    %p271 = scmp.ne.s32.totalorder %s263, %s266
    %p272 = scmp.eq.s32.totalorder %s17, 0
    %p273 = por %p271, %p272
    %p274 = scmp.ne.s32.totalorder %s263, %s266
    %p275 = scmp.eq.s32.totalorder %s22, 1
    %p276 = por %p274, %p275
    %p277 = scmp.ne.s32.totalorder %s266, %s267
    %p278 = scmp.eq.s32.totalorder %s22, 0
    %p279 = por %p277, %p278
    %p280 = scmp.ne.s32.totalorder %s266, %s267
    %p281 = scmp.eq.s32.totalorder %s23, 1
    %p282 = por %p280, %p281
    %p284 = scmp.ne.s32.totalorder %s267, %s283
    %p285 = scmp.eq.s32.totalorder %s23, 0
    %p286 = por %p284, %p285
    %p287 = scmp.le.s32.totalorder 1, %s17
    %p288 = scmp.lt.s32.totalorder %s17, 3
    %p289 = pnand %p287, %p288
    %p290 = pneg %p289
    // Predicated region
    $region9: #{down_forward.1} parent=5 // pred_check
      _
    $region10: #{down_forward.1} parent=5 // pred_check_branch
      %292 = sbr.rel (%p289) target = $region12
    $region11: #{down_forward.1} parent=5 // pred_region
      %s293 = ssub.s32 %s17, 1
      // Predicated region
      $region13: #{down_forward.1} parent=11 // pred_check
        %p294 = pneg %p64
      $region14: #{down_forward.1} parent=11 // pred_check_branch
        %296 = sbr.rel (%p294) target = $region16
      $region15: #{down_forward.1} parent=11 // pred_region
        _
      $region16: #{down_forward.1} parent=11 // pred_fallthru
        _
      // Predicated region
      $region17: #{down_forward.1} parent=11 // pred_check
        %p297 = pneg %p85
      $region18: #{down_forward.1} parent=11 // pred_check_branch
        %299 = sbr.rel (%p297) target = $region20
      $region19: #{down_forward.1} parent=11 // pred_region
        _
      $region20: #{down_forward.1} parent=11 // pred_fallthru
        _
      // Predicated region
      $region21: #{down_forward.1} parent=11 // pred_check
        %p300 = pneg %p106
      $region22: #{down_forward.1} parent=11 // pred_check_branch
        %302 = sbr.rel (%p300) target = $region24
      $region23: #{down_forward.1} parent=11 // pred_region
        _
      $region24: #{down_forward.1} parent=11 // pred_fallthru
        _
      // Predicated region
      $region25: #{down_forward.1} parent=11 // pred_check
        %p303 = pneg %p127
      $region26: #{down_forward.1} parent=11 // pred_check_branch
        %305 = sbr.rel (%p303) target = $region28
      $region27: #{down_forward.1} parent=11 // pred_region
        _
      $region28: #{down_forward.1} parent=11 // pred_fallthru
        _
      // Predicated region
      $region29: #{down_forward.1} parent=11 // pred_check
        %p306 = pneg %p148
      $region30: #{down_forward.1} parent=11 // pred_check_branch
        %308 = sbr.rel (%p306) target = $region32
      $region31: #{down_forward.1} parent=11 // pred_region
        _
      $region32: #{down_forward.1} parent=11 // pred_fallthru
        _
      // Predicated region
      $region33: #{down_forward.1} parent=11 // pred_check
        %p309 = pneg %p169
      $region34: #{down_forward.1} parent=11 // pred_check_branch
        %311 = sbr.rel (%p309) target = $region36
      $region35: #{down_forward.1} parent=11 // pred_region
        _
      $region36: #{down_forward.1} parent=11 // pred_fallthru
        _
      // Predicated region
      $region37: #{down_forward.1} parent=11 // pred_check
        %p312 = pneg %p190
      $region38: #{down_forward.1} parent=11 // pred_check_branch
        %314 = sbr.rel (%p312) target = $region40
      $region39: #{down_forward.1} parent=11 // pred_region
        _
      $region40: #{down_forward.1} parent=11 // pred_fallthru
        _
      // Predicated region
      $region41: #{down_forward.1} parent=11 // pred_check
        %p315 = pneg %p211
      $region42: #{down_forward.1} parent=11 // pred_check_branch
        %317 = sbr.rel (%p315) target = $region44
      $region43: #{down_forward.1} parent=11 // pred_region
        _
      $region44: #{down_forward.1} parent=11 // pred_fallthru
        _
      // Predicated region
      $region45: #{down_forward.1} parent=11 // pred_check
        %p318 = pneg %p232
      $region46: #{down_forward.1} parent=11 // pred_check_branch
        %320 = sbr.rel (%p318) target = $region48
      $region47: #{down_forward.1} parent=11 // pred_region
        _
      $region48: #{down_forward.1} parent=11 // pred_fallthru
        _
      // Predicated region
      $region49: #{down_forward.1} parent=11 // pred_check
        %p321 = pneg %p253
      $region50: #{down_forward.1} parent=11 // pred_check_branch
        %323 = sbr.rel (%p321) target = $region52
      $region51: #{down_forward.1} parent=11 // pred_region
        _
      $region52: #{down_forward.1} parent=11 // pred_fallthru
        _
    $region12: #{down_forward.1} parent=5 // pred_fallthru
      _
    %p324 = scmp.lt.s32.totalorder %s17, 2
    // Predicated region
    $region53: #{down_forward.1} parent=5 // pred_check
      %p325 = pneg %p324
    $region54: #{down_forward.1} parent=5 // pred_check_branch
      %327 = sbr.rel (%p325) target = $region56
    $region55: #{down_forward.1} parent=5 // pred_region
      // Predicated region
      $region57: #{down_forward.1} parent=55 // pred_check
        %p328 = pneg %p37
      $region58: #{down_forward.1} parent=55 // pred_check_branch
        %330 = sbr.rel (%p328) target = $region60
      $region59: #{down_forward.1} parent=55 // pred_region
        %p331 = scmp.lt.s32.totalorder %s17, 1
        %s332 = scalar_select %p331, %s17, 1
        %s333 = smul.addr %s332, 32
        %s334 = smul.addr %s333, 8
        %s335 = scalar_lea.vmem %s0, %s334
      $region60: #{down_forward.1} parent=55 // pred_fallthru
        _
    $region56: #{down_forward.1} parent=5 // pred_fallthru
      _
    %p336 = scmp.le.s32.totalorder 1, %s17
    %p337 = scmp.lt.s32.totalorder %s17, 3
    %p338 = pnand %p336, %p337
    %p339 = pneg %p338
    // Predicated region
    $region61: #{down_forward.1} parent=5 // pred_check
      _
    $region62: #{down_forward.1} parent=5 // pred_check_branch
      %341 = sbr.rel (%p338) target = $region64
    $region63: #{down_forward.1} parent=5 // pred_region
      %s342 = ssub.s32 %s17, 1
      %p343 = scmp.lt.s32.totalorder %s22, 1
      %s344 = scalar_select %p343, %s22, 1
      %s345 = smul.addr %s344, 32
      %s346 = smul.addr %s345, 8
      %s347 = scalar_lea.vmem %s0, %s346
      %p348 = pneg %p43
      %p349 = pneg %p40
      %p350 = pneg %p64
      %p351 = pneg %p61
      %p352 = pneg %p85
      %p353 = pneg %p82
      %p354 = pneg %p106
      %p355 = pneg %p103
      %p356 = pneg %p127
      %p357 = pneg %p124
      %p358 = pneg %p148
      %p359 = pneg %p145
      %p360 = pneg %p169
      %p361 = pneg %p166
      %p362 = pneg %p190
      %p363 = pneg %p187
      %p364 = pneg %p211
      %p365 = pneg %p208
      %p366 = pneg %p232
      %p367 = pneg %p229
      %p368 = pneg %p253
      %p369 = pneg %p250
      %p370 = pneg %p279
      %p371 = pneg %p276
      %p372 = scmp.lt.s32.totalorder %s22, 1
      %s373 = scalar_select %p372, %s22, 1
      %s374 = smul.addr %s373, 8
      %s375 = smul.addr %s374, 8
      %s376 = scalar_lea.vmem %s11, %s375
      %p377 = scmp.lt.s32.totalorder %s22, 1
      %s378 = scalar_select %p377, %s22, 1
      %s379 = smul.addr %s378, 32
      %s380 = smul.addr %s379, 8
      %s381 = scalar_lea.vmem %s0, %s380
      %p382 = scmp.lt.s32.totalorder %s22, 1
      %s383 = scalar_select %p382, %s22, 1
      %s384 = smul.addr %s383, 8
      %s385 = smul.addr %s384, 8
      %s386 = scalar_lea.vmem %s11, %s385
      %v388 = vld [vmem:[%s381] sm:$0xff]
      %v389 = vld [vmem:[%s381 + $0x8] sm:$0xff]
      %v390 = vld [vmem:[%s381 + $0x10] sm:$0xff]
      %v391 = vld [vmem:[%s381 + $0x18] sm:$0xff]
      %v392 = vld [vmem:[%s381 + $0x20] sm:$0xff]
      %v393 = vld [vmem:[%s381 + $0x28] sm:$0xff]
      %v394 = vld [vmem:[%s381 + $0x30] sm:$0xff]
      %v395 = vld [vmem:[%s381 + $0x38] sm:$0xff]
      %s396 = scalar_lea.vmem %s381, 64
      %v397 = vld [vmem:[%s396] sm:$0xff]
      %v398 = vld [vmem:[%s396 + $0x8] sm:$0xff]
      %v399 = vld [vmem:[%s396 + $0x10] sm:$0xff]
      %v400 = vld [vmem:[%s396 + $0x18] sm:$0xff]
      %v401 = vld [vmem:[%s396 + $0x20] sm:$0xff]
      %v402 = vld [vmem:[%s396 + $0x28] sm:$0xff]
      %v403 = vld [vmem:[%s396 + $0x30] sm:$0xff]
      %v404 = vld [vmem:[%s396 + $0x38] sm:$0xff]
      %v405 = vmax.f32 %v388, %v397
      %v406 = vmax.f32 %v389, %v398
      %v407 = vmax.f32 %v390, %v399
      %v408 = vmax.f32 %v391, %v400
      %v409 = vmax.f32 %v392, %v401
      %v410 = vmax.f32 %v393, %v402
      %v411 = vmax.f32 %v394, %v403
      %v412 = vmax.f32 %v395, %v404
      %s413 = scalar_lea.vmem %s381, 128
      %v414 = vld [vmem:[%s413] sm:$0xff]
      %v415 = vld [vmem:[%s413 + $0x8] sm:$0xff]
      %v416 = vld [vmem:[%s413 + $0x10] sm:$0xff]
      %v417 = vld [vmem:[%s413 + $0x18] sm:$0xff]
      %v418 = vld [vmem:[%s413 + $0x20] sm:$0xff]
      %v419 = vld [vmem:[%s413 + $0x28] sm:$0xff]
      %v420 = vld [vmem:[%s413 + $0x30] sm:$0xff]
      %v421 = vld [vmem:[%s413 + $0x38] sm:$0xff]
      %s422 = scalar_lea.vmem %s381, 192
      %v423 = vld [vmem:[%s422] sm:$0xff]
      %v424 = vld [vmem:[%s422 + $0x8] sm:$0xff]
      %v425 = vld [vmem:[%s422 + $0x10] sm:$0xff]
      %v426 = vld [vmem:[%s422 + $0x18] sm:$0xff]
      %v427 = vld [vmem:[%s422 + $0x20] sm:$0xff]
      %v428 = vld [vmem:[%s422 + $0x28] sm:$0xff]
      %v429 = vld [vmem:[%s422 + $0x30] sm:$0xff]
      %v430 = vld [vmem:[%s422 + $0x38] sm:$0xff]
      %v431 = vmax.f32 %v414, %v423
      %v432 = vmax.f32 %v415, %v424
      %v433 = vmax.f32 %v416, %v425
      %v434 = vmax.f32 %v417, %v426
      %v435 = vmax.f32 %v418, %v427
      %v436 = vmax.f32 %v419, %v428
      %v437 = vmax.f32 %v420, %v429
      %v438 = vmax.f32 %v421, %v430
      %v439 = vmax.f32 %v405, %v431
      %v440 = vmax.f32 %v406, %v432
      %v441 = vmax.f32 %v407, %v433
      %v442 = vmax.f32 %v408, %v434
      %v443 = vmax.f32 %v409, %v435
      %v444 = vmax.f32 %v410, %v436
      %v445 = vmax.f32 %v411, %v437
      %v446 = vmax.f32 %v412, %v438
      %447 = vst [vmem:[#allocation2] sm:$0xf] 0
      %448 = vst [vmem:[#allocation2 + $0x4] sm:$0xf] 0
      %449 = vst [vmem:[#allocation2 + $0x8] sm:$0xf] 0
      %s450 = scalar_lea.vmem [#allocation2], 108
      %451 = vst [vmem:[%s450] sm:$0xf] 0
      %452 = vst [vmem:[%s450 + $0x4] sm:$0xf] 0
      %453 = vst [vmem:[%s450 + $0x8] sm:$0xf] 0
      %s454 = scalar_lea.vmem [#allocation2], 12
      %455 = vst [vmem:[%s454] sm:$0xf] 0
      %456 = vst [vmem:[%s454 + $0xc] sm:$0xf] 0
      %457 = vst [vmem:[%s454 + $0x18] sm:$0xf] 0
      %458 = vst [vmem:[%s454 + $0x24] sm:$0xf] 0
      %459 = vst [vmem:[%s454 + $0x30] sm:$0xf] 0
      %460 = vst [vmem:[%s454 + $0x3c] sm:$0xf] 0
      %461 = vst [vmem:[%s454 + $0x48] sm:$0xf] 0
      %462 = vst [vmem:[%s454 + $0x54] sm:$0xf] 0
      %463 = vst [vmem:[%s454 + $0x8] sm:$0xf] 0
      %464 = vst [vmem:[%s454 + $0x14] sm:$0xf] 0
      %465 = vst [vmem:[%s454 + $0x20] sm:$0xf] 0
      %466 = vst [vmem:[%s454 + $0x2c] sm:$0xf] 0
      %467 = vst [vmem:[%s454 + $0x38] sm:$0xf] 0
      %468 = vst [vmem:[%s454 + $0x44] sm:$0xf] 0
      %469 = vst [vmem:[%s454 + $0x50] sm:$0xf] 0
      %470 = vst [vmem:[%s454 + $0x5c] sm:$0xf] 0
      %471 = vst [vmem:[#allocation3] sm:$0xf] 0
      %472 = vst [vmem:[#allocation3 + $0x4] sm:$0xf] 0
      %473 = vst [vmem:[#allocation3 + $0x8] sm:$0xf] 0
      %s474 = scalar_lea.vmem [#allocation3], 108
      %475 = vst [vmem:[%s474] sm:$0xf] 0
      %476 = vst [vmem:[%s474 + $0x4] sm:$0xf] 0
      %477 = vst [vmem:[%s474 + $0x8] sm:$0xf] 0
      %s478 = scalar_lea.vmem [#allocation3], 12
      %479 = vst [vmem:[%s478] sm:$0xf] 0
      %480 = vst [vmem:[%s478 + $0xc] sm:$0xf] 0
      %481 = vst [vmem:[%s478 + $0x18] sm:$0xf] 0
      %482 = vst [vmem:[%s478 + $0x24] sm:$0xf] 0
      %483 = vst [vmem:[%s478 + $0x30] sm:$0xf] 0
      %484 = vst [vmem:[%s478 + $0x3c] sm:$0xf] 0
      %485 = vst [vmem:[%s478 + $0x48] sm:$0xf] 0
      %486 = vst [vmem:[%s478 + $0x54] sm:$0xf] 0
      %487 = vst [vmem:[%s478 + $0x8] sm:$0xf] 0
      %488 = vst [vmem:[%s478 + $0x14] sm:$0xf] 0
      %489 = vst [vmem:[%s478 + $0x20] sm:$0xf] 0
      %490 = vst [vmem:[%s478 + $0x2c] sm:$0xf] 0
      %491 = vst [vmem:[%s478 + $0x38] sm:$0xf] 0
      %492 = vst [vmem:[%s478 + $0x44] sm:$0xf] 0
      %493 = vst [vmem:[%s478 + $0x50] sm:$0xf] 0
      %494 = vst [vmem:[%s478 + $0x5c] sm:$0xf] 0
      %v495 = vpack.c.bf16 %v439, %v439
      %v496 = vpack.c.bf16 %v440, %v440
      %v497 = vpack.c.bf16 %v441, %v441
      %v498 = vpack.c.bf16 %v442, %v442
      %v499 = vpack.c.bf16 %v443, %v443
      %v500 = vpack.c.bf16 %v444, %v444
      %v501 = vpack.c.bf16 %v445, %v445
      %v502 = vpack.c.bf16 %v446, %v446
      %503 = vst [vmem:[%s454 + $0x4] sm:$0xf] %v495
      %504 = vst [vmem:[%s454 + $0x10] sm:$0xf] %v496
      %505 = vst [vmem:[%s454 + $0x1c] sm:$0xf] %v497
      %506 = vst [vmem:[%s454 + $0x28] sm:$0xf] %v498
      %507 = vst [vmem:[%s454 + $0x34] sm:$0xf] %v499
      %508 = vst [vmem:[%s454 + $0x40] sm:$0xf] %v500
      %509 = vst [vmem:[%s454 + $0x4c] sm:$0xf] %v501
      %510 = vst [vmem:[%s454 + $0x58] sm:$0xf] %v502
      %v511 = vld [vmem:[#allocation2] sm:$0x8]
      %v512 = vld [vmem:[#allocation2 + $0x4] sm:$0xf]
      %v513 = vld [vmem:[#allocation2 + $0xc] sm:$0x8]
      %v514 = vld [vmem:[#allocation2 + $0x10] sm:$0xf]
      %v515 = vld [vmem:[#allocation2 + $0x18] sm:$0x8]
      %v516 = vld [vmem:[#allocation2 + $0x1c] sm:$0xf]
      %v517 = vld [vmem:[#allocation2 + $0x24] sm:$0x8]
      %v518 = vld [vmem:[#allocation2 + $0x28] sm:$0xf]
      %v519 = vld [vmem:[#allocation2 + $0x30] sm:$0x8]
      %v520 = vld [vmem:[#allocation2 + $0x34] sm:$0xf]
      %v521 = vld [vmem:[#allocation2 + $0x3c] sm:$0x8]
      %v522 = vld [vmem:[#allocation2 + $0x40] sm:$0xf]
      %v523 = vld [vmem:[#allocation2 + $0x48] sm:$0x8]
      %v524 = vld [vmem:[#allocation2 + $0x4c] sm:$0xf]
      %v525 = vld [vmem:[#allocation2 + $0x54] sm:$0x8]
      %v526 = vld [vmem:[#allocation2 + $0x58] sm:$0xf]
      %vm527 = vsmask.f32 256
      %vm528 = vsmask.f32 4368
      %vm529 = vmor %vm527, %vm528
      %v531 = vshrl.u32 %v511, 16
      %v533 = vrot.slane %v531, 7
      %v534 = vrot.slane %v533, 4
      %v536 = vshrl.u32 %v512, 16
      %v538 = vrot.slane %v536, 7
      %v539 = vshll.u32 %v512, 16
      %v541 = vor.u32 %v538, %v539
      %v542 = vsel %vm529, %v534, %v541
      %v544 = vshrl.u32 %v513, 16
      %v546 = vrot.slane %v544, 7
      %v547 = vrot.slane %v546, 4
      %v549 = vshrl.u32 %v514, 16
      %v551 = vrot.slane %v549, 7
      %v552 = vshll.u32 %v514, 16
      %v554 = vor.u32 %v551, %v552
      %v555 = vsel %vm529, %v547, %v554
      %v557 = vshrl.u32 %v515, 16
      %v559 = vrot.slane %v557, 7
      %v560 = vrot.slane %v559, 4
      %v562 = vshrl.u32 %v516, 16
      %v564 = vrot.slane %v562, 7
      %v565 = vshll.u32 %v516, 16
      %v567 = vor.u32 %v564, %v565
      %v568 = vsel %vm529, %v560, %v567
      %v570 = vshrl.u32 %v517, 16
      %v572 = vrot.slane %v570, 7
      %v573 = vrot.slane %v572, 4
      %v575 = vshrl.u32 %v518, 16
      %v577 = vrot.slane %v575, 7
      %v578 = vshll.u32 %v518, 16
      %v580 = vor.u32 %v577, %v578
      %v581 = vsel %vm529, %v573, %v580
      %v583 = vshrl.u32 %v519, 16
      %v585 = vrot.slane %v583, 7
      %v586 = vrot.slane %v585, 4
      %v588 = vshrl.u32 %v520, 16
      %v590 = vrot.slane %v588, 7
      %v591 = vshll.u32 %v520, 16
      %v593 = vor.u32 %v590, %v591
      %v594 = vsel %vm529, %v586, %v593
      %v596 = vshrl.u32 %v521, 16
      %v598 = vrot.slane %v596, 7
      %v599 = vrot.slane %v598, 4
      %v601 = vshrl.u32 %v522, 16
      %v603 = vrot.slane %v601, 7
      %v604 = vshll.u32 %v522, 16
      %v606 = vor.u32 %v603, %v604
      %v607 = vsel %vm529, %v599, %v606
      %v609 = vshrl.u32 %v523, 16
      %v611 = vrot.slane %v609, 7
      %v612 = vrot.slane %v611, 4
      %v614 = vshrl.u32 %v524, 16
      %v616 = vrot.slane %v614, 7
      %v617 = vshll.u32 %v524, 16
      %v619 = vor.u32 %v616, %v617
      %v620 = vsel %vm529, %v612, %v619
      %v622 = vshrl.u32 %v525, 16
      %v624 = vrot.slane %v622, 7
      %v625 = vrot.slane %v624, 4
      %v627 = vshrl.u32 %v526, 16
      %v629 = vrot.slane %v627, 7
      %v630 = vshll.u32 %v526, 16
      %v632 = vor.u32 %v629, %v630
      %v633 = vsel %vm529, %v625, %v632
      %v634 = vld [vmem:[%s1] sm:$0xf]
      %v635 = vld [vmem:[%s1 + $0x4] sm:$0xf]
      %v636 = vld [vmem:[%s1 + $0x8] sm:$0xf]
      %v637 = vld [vmem:[%s1 + $0xc] sm:$0xf]
      %v638 = vld [vmem:[%s1 + $0x10] sm:$0xf]
      %v639 = vld [vmem:[%s1 + $0x14] sm:$0xf]
      %v640 = vld [vmem:[%s1 + $0x18] sm:$0xf]
      %v641 = vld [vmem:[%s1 + $0x1c] sm:$0xf]
      %v642 = vld [vmem:[%s1 + $0x20] sm:$0xf]
      %v643 = vld [vmem:[%s1 + $0x24] sm:$0xf]
      %v644 = vld [vmem:[%s1 + $0x28] sm:$0xf]
      %v645 = vld [vmem:[%s1 + $0x2c] sm:$0xf]
      %v646 = vld [vmem:[%s1 + $0x30] sm:$0xf]
      %v647 = vld [vmem:[%s1 + $0x34] sm:$0xf]
      %v648 = vld [vmem:[%s1 + $0x38] sm:$0xf]
      %v649 = vld [vmem:[%s1 + $0x3c] sm:$0xf]
      %s650 = scalar_lea.vmem %s1, 64
      %v651 = vld [vmem:[%s650] sm:$0xf]
      %v652 = vld [vmem:[%s650 + $0x4] sm:$0xf]
      %v653 = vld [vmem:[%s650 + $0x8] sm:$0xf]
      %v654 = vld [vmem:[%s650 + $0xc] sm:$0xf]
      %v655 = vld [vmem:[%s650 + $0x10] sm:$0xf]
      %v656 = vld [vmem:[%s650 + $0x14] sm:$0xf]
      %v657 = vld [vmem:[%s650 + $0x18] sm:$0xf]
      %v658 = vld [vmem:[%s650 + $0x1c] sm:$0xf]
      %v659 = vld [vmem:[%s650 + $0x20] sm:$0xf]
      %v660 = vld [vmem:[%s650 + $0x24] sm:$0xf]
      %v661 = vld [vmem:[%s650 + $0x28] sm:$0xf]
      %v662 = vld [vmem:[%s650 + $0x2c] sm:$0xf]
      %v663 = vld [vmem:[%s650 + $0x30] sm:$0xf]
      %v664 = vld [vmem:[%s650 + $0x34] sm:$0xf]
      %v665 = vld [vmem:[%s650 + $0x38] sm:$0xf]
      %v666 = vld [vmem:[%s650 + $0x3c] sm:$0xf]
      %v675 = vunpack.c.l.b16 %v512
      %v676 = vunpack.c.l.b16 %v514
      %v677 = vunpack.c.l.b16 %v516
      %v678 = vunpack.c.l.b16 %v518
      %v679 = vunpack.c.l.b16 %v520
      %v680 = vunpack.c.l.b16 %v522
      %v681 = vunpack.c.l.b16 %v524
      %v682 = vunpack.c.l.b16 %v526
      %v683 = vpack.c.b16 %v676, %v675
      %v684 = vpack.c.b16 %v678, %v677
      %v685 = vpack.c.b16 %v680, %v679
      %v686 = vpack.c.b16 %v682, %v681
      %v707 = vunpack.c.l.b16 %v651
      %v708 = vunpack.c.l.b16 %v652
      %v709 = vunpack.c.l.b16 %v653
      %v710 = vunpack.c.l.b16 %v654
      %v711 = vunpack.c.l.b16 %v655
      %v712 = vunpack.c.l.b16 %v656
      %v713 = vunpack.c.l.b16 %v657
      %v714 = vunpack.c.l.b16 %v658
      %v715 = vunpack.c.l.b16 %v659
      %v716 = vunpack.c.l.b16 %v660
      %v717 = vunpack.c.l.b16 %v661
      %v718 = vunpack.c.l.b16 %v662
      %v719 = vunpack.c.l.b16 %v663
      %v720 = vunpack.c.l.b16 %v664
      %v721 = vunpack.c.l.b16 %v665
      %v722 = vunpack.c.l.b16 %v666
      %v723 = vpack.c.b16 %v708, %v707
      %v724 = vpack.c.b16 %v710, %v709
      %v725 = vpack.c.b16 %v712, %v711
      %v726 = vpack.c.b16 %v714, %v713
      %v727 = vpack.c.b16 %v716, %v715
      %v728 = vpack.c.b16 %v718, %v717
      %v729 = vpack.c.b16 %v720, %v719
      %v730 = vpack.c.b16 %v722, %v721
      %739 = vmatprep.subr.bf16.mxu0 0
      %740 = vmatpush1.bf16.msra.mxu0 %v723
      %741 = vmatprep.subr.bf16.mxu0 0
      %742 = vmatpush1.bf16.msra.mxu0 %v724
      %743 = vmatprep.subr.bf16.mxu0 0
      %744 = vmatpush1.bf16.msra.mxu0 %v725
      %745 = vmatprep.subr.bf16.mxu0 0
      %746 = vmatpush1.bf16.msra.mxu0 %v726
      %747 = vmatprep.subr.bf16.mxu0 0
      %748 = vmatpush1.bf16.msra.mxu0 %v727
      %749 = vmatprep.subr.bf16.mxu0 0
      %750 = vmatpush1.bf16.msra.mxu0 %v728
      %751 = vmatprep.subr.bf16.mxu0 0
      %752 = vmatpush1.bf16.msra.mxu0 %v729
      %753 = vmatprep.subr.bf16.mxu0 0
      %754 = vmatpush1.bf16.msra.mxu0 %v730
      %755 = vmatprep.subr.bf16.mxu0 0
      %756 = vmatpush1.bf16.msra.mxu0 0
      %757 = vmatprep.subr.bf16.mxu0 0
      %758 = vmatpush1.bf16.msra.mxu0 0
      %759 = vmatprep.subr.bf16.mxu0 0
      %760 = vmatpush1.bf16.msra.mxu0 0
      %761 = vmatprep.subr.bf16.mxu0 0
      %762 = vmatpush1.bf16.msra.mxu0 0
      %763 = vmatprep.subr.bf16.mxu0 0
      %764 = vmatpush1.bf16.msra.mxu0 0
      %765 = vmatprep.subr.bf16.mxu0 0
      %766 = vmatpush1.bf16.msra.mxu0 0
      %767 = vmatprep.subr.bf16.mxu0 0
      %768 = vmatpush1.bf16.msra.mxu0 0
      %769 = vmatprep.subr.bf16.mxu0 0
      %770 = vmatpush1.bf16.msra.mxu0 0
      %771 = vmatprep.mubr.bf16.mxu0 0
      %772 = vmatmul.mubr.bf16.gmra.mrb[0].mxu0 %v683
      %v773 = vpop.f32.mrb[0].mxu0
      %v774 = vadd.f32 0.0, %v773
      %v775 = vpop.f32.mrb[0].mxu0
      %v776 = vpop.f32.mrb[0].mxu0
      %v777 = vadd.f32 0.0, %v776
      %v778 = vpop.f32.mrb[0].mxu0
      %779 = vmatprep.mubr.bf16.mxu0 0
      %780 = vmatmul.mubr.bf16.gmra.mrb[0].mxu0 %v684
      %v781 = vpop.f32.mrb[0].mxu0
      %v782 = vadd.f32 0.0, %v781
      %v783 = vpop.f32.mrb[0].mxu0
      %v784 = vpop.f32.mrb[0].mxu0
      %v785 = vadd.f32 0.0, %v784
      %v786 = vpop.f32.mrb[0].mxu0
      %787 = vmatprep.mubr.bf16.mxu0 0
      %788 = vmatmul.mubr.bf16.gmra.mrb[0].mxu0 %v685
      %v789 = vpop.f32.mrb[0].mxu0
      %v790 = vadd.f32 0.0, %v789
      %v791 = vpop.f32.mrb[0].mxu0
      %v792 = vpop.f32.mrb[0].mxu0
      %v793 = vadd.f32 0.0, %v792
      %v794 = vpop.f32.mrb[0].mxu0
      %795 = vmatprep.mubr.bf16.mxu0 0
      %796 = vmatmul.mubr.bf16.gmra.mrb[0].mxu0 %v686
      %v797 = vpop.f32.mrb[0].mxu0
      %v798 = vadd.f32 0.0, %v797
      %v799 = vpop.f32.mrb[0].mxu0
      %v800 = vpop.f32.mrb[0].mxu0
      %v801 = vadd.f32 0.0, %v800
      %v802 = vpop.f32.mrb[0].mxu0
      %803 = vdwg.mxu0
      %v804 = vunpack.c.l.b16 %v542
      %v805 = vunpack.c.l.b16 %v555
      %v806 = vunpack.c.l.b16 %v568
      %v807 = vunpack.c.l.b16 %v581
      %v808 = vunpack.c.l.b16 %v594
      %v809 = vunpack.c.l.b16 %v607
      %v810 = vunpack.c.l.b16 %v620
      %v811 = vunpack.c.l.b16 %v633
      %v812 = vpack.c.b16 %v805, %v804
      %v813 = vpack.c.b16 %v807, %v806
      %v814 = vpack.c.b16 %v809, %v808
      %v815 = vpack.c.b16 %v811, %v810
      %v836 = vunpack.c.l.b16 %v634
      %v837 = vunpack.c.l.b16 %v635
      %v838 = vunpack.c.l.b16 %v636
      %v839 = vunpack.c.l.b16 %v637
      %v840 = vunpack.c.l.b16 %v638
      %v841 = vunpack.c.l.b16 %v639
      %v842 = vunpack.c.l.b16 %v640
      %v843 = vunpack.c.l.b16 %v641
      %v844 = vunpack.c.l.b16 %v642
      %v845 = vunpack.c.l.b16 %v643
      %v846 = vunpack.c.l.b16 %v644
      %v847 = vunpack.c.l.b16 %v645
      %v848 = vunpack.c.l.b16 %v646
      %v849 = vunpack.c.l.b16 %v647
      %v850 = vunpack.c.l.b16 %v648
      %v851 = vunpack.c.l.b16 %v649
      %v852 = vpack.c.b16 %v837, %v836
      %v853 = vpack.c.b16 %v839, %v838
      %v854 = vpack.c.b16 %v841, %v840
      %v855 = vpack.c.b16 %v843, %v842
      %v856 = vpack.c.b16 %v845, %v844
      %v857 = vpack.c.b16 %v847, %v846
      %v858 = vpack.c.b16 %v849, %v848
      %v859 = vpack.c.b16 %v851, %v850
      %868 = vmatprep.subr.bf16.mxu0 0
      %869 = vmatpush1.bf16.msra.mxu0 %v852
      %870 = vmatprep.subr.bf16.mxu0 0
      %871 = vmatpush1.bf16.msra.mxu0 %v853
      %872 = vmatprep.subr.bf16.mxu0 0
      %873 = vmatpush1.bf16.msra.mxu0 %v854
      %874 = vmatprep.subr.bf16.mxu0 0
      %875 = vmatpush1.bf16.msra.mxu0 %v855
      %876 = vmatprep.subr.bf16.mxu0 0
      %877 = vmatpush1.bf16.msra.mxu0 %v856
      %878 = vmatprep.subr.bf16.mxu0 0
      %879 = vmatpush1.bf16.msra.mxu0 %v857
      %880 = vmatprep.subr.bf16.mxu0 0
      %881 = vmatpush1.bf16.msra.mxu0 %v858
      %882 = vmatprep.subr.bf16.mxu0 0
      %883 = vmatpush1.bf16.msra.mxu0 %v859
      %884 = vmatprep.subr.bf16.mxu0 0
      %885 = vmatpush1.bf16.msra.mxu0 0
      %886 = vmatprep.subr.bf16.mxu0 0
      %887 = vmatpush1.bf16.msra.mxu0 0
      %888 = vmatprep.subr.bf16.mxu0 0
      %889 = vmatpush1.bf16.msra.mxu0 0
      %890 = vmatprep.subr.bf16.mxu0 0
      %891 = vmatpush1.bf16.msra.mxu0 0
      %892 = vmatprep.subr.bf16.mxu0 0
      %893 = vmatpush1.bf16.msra.mxu0 0
      %894 = vmatprep.subr.bf16.mxu0 0
      %895 = vmatpush1.bf16.msra.mxu0 0
      %896 = vmatprep.subr.bf16.mxu0 0
      %897 = vmatpush1.bf16.msra.mxu0 0
      %898 = vmatprep.subr.bf16.mxu0 0
      %899 = vmatpush1.bf16.msra.mxu0 0
      %900 = vmatprep.mubr.bf16.mxu0 0
      %901 = vmatmul.mubr.bf16.gmra.mrb[0].mxu0 %v812
      %v902 = vpop.f32.mrb[0].mxu0
      %v903 = vadd.f32 %v774, %v902
      %v904 = vpop.f32.mrb[0].mxu0
      %v905 = vpop.f32.mrb[0].mxu0
      %v906 = vadd.f32 %v777, %v905
      %v907 = vpop.f32.mrb[0].mxu0
      %908 = vmatprep.mubr.bf16.mxu0 0
      %909 = vmatmul.mubr.bf16.gmra.mrb[0].mxu0 %v813
      %v910 = vpop.f32.mrb[0].mxu0
      %v911 = vadd.f32 %v782, %v910
      %v912 = vpop.f32.mrb[0].mxu0
      %v913 = vpop.f32.mrb[0].mxu0
      %v914 = vadd.f32 %v785, %v913
      %v915 = vpop.f32.mrb[0].mxu0
      %916 = vmatprep.mubr.bf16.mxu0 0
      %917 = vmatmul.mubr.bf16.gmra.mrb[0].mxu0 %v814
      %v918 = vpop.f32.mrb[0].mxu0
      %v919 = vadd.f32 %v790, %v918
      %v920 = vpop.f32.mrb[0].mxu0
      %v921 = vpop.f32.mrb[0].mxu0
      %v922 = vadd.f32 %v793, %v921
      %v923 = vpop.f32.mrb[0].mxu0
      %924 = vmatprep.mubr.bf16.mxu0 0
      %925 = vmatmul.mubr.bf16.gmra.mrb[0].mxu0 %v815
      %v926 = vpop.f32.mrb[0].mxu0
      %v927 = vadd.f32 %v798, %v926
      %v928 = vpop.f32.mrb[0].mxu0
      %v929 = vpop.f32.mrb[0].mxu0
      %v930 = vadd.f32 %v801, %v929
      %v931 = vpop.f32.mrb[0].mxu0
      %932 = vdwg.mxu0
      %v933 = vld [vmem:[#allocation2 + $0x4] sm:$0xf]
      %v934 = vld [vmem:[#allocation2 + $0x8] sm:$0x1]
      %v935 = vld [vmem:[#allocation2 + $0x10] sm:$0xf]
      %v936 = vld [vmem:[#allocation2 + $0x14] sm:$0x1]
      %v937 = vld [vmem:[#allocation2 + $0x1c] sm:$0xf]
      %v938 = vld [vmem:[#allocation2 + $0x20] sm:$0x1]
      %v939 = vld [vmem:[#allocation2 + $0x28] sm:$0xf]
      %v940 = vld [vmem:[#allocation2 + $0x2c] sm:$0x1]
      %v941 = vld [vmem:[#allocation2 + $0x34] sm:$0xf]
      %v942 = vld [vmem:[#allocation2 + $0x38] sm:$0x1]
      %v943 = vld [vmem:[#allocation2 + $0x40] sm:$0xf]
      %v944 = vld [vmem:[#allocation2 + $0x44] sm:$0x1]
      %v945 = vld [vmem:[#allocation2 + $0x4c] sm:$0xf]
      %v946 = vld [vmem:[#allocation2 + $0x50] sm:$0x1]
      %v947 = vld [vmem:[#allocation2 + $0x58] sm:$0xf]
      %v948 = vld [vmem:[#allocation2 + $0x5c] sm:$0x1]
      %vm949 = vsmask.f32 3328
      %vm950 = vsmask.f32 7440
      %vm951 = vmor %vm949, %vm950
      %v953 = vshrl.u32 %v933, 16
      %v955 = vrot.slane %v953, 4
      %v956 = vshll.u32 %v933, 16
      %v958 = vrot.slane %v956, 5
      %v959 = vor.u32 %v955, %v958
      %v960 = vrot.slane %v959, 4
      %v962 = vshll.u32 %v934, 16
      %v964 = vrot.slane %v962, 5
      %v965 = vsel %vm951, %v960, %v964
      %v967 = vshrl.u32 %v935, 16
      %v969 = vrot.slane %v967, 4
      %v970 = vshll.u32 %v935, 16
      %v972 = vrot.slane %v970, 5
      %v973 = vor.u32 %v969, %v972
      %v974 = vrot.slane %v973, 4
      %v976 = vshll.u32 %v936, 16
      %v978 = vrot.slane %v976, 5
      %v979 = vsel %vm951, %v974, %v978
      %v981 = vshrl.u32 %v937, 16
      %v983 = vrot.slane %v981, 4
      %v984 = vshll.u32 %v937, 16
      %v986 = vrot.slane %v984, 5
      %v987 = vor.u32 %v983, %v986
      %v988 = vrot.slane %v987, 4
      %v990 = vshll.u32 %v938, 16
      %v992 = vrot.slane %v990, 5
      %v993 = vsel %vm951, %v988, %v992
      %v995 = vshrl.u32 %v939, 16
      %v997 = vrot.slane %v995, 4
      %v998 = vshll.u32 %v939, 16
      %v1000 = vrot.slane %v998, 5
      %v1001 = vor.u32 %v997, %v1000
      %v1002 = vrot.slane %v1001, 4
      %v1004 = vshll.u32 %v940, 16
      %v1006 = vrot.slane %v1004, 5
      %v1007 = vsel %vm951, %v1002, %v1006
      %v1009 = vshrl.u32 %v941, 16
      %v1011 = vrot.slane %v1009, 4
      %v1012 = vshll.u32 %v941, 16
      %v1014 = vrot.slane %v1012, 5
      %v1015 = vor.u32 %v1011, %v1014
      %v1016 = vrot.slane %v1015, 4
      %v1018 = vshll.u32 %v942, 16
      %v1020 = vrot.slane %v1018, 5
      %v1021 = vsel %vm951, %v1016, %v1020
      %v1023 = vshrl.u32 %v943, 16
      %v1025 = vrot.slane %v1023, 4
      %v1026 = vshll.u32 %v943, 16
      %v1028 = vrot.slane %v1026, 5
      %v1029 = vor.u32 %v1025, %v1028
      %v1030 = vrot.slane %v1029, 4
      %v1032 = vshll.u32 %v944, 16
      %v1034 = vrot.slane %v1032, 5
      %v1035 = vsel %vm951, %v1030, %v1034
      %v1037 = vshrl.u32 %v945, 16
      %v1039 = vrot.slane %v1037, 4
      %v1040 = vshll.u32 %v945, 16
      %v1042 = vrot.slane %v1040, 5
      %v1043 = vor.u32 %v1039, %v1042
      %v1044 = vrot.slane %v1043, 4
      %v1046 = vshll.u32 %v946, 16
      %v1048 = vrot.slane %v1046, 5
      %v1049 = vsel %vm951, %v1044, %v1048
      %v1051 = vshrl.u32 %v947, 16
      %v1053 = vrot.slane %v1051, 4
      %v1054 = vshll.u32 %v947, 16
      %v1056 = vrot.slane %v1054, 5
      %v1057 = vor.u32 %v1053, %v1056
      %v1058 = vrot.slane %v1057, 4
      %v1060 = vshll.u32 %v948, 16
      %v1062 = vrot.slane %v1060, 5
      %v1063 = vsel %vm951, %v1058, %v1062
      %s1064 = scalar_lea.vmem %s1, 128
      %v1065 = vld [vmem:[%s1064] sm:$0xf]
      %v1066 = vld [vmem:[%s1064 + $0x4] sm:$0xf]
      %v1067 = vld [vmem:[%s1064 + $0x8] sm:$0xf]
      %v1068 = vld [vmem:[%s1064 + $0xc] sm:$0xf]
      %v1069 = vld [vmem:[%s1064 + $0x10] sm:$0xf]
      %v1070 = vld [vmem:[%s1064 + $0x14] sm:$0xf]
      %v1071 = vld [vmem:[%s1064 + $0x18] sm:$0xf]
      %v1072 = vld [vmem:[%s1064 + $0x1c] sm:$0xf]
      %v1073 = vld [vmem:[%s1064 + $0x20] sm:$0xf]
      %v1074 = vld [vmem:[%s1064 + $0x24] sm:$0xf]
      %v1075 = vld [vmem:[%s1064 + $0x28] sm:$0xf]
      %v1076 = vld [vmem:[%s1064 + $0x2c] sm:$0xf]
      %v1077 = vld [vmem:[%s1064 + $0x30] sm:$0xf]
      %v1078 = vld [vmem:[%s1064 + $0x34] sm:$0xf]
      %v1079 = vld [vmem:[%s1064 + $0x38] sm:$0xf]
      %v1080 = vld [vmem:[%s1064 + $0x3c] sm:$0xf]
      %v1081 = vunpack.c.l.b16 %v965
      %v1082 = vunpack.c.l.b16 %v979
      %v1083 = vunpack.c.l.b16 %v993
      %v1084 = vunpack.c.l.b16 %v1007
      %v1085 = vunpack.c.l.b16 %v1021
      %v1086 = vunpack.c.l.b16 %v1035
      %v1087 = vunpack.c.l.b16 %v1049
      %v1088 = vunpack.c.l.b16 %v1063
      %v1089 = vpack.c.b16 %v1082, %v1081
      %v1090 = vpack.c.b16 %v1084, %v1083
      %v1091 = vpack.c.b16 %v1086, %v1085
      %v1092 = vpack.c.b16 %v1088, %v1087
      %v1113 = vunpack.c.l.b16 %v1065
      %v1114 = vunpack.c.l.b16 %v1066
      %v1115 = vunpack.c.l.b16 %v1067
      %v1116 = vunpack.c.l.b16 %v1068
      %v1117 = vunpack.c.l.b16 %v1069
      %v1118 = vunpack.c.l.b16 %v1070
      %v1119 = vunpack.c.l.b16 %v1071
      %v1120 = vunpack.c.l.b16 %v1072
      %v1121 = vunpack.c.l.b16 %v1073
      %v1122 = vunpack.c.l.b16 %v1074
      %v1123 = vunpack.c.l.b16 %v1075
      %v1124 = vunpack.c.l.b16 %v1076
      %v1125 = vunpack.c.l.b16 %v1077
      %v1126 = vunpack.c.l.b16 %v1078
      %v1127 = vunpack.c.l.b16 %v1079
      %v1128 = vunpack.c.l.b16 %v1080
      %v1129 = vpack.c.b16 %v1114, %v1113
      %v1130 = vpack.c.b16 %v1116, %v1115
      %v1131 = vpack.c.b16 %v1118, %v1117
      %v1132 = vpack.c.b16 %v1120, %v1119
      %v1133 = vpack.c.b16 %v1122, %v1121
      %v1134 = vpack.c.b16 %v1124, %v1123
      %v1135 = vpack.c.b16 %v1126, %v1125
      %v1136 = vpack.c.b16 %v1128, %v1127
      %1145 = vmatprep.subr.bf16.mxu0 0
      %1146 = vmatpush1.bf16.msra.mxu0 %v1129
      %1147 = vmatprep.subr.bf16.mxu0 0
      %1148 = vmatpush1.bf16.msra.mxu0 %v1130
      %1149 = vmatprep.subr.bf16.mxu0 0
      %1150 = vmatpush1.bf16.msra.mxu0 %v1131
      %1151 = vmatprep.subr.bf16.mxu0 0
      %1152 = vmatpush1.bf16.msra.mxu0 %v1132
      %1153 = vmatprep.subr.bf16.mxu0 0
      %1154 = vmatpush1.bf16.msra.mxu0 %v1133
      %1155 = vmatprep.subr.bf16.mxu0 0
      %1156 = vmatpush1.bf16.msra.mxu0 %v1134
      %1157 = vmatprep.subr.bf16.mxu0 0
      %1158 = vmatpush1.bf16.msra.mxu0 %v1135
      %1159 = vmatprep.subr.bf16.mxu0 0
      %1160 = vmatpush1.bf16.msra.mxu0 %v1136
      %1161 = vmatprep.subr.bf16.mxu0 0
      %1162 = vmatpush1.bf16.msra.mxu0 0
      %1163 = vmatprep.subr.bf16.mxu0 0
      %1164 = vmatpush1.bf16.msra.mxu0 0
      %1165 = vmatprep.subr.bf16.mxu0 0
      %1166 = vmatpush1.bf16.msra.mxu0 0
      %1167 = vmatprep.subr.bf16.mxu0 0
      %1168 = vmatpush1.bf16.msra.mxu0 0
      %1169 = vmatprep.subr.bf16.mxu0 0
      %1170 = vmatpush1.bf16.msra.mxu0 0
      %1171 = vmatprep.subr.bf16.mxu0 0
      %1172 = vmatpush1.bf16.msra.mxu0 0
      %1173 = vmatprep.subr.bf16.mxu0 0
      %1174 = vmatpush1.bf16.msra.mxu0 0
      %1175 = vmatprep.subr.bf16.mxu0 0
      %1176 = vmatpush1.bf16.msra.mxu0 0
      %1177 = vmatprep.mubr.bf16.mxu0 0
      %1178 = vmatmul.mubr.bf16.gmra.mrb[0].mxu0 %v1089
      %v1179 = vpop.f32.mrb[0].mxu0
      %v1180 = vadd.f32 0.0, %v1179
      %v1181 = vpop.f32.mrb[0].mxu0
      %v1182 = vpop.f32.mrb[0].mxu0
      %v1183 = vadd.f32 0.0, %v1182
      %v1184 = vpop.f32.mrb[0].mxu0
      %1185 = vmatprep.mubr.bf16.mxu0 0
      %1186 = vmatmul.mubr.bf16.gmra.mrb[0].mxu0 %v1090
      %v1187 = vpop.f32.mrb[0].mxu0
      %v1188 = vadd.f32 0.0, %v1187
      %v1189 = vpop.f32.mrb[0].mxu0
      %v1190 = vpop.f32.mrb[0].mxu0
      %v1191 = vadd.f32 0.0, %v1190
      %v1192 = vpop.f32.mrb[0].mxu0
      %1193 = vmatprep.mubr.bf16.mxu0 0
      %1194 = vmatmul.mubr.bf16.gmra.mrb[0].mxu0 %v1091
      %v1195 = vpop.f32.mrb[0].mxu0
      %v1196 = vadd.f32 0.0, %v1195
      %v1197 = vpop.f32.mrb[0].mxu0
      %v1198 = vpop.f32.mrb[0].mxu0
      %v1199 = vadd.f32 0.0, %v1198
      %v1200 = vpop.f32.mrb[0].mxu0
      %1201 = vmatprep.mubr.bf16.mxu0 0
      %1202 = vmatmul.mubr.bf16.gmra.mrb[0].mxu0 %v1092
      %v1203 = vpop.f32.mrb[0].mxu0
      %v1204 = vadd.f32 0.0, %v1203
      %v1205 = vpop.f32.mrb[0].mxu0
      %v1206 = vpop.f32.mrb[0].mxu0
      %v1207 = vadd.f32 0.0, %v1206
      %v1208 = vpop.f32.mrb[0].mxu0
      %1209 = vdwg.mxu0
      %v1210 = vadd.f32 %v903, %v1180
      %v1211 = vadd.f32 %v906, %v1183
      %v1212 = vadd.f32 %v911, %v1188
      %v1213 = vadd.f32 %v914, %v1191
      %v1214 = vadd.f32 %v919, %v1196
      %v1215 = vadd.f32 %v922, %v1199
      %v1216 = vadd.f32 %v927, %v1204
      %v1217 = vadd.f32 %v930, %v1207
      %v1218 = vld [vmem:[%s454] sm:$0x8]
      %v1219 = vld [vmem:[%s454 + $0x4] sm:$0xf]
      %v1220 = vld [vmem:[%s454 + $0xc] sm:$0x8]
      %v1221 = vld [vmem:[%s454 + $0x10] sm:$0xf]
      %v1222 = vld [vmem:[%s454 + $0x18] sm:$0x8]
      %v1223 = vld [vmem:[%s454 + $0x1c] sm:$0xf]
      %v1224 = vld [vmem:[%s454 + $0x24] sm:$0x8]
      %v1225 = vld [vmem:[%s454 + $0x28] sm:$0xf]
      %v1226 = vld [vmem:[%s454 + $0x30] sm:$0x8]
      %v1227 = vld [vmem:[%s454 + $0x34] sm:$0xf]
      %v1228 = vld [vmem:[%s454 + $0x3c] sm:$0x8]
      %v1229 = vld [vmem:[%s454 + $0x40] sm:$0xf]
      %v1230 = vld [vmem:[%s454 + $0x48] sm:$0x8]
      %v1231 = vld [vmem:[%s454 + $0x4c] sm:$0xf]
      %v1232 = vld [vmem:[%s454 + $0x54] sm:$0x8]
      %v1233 = vld [vmem:[%s454 + $0x58] sm:$0xf]
      %v1235 = vshrl.u32 %v1218, 16
      %v1237 = vrot.slane %v1235, 7
      %v1238 = vrot.slane %v1237, 4
      %v1240 = vshrl.u32 %v1219, 16
      %v1242 = vrot.slane %v1240, 7
      %v1243 = vshll.u32 %v1219, 16
      %v1245 = vor.u32 %v1242, %v1243
      %v1246 = vsel %vm529, %v1238, %v1245
      %v1248 = vshrl.u32 %v1220, 16
      %v1250 = vrot.slane %v1248, 7
      %v1251 = vrot.slane %v1250, 4
      %v1253 = vshrl.u32 %v1221, 16
      %v1255 = vrot.slane %v1253, 7
      %v1256 = vshll.u32 %v1221, 16
      %v1258 = vor.u32 %v1255, %v1256
      %v1259 = vsel %vm529, %v1251, %v1258
      %v1261 = vshrl.u32 %v1222, 16
      %v1263 = vrot.slane %v1261, 7
      %v1264 = vrot.slane %v1263, 4
      %v1266 = vshrl.u32 %v1223, 16
      %v1268 = vrot.slane %v1266, 7
      %v1269 = vshll.u32 %v1223, 16
      %v1271 = vor.u32 %v1268, %v1269
      %v1272 = vsel %vm529, %v1264, %v1271
      %v1274 = vshrl.u32 %v1224, 16
      %v1276 = vrot.slane %v1274, 7
      %v1277 = vrot.slane %v1276, 4
      %v1279 = vshrl.u32 %v1225, 16
      %v1281 = vrot.slane %v1279, 7
      %v1282 = vshll.u32 %v1225, 16
      %v1284 = vor.u32 %v1281, %v1282
      %v1285 = vsel %vm529, %v1277, %v1284
      %v1287 = vshrl.u32 %v1226, 16
      %v1289 = vrot.slane %v1287, 7
      %v1290 = vrot.slane %v1289, 4
      %v1292 = vshrl.u32 %v1227, 16
      %v1294 = vrot.slane %v1292, 7
      %v1295 = vshll.u32 %v1227, 16
      %v1297 = vor.u32 %v1294, %v1295
      %v1298 = vsel %vm529, %v1290, %v1297
      %v1300 = vshrl.u32 %v1228, 16
      %v1302 = vrot.slane %v1300, 7
      %v1303 = vrot.slane %v1302, 4
      %v1305 = vshrl.u32 %v1229, 16
      %v1307 = vrot.slane %v1305, 7
      %v1308 = vshll.u32 %v1229, 16
      %v1310 = vor.u32 %v1307, %v1308
      %v1311 = vsel %vm529, %v1303, %v1310
      %v1313 = vshrl.u32 %v1230, 16
      %v1315 = vrot.slane %v1313, 7
      %v1316 = vrot.slane %v1315, 4
      %v1318 = vshrl.u32 %v1231, 16
      %v1320 = vrot.slane %v1318, 7
      %v1321 = vshll.u32 %v1231, 16
      %v1323 = vor.u32 %v1320, %v1321
      %v1324 = vsel %vm529, %v1316, %v1323
      %v1326 = vshrl.u32 %v1232, 16
      %v1328 = vrot.slane %v1326, 7
      %v1329 = vrot.slane %v1328, 4
      %v1331 = vshrl.u32 %v1233, 16
      %v1333 = vrot.slane %v1331, 7
      %v1334 = vshll.u32 %v1233, 16
      %v1336 = vor.u32 %v1333, %v1334
      %v1337 = vsel %vm529, %v1329, %v1336
      %s1338 = scalar_lea.vmem %s1, 192
      %v1339 = vld [vmem:[%s1338] sm:$0xf]
      %v1340 = vld [vmem:[%s1338 + $0x4] sm:$0xf]
      %v1341 = vld [vmem:[%s1338 + $0x8] sm:$0xf]
      %v1342 = vld [vmem:[%s1338 + $0xc] sm:$0xf]
      %v1343 = vld [vmem:[%s1338 + $0x10] sm:$0xf]
      %v1344 = vld [vmem:[%s1338 + $0x14] sm:$0xf]
      %v1345 = vld [vmem:[%s1338 + $0x18] sm:$0xf]
      %v1346 = vld [vmem:[%s1338 + $0x1c] sm:$0xf]
      %v1347 = vld [vmem:[%s1338 + $0x20] sm:$0xf]
      %v1348 = vld [vmem:[%s1338 + $0x24] sm:$0xf]
      %v1349 = vld [vmem:[%s1338 + $0x28] sm:$0xf]
      %v1350 = vld [vmem:[%s1338 + $0x2c] sm:$0xf]
      %v1351 = vld [vmem:[%s1338 + $0x30] sm:$0xf]
      %v1352 = vld [vmem:[%s1338 + $0x34] sm:$0xf]
      %v1353 = vld [vmem:[%s1338 + $0x38] sm:$0xf]
      %v1354 = vld [vmem:[%s1338 + $0x3c] sm:$0xf]
      %v1355 = vunpack.c.l.b16 %v1246
      %v1356 = vunpack.c.l.b16 %v1259
      %v1357 = vunpack.c.l.b16 %v1272
      %v1358 = vunpack.c.l.b16 %v1285
      %v1359 = vunpack.c.l.b16 %v1298
      %v1360 = vunpack.c.l.b16 %v1311
      %v1361 = vunpack.c.l.b16 %v1324
      %v1362 = vunpack.c.l.b16 %v1337
      %v1363 = vpack.c.b16 %v1356, %v1355
      %v1364 = vpack.c.b16 %v1358, %v1357
      %v1365 = vpack.c.b16 %v1360, %v1359
      %v1366 = vpack.c.b16 %v1362, %v1361
      %v1387 = vunpack.c.l.b16 %v1339
      %v1388 = vunpack.c.l.b16 %v1340
      %v1389 = vunpack.c.l.b16 %v1341
      %v1390 = vunpack.c.l.b16 %v1342
      %v1391 = vunpack.c.l.b16 %v1343
      %v1392 = vunpack.c.l.b16 %v1344
      %v1393 = vunpack.c.l.b16 %v1345
      %v1394 = vunpack.c.l.b16 %v1346
      %v1395 = vunpack.c.l.b16 %v1347
      %v1396 = vunpack.c.l.b16 %v1348
      %v1397 = vunpack.c.l.b16 %v1349
      %v1398 = vunpack.c.l.b16 %v1350
      %v1399 = vunpack.c.l.b16 %v1351
      %v1400 = vunpack.c.l.b16 %v1352
      %v1401 = vunpack.c.l.b16 %v1353
      %v1402 = vunpack.c.l.b16 %v1354
      %v1403 = vpack.c.b16 %v1388, %v1387
      %v1404 = vpack.c.b16 %v1390, %v1389
      %v1405 = vpack.c.b16 %v1392, %v1391
      %v1406 = vpack.c.b16 %v1394, %v1393
      %v1407 = vpack.c.b16 %v1396, %v1395
      %v1408 = vpack.c.b16 %v1398, %v1397
      %v1409 = vpack.c.b16 %v1400, %v1399
      %v1410 = vpack.c.b16 %v1402, %v1401
      %1419 = vmatprep.subr.bf16.mxu0 0
      %1420 = vmatpush1.bf16.msra.mxu0 %v1403
      %1421 = vmatprep.subr.bf16.mxu0 0
      %1422 = vmatpush1.bf16.msra.mxu0 %v1404
      %1423 = vmatprep.subr.bf16.mxu0 0
      %1424 = vmatpush1.bf16.msra.mxu0 %v1405
      %1425 = vmatprep.subr.bf16.mxu0 0
      %1426 = vmatpush1.bf16.msra.mxu0 %v1406
      %1427 = vmatprep.subr.bf16.mxu0 0
      %1428 = vmatpush1.bf16.msra.mxu0 %v1407
      %1429 = vmatprep.subr.bf16.mxu0 0
      %1430 = vmatpush1.bf16.msra.mxu0 %v1408
      %1431 = vmatprep.subr.bf16.mxu0 0
      %1432 = vmatpush1.bf16.msra.mxu0 %v1409
      %1433 = vmatprep.subr.bf16.mxu0 0
      %1434 = vmatpush1.bf16.msra.mxu0 %v1410
      %1435 = vmatprep.subr.bf16.mxu0 0
      %1436 = vmatpush1.bf16.msra.mxu0 0
      %1437 = vmatprep.subr.bf16.mxu0 0
      %1438 = vmatpush1.bf16.msra.mxu0 0
      %1439 = vmatprep.subr.bf16.mxu0 0
      %1440 = vmatpush1.bf16.msra.mxu0 0
      %1441 = vmatprep.subr.bf16.mxu0 0
      %1442 = vmatpush1.bf16.msra.mxu0 0
      %1443 = vmatprep.subr.bf16.mxu0 0
      %1444 = vmatpush1.bf16.msra.mxu0 0
      %1445 = vmatprep.subr.bf16.mxu0 0
      %1446 = vmatpush1.bf16.msra.mxu0 0
      %1447 = vmatprep.subr.bf16.mxu0 0
      %1448 = vmatpush1.bf16.msra.mxu0 0
      %1449 = vmatprep.subr.bf16.mxu0 0
      %1450 = vmatpush1.bf16.msra.mxu0 0
      %1451 = vmatprep.mubr.bf16.mxu0 0
      %1452 = vmatmul.mubr.bf16.gmra.mrb[0].mxu0 %v1363
      %v1453 = vpop.f32.mrb[0].mxu0
      %v1454 = vadd.f32 0.0, %v1453
      %v1455 = vpop.f32.mrb[0].mxu0
      %v1456 = vpop.f32.mrb[0].mxu0
      %v1457 = vadd.f32 0.0, %v1456
      %v1458 = vpop.f32.mrb[0].mxu0
      %1459 = vmatprep.mubr.bf16.mxu0 0
      %1460 = vmatmul.mubr.bf16.gmra.mrb[0].mxu0 %v1364
      %v1461 = vpop.f32.mrb[0].mxu0
      %v1462 = vadd.f32 0.0, %v1461
      %v1463 = vpop.f32.mrb[0].mxu0
      %v1464 = vpop.f32.mrb[0].mxu0
      %v1465 = vadd.f32 0.0, %v1464
      %v1466 = vpop.f32.mrb[0].mxu0
      %1467 = vmatprep.mubr.bf16.mxu0 0
      %1468 = vmatmul.mubr.bf16.gmra.mrb[0].mxu0 %v1365
      %v1469 = vpop.f32.mrb[0].mxu0
      %v1470 = vadd.f32 0.0, %v1469
      %v1471 = vpop.f32.mrb[0].mxu0
      %v1472 = vpop.f32.mrb[0].mxu0
      %v1473 = vadd.f32 0.0, %v1472
      %v1474 = vpop.f32.mrb[0].mxu0
      %1475 = vmatprep.mubr.bf16.mxu0 0
      %1476 = vmatmul.mubr.bf16.gmra.mrb[0].mxu0 %v1366
      %v1477 = vpop.f32.mrb[0].mxu0
      %v1478 = vadd.f32 0.0, %v1477
      %v1479 = vpop.f32.mrb[0].mxu0
      %v1480 = vpop.f32.mrb[0].mxu0
      %v1481 = vadd.f32 0.0, %v1480
      %v1482 = vpop.f32.mrb[0].mxu0
      %1483 = vdwg.mxu0
      %v1484 = vadd.f32 %v1210, %v1454
      %v1485 = vadd.f32 %v1211, %v1457
      %v1486 = vadd.f32 %v1212, %v1462
      %v1487 = vadd.f32 %v1213, %v1465
      %v1488 = vadd.f32 %v1214, %v1470
      %v1489 = vadd.f32 %v1215, %v1473
      %v1490 = vadd.f32 %v1216, %v1478
      %v1491 = vadd.f32 %v1217, %v1481
      %s1492 = scalar_lea.vmem %s1, 256
      %v1493 = vld [vmem:[%s1492] sm:$0xf]
      %v1494 = vld [vmem:[%s1492 + $0x4] sm:$0xf]
      %v1495 = vld [vmem:[%s1492 + $0x8] sm:$0xf]
      %v1496 = vld [vmem:[%s1492 + $0xc] sm:$0xf]
      %v1497 = vld [vmem:[%s1492 + $0x10] sm:$0xf]
      %v1498 = vld [vmem:[%s1492 + $0x14] sm:$0xf]
      %v1499 = vld [vmem:[%s1492 + $0x18] sm:$0xf]
      %v1500 = vld [vmem:[%s1492 + $0x1c] sm:$0xf]
      %v1501 = vld [vmem:[%s1492 + $0x20] sm:$0xf]
      %v1502 = vld [vmem:[%s1492 + $0x24] sm:$0xf]
      %v1503 = vld [vmem:[%s1492 + $0x28] sm:$0xf]
      %v1504 = vld [vmem:[%s1492 + $0x2c] sm:$0xf]
      %v1505 = vld [vmem:[%s1492 + $0x30] sm:$0xf]
      %v1506 = vld [vmem:[%s1492 + $0x34] sm:$0xf]
      %v1507 = vld [vmem:[%s1492 + $0x38] sm:$0xf]
      %v1508 = vld [vmem:[%s1492 + $0x3c] sm:$0xf]
      %v1517 = vunpack.c.l.b16 %v1219
      %v1518 = vunpack.c.l.b16 %v1221
      %v1519 = vunpack.c.l.b16 %v1223
      %v1520 = vunpack.c.l.b16 %v1225
      %v1521 = vunpack.c.l.b16 %v1227
      %v1522 = vunpack.c.l.b16 %v1229
      %v1523 = vunpack.c.l.b16 %v1231
      %v1524 = vunpack.c.l.b16 %v1233
      %v1525 = vpack.c.b16 %v1518, %v1517
      %v1526 = vpack.c.b16 %v1520, %v1519
      %v1527 = vpack.c.b16 %v1522, %v1521
      %v1528 = vpack.c.b16 %v1524, %v1523
      %v1549 = vunpack.c.l.b16 %v1493
      %v1550 = vunpack.c.l.b16 %v1494
      %v1551 = vunpack.c.l.b16 %v1495
      %v1552 = vunpack.c.l.b16 %v1496
      %v1553 = vunpack.c.l.b16 %v1497
      %v1554 = vunpack.c.l.b16 %v1498
      %v1555 = vunpack.c.l.b16 %v1499
      %v1556 = vunpack.c.l.b16 %v1500
      %v1557 = vunpack.c.l.b16 %v1501
      %v1558 = vunpack.c.l.b16 %v1502
      %v1559 = vunpack.c.l.b16 %v1503
      %v1560 = vunpack.c.l.b16 %v1504
      %v1561 = vunpack.c.l.b16 %v1505
      %v1562 = vunpack.c.l.b16 %v1506
      %v1563 = vunpack.c.l.b16 %v1507
      %v1564 = vunpack.c.l.b16 %v1508
      %v1565 = vpack.c.b16 %v1550, %v1549
      %v1566 = vpack.c.b16 %v1552, %v1551
      %v1567 = vpack.c.b16 %v1554, %v1553
      %v1568 = vpack.c.b16 %v1556, %v1555
      %v1569 = vpack.c.b16 %v1558, %v1557
      %v1570 = vpack.c.b16 %v1560, %v1559
      %v1571 = vpack.c.b16 %v1562, %v1561
      %v1572 = vpack.c.b16 %v1564, %v1563
      %1581 = vmatprep.subr.bf16.mxu0 0
      %1582 = vmatpush1.bf16.msra.mxu0 %v1565
      %1583 = vmatprep.subr.bf16.mxu0 0
      %1584 = vmatpush1.bf16.msra.mxu0 %v1566
      %1585 = vmatprep.subr.bf16.mxu0 0
      %1586 = vmatpush1.bf16.msra.mxu0 %v1567
      %1587 = vmatprep.subr.bf16.mxu0 0
      %1588 = vmatpush1.bf16.msra.mxu0 %v1568
      %1589 = vmatprep.subr.bf16.mxu0 0
      %1590 = vmatpush1.bf16.msra.mxu0 %v1569
      %1591 = vmatprep.subr.bf16.mxu0 0
      %1592 = vmatpush1.bf16.msra.mxu0 %v1570
      %1593 = vmatprep.subr.bf16.mxu0 0
      %1594 = vmatpush1.bf16.msra.mxu0 %v1571
      %1595 = vmatprep.subr.bf16.mxu0 0
      %1596 = vmatpush1.bf16.msra.mxu0 %v1572
      %1597 = vmatprep.subr.bf16.mxu0 0
      %1598 = vmatpush1.bf16.msra.mxu0 0
      %1599 = vmatprep.subr.bf16.mxu0 0
      %1600 = vmatpush1.bf16.msra.mxu0 0
      %1601 = vmatprep.subr.bf16.mxu0 0
      %1602 = vmatpush1.bf16.msra.mxu0 0
      %1603 = vmatprep.subr.bf16.mxu0 0
      %1604 = vmatpush1.bf16.msra.mxu0 0
      %1605 = vmatprep.subr.bf16.mxu0 0
      %1606 = vmatpush1.bf16.msra.mxu0 0
      %1607 = vmatprep.subr.bf16.mxu0 0
      %1608 = vmatpush1.bf16.msra.mxu0 0
      %1609 = vmatprep.subr.bf16.mxu0 0
      %1610 = vmatpush1.bf16.msra.mxu0 0
      %1611 = vmatprep.subr.bf16.mxu0 0
      %1612 = vmatpush1.bf16.msra.mxu0 0
      %1613 = vmatprep.mubr.bf16.mxu0 0
      %1614 = vmatmul.mubr.bf16.gmra.mrb[0].mxu0 %v1525
      %v1615 = vpop.f32.mrb[0].mxu0
      %v1616 = vadd.f32 0.0, %v1615
      %v1617 = vpop.f32.mrb[0].mxu0
      %v1618 = vpop.f32.mrb[0].mxu0
      %v1619 = vadd.f32 0.0, %v1618
      %v1620 = vpop.f32.mrb[0].mxu0
      %1621 = vmatprep.mubr.bf16.mxu0 0
      %1622 = vmatmul.mubr.bf16.gmra.mrb[0].mxu0 %v1526
      %v1623 = vpop.f32.mrb[0].mxu0
      %v1624 = vadd.f32 0.0, %v1623
      %v1625 = vpop.f32.mrb[0].mxu0
      %v1626 = vpop.f32.mrb[0].mxu0
      %v1627 = vadd.f32 0.0, %v1626
      %v1628 = vpop.f32.mrb[0].mxu0
      %1629 = vmatprep.mubr.bf16.mxu0 0
      %1630 = vmatmul.mubr.bf16.gmra.mrb[0].mxu0 %v1527
      %v1631 = vpop.f32.mrb[0].mxu0
      %v1632 = vadd.f32 0.0, %v1631
      %v1633 = vpop.f32.mrb[0].mxu0
      %v1634 = vpop.f32.mrb[0].mxu0
      %v1635 = vadd.f32 0.0, %v1634
      %v1636 = vpop.f32.mrb[0].mxu0
      %1637 = vmatprep.mubr.bf16.mxu0 0
      %1638 = vmatmul.mubr.bf16.gmra.mrb[0].mxu0 %v1528
      %v1639 = vpop.f32.mrb[0].mxu0
      %v1640 = vadd.f32 0.0, %v1639
      %v1641 = vpop.f32.mrb[0].mxu0
      %v1642 = vpop.f32.mrb[0].mxu0
      %v1643 = vadd.f32 0.0, %v1642
      %v1644 = vpop.f32.mrb[0].mxu0
      %1645 = vdwg.mxu0
      %v1646 = vadd.f32 %v1484, %v1616
      %v1647 = vadd.f32 %v1485, %v1619
      %v1648 = vadd.f32 %v1486, %v1624
      %v1649 = vadd.f32 %v1487, %v1627
      %v1650 = vadd.f32 %v1488, %v1632
      %v1651 = vadd.f32 %v1489, %v1635
      %v1652 = vadd.f32 %v1490, %v1640
      %v1653 = vadd.f32 %v1491, %v1643
      %v1654 = vld [vmem:[%s454 + $0x4] sm:$0xf]
      %v1655 = vld [vmem:[%s454 + $0x8] sm:$0x1]
      %v1656 = vld [vmem:[%s454 + $0x10] sm:$0xf]
      %v1657 = vld [vmem:[%s454 + $0x14] sm:$0x1]
      %v1658 = vld [vmem:[%s454 + $0x1c] sm:$0xf]
      %v1659 = vld [vmem:[%s454 + $0x20] sm:$0x1]
      %v1660 = vld [vmem:[%s454 + $0x28] sm:$0xf]
      %v1661 = vld [vmem:[%s454 + $0x2c] sm:$0x1]
      %v1662 = vld [vmem:[%s454 + $0x34] sm:$0xf]
      %v1663 = vld [vmem:[%s454 + $0x38] sm:$0x1]
      %v1664 = vld [vmem:[%s454 + $0x40] sm:$0xf]
      %v1665 = vld [vmem:[%s454 + $0x44] sm:$0x1]
      %v1666 = vld [vmem:[%s454 + $0x4c] sm:$0xf]
      %v1667 = vld [vmem:[%s454 + $0x50] sm:$0x1]
      %v1668 = vld [vmem:[%s454 + $0x58] sm:$0xf]
      %v1669 = vld [vmem:[%s454 + $0x5c] sm:$0x1]
      %v1671 = vshrl.u32 %v1654, 16
      %v1673 = vrot.slane %v1671, 4
      %v1674 = vshll.u32 %v1654, 16
      %v1676 = vrot.slane %v1674, 5
      %v1677 = vor.u32 %v1673, %v1676
      %v1678 = vrot.slane %v1677, 4
      %v1680 = vshll.u32 %v1655, 16
      %v1682 = vrot.slane %v1680, 5
      %v1683 = vsel %vm951, %v1678, %v1682
      %v1685 = vshrl.u32 %v1656, 16
      %v1687 = vrot.slane %v1685, 4
      %v1688 = vshll.u32 %v1656, 16
      %v1690 = vrot.slane %v1688, 5
      %v1691 = vor.u32 %v1687, %v1690
      %v1692 = vrot.slane %v1691, 4
      %v1694 = vshll.u32 %v1657, 16
      %v1696 = vrot.slane %v1694, 5
      %v1697 = vsel %vm951, %v1692, %v1696
      %v1699 = vshrl.u32 %v1658, 16
      %v1701 = vrot.slane %v1699, 4
      %v1702 = vshll.u32 %v1658, 16
      %v1704 = vrot.slane %v1702, 5
      %v1705 = vor.u32 %v1701, %v1704
      %v1706 = vrot.slane %v1705, 4
      %v1708 = vshll.u32 %v1659, 16
      %v1710 = vrot.slane %v1708, 5
      %v1711 = vsel %vm951, %v1706, %v1710
      %v1713 = vshrl.u32 %v1660, 16
      %v1715 = vrot.slane %v1713, 4
      %v1716 = vshll.u32 %v1660, 16
      %v1718 = vrot.slane %v1716, 5
      %v1719 = vor.u32 %v1715, %v1718
      %v1720 = vrot.slane %v1719, 4
      %v1722 = vshll.u32 %v1661, 16
      %v1724 = vrot.slane %v1722, 5
      %v1725 = vsel %vm951, %v1720, %v1724
      %v1727 = vshrl.u32 %v1662, 16
      %v1729 = vrot.slane %v1727, 4
      %v1730 = vshll.u32 %v1662, 16
      %v1732 = vrot.slane %v1730, 5
      %v1733 = vor.u32 %v1729, %v1732
      %v1734 = vrot.slane %v1733, 4
      %v1736 = vshll.u32 %v1663, 16
      %v1738 = vrot.slane %v1736, 5
      %v1739 = vsel %vm951, %v1734, %v1738
      %v1741 = vshrl.u32 %v1664, 16
      %v1743 = vrot.slane %v1741, 4
      %v1744 = vshll.u32 %v1664, 16
      %v1746 = vrot.slane %v1744, 5
      %v1747 = vor.u32 %v1743, %v1746
      %v1748 = vrot.slane %v1747, 4
      %v1750 = vshll.u32 %v1665, 16
      %v1752 = vrot.slane %v1750, 5
      %v1753 = vsel %vm951, %v1748, %v1752
      %v1755 = vshrl.u32 %v1666, 16
      %v1757 = vrot.slane %v1755, 4
      %v1758 = vshll.u32 %v1666, 16
      %v1760 = vrot.slane %v1758, 5
      %v1761 = vor.u32 %v1757, %v1760
      %v1762 = vrot.slane %v1761, 4
      %v1764 = vshll.u32 %v1667, 16
      %v1766 = vrot.slane %v1764, 5
      %v1767 = vsel %vm951, %v1762, %v1766
      %v1769 = vshrl.u32 %v1668, 16
      %v1771 = vrot.slane %v1769, 4
      %v1772 = vshll.u32 %v1668, 16
      %v1774 = vrot.slane %v1772, 5
      %v1775 = vor.u32 %v1771, %v1774
      %v1776 = vrot.slane %v1775, 4
      %v1778 = vshll.u32 %v1669, 16
      %v1780 = vrot.slane %v1778, 5
      %v1781 = vsel %vm951, %v1776, %v1780
      %s1782 = scalar_lea.vmem %s1, 320
      %v1783 = vld [vmem:[%s1782] sm:$0xf]
      %v1784 = vld [vmem:[%s1782 + $0x4] sm:$0xf]
      %v1785 = vld [vmem:[%s1782 + $0x8] sm:$0xf]
      %v1786 = vld [vmem:[%s1782 + $0xc] sm:$0xf]
      %v1787 = vld [vmem:[%s1782 + $0x10] sm:$0xf]
      %v1788 = vld [vmem:[%s1782 + $0x14] sm:$0xf]
      %v1789 = vld [vmem:[%s1782 + $0x18] sm:$0xf]
      %v1790 = vld [vmem:[%s1782 + $0x1c] sm:$0xf]
      %v1791 = vld [vmem:[%s1782 + $0x20] sm:$0xf]
      %v1792 = vld [vmem:[%s1782 + $0x24] sm:$0xf]
      %v1793 = vld [vmem:[%s1782 + $0x28] sm:$0xf]
      %v1794 = vld [vmem:[%s1782 + $0x2c] sm:$0xf]
      %v1795 = vld [vmem:[%s1782 + $0x30] sm:$0xf]
      %v1796 = vld [vmem:[%s1782 + $0x34] sm:$0xf]
      %v1797 = vld [vmem:[%s1782 + $0x38] sm:$0xf]
      %v1798 = vld [vmem:[%s1782 + $0x3c] sm:$0xf]
      %v1799 = vunpack.c.l.b16 %v1683
      %v1800 = vunpack.c.l.b16 %v1697
      %v1801 = vunpack.c.l.b16 %v1711
      %v1802 = vunpack.c.l.b16 %v1725
      %v1803 = vunpack.c.l.b16 %v1739
      %v1804 = vunpack.c.l.b16 %v1753
      %v1805 = vunpack.c.l.b16 %v1767
      %v1806 = vunpack.c.l.b16 %v1781
      %v1807 = vpack.c.b16 %v1800, %v1799
      %v1808 = vpack.c.b16 %v1802, %v1801
      %v1809 = vpack.c.b16 %v1804, %v1803
      %v1810 = vpack.c.b16 %v1806, %v1805
      %v1831 = vunpack.c.l.b16 %v1783
      %v1832 = vunpack.c.l.b16 %v1784
      %v1833 = vunpack.c.l.b16 %v1785
      %v1834 = vunpack.c.l.b16 %v1786
      %v1835 = vunpack.c.l.b16 %v1787
      %v1836 = vunpack.c.l.b16 %v1788
      %v1837 = vunpack.c.l.b16 %v1789
      %v1838 = vunpack.c.l.b16 %v1790
      %v1839 = vunpack.c.l.b16 %v1791
      %v1840 = vunpack.c.l.b16 %v1792
      %v1841 = vunpack.c.l.b16 %v1793
      %v1842 = vunpack.c.l.b16 %v1794
      %v1843 = vunpack.c.l.b16 %v1795
      %v1844 = vunpack.c.l.b16 %v1796
      %v1845 = vunpack.c.l.b16 %v1797
      %v1846 = vunpack.c.l.b16 %v1798
      %v1847 = vpack.c.b16 %v1832, %v1831
      %v1848 = vpack.c.b16 %v1834, %v1833
      %v1849 = vpack.c.b16 %v1836, %v1835
      %v1850 = vpack.c.b16 %v1838, %v1837
      %v1851 = vpack.c.b16 %v1840, %v1839
      %v1852 = vpack.c.b16 %v1842, %v1841
      %v1853 = vpack.c.b16 %v1844, %v1843
      %v1854 = vpack.c.b16 %v1846, %v1845
      %1863 = vmatprep.subr.bf16.mxu0 0
      %1864 = vmatpush1.bf16.msra.mxu0 %v1847
      %1865 = vmatprep.subr.bf16.mxu0 0
      %1866 = vmatpush1.bf16.msra.mxu0 %v1848
      %1867 = vmatprep.subr.bf16.mxu0 0
      %1868 = vmatpush1.bf16.msra.mxu0 %v1849
      %1869 = vmatprep.subr.bf16.mxu0 0
      %1870 = vmatpush1.bf16.msra.mxu0 %v1850
      %1871 = vmatprep.subr.bf16.mxu0 0
      %1872 = vmatpush1.bf16.msra.mxu0 %v1851
      %1873 = vmatprep.subr.bf16.mxu0 0
      %1874 = vmatpush1.bf16.msra.mxu0 %v1852
      %1875 = vmatprep.subr.bf16.mxu0 0
      %1876 = vmatpush1.bf16.msra.mxu0 %v1853
      %1877 = vmatprep.subr.bf16.mxu0 0
      %1878 = vmatpush1.bf16.msra.mxu0 %v1854
      %1879 = vmatprep.subr.bf16.mxu0 0
      %1880 = vmatpush1.bf16.msra.mxu0 0
      %1881 = vmatprep.subr.bf16.mxu0 0
      %1882 = vmatpush1.bf16.msra.mxu0 0
      %1883 = vmatprep.subr.bf16.mxu0 0
      %1884 = vmatpush1.bf16.msra.mxu0 0
      %1885 = vmatprep.subr.bf16.mxu0 0
      %1886 = vmatpush1.bf16.msra.mxu0 0
      %1887 = vmatprep.subr.bf16.mxu0 0
      %1888 = vmatpush1.bf16.msra.mxu0 0
      %1889 = vmatprep.subr.bf16.mxu0 0
      %1890 = vmatpush1.bf16.msra.mxu0 0
      %1891 = vmatprep.subr.bf16.mxu0 0
      %1892 = vmatpush1.bf16.msra.mxu0 0
      %1893 = vmatprep.subr.bf16.mxu0 0
      %1894 = vmatpush1.bf16.msra.mxu0 0
      %1895 = vmatprep.mubr.bf16.mxu0 0
      %1896 = vmatmul.mubr.bf16.gmra.mrb[0].mxu0 %v1807
      %v1897 = vpop.f32.mrb[0].mxu0
      %v1898 = vadd.f32 0.0, %v1897
      %v1899 = vpop.f32.mrb[0].mxu0
      %v1900 = vpop.f32.mrb[0].mxu0
      %v1901 = vadd.f32 0.0, %v1900
      %v1902 = vpop.f32.mrb[0].mxu0
      %1903 = vmatprep.mubr.bf16.mxu0 0
      %1904 = vmatmul.mubr.bf16.gmra.mrb[0].mxu0 %v1808
      %v1905 = vpop.f32.mrb[0].mxu0
      %v1906 = vadd.f32 0.0, %v1905
      %v1907 = vpop.f32.mrb[0].mxu0
      %v1908 = vpop.f32.mrb[0].mxu0
      %v1909 = vadd.f32 0.0, %v1908
      %v1910 = vpop.f32.mrb[0].mxu0
      %1911 = vmatprep.mubr.bf16.mxu0 0
      %1912 = vmatmul.mubr.bf16.gmra.mrb[0].mxu0 %v1809
      %v1913 = vpop.f32.mrb[0].mxu0
      %v1914 = vadd.f32 0.0, %v1913
      %v1915 = vpop.f32.mrb[0].mxu0
      %v1916 = vpop.f32.mrb[0].mxu0
      %v1917 = vadd.f32 0.0, %v1916
      %v1918 = vpop.f32.mrb[0].mxu0
      %1919 = vmatprep.mubr.bf16.mxu0 0
      %1920 = vmatmul.mubr.bf16.gmra.mrb[0].mxu0 %v1810
      %v1921 = vpop.f32.mrb[0].mxu0
      %v1922 = vadd.f32 0.0, %v1921
      %v1923 = vpop.f32.mrb[0].mxu0
      %v1924 = vpop.f32.mrb[0].mxu0
      %v1925 = vadd.f32 0.0, %v1924
      %v1926 = vpop.f32.mrb[0].mxu0
      %1927 = vdwg.mxu0
      %v1928 = vadd.f32 %v1646, %v1898
      %v1929 = vadd.f32 %v1647, %v1901
      %v1930 = vadd.f32 %v1648, %v1906
      %v1931 = vadd.f32 %v1649, %v1909
      %v1932 = vadd.f32 %v1650, %v1914
      %v1933 = vadd.f32 %v1651, %v1917
      %v1934 = vadd.f32 %v1652, %v1922
      %v1935 = vadd.f32 %v1653, %v1925
      %s1936 = scalar_lea.vmem [#allocation2], 24
      %v1937 = vld [vmem:[%s1936] sm:$0x8]
      %v1938 = vld [vmem:[%s1936 + $0x4] sm:$0xf]
      %v1939 = vld [vmem:[%s1936 + $0xc] sm:$0x8]
      %v1940 = vld [vmem:[%s1936 + $0x10] sm:$0xf]
      %v1941 = vld [vmem:[%s1936 + $0x18] sm:$0x8]
      %v1942 = vld [vmem:[%s1936 + $0x1c] sm:$0xf]
      %v1943 = vld [vmem:[%s1936 + $0x24] sm:$0x8]
      %v1944 = vld [vmem:[%s1936 + $0x28] sm:$0xf]
      %v1945 = vld [vmem:[%s1936 + $0x30] sm:$0x8]
      %v1946 = vld [vmem:[%s1936 + $0x34] sm:$0xf]
      %v1947 = vld [vmem:[%s1936 + $0x3c] sm:$0x8]
      %v1948 = vld [vmem:[%s1936 + $0x40] sm:$0xf]
      %v1949 = vld [vmem:[%s1936 + $0x48] sm:$0x8]
      %v1950 = vld [vmem:[%s1936 + $0x4c] sm:$0xf]
      %v1951 = vld [vmem:[%s1936 + $0x54] sm:$0x8]
      %v1952 = vld [vmem:[%s1936 + $0x58] sm:$0xf]
      %v1954 = vshrl.u32 %v1937, 16
      %v1956 = vrot.slane %v1954, 7
      %v1957 = vrot.slane %v1956, 4
      %v1959 = vshrl.u32 %v1938, 16
      %v1961 = vrot.slane %v1959, 7
      %v1962 = vshll.u32 %v1938, 16
      %v1964 = vor.u32 %v1961, %v1962
      %v1965 = vsel %vm529, %v1957, %v1964
      %v1967 = vshrl.u32 %v1939, 16
      %v1969 = vrot.slane %v1967, 7
      %v1970 = vrot.slane %v1969, 4
      %v1972 = vshrl.u32 %v1940, 16
      %v1974 = vrot.slane %v1972, 7
      %v1975 = vshll.u32 %v1940, 16
      %v1977 = vor.u32 %v1974, %v1975
      %v1978 = vsel %vm529, %v1970, %v1977
      %v1980 = vshrl.u32 %v1941, 16
      %v1982 = vrot.slane %v1980, 7
      %v1983 = vrot.slane %v1982, 4
      %v1985 = vshrl.u32 %v1942, 16
      %v1987 = vrot.slane %v1985, 7
      %v1988 = vshll.u32 %v1942, 16
      %v1990 = vor.u32 %v1987, %v1988
      %v1991 = vsel %vm529, %v1983, %v1990
      %v1993 = vshrl.u32 %v1943, 16
      %v1995 = vrot.slane %v1993, 7
      %v1996 = vrot.slane %v1995, 4
      %v1998 = vshrl.u32 %v1944, 16
      %v2000 = vrot.slane %v1998, 7
      %v2001 = vshll.u32 %v1944, 16
      %v2003 = vor.u32 %v2000, %v2001
      %v2004 = vsel %vm529, %v1996, %v2003
      %v2006 = vshrl.u32 %v1945, 16
      %v2008 = vrot.slane %v2006, 7
      %v2009 = vrot.slane %v2008, 4
      %v2011 = vshrl.u32 %v1946, 16
      %v2013 = vrot.slane %v2011, 7
      %v2014 = vshll.u32 %v1946, 16
      %v2016 = vor.u32 %v2013, %v2014
      %v2017 = vsel %vm529, %v2009, %v2016
      %v2019 = vshrl.u32 %v1947, 16
      %v2021 = vrot.slane %v2019, 7
      %v2022 = vrot.slane %v2021, 4
      %v2024 = vshrl.u32 %v1948, 16
      %v2026 = vrot.slane %v2024, 7
      %v2027 = vshll.u32 %v1948, 16
      %v2029 = vor.u32 %v2026, %v2027
      %v2030 = vsel %vm529, %v2022, %v2029
      %v2032 = vshrl.u32 %v1949, 16
      %v2034 = vrot.slane %v2032, 7
      %v2035 = vrot.slane %v2034, 4
      %v2037 = vshrl.u32 %v1950, 16
      %v2039 = vrot.slane %v2037, 7
      %v2040 = vshll.u32 %v1950, 16
      %v2042 = vor.u32 %v2039, %v2040
      %v2043 = vsel %vm529, %v2035, %v2042
      %v2045 = vshrl.u32 %v1951, 16
      %v2047 = vrot.slane %v2045, 7
      %v2048 = vrot.slane %v2047, 4
      %v2050 = vshrl.u32 %v1952, 16
      %v2052 = vrot.slane %v2050, 7
      %v2053 = vshll.u32 %v1952, 16
      %v2055 = vor.u32 %v2052, %v2053
      %v2056 = vsel %vm529, %v2048, %v2055
      %s2057 = scalar_lea.vmem %s1, 384
      %v2058 = vld [vmem:[%s2057] sm:$0xf]
      %v2059 = vld [vmem:[%s2057 + $0x4] sm:$0xf]
      %v2060 = vld [vmem:[%s2057 + $0x8] sm:$0xf]
      %v2061 = vld [vmem:[%s2057 + $0xc] sm:$0xf]
      %v2062 = vld [vmem:[%s2057 + $0x10] sm:$0xf]
      %v2063 = vld [vmem:[%s2057 + $0x14] sm:$0xf]
      %v2064 = vld [vmem:[%s2057 + $0x18] sm:$0xf]
      %v2065 = vld [vmem:[%s2057 + $0x1c] sm:$0xf]
      %v2066 = vld [vmem:[%s2057 + $0x20] sm:$0xf]
      %v2067 = vld [vmem:[%s2057 + $0x24] sm:$0xf]
      %v2068 = vld [vmem:[%s2057 + $0x28] sm:$0xf]
      %v2069 = vld [vmem:[%s2057 + $0x2c] sm:$0xf]
      %v2070 = vld [vmem:[%s2057 + $0x30] sm:$0xf]
      %v2071 = vld [vmem:[%s2057 + $0x34] sm:$0xf]
      %v2072 = vld [vmem:[%s2057 + $0x38] sm:$0xf]
      %v2073 = vld [vmem:[%s2057 + $0x3c] sm:$0xf]
      %v2074 = vunpack.c.l.b16 %v1965
      %v2075 = vunpack.c.l.b16 %v1978
      %v2076 = vunpack.c.l.b16 %v1991
      %v2077 = vunpack.c.l.b16 %v2004
      %v2078 = vunpack.c.l.b16 %v2017
      %v2079 = vunpack.c.l.b16 %v2030
      %v2080 = vunpack.c.l.b16 %v2043
      %v2081 = vunpack.c.l.b16 %v2056
      %v2082 = vpack.c.b16 %v2075, %v2074
      %v2083 = vpack.c.b16 %v2077, %v2076
      %v2084 = vpack.c.b16 %v2079, %v2078
      %v2085 = vpack.c.b16 %v2081, %v2080
      %v2106 = vunpack.c.l.b16 %v2058
      %v2107 = vunpack.c.l.b16 %v2059
      %v2108 = vunpack.c.l.b16 %v2060
      %v2109 = vunpack.c.l.b16 %v2061
      %v2110 = vunpack.c.l.b16 %v2062
      %v2111 = vunpack.c.l.b16 %v2063
      %v2112 = vunpack.c.l.b16 %v2064
      %v2113 = vunpack.c.l.b16 %v2065
      %v2114 = vunpack.c.l.b16 %v2066
      %v2115 = vunpack.c.l.b16 %v2067
      %v2116 = vunpack.c.l.b16 %v2068
      %v2117 = vunpack.c.l.b16 %v2069
      %v2118 = vunpack.c.l.b16 %v2070
      %v2119 = vunpack.c.l.b16 %v2071
      %v2120 = vunpack.c.l.b16 %v2072
      %v2121 = vunpack.c.l.b16 %v2073
      %v2122 = vpack.c.b16 %v2107, %v2106
      %v2123 = vpack.c.b16 %v2109, %v2108
      %v2124 = vpack.c.b16 %v2111, %v2110
      %v2125 = vpack.c.b16 %v2113, %v2112
      %v2126 = vpack.c.b16 %v2115, %v2114
      %v2127 = vpack.c.b16 %v2117, %v2116
      %v2128 = vpack.c.b16 %v2119, %v2118
      %v2129 = vpack.c.b16 %v2121, %v2120
      %2138 = vmatprep.subr.bf16.mxu0 0
      %2139 = vmatpush1.bf16.msra.mxu0 %v2122
      %2140 = vmatprep.subr.bf16.mxu0 0
      %2141 = vmatpush1.bf16.msra.mxu0 %v2123
      %2142 = vmatprep.subr.bf16.mxu0 0
      %2143 = vmatpush1.bf16.msra.mxu0 %v2124
      %2144 = vmatprep.subr.bf16.mxu0 0
      %2145 = vmatpush1.bf16.msra.mxu0 %v2125
      %2146 = vmatprep.subr.bf16.mxu0 0
      %2147 = vmatpush1.bf16.msra.mxu0 %v2126
      %2148 = vmatprep.subr.bf16.mxu0 0
      %2149 = vmatpush1.bf16.msra.mxu0 %v2127
      %2150 = vmatprep.subr.bf16.mxu0 0
      %2151 = vmatpush1.bf16.msra.mxu0 %v2128
      %2152 = vmatprep.subr.bf16.mxu0 0
      %2153 = vmatpush1.bf16.msra.mxu0 %v2129
      %2154 = vmatprep.subr.bf16.mxu0 0
      %2155 = vmatpush1.bf16.msra.mxu0 0
      %2156 = vmatprep.subr.bf16.mxu0 0
      %2157 = vmatpush1.bf16.msra.mxu0 0
      %2158 = vmatprep.subr.bf16.mxu0 0
      %2159 = vmatpush1.bf16.msra.mxu0 0
      %2160 = vmatprep.subr.bf16.mxu0 0
      %2161 = vmatpush1.bf16.msra.mxu0 0
      %2162 = vmatprep.subr.bf16.mxu0 0
      %2163 = vmatpush1.bf16.msra.mxu0 0
      %2164 = vmatprep.subr.bf16.mxu0 0
      %2165 = vmatpush1.bf16.msra.mxu0 0
      %2166 = vmatprep.subr.bf16.mxu0 0
      %2167 = vmatpush1.bf16.msra.mxu0 0
      %2168 = vmatprep.subr.bf16.mxu0 0
      %2169 = vmatpush1.bf16.msra.mxu0 0
      %2170 = vmatprep.mubr.bf16.mxu0 0
      %2171 = vmatmul.mubr.bf16.gmra.mrb[0].mxu0 %v2082
      %v2172 = vpop.f32.mrb[0].mxu0
      %v2173 = vadd.f32 0.0, %v2172
      %v2174 = vpop.f32.mrb[0].mxu0
      %v2175 = vpop.f32.mrb[0].mxu0
      %v2176 = vadd.f32 0.0, %v2175
      %v2177 = vpop.f32.mrb[0].mxu0
      %2178 = vmatprep.mubr.bf16.mxu0 0
      %2179 = vmatmul.mubr.bf16.gmra.mrb[0].mxu0 %v2083
      %v2180 = vpop.f32.mrb[0].mxu0
      %v2181 = vadd.f32 0.0, %v2180
      %v2182 = vpop.f32.mrb[0].mxu0
      %v2183 = vpop.f32.mrb[0].mxu0
      %v2184 = vadd.f32 0.0, %v2183
      %v2185 = vpop.f32.mrb[0].mxu0
      %2186 = vmatprep.mubr.bf16.mxu0 0
      %2187 = vmatmul.mubr.bf16.gmra.mrb[0].mxu0 %v2084
      %v2188 = vpop.f32.mrb[0].mxu0
      %v2189 = vadd.f32 0.0, %v2188
      %v2190 = vpop.f32.mrb[0].mxu0
      %v2191 = vpop.f32.mrb[0].mxu0
      %v2192 = vadd.f32 0.0, %v2191
      %v2193 = vpop.f32.mrb[0].mxu0
      %2194 = vmatprep.mubr.bf16.mxu0 0
      %2195 = vmatmul.mubr.bf16.gmra.mrb[0].mxu0 %v2085
      %v2196 = vpop.f32.mrb[0].mxu0
      %v2197 = vadd.f32 0.0, %v2196
      %v2198 = vpop.f32.mrb[0].mxu0
      %v2199 = vpop.f32.mrb[0].mxu0
      %v2200 = vadd.f32 0.0, %v2199
      %v2201 = vpop.f32.mrb[0].mxu0
      %2202 = vdwg.mxu0
      %v2203 = vadd.f32 %v1928, %v2173
      %v2204 = vadd.f32 %v1929, %v2176
      %v2205 = vadd.f32 %v1930, %v2181
      %v2206 = vadd.f32 %v1931, %v2184
      %v2207 = vadd.f32 %v1932, %v2189
      %v2208 = vadd.f32 %v1933, %v2192
      %v2209 = vadd.f32 %v1934, %v2197
      %v2210 = vadd.f32 %v1935, %v2200
      %s2211 = scalar_lea.vmem %s1, 448
      %v2212 = vld [vmem:[%s2211] sm:$0xf]
      %v2213 = vld [vmem:[%s2211 + $0x4] sm:$0xf]
      %v2214 = vld [vmem:[%s2211 + $0x8] sm:$0xf]
      %v2215 = vld [vmem:[%s2211 + $0xc] sm:$0xf]
      %v2216 = vld [vmem:[%s2211 + $0x10] sm:$0xf]
      %v2217 = vld [vmem:[%s2211 + $0x14] sm:$0xf]
      %v2218 = vld [vmem:[%s2211 + $0x18] sm:$0xf]
      %v2219 = vld [vmem:[%s2211 + $0x1c] sm:$0xf]
      %v2220 = vld [vmem:[%s2211 + $0x20] sm:$0xf]
      %v2221 = vld [vmem:[%s2211 + $0x24] sm:$0xf]
      %v2222 = vld [vmem:[%s2211 + $0x28] sm:$0xf]
      %v2223 = vld [vmem:[%s2211 + $0x2c] sm:$0xf]
      %v2224 = vld [vmem:[%s2211 + $0x30] sm:$0xf]
      %v2225 = vld [vmem:[%s2211 + $0x34] sm:$0xf]
      %v2226 = vld [vmem:[%s2211 + $0x38] sm:$0xf]
      %v2227 = vld [vmem:[%s2211 + $0x3c] sm:$0xf]
      %v2236 = vunpack.c.l.b16 %v1938
      %v2237 = vunpack.c.l.b16 %v1940
      %v2238 = vunpack.c.l.b16 %v1942
      %v2239 = vunpack.c.l.b16 %v1944
      %v2240 = vunpack.c.l.b16 %v1946
      %v2241 = vunpack.c.l.b16 %v1948
      %v2242 = vunpack.c.l.b16 %v1950
      %v2243 = vunpack.c.l.b16 %v1952
      %v2244 = vpack.c.b16 %v2237, %v2236
      %v2245 = vpack.c.b16 %v2239, %v2238
      %v2246 = vpack.c.b16 %v2241, %v2240
      %v2247 = vpack.c.b16 %v2243, %v2242
      %v2268 = vunpack.c.l.b16 %v2212
      %v2269 = vunpack.c.l.b16 %v2213
      %v2270 = vunpack.c.l.b16 %v2214
      %v2271 = vunpack.c.l.b16 %v2215
      %v2272 = vunpack.c.l.b16 %v2216
      %v2273 = vunpack.c.l.b16 %v2217
      %v2274 = vunpack.c.l.b16 %v2218
      %v2275 = vunpack.c.l.b16 %v2219
      %v2276 = vunpack.c.l.b16 %v2220
      %v2277 = vunpack.c.l.b16 %v2221
      %v2278 = vunpack.c.l.b16 %v2222
      %v2279 = vunpack.c.l.b16 %v2223
      %v2280 = vunpack.c.l.b16 %v2224
      %v2281 = vunpack.c.l.b16 %v2225
      %v2282 = vunpack.c.l.b16 %v2226
      %v2283 = vunpack.c.l.b16 %v2227
      %v2284 = vpack.c.b16 %v2269, %v2268
      %v2285 = vpack.c.b16 %v2271, %v2270
      %v2286 = vpack.c.b16 %v2273, %v2272
      %v2287 = vpack.c.b16 %v2275, %v2274
      %v2288 = vpack.c.b16 %v2277, %v2276
      %v2289 = vpack.c.b16 %v2279, %v2278
      %v2290 = vpack.c.b16 %v2281, %v2280
      %v2291 = vpack.c.b16 %v2283, %v2282
      %2300 = vmatprep.subr.bf16.mxu0 0
      %2301 = vmatpush1.bf16.msra.mxu0 %v2284
      %2302 = vmatprep.subr.bf16.mxu0 0
      %2303 = vmatpush1.bf16.msra.mxu0 %v2285
      %2304 = vmatprep.subr.bf16.mxu0 0
      %2305 = vmatpush1.bf16.msra.mxu0 %v2286
      %2306 = vmatprep.subr.bf16.mxu0 0
      %2307 = vmatpush1.bf16.msra.mxu0 %v2287
      %2308 = vmatprep.subr.bf16.mxu0 0
      %2309 = vmatpush1.bf16.msra.mxu0 %v2288
      %2310 = vmatprep.subr.bf16.mxu0 0
      %2311 = vmatpush1.bf16.msra.mxu0 %v2289
      %2312 = vmatprep.subr.bf16.mxu0 0
      %2313 = vmatpush1.bf16.msra.mxu0 %v2290
      %2314 = vmatprep.subr.bf16.mxu0 0
      %2315 = vmatpush1.bf16.msra.mxu0 %v2291
      %2316 = vmatprep.subr.bf16.mxu0 0
      %2317 = vmatpush1.bf16.msra.mxu0 0
      %2318 = vmatprep.subr.bf16.mxu0 0
      %2319 = vmatpush1.bf16.msra.mxu0 0
      %2320 = vmatprep.subr.bf16.mxu0 0
      %2321 = vmatpush1.bf16.msra.mxu0 0
      %2322 = vmatprep.subr.bf16.mxu0 0
      %2323 = vmatpush1.bf16.msra.mxu0 0
      %2324 = vmatprep.subr.bf16.mxu0 0
      %2325 = vmatpush1.bf16.msra.mxu0 0
      %2326 = vmatprep.subr.bf16.mxu0 0
      %2327 = vmatpush1.bf16.msra.mxu0 0
      %2328 = vmatprep.subr.bf16.mxu0 0
      %2329 = vmatpush1.bf16.msra.mxu0 0
      %2330 = vmatprep.subr.bf16.mxu0 0
      %2331 = vmatpush1.bf16.msra.mxu0 0
      %2332 = vmatprep.mubr.bf16.mxu0 0
      %2333 = vmatmul.mubr.bf16.gmra.mrb[0].mxu0 %v2244
      %v2334 = vpop.f32.mrb[0].mxu0
      %v2335 = vadd.f32 0.0, %v2334
      %v2336 = vpop.f32.mrb[0].mxu0
      %v2337 = vpop.f32.mrb[0].mxu0
      %v2338 = vadd.f32 0.0, %v2337
      %v2339 = vpop.f32.mrb[0].mxu0
      %2340 = vmatprep.mubr.bf16.mxu0 0
      %2341 = vmatmul.mubr.bf16.gmra.mrb[0].mxu0 %v2245
      %v2342 = vpop.f32.mrb[0].mxu0
      %v2343 = vadd.f32 0.0, %v2342
      %v2344 = vpop.f32.mrb[0].mxu0
      %v2345 = vpop.f32.mrb[0].mxu0
      %v2346 = vadd.f32 0.0, %v2345
      %v2347 = vpop.f32.mrb[0].mxu0
      %2348 = vmatprep.mubr.bf16.mxu0 0
      %2349 = vmatmul.mubr.bf16.gmra.mrb[0].mxu0 %v2246
      %v2350 = vpop.f32.mrb[0].mxu0
      %v2351 = vadd.f32 0.0, %v2350
      %v2352 = vpop.f32.mrb[0].mxu0
      %v2353 = vpop.f32.mrb[0].mxu0
      %v2354 = vadd.f32 0.0, %v2353
      %v2355 = vpop.f32.mrb[0].mxu0
      %2356 = vmatprep.mubr.bf16.mxu0 0
      %2357 = vmatmul.mubr.bf16.gmra.mrb[0].mxu0 %v2247
      %v2358 = vpop.f32.mrb[0].mxu0
      %v2359 = vadd.f32 0.0, %v2358
      %v2360 = vpop.f32.mrb[0].mxu0
      %v2361 = vpop.f32.mrb[0].mxu0
      %v2362 = vadd.f32 0.0, %v2361
      %v2363 = vpop.f32.mrb[0].mxu0
      %2364 = vdwg.mxu0
      %v2365 = vadd.f32 %v2203, %v2335
      %v2366 = vadd.f32 %v2204, %v2338
      %v2367 = vadd.f32 %v2205, %v2343
      %v2368 = vadd.f32 %v2206, %v2346
      %v2369 = vadd.f32 %v2207, %v2351
      %v2370 = vadd.f32 %v2208, %v2354
      %v2371 = vadd.f32 %v2209, %v2359
      %v2372 = vadd.f32 %v2210, %v2362
      %v2373 = vld [vmem:[%s1936 + $0x4] sm:$0xf]
      %v2374 = vld [vmem:[%s1936 + $0x8] sm:$0x1]
      %v2375 = vld [vmem:[%s1936 + $0x10] sm:$0xf]
      %v2376 = vld [vmem:[%s1936 + $0x14] sm:$0x1]
      %v2377 = vld [vmem:[%s1936 + $0x1c] sm:$0xf]
      %v2378 = vld [vmem:[%s1936 + $0x20] sm:$0x1]
      %v2379 = vld [vmem:[%s1936 + $0x28] sm:$0xf]
      %v2380 = vld [vmem:[%s1936 + $0x2c] sm:$0x1]
      %v2381 = vld [vmem:[%s1936 + $0x34] sm:$0xf]
      %v2382 = vld [vmem:[%s1936 + $0x38] sm:$0x1]
      %v2383 = vld [vmem:[%s1936 + $0x40] sm:$0xf]
      %v2384 = vld [vmem:[%s1936 + $0x44] sm:$0x1]
      %v2385 = vld [vmem:[%s1936 + $0x4c] sm:$0xf]
      %v2386 = vld [vmem:[%s1936 + $0x50] sm:$0x1]
      %v2387 = vld [vmem:[%s1936 + $0x58] sm:$0xf]
      %v2388 = vld [vmem:[%s1936 + $0x5c] sm:$0x1]
      %v2390 = vshrl.u32 %v2373, 16
      %v2392 = vrot.slane %v2390, 4
      %v2393 = vshll.u32 %v2373, 16
      %v2395 = vrot.slane %v2393, 5
      %v2396 = vor.u32 %v2392, %v2395
      %v2397 = vrot.slane %v2396, 4
      %v2399 = vshll.u32 %v2374, 16
      %v2401 = vrot.slane %v2399, 5
      %v2402 = vsel %vm951, %v2397, %v2401
      %v2404 = vshrl.u32 %v2375, 16
      %v2406 = vrot.slane %v2404, 4
      %v2407 = vshll.u32 %v2375, 16
      %v2409 = vrot.slane %v2407, 5
      %v2410 = vor.u32 %v2406, %v2409
      %v2411 = vrot.slane %v2410, 4
      %v2413 = vshll.u32 %v2376, 16
      %v2415 = vrot.slane %v2413, 5
      %v2416 = vsel %vm951, %v2411, %v2415
      %v2418 = vshrl.u32 %v2377, 16
      %v2420 = vrot.slane %v2418, 4
      %v2421 = vshll.u32 %v2377, 16
      %v2423 = vrot.slane %v2421, 5
      %v2424 = vor.u32 %v2420, %v2423
      %v2425 = vrot.slane %v2424, 4
      %v2427 = vshll.u32 %v2378, 16
      %v2429 = vrot.slane %v2427, 5
      %v2430 = vsel %vm951, %v2425, %v2429
      %v2432 = vshrl.u32 %v2379, 16
      %v2434 = vrot.slane %v2432, 4
      %v2435 = vshll.u32 %v2379, 16
      %v2437 = vrot.slane %v2435, 5
      %v2438 = vor.u32 %v2434, %v2437
      %v2439 = vrot.slane %v2438, 4
      %v2441 = vshll.u32 %v2380, 16
      %v2443 = vrot.slane %v2441, 5
      %v2444 = vsel %vm951, %v2439, %v2443
      %v2446 = vshrl.u32 %v2381, 16
      %v2448 = vrot.slane %v2446, 4
      %v2449 = vshll.u32 %v2381, 16
      %v2451 = vrot.slane %v2449, 5
      %v2452 = vor.u32 %v2448, %v2451
      %v2453 = vrot.slane %v2452, 4
      %v2455 = vshll.u32 %v2382, 16
      %v2457 = vrot.slane %v2455, 5
      %v2458 = vsel %vm951, %v2453, %v2457
      %v2460 = vshrl.u32 %v2383, 16
      %v2462 = vrot.slane %v2460, 4
      %v2463 = vshll.u32 %v2383, 16
      %v2465 = vrot.slane %v2463, 5
      %v2466 = vor.u32 %v2462, %v2465
      %v2467 = vrot.slane %v2466, 4
      %v2469 = vshll.u32 %v2384, 16
      %v2471 = vrot.slane %v2469, 5
      %v2472 = vsel %vm951, %v2467, %v2471
      %v2474 = vshrl.u32 %v2385, 16
      %v2476 = vrot.slane %v2474, 4
      %v2477 = vshll.u32 %v2385, 16
      %v2479 = vrot.slane %v2477, 5
      %v2480 = vor.u32 %v2476, %v2479
      %v2481 = vrot.slane %v2480, 4
      %v2483 = vshll.u32 %v2386, 16
      %v2485 = vrot.slane %v2483, 5
      %v2486 = vsel %vm951, %v2481, %v2485
      %v2488 = vshrl.u32 %v2387, 16
      %v2490 = vrot.slane %v2488, 4
      %v2491 = vshll.u32 %v2387, 16
      %v2493 = vrot.slane %v2491, 5
      %v2494 = vor.u32 %v2490, %v2493
      %v2495 = vrot.slane %v2494, 4
      %v2497 = vshll.u32 %v2388, 16
      %v2499 = vrot.slane %v2497, 5
      %v2500 = vsel %vm951, %v2495, %v2499
      %s2501 = scalar_lea.vmem %s1, 512
      %v2502 = vld [vmem:[%s2501] sm:$0xf]
      %v2503 = vld [vmem:[%s2501 + $0x4] sm:$0xf]
      %v2504 = vld [vmem:[%s2501 + $0x8] sm:$0xf]
      %v2505 = vld [vmem:[%s2501 + $0xc] sm:$0xf]
      %v2506 = vld [vmem:[%s2501 + $0x10] sm:$0xf]
      %v2507 = vld [vmem:[%s2501 + $0x14] sm:$0xf]
      %v2508 = vld [vmem:[%s2501 + $0x18] sm:$0xf]
      %v2509 = vld [vmem:[%s2501 + $0x1c] sm:$0xf]
      %v2510 = vld [vmem:[%s2501 + $0x20] sm:$0xf]
      %v2511 = vld [vmem:[%s2501 + $0x24] sm:$0xf]
      %v2512 = vld [vmem:[%s2501 + $0x28] sm:$0xf]
      %v2513 = vld [vmem:[%s2501 + $0x2c] sm:$0xf]
      %v2514 = vld [vmem:[%s2501 + $0x30] sm:$0xf]
      %v2515 = vld [vmem:[%s2501 + $0x34] sm:$0xf]
      %v2516 = vld [vmem:[%s2501 + $0x38] sm:$0xf]
      %v2517 = vld [vmem:[%s2501 + $0x3c] sm:$0xf]
      %v2518 = vunpack.c.l.b16 %v2402
      %v2519 = vunpack.c.l.b16 %v2416
      %v2520 = vunpack.c.l.b16 %v2430
      %v2521 = vunpack.c.l.b16 %v2444
      %v2522 = vunpack.c.l.b16 %v2458
      %v2523 = vunpack.c.l.b16 %v2472
      %v2524 = vunpack.c.l.b16 %v2486
      %v2525 = vunpack.c.l.b16 %v2500
      %v2526 = vpack.c.b16 %v2519, %v2518
      %v2527 = vpack.c.b16 %v2521, %v2520
      %v2528 = vpack.c.b16 %v2523, %v2522
      %v2529 = vpack.c.b16 %v2525, %v2524
      %v2550 = vunpack.c.l.b16 %v2502
      %v2551 = vunpack.c.l.b16 %v2503
      %v2552 = vunpack.c.l.b16 %v2504
      %v2553 = vunpack.c.l.b16 %v2505
      %v2554 = vunpack.c.l.b16 %v2506
      %v2555 = vunpack.c.l.b16 %v2507
      %v2556 = vunpack.c.l.b16 %v2508
      %v2557 = vunpack.c.l.b16 %v2509
      %v2558 = vunpack.c.l.b16 %v2510
      %v2559 = vunpack.c.l.b16 %v2511
      %v2560 = vunpack.c.l.b16 %v2512
      %v2561 = vunpack.c.l.b16 %v2513
      %v2562 = vunpack.c.l.b16 %v2514
      %v2563 = vunpack.c.l.b16 %v2515
      %v2564 = vunpack.c.l.b16 %v2516
      %v2565 = vunpack.c.l.b16 %v2517
      %v2566 = vpack.c.b16 %v2551, %v2550
      %v2567 = vpack.c.b16 %v2553, %v2552
      %v2568 = vpack.c.b16 %v2555, %v2554
      %v2569 = vpack.c.b16 %v2557, %v2556
      %v2570 = vpack.c.b16 %v2559, %v2558
      %v2571 = vpack.c.b16 %v2561, %v2560
      %v2572 = vpack.c.b16 %v2563, %v2562
      %v2573 = vpack.c.b16 %v2565, %v2564
      %2582 = vmatprep.subr.bf16.mxu0 0
      %2583 = vmatpush1.bf16.msra.mxu0 %v2566
      %2584 = vmatprep.subr.bf16.mxu0 0
      %2585 = vmatpush1.bf16.msra.mxu0 %v2567
      %2586 = vmatprep.subr.bf16.mxu0 0
      %2587 = vmatpush1.bf16.msra.mxu0 %v2568
      %2588 = vmatprep.subr.bf16.mxu0 0
      %2589 = vmatpush1.bf16.msra.mxu0 %v2569
      %2590 = vmatprep.subr.bf16.mxu0 0
      %2591 = vmatpush1.bf16.msra.mxu0 %v2570
      %2592 = vmatprep.subr.bf16.mxu0 0
      %2593 = vmatpush1.bf16.msra.mxu0 %v2571
      %2594 = vmatprep.subr.bf16.mxu0 0
      %2595 = vmatpush1.bf16.msra.mxu0 %v2572
      %2596 = vmatprep.subr.bf16.mxu0 0
      %2597 = vmatpush1.bf16.msra.mxu0 %v2573
      %2598 = vmatprep.subr.bf16.mxu0 0
      %2599 = vmatpush1.bf16.msra.mxu0 0
      %2600 = vmatprep.subr.bf16.mxu0 0
      %2601 = vmatpush1.bf16.msra.mxu0 0
      %2602 = vmatprep.subr.bf16.mxu0 0
      %2603 = vmatpush1.bf16.msra.mxu0 0
      %2604 = vmatprep.subr.bf16.mxu0 0
      %2605 = vmatpush1.bf16.msra.mxu0 0
      %2606 = vmatprep.subr.bf16.mxu0 0
      %2607 = vmatpush1.bf16.msra.mxu0 0
      %2608 = vmatprep.subr.bf16.mxu0 0
      %2609 = vmatpush1.bf16.msra.mxu0 0
      %2610 = vmatprep.subr.bf16.mxu0 0
      %2611 = vmatpush1.bf16.msra.mxu0 0
      %2612 = vmatprep.subr.bf16.mxu0 0
      %2613 = vmatpush1.bf16.msra.mxu0 0
      %2614 = vmatprep.mubr.bf16.mxu0 0
      %2615 = vmatmul.mubr.bf16.gmra.mrb[0].mxu0 %v2526
      %v2616 = vpop.f32.mrb[0].mxu0
      %v2617 = vadd.f32 0.0, %v2616
      %v2618 = vpop.f32.mrb[0].mxu0
      %v2619 = vpop.f32.mrb[0].mxu0
      %v2620 = vadd.f32 0.0, %v2619
      %v2621 = vpop.f32.mrb[0].mxu0
      %2622 = vmatprep.mubr.bf16.mxu0 0
      %2623 = vmatmul.mubr.bf16.gmra.mrb[0].mxu0 %v2527
      %v2624 = vpop.f32.mrb[0].mxu0
      %v2625 = vadd.f32 0.0, %v2624
      %v2626 = vpop.f32.mrb[0].mxu0
      %v2627 = vpop.f32.mrb[0].mxu0
      %v2628 = vadd.f32 0.0, %v2627
      %v2629 = vpop.f32.mrb[0].mxu0
      %2630 = vmatprep.mubr.bf16.mxu0 0
      %2631 = vmatmul.mubr.bf16.gmra.mrb[0].mxu0 %v2528
      %v2632 = vpop.f32.mrb[0].mxu0
      %v2633 = vadd.f32 0.0, %v2632
      %v2634 = vpop.f32.mrb[0].mxu0
      %v2635 = vpop.f32.mrb[0].mxu0
      %v2636 = vadd.f32 0.0, %v2635
      %v2637 = vpop.f32.mrb[0].mxu0
      %2638 = vmatprep.mubr.bf16.mxu0 0
      %2639 = vmatmul.mubr.bf16.gmra.mrb[0].mxu0 %v2529
      %v2640 = vpop.f32.mrb[0].mxu0
      %v2641 = vadd.f32 0.0, %v2640
      %v2642 = vpop.f32.mrb[0].mxu0
      %v2643 = vpop.f32.mrb[0].mxu0
      %v2644 = vadd.f32 0.0, %v2643
      %v2645 = vpop.f32.mrb[0].mxu0
      %2646 = vdwg.mxu0
      %v2647 = vadd.f32 %v2365, %v2617
      %v2648 = vadd.f32 %v2366, %v2620
      %v2649 = vadd.f32 %v2367, %v2625
      %v2650 = vadd.f32 %v2368, %v2628
      %v2651 = vadd.f32 %v2369, %v2633
      %v2652 = vadd.f32 %v2370, %v2636
      %v2653 = vadd.f32 %v2371, %v2641
      %v2654 = vadd.f32 %v2372, %v2644
      %v2655 = vld [vmem:[%s2] sm:$0x1]
      %v2657 = vlaneseq
      %v2658 = vshrl.u32 %v2657, 7
      %v2659 = vsub.s32 0, %v2658
      %v2660 = vrot.slane %v2655, %v2659
      %v2662 = vadd.f32 %v2647, %v2660
      %v2663 = vadd.f32 %v2648, %v2660
      %v2664 = vadd.f32 %v2649, %v2660
      %v2665 = vadd.f32 %v2650, %v2660
      %v2666 = vadd.f32 %v2651, %v2660
      %v2667 = vadd.f32 %v2652, %v2660
      %v2668 = vadd.f32 %v2653, %v2660
      %v2669 = vadd.f32 %v2654, %v2660
      %v2670 = vmax.f32 %v2662, 0.0
      %v2671 = vmax.f32 %v2663, 0.0
      %v2672 = vmax.f32 %v2664, 0.0
      %v2673 = vmax.f32 %v2665, 0.0
      %v2674 = vmax.f32 %v2666, 0.0
      %v2675 = vmax.f32 %v2667, 0.0
      %v2676 = vmax.f32 %v2668, 0.0
      %v2677 = vmax.f32 %v2669, 0.0
      %v2678 = vpack.c.bf16 %v2670, %v2670
      %v2679 = vpack.c.bf16 %v2671, %v2671
      %v2680 = vpack.c.bf16 %v2672, %v2672
      %v2681 = vpack.c.bf16 %v2673, %v2673
      %v2682 = vpack.c.bf16 %v2674, %v2674
      %v2683 = vpack.c.bf16 %v2675, %v2675
      %v2684 = vpack.c.bf16 %v2676, %v2676
      %v2685 = vpack.c.bf16 %v2677, %v2677
      %2686 = vst [vmem:[%s454 + $0x4] sm:$0xf] %v2678
      %2687 = vst [vmem:[%s454 + $0x10] sm:$0xf] %v2679
      %2688 = vst [vmem:[%s454 + $0x1c] sm:$0xf] %v2680
      %2689 = vst [vmem:[%s454 + $0x28] sm:$0xf] %v2681
      %2690 = vst [vmem:[%s454 + $0x34] sm:$0xf] %v2682
      %2691 = vst [vmem:[%s454 + $0x40] sm:$0xf] %v2683
      %2692 = vst [vmem:[%s454 + $0x4c] sm:$0xf] %v2684
      %2693 = vst [vmem:[%s454 + $0x58] sm:$0xf] %v2685
      %v2694 = vld [vmem:[#allocation2] sm:$0x8]
      %v2695 = vld [vmem:[#allocation2 + $0x4] sm:$0xf]
      %v2696 = vld [vmem:[#allocation2 + $0xc] sm:$0x8]
      %v2697 = vld [vmem:[#allocation2 + $0x10] sm:$0xf]
      %v2698 = vld [vmem:[#allocation2 + $0x18] sm:$0x8]
      %v2699 = vld [vmem:[#allocation2 + $0x1c] sm:$0xf]
      %v2700 = vld [vmem:[#allocation2 + $0x24] sm:$0x8]
      %v2701 = vld [vmem:[#allocation2 + $0x28] sm:$0xf]
      %v2702 = vld [vmem:[#allocation2 + $0x30] sm:$0x8]
      %v2703 = vld [vmem:[#allocation2 + $0x34] sm:$0xf]
      %v2704 = vld [vmem:[#allocation2 + $0x3c] sm:$0x8]
      %v2705 = vld [vmem:[#allocation2 + $0x40] sm:$0xf]
      %v2706 = vld [vmem:[#allocation2 + $0x48] sm:$0x8]
      %v2707 = vld [vmem:[#allocation2 + $0x4c] sm:$0xf]
      %v2708 = vld [vmem:[#allocation2 + $0x54] sm:$0x8]
      %v2709 = vld [vmem:[#allocation2 + $0x58] sm:$0xf]
      %v2711 = vshrl.u32 %v2694, 16
      %v2713 = vrot.slane %v2711, 7
      %v2714 = vrot.slane %v2713, 4
      %v2716 = vshrl.u32 %v2695, 16
      %v2718 = vrot.slane %v2716, 7
      %v2719 = vshll.u32 %v2695, 16
      %v2721 = vor.u32 %v2718, %v2719
      %v2722 = vsel %vm529, %v2714, %v2721
      %v2724 = vshrl.u32 %v2696, 16
      %v2726 = vrot.slane %v2724, 7
      %v2727 = vrot.slane %v2726, 4
      %v2729 = vshrl.u32 %v2697, 16
      %v2731 = vrot.slane %v2729, 7
      %v2732 = vshll.u32 %v2697, 16
      %v2734 = vor.u32 %v2731, %v2732
      %v2735 = vsel %vm529, %v2727, %v2734
      %v2737 = vshrl.u32 %v2698, 16
      %v2739 = vrot.slane %v2737, 7
      %v2740 = vrot.slane %v2739, 4
      %v2742 = vshrl.u32 %v2699, 16
      %v2744 = vrot.slane %v2742, 7
      %v2745 = vshll.u32 %v2699, 16
      %v2747 = vor.u32 %v2744, %v2745
      %v2748 = vsel %vm529, %v2740, %v2747
      %v2750 = vshrl.u32 %v2700, 16
      %v2752 = vrot.slane %v2750, 7
      %v2753 = vrot.slane %v2752, 4
      %v2755 = vshrl.u32 %v2701, 16
      %v2757 = vrot.slane %v2755, 7
      %v2758 = vshll.u32 %v2701, 16
      %v2760 = vor.u32 %v2757, %v2758
      %v2761 = vsel %vm529, %v2753, %v2760
      %v2763 = vshrl.u32 %v2702, 16
      %v2765 = vrot.slane %v2763, 7
      %v2766 = vrot.slane %v2765, 4
      %v2768 = vshrl.u32 %v2703, 16
      %v2770 = vrot.slane %v2768, 7
      %v2771 = vshll.u32 %v2703, 16
      %v2773 = vor.u32 %v2770, %v2771
      %v2774 = vsel %vm529, %v2766, %v2773
      %v2776 = vshrl.u32 %v2704, 16
      %v2778 = vrot.slane %v2776, 7
      %v2779 = vrot.slane %v2778, 4
      %v2781 = vshrl.u32 %v2705, 16
      %v2783 = vrot.slane %v2781, 7
      %v2784 = vshll.u32 %v2705, 16
      %v2786 = vor.u32 %v2783, %v2784
      %v2787 = vsel %vm529, %v2779, %v2786
      %v2789 = vshrl.u32 %v2706, 16
      %v2791 = vrot.slane %v2789, 7
      %v2792 = vrot.slane %v2791, 4
      %v2794 = vshrl.u32 %v2707, 16
      %v2796 = vrot.slane %v2794, 7
      %v2797 = vshll.u32 %v2707, 16
      %v2799 = vor.u32 %v2796, %v2797
      %v2800 = vsel %vm529, %v2792, %v2799
      %v2802 = vshrl.u32 %v2708, 16
      %v2804 = vrot.slane %v2802, 7
      %v2805 = vrot.slane %v2804, 4
      %v2807 = vshrl.u32 %v2709, 16
      %v2809 = vrot.slane %v2807, 7
      %v2810 = vshll.u32 %v2709, 16
      %v2812 = vor.u32 %v2809, %v2810
      %v2813 = vsel %vm529, %v2805, %v2812
      %v2814 = vld [vmem:[%s3] sm:$0xf]
      %v2815 = vld [vmem:[%s3 + $0x4] sm:$0xf]
      %v2816 = vld [vmem:[%s3 + $0x8] sm:$0xf]
      %v2817 = vld [vmem:[%s3 + $0xc] sm:$0xf]
      %v2818 = vld [vmem:[%s3 + $0x10] sm:$0xf]
      %v2819 = vld [vmem:[%s3 + $0x14] sm:$0xf]
      %v2820 = vld [vmem:[%s3 + $0x18] sm:$0xf]
      %v2821 = vld [vmem:[%s3 + $0x1c] sm:$0xf]
      %v2822 = vld [vmem:[%s3 + $0x20] sm:$0xf]
      %v2823 = vld [vmem:[%s3 + $0x24] sm:$0xf]
      %v2824 = vld [vmem:[%s3 + $0x28] sm:$0xf]
      %v2825 = vld [vmem:[%s3 + $0x2c] sm:$0xf]
      %v2826 = vld [vmem:[%s3 + $0x30] sm:$0xf]
      %v2827 = vld [vmem:[%s3 + $0x34] sm:$0xf]
      %v2828 = vld [vmem:[%s3 + $0x38] sm:$0xf]
      %v2829 = vld [vmem:[%s3 + $0x3c] sm:$0xf]
      %s2830 = scalar_lea.vmem %s3, 64
      %v2831 = vld [vmem:[%s2830] sm:$0xf]
      %v2832 = vld [vmem:[%s2830 + $0x4] sm:$0xf]
      %v2833 = vld [vmem:[%s2830 + $0x8] sm:$0xf]
      %v2834 = vld [vmem:[%s2830 + $0xc] sm:$0xf]
      %v2835 = vld [vmem:[%s2830 + $0x10] sm:$0xf]
      %v2836 = vld [vmem:[%s2830 + $0x14] sm:$0xf]
      %v2837 = vld [vmem:[%s2830 + $0x18] sm:$0xf]
      %v2838 = vld [vmem:[%s2830 + $0x1c] sm:$0xf]
      %v2839 = vld [vmem:[%s2830 + $0x20] sm:$0xf]
      %v2840 = vld [vmem:[%s2830 + $0x24] sm:$0xf]
      %v2841 = vld [vmem:[%s2830 + $0x28] sm:$0xf]
      %v2842 = vld [vmem:[%s2830 + $0x2c] sm:$0xf]
      %v2843 = vld [vmem:[%s2830 + $0x30] sm:$0xf]
      %v2844 = vld [vmem:[%s2830 + $0x34] sm:$0xf]
      %v2845 = vld [vmem:[%s2830 + $0x38] sm:$0xf]
      %v2846 = vld [vmem:[%s2830 + $0x3c] sm:$0xf]
      %v2855 = vunpack.c.l.b16 %v2695
      %v2856 = vunpack.c.l.b16 %v2697
      %v2857 = vunpack.c.l.b16 %v2699
      %v2858 = vunpack.c.l.b16 %v2701
      %v2859 = vunpack.c.l.b16 %v2703
      %v2860 = vunpack.c.l.b16 %v2705
      %v2861 = vunpack.c.l.b16 %v2707
      %v2862 = vunpack.c.l.b16 %v2709
      %v2863 = vpack.c.b16 %v2856, %v2855
      %v2864 = vpack.c.b16 %v2858, %v2857
      %v2865 = vpack.c.b16 %v2860, %v2859
      %v2866 = vpack.c.b16 %v2862, %v2861
      %v2887 = vunpack.c.l.b16 %v2831
      %v2888 = vunpack.c.l.b16 %v2832
      %v2889 = vunpack.c.l.b16 %v2833
      %v2890 = vunpack.c.l.b16 %v2834
      %v2891 = vunpack.c.l.b16 %v2835
      %v2892 = vunpack.c.l.b16 %v2836
      %v2893 = vunpack.c.l.b16 %v2837
      %v2894 = vunpack.c.l.b16 %v2838
      %v2895 = vunpack.c.l.b16 %v2839
      %v2896 = vunpack.c.l.b16 %v2840
      %v2897 = vunpack.c.l.b16 %v2841
      %v2898 = vunpack.c.l.b16 %v2842
      %v2899 = vunpack.c.l.b16 %v2843
      %v2900 = vunpack.c.l.b16 %v2844
      %v2901 = vunpack.c.l.b16 %v2845
      %v2902 = vunpack.c.l.b16 %v2846
      %v2903 = vpack.c.b16 %v2888, %v2887
      %v2904 = vpack.c.b16 %v2890, %v2889
      %v2905 = vpack.c.b16 %v2892, %v2891
      %v2906 = vpack.c.b16 %v2894, %v2893
      %v2907 = vpack.c.b16 %v2896, %v2895
      %v2908 = vpack.c.b16 %v2898, %v2897
      %v2909 = vpack.c.b16 %v2900, %v2899
      %v2910 = vpack.c.b16 %v2902, %v2901
      %2919 = vmatprep.subr.bf16.mxu0 0
      %2920 = vmatpush1.bf16.msra.mxu0 %v2903
      %2921 = vmatprep.subr.bf16.mxu0 0
      %2922 = vmatpush1.bf16.msra.mxu0 %v2904
      %2923 = vmatprep.subr.bf16.mxu0 0
      %2924 = vmatpush1.bf16.msra.mxu0 %v2905
      %2925 = vmatprep.subr.bf16.mxu0 0
      %2926 = vmatpush1.bf16.msra.mxu0 %v2906
      %2927 = vmatprep.subr.bf16.mxu0 0
      %2928 = vmatpush1.bf16.msra.mxu0 %v2907
      %2929 = vmatprep.subr.bf16.mxu0 0
      %2930 = vmatpush1.bf16.msra.mxu0 %v2908
      %2931 = vmatprep.subr.bf16.mxu0 0
      %2932 = vmatpush1.bf16.msra.mxu0 %v2909
      %2933 = vmatprep.subr.bf16.mxu0 0
      %2934 = vmatpush1.bf16.msra.mxu0 %v2910
      %2935 = vmatprep.subr.bf16.mxu0 0
      %2936 = vmatpush1.bf16.msra.mxu0 0
      %2937 = vmatprep.subr.bf16.mxu0 0
      %2938 = vmatpush1.bf16.msra.mxu0 0
      %2939 = vmatprep.subr.bf16.mxu0 0
      %2940 = vmatpush1.bf16.msra.mxu0 0
      %2941 = vmatprep.subr.bf16.mxu0 0
      %2942 = vmatpush1.bf16.msra.mxu0 0
      %2943 = vmatprep.subr.bf16.mxu0 0
      %2944 = vmatpush1.bf16.msra.mxu0 0
      %2945 = vmatprep.subr.bf16.mxu0 0
      %2946 = vmatpush1.bf16.msra.mxu0 0
      %2947 = vmatprep.subr.bf16.mxu0 0
      %2948 = vmatpush1.bf16.msra.mxu0 0
      %2949 = vmatprep.subr.bf16.mxu0 0
      %2950 = vmatpush1.bf16.msra.mxu0 0
      %2951 = vmatprep.mubr.bf16.mxu0 0
      %2952 = vmatmul.mubr.bf16.gmra.mrb[0].mxu0 %v2863
      %v2953 = vpop.f32.mrb[0].mxu0
      %v2954 = vadd.f32 0.0, %v2953
      %v2955 = vpop.f32.mrb[0].mxu0
      %v2956 = vpop.f32.mrb[0].mxu0
      %v2957 = vadd.f32 0.0, %v2956
      %v2958 = vpop.f32.mrb[0].mxu0
      %2959 = vmatprep.mubr.bf16.mxu0 0
      %2960 = vmatmul.mubr.bf16.gmra.mrb[0].mxu0 %v2864
      %v2961 = vpop.f32.mrb[0].mxu0
      %v2962 = vadd.f32 0.0, %v2961
      %v2963 = vpop.f32.mrb[0].mxu0
      %v2964 = vpop.f32.mrb[0].mxu0
      %v2965 = vadd.f32 0.0, %v2964
      %v2966 = vpop.f32.mrb[0].mxu0
      %2967 = vmatprep.mubr.bf16.mxu0 0
      %2968 = vmatmul.mubr.bf16.gmra.mrb[0].mxu0 %v2865
      %v2969 = vpop.f32.mrb[0].mxu0
      %v2970 = vadd.f32 0.0, %v2969
      %v2971 = vpop.f32.mrb[0].mxu0
      %v2972 = vpop.f32.mrb[0].mxu0
      %v2973 = vadd.f32 0.0, %v2972
      %v2974 = vpop.f32.mrb[0].mxu0
      %2975 = vmatprep.mubr.bf16.mxu0 0
      %2976 = vmatmul.mubr.bf16.gmra.mrb[0].mxu0 %v2866
      %v2977 = vpop.f32.mrb[0].mxu0
      %v2978 = vadd.f32 0.0, %v2977
      %v2979 = vpop.f32.mrb[0].mxu0
      %v2980 = vpop.f32.mrb[0].mxu0
      %v2981 = vadd.f32 0.0, %v2980
      %v2982 = vpop.f32.mrb[0].mxu0
      %2983 = vdwg.mxu0
      %v2984 = vunpack.c.l.b16 %v2722
      %v2985 = vunpack.c.l.b16 %v2735
      %v2986 = vunpack.c.l.b16 %v2748
      %v2987 = vunpack.c.l.b16 %v2761
      %v2988 = vunpack.c.l.b16 %v2774
      %v2989 = vunpack.c.l.b16 %v2787
      %v2990 = vunpack.c.l.b16 %v2800
      %v2991 = vunpack.c.l.b16 %v2813
      %v2992 = vpack.c.b16 %v2985, %v2984
      %v2993 = vpack.c.b16 %v2987, %v2986
      %v2994 = vpack.c.b16 %v2989, %v2988
      %v2995 = vpack.c.b16 %v2991, %v2990
      %v3016 = vunpack.c.l.b16 %v2814
      %v3017 = vunpack.c.l.b16 %v2815
      %v3018 = vunpack.c.l.b16 %v2816
      %v3019 = vunpack.c.l.b16 %v2817
      %v3020 = vunpack.c.l.b16 %v2818
      %v3021 = vunpack.c.l.b16 %v2819
      %v3022 = vunpack.c.l.b16 %v2820
      %v3023 = vunpack.c.l.b16 %v2821
      %v3024 = vunpack.c.l.b16 %v2822
      %v3025 = vunpack.c.l.b16 %v2823
      %v3026 = vunpack.c.l.b16 %v2824
      %v3027 = vunpack.c.l.b16 %v2825
      %v3028 = vunpack.c.l.b16 %v2826
      %v3029 = vunpack.c.l.b16 %v2827
      %v3030 = vunpack.c.l.b16 %v2828
      %v3031 = vunpack.c.l.b16 %v2829
      %v3032 = vpack.c.b16 %v3017, %v3016
      %v3033 = vpack.c.b16 %v3019, %v3018
      %v3034 = vpack.c.b16 %v3021, %v3020
      %v3035 = vpack.c.b16 %v3023, %v3022
      %v3036 = vpack.c.b16 %v3025, %v3024
      %v3037 = vpack.c.b16 %v3027, %v3026
      %v3038 = vpack.c.b16 %v3029, %v3028
      %v3039 = vpack.c.b16 %v3031, %v3030
      %3048 = vmatprep.subr.bf16.mxu0 0
      %3049 = vmatpush1.bf16.msra.mxu0 %v3032
      %3050 = vmatprep.subr.bf16.mxu0 0
      %3051 = vmatpush1.bf16.msra.mxu0 %v3033
      %3052 = vmatprep.subr.bf16.mxu0 0
      %3053 = vmatpush1.bf16.msra.mxu0 %v3034
      %3054 = vmatprep.subr.bf16.mxu0 0
      %3055 = vmatpush1.bf16.msra.mxu0 %v3035
      %3056 = vmatprep.subr.bf16.mxu0 0
      %3057 = vmatpush1.bf16.msra.mxu0 %v3036
      %3058 = vmatprep.subr.bf16.mxu0 0
      %3059 = vmatpush1.bf16.msra.mxu0 %v3037
      %3060 = vmatprep.subr.bf16.mxu0 0
      %3061 = vmatpush1.bf16.msra.mxu0 %v3038
      %3062 = vmatprep.subr.bf16.mxu0 0
      %3063 = vmatpush1.bf16.msra.mxu0 %v3039
      %3064 = vmatprep.subr.bf16.mxu0 0
      %3065 = vmatpush1.bf16.msra.mxu0 0
      %3066 = vmatprep.subr.bf16.mxu0 0
      %3067 = vmatpush1.bf16.msra.mxu0 0
      %3068 = vmatprep.subr.bf16.mxu0 0
      %3069 = vmatpush1.bf16.msra.mxu0 0
      %3070 = vmatprep.subr.bf16.mxu0 0
      %3071 = vmatpush1.bf16.msra.mxu0 0
      %3072 = vmatprep.subr.bf16.mxu0 0
      %3073 = vmatpush1.bf16.msra.mxu0 0
      %3074 = vmatprep.subr.bf16.mxu0 0
      %3075 = vmatpush1.bf16.msra.mxu0 0
      %3076 = vmatprep.subr.bf16.mxu0 0
      %3077 = vmatpush1.bf16.msra.mxu0 0
      %3078 = vmatprep.subr.bf16.mxu0 0
      %3079 = vmatpush1.bf16.msra.mxu0 0
      %3080 = vmatprep.mubr.bf16.mxu0 0
      %3081 = vmatmul.mubr.bf16.gmra.mrb[0].mxu0 %v2992
      %v3082 = vpop.f32.mrb[0].mxu0
      %v3083 = vadd.f32 %v2954, %v3082
      %v3084 = vpop.f32.mrb[0].mxu0
      %v3085 = vpop.f32.mrb[0].mxu0
      %v3086 = vadd.f32 %v2957, %v3085
      %v3087 = vpop.f32.mrb[0].mxu0
      %3088 = vmatprep.mubr.bf16.mxu0 0
      %3089 = vmatmul.mubr.bf16.gmra.mrb[0].mxu0 %v2993
      %v3090 = vpop.f32.mrb[0].mxu0
      %v3091 = vadd.f32 %v2962, %v3090
      %v3092 = vpop.f32.mrb[0].mxu0
      %v3093 = vpop.f32.mrb[0].mxu0
      %v3094 = vadd.f32 %v2965, %v3093
      %v3095 = vpop.f32.mrb[0].mxu0
      %3096 = vmatprep.mubr.bf16.mxu0 0
      %3097 = vmatmul.mubr.bf16.gmra.mrb[0].mxu0 %v2994
      %v3098 = vpop.f32.mrb[0].mxu0
      %v3099 = vadd.f32 %v2970, %v3098
      %v3100 = vpop.f32.mrb[0].mxu0
      %v3101 = vpop.f32.mrb[0].mxu0
      %v3102 = vadd.f32 %v2973, %v3101
      %v3103 = vpop.f32.mrb[0].mxu0
      %3104 = vmatprep.mubr.bf16.mxu0 0
      %3105 = vmatmul.mubr.bf16.gmra.mrb[0].mxu0 %v2995
      %v3106 = vpop.f32.mrb[0].mxu0
      %v3107 = vadd.f32 %v2978, %v3106
      %v3108 = vpop.f32.mrb[0].mxu0
      %v3109 = vpop.f32.mrb[0].mxu0
      %v3110 = vadd.f32 %v2981, %v3109
      %v3111 = vpop.f32.mrb[0].mxu0
      %3112 = vdwg.mxu0
      %v3113 = vld [vmem:[#allocation2 + $0x4] sm:$0xf]
      %v3114 = vld [vmem:[#allocation2 + $0x8] sm:$0x1]
      %v3115 = vld [vmem:[#allocation2 + $0x10] sm:$0xf]
      %v3116 = vld [vmem:[#allocation2 + $0x14] sm:$0x1]
      %v3117 = vld [vmem:[#allocation2 + $0x1c] sm:$0xf]
      %v3118 = vld [vmem:[#allocation2 + $0x20] sm:$0x1]
      %v3119 = vld [vmem:[#allocation2 + $0x28] sm:$0xf]
      %v3120 = vld [vmem:[#allocation2 + $0x2c] sm:$0x1]
      %v3121 = vld [vmem:[#allocation2 + $0x34] sm:$0xf]
      %v3122 = vld [vmem:[#allocation2 + $0x38] sm:$0x1]
      %v3123 = vld [vmem:[#allocation2 + $0x40] sm:$0xf]
      %v3124 = vld [vmem:[#allocation2 + $0x44] sm:$0x1]
      %v3125 = vld [vmem:[#allocation2 + $0x4c] sm:$0xf]
      %v3126 = vld [vmem:[#allocation2 + $0x50] sm:$0x1]
      %v3127 = vld [vmem:[#allocation2 + $0x58] sm:$0xf]
      %v3128 = vld [vmem:[#allocation2 + $0x5c] sm:$0x1]
      %v3130 = vshrl.u32 %v3113, 16
      %v3132 = vrot.slane %v3130, 4
      %v3133 = vshll.u32 %v3113, 16
      %v3135 = vrot.slane %v3133, 5
      %v3136 = vor.u32 %v3132, %v3135
      %v3137 = vrot.slane %v3136, 4
      %v3139 = vshll.u32 %v3114, 16
      %v3141 = vrot.slane %v3139, 5
      %v3142 = vsel %vm951, %v3137, %v3141
      %v3144 = vshrl.u32 %v3115, 16
      %v3146 = vrot.slane %v3144, 4
      %v3147 = vshll.u32 %v3115, 16
      %v3149 = vrot.slane %v3147, 5
      %v3150 = vor.u32 %v3146, %v3149
      %v3151 = vrot.slane %v3150, 4
      %v3153 = vshll.u32 %v3116, 16
      %v3155 = vrot.slane %v3153, 5
      %v3156 = vsel %vm951, %v3151, %v3155
      %v3158 = vshrl.u32 %v3117, 16
      %v3160 = vrot.slane %v3158, 4
      %v3161 = vshll.u32 %v3117, 16
      %v3163 = vrot.slane %v3161, 5
      %v3164 = vor.u32 %v3160, %v3163
      %v3165 = vrot.slane %v3164, 4
      %v3167 = vshll.u32 %v3118, 16
      %v3169 = vrot.slane %v3167, 5
      %v3170 = vsel %vm951, %v3165, %v3169
      %v3172 = vshrl.u32 %v3119, 16
      %v3174 = vrot.slane %v3172, 4
      %v3175 = vshll.u32 %v3119, 16
      %v3177 = vrot.slane %v3175, 5
      %v3178 = vor.u32 %v3174, %v3177
      %v3179 = vrot.slane %v3178, 4
      %v3181 = vshll.u32 %v3120, 16
      %v3183 = vrot.slane %v3181, 5
      %v3184 = vsel %vm951, %v3179, %v3183
      %v3186 = vshrl.u32 %v3121, 16
      %v3188 = vrot.slane %v3186, 4
      %v3189 = vshll.u32 %v3121, 16
      %v3191 = vrot.slane %v3189, 5
      %v3192 = vor.u32 %v3188, %v3191
      %v3193 = vrot.slane %v3192, 4
      %v3195 = vshll.u32 %v3122, 16
      %v3197 = vrot.slane %v3195, 5
      %v3198 = vsel %vm951, %v3193, %v3197
      %v3200 = vshrl.u32 %v3123, 16
      %v3202 = vrot.slane %v3200, 4
      %v3203 = vshll.u32 %v3123, 16
      %v3205 = vrot.slane %v3203, 5
      %v3206 = vor.u32 %v3202, %v3205
      %v3207 = vrot.slane %v3206, 4
      %v3209 = vshll.u32 %v3124, 16
      %v3211 = vrot.slane %v3209, 5
      %v3212 = vsel %vm951, %v3207, %v3211
      %v3214 = vshrl.u32 %v3125, 16
      %v3216 = vrot.slane %v3214, 4
      %v3217 = vshll.u32 %v3125, 16
      %v3219 = vrot.slane %v3217, 5
      %v3220 = vor.u32 %v3216, %v3219
      %v3221 = vrot.slane %v3220, 4
      %v3223 = vshll.u32 %v3126, 16
      %v3225 = vrot.slane %v3223, 5
      %v3226 = vsel %vm951, %v3221, %v3225
      %v3228 = vshrl.u32 %v3127, 16
      %v3230 = vrot.slane %v3228, 4
      %v3231 = vshll.u32 %v3127, 16
      %v3233 = vrot.slane %v3231, 5
      %v3234 = vor.u32 %v3230, %v3233
      %v3235 = vrot.slane %v3234, 4
      %v3237 = vshll.u32 %v3128, 16
      %v3239 = vrot.slane %v3237, 5
      %v3240 = vsel %vm951, %v3235, %v3239
      %s3241 = scalar_lea.vmem %s3, 128
      %v3242 = vld [vmem:[%s3241] sm:$0xf]
      %v3243 = vld [vmem:[%s3241 + $0x4] sm:$0xf]
      %v3244 = vld [vmem:[%s3241 + $0x8] sm:$0xf]
      %v3245 = vld [vmem:[%s3241 + $0xc] sm:$0xf]
      %v3246 = vld [vmem:[%s3241 + $0x10] sm:$0xf]
      %v3247 = vld [vmem:[%s3241 + $0x14] sm:$0xf]
      %v3248 = vld [vmem:[%s3241 + $0x18] sm:$0xf]
      %v3249 = vld [vmem:[%s3241 + $0x1c] sm:$0xf]
      %v3250 = vld [vmem:[%s3241 + $0x20] sm:$0xf]
      %v3251 = vld [vmem:[%s3241 + $0x24] sm:$0xf]
      %v3252 = vld [vmem:[%s3241 + $0x28] sm:$0xf]
      %v3253 = vld [vmem:[%s3241 + $0x2c] sm:$0xf]
      %v3254 = vld [vmem:[%s3241 + $0x30] sm:$0xf]
      %v3255 = vld [vmem:[%s3241 + $0x34] sm:$0xf]
      %v3256 = vld [vmem:[%s3241 + $0x38] sm:$0xf]
      %v3257 = vld [vmem:[%s3241 + $0x3c] sm:$0xf]
      %v3258 = vunpack.c.l.b16 %v3142
      %v3259 = vunpack.c.l.b16 %v3156
      %v3260 = vunpack.c.l.b16 %v3170
      %v3261 = vunpack.c.l.b16 %v3184
      %v3262 = vunpack.c.l.b16 %v3198
      %v3263 = vunpack.c.l.b16 %v3212
      %v3264 = vunpack.c.l.b16 %v3226
      %v3265 = vunpack.c.l.b16 %v3240
      %v3266 = vpack.c.b16 %v3259, %v3258
      %v3267 = vpack.c.b16 %v3261, %v3260
      %v3268 = vpack.c.b16 %v3263, %v3262
      %v3269 = vpack.c.b16 %v3265, %v3264
      %v3290 = vunpack.c.l.b16 %v3242
      %v3291 = vunpack.c.l.b16 %v3243
      %v3292 = vunpack.c.l.b16 %v3244
      %v3293 = vunpack.c.l.b16 %v3245
      %v3294 = vunpack.c.l.b16 %v3246
      %v3295 = vunpack.c.l.b16 %v3247
      %v3296 = vunpack.c.l.b16 %v3248
      %v3297 = vunpack.c.l.b16 %v3249
      %v3298 = vunpack.c.l.b16 %v3250
      %v3299 = vunpack.c.l.b16 %v3251
      %v3300 = vunpack.c.l.b16 %v3252
      %v3301 = vunpack.c.l.b16 %v3253
      %v3302 = vunpack.c.l.b16 %v3254
      %v3303 = vunpack.c.l.b16 %v3255
      %v3304 = vunpack.c.l.b16 %v3256
      %v3305 = vunpack.c.l.b16 %v3257
      %v3306 = vpack.c.b16 %v3291, %v3290
      %v3307 = vpack.c.b16 %v3293, %v3292
      %v3308 = vpack.c.b16 %v3295, %v3294
      %v3309 = vpack.c.b16 %v3297, %v3296
      %v3310 = vpack.c.b16 %v3299, %v3298
      %v3311 = vpack.c.b16 %v3301, %v3300
      %v3312 = vpack.c.b16 %v3303, %v3302
      %v3313 = vpack.c.b16 %v3305, %v3304
      %3322 = vmatprep.subr.bf16.mxu0 0
      %3323 = vmatpush1.bf16.msra.mxu0 %v3306
      %3324 = vmatprep.subr.bf16.mxu0 0
      %3325 = vmatpush1.bf16.msra.mxu0 %v3307
      %3326 = vmatprep.subr.bf16.mxu0 0
      %3327 = vmatpush1.bf16.msra.mxu0 %v3308
      %3328 = vmatprep.subr.bf16.mxu0 0
      %3329 = vmatpush1.bf16.msra.mxu0 %v3309
      %3330 = vmatprep.subr.bf16.mxu0 0
      %3331 = vmatpush1.bf16.msra.mxu0 %v3310
      %3332 = vmatprep.subr.bf16.mxu0 0
      %3333 = vmatpush1.bf16.msra.mxu0 %v3311
      %3334 = vmatprep.subr.bf16.mxu0 0
      %3335 = vmatpush1.bf16.msra.mxu0 %v3312
      %3336 = vmatprep.subr.bf16.mxu0 0
      %3337 = vmatpush1.bf16.msra.mxu0 %v3313
      %3338 = vmatprep.subr.bf16.mxu0 0
      %3339 = vmatpush1.bf16.msra.mxu0 0
      %3340 = vmatprep.subr.bf16.mxu0 0
      %3341 = vmatpush1.bf16.msra.mxu0 0
      %3342 = vmatprep.subr.bf16.mxu0 0
      %3343 = vmatpush1.bf16.msra.mxu0 0
      %3344 = vmatprep.subr.bf16.mxu0 0
      %3345 = vmatpush1.bf16.msra.mxu0 0
      %3346 = vmatprep.subr.bf16.mxu0 0
      %3347 = vmatpush1.bf16.msra.mxu0 0
      %3348 = vmatprep.subr.bf16.mxu0 0
      %3349 = vmatpush1.bf16.msra.mxu0 0
      %3350 = vmatprep.subr.bf16.mxu0 0
      %3351 = vmatpush1.bf16.msra.mxu0 0
      %3352 = vmatprep.subr.bf16.mxu0 0
      %3353 = vmatpush1.bf16.msra.mxu0 0
      %3354 = vmatprep.mubr.bf16.mxu0 0
      %3355 = vmatmul.mubr.bf16.gmra.mrb[0].mxu0 %v3266
      %v3356 = vpop.f32.mrb[0].mxu0
      %v3357 = vadd.f32 0.0, %v3356
      %v3358 = vpop.f32.mrb[0].mxu0
      %v3359 = vpop.f32.mrb[0].mxu0
      %v3360 = vadd.f32 0.0, %v3359
      %v3361 = vpop.f32.mrb[0].mxu0
      %3362 = vmatprep.mubr.bf16.mxu0 0
      %3363 = vmatmul.mubr.bf16.gmra.mrb[0].mxu0 %v3267
      %v3364 = vpop.f32.mrb[0].mxu0
      %v3365 = vadd.f32 0.0, %v3364
      %v3366 = vpop.f32.mrb[0].mxu0
      %v3367 = vpop.f32.mrb[0].mxu0
      %v3368 = vadd.f32 0.0, %v3367
      %v3369 = vpop.f32.mrb[0].mxu0
      %3370 = vmatprep.mubr.bf16.mxu0 0
      %3371 = vmatmul.mubr.bf16.gmra.mrb[0].mxu0 %v3268
      %v3372 = vpop.f32.mrb[0].mxu0
      %v3373 = vadd.f32 0.0, %v3372
      %v3374 = vpop.f32.mrb[0].mxu0
      %v3375 = vpop.f32.mrb[0].mxu0
      %v3376 = vadd.f32 0.0, %v3375
      %v3377 = vpop.f32.mrb[0].mxu0
      %3378 = vmatprep.mubr.bf16.mxu0 0
      %3379 = vmatmul.mubr.bf16.gmra.mrb[0].mxu0 %v3269
      %v3380 = vpop.f32.mrb[0].mxu0
      %v3381 = vadd.f32 0.0, %v3380
      %v3382 = vpop.f32.mrb[0].mxu0
      %v3383 = vpop.f32.mrb[0].mxu0
      %v3384 = vadd.f32 0.0, %v3383
      %v3385 = vpop.f32.mrb[0].mxu0
      %3386 = vdwg.mxu0
      %v3387 = vadd.f32 %v3083, %v3357
      %v3388 = vadd.f32 %v3086, %v3360
      %v3389 = vadd.f32 %v3091, %v3365
      %v3390 = vadd.f32 %v3094, %v3368
      %v3391 = vadd.f32 %v3099, %v3373
      %v3392 = vadd.f32 %v3102, %v3376
      %v3393 = vadd.f32 %v3107, %v3381
      %v3394 = vadd.f32 %v3110, %v3384
      %v3395 = vld [vmem:[%s454] sm:$0x8]
      %v3396 = vld [vmem:[%s454 + $0x4] sm:$0xf]
      %v3397 = vld [vmem:[%s454 + $0xc] sm:$0x8]
      %v3398 = vld [vmem:[%s454 + $0x10] sm:$0xf]
      %v3399 = vld [vmem:[%s454 + $0x18] sm:$0x8]
      %v3400 = vld [vmem:[%s454 + $0x1c] sm:$0xf]
      %v3401 = vld [vmem:[%s454 + $0x24] sm:$0x8]
      %v3402 = vld [vmem:[%s454 + $0x28] sm:$0xf]
      %v3403 = vld [vmem:[%s454 + $0x30] sm:$0x8]
      %v3404 = vld [vmem:[%s454 + $0x34] sm:$0xf]
      %v3405 = vld [vmem:[%s454 + $0x3c] sm:$0x8]
      %v3406 = vld [vmem:[%s454 + $0x40] sm:$0xf]
      %v3407 = vld [vmem:[%s454 + $0x48] sm:$0x8]
      %v3408 = vld [vmem:[%s454 + $0x4c] sm:$0xf]
      %v3409 = vld [vmem:[%s454 + $0x54] sm:$0x8]
      %v3410 = vld [vmem:[%s454 + $0x58] sm:$0xf]
      %v3412 = vshrl.u32 %v3395, 16
      %v3414 = vrot.slane %v3412, 7
      %v3415 = vrot.slane %v3414, 4
      %v3417 = vshrl.u32 %v3396, 16
      %v3419 = vrot.slane %v3417, 7
      %v3420 = vshll.u32 %v3396, 16
      %v3422 = vor.u32 %v3419, %v3420
      %v3423 = vsel %vm529, %v3415, %v3422
      %v3425 = vshrl.u32 %v3397, 16
      %v3427 = vrot.slane %v3425, 7
      %v3428 = vrot.slane %v3427, 4
      %v3430 = vshrl.u32 %v3398, 16
      %v3432 = vrot.slane %v3430, 7
      %v3433 = vshll.u32 %v3398, 16
      %v3435 = vor.u32 %v3432, %v3433
      %v3436 = vsel %vm529, %v3428, %v3435
      %v3438 = vshrl.u32 %v3399, 16
      %v3440 = vrot.slane %v3438, 7
      %v3441 = vrot.slane %v3440, 4
      %v3443 = vshrl.u32 %v3400, 16
      %v3445 = vrot.slane %v3443, 7
      %v3446 = vshll.u32 %v3400, 16
      %v3448 = vor.u32 %v3445, %v3446
      %v3449 = vsel %vm529, %v3441, %v3448
      %v3451 = vshrl.u32 %v3401, 16
      %v3453 = vrot.slane %v3451, 7
      %v3454 = vrot.slane %v3453, 4
      %v3456 = vshrl.u32 %v3402, 16
      %v3458 = vrot.slane %v3456, 7
      %v3459 = vshll.u32 %v3402, 16
      %v3461 = vor.u32 %v3458, %v3459
      %v3462 = vsel %vm529, %v3454, %v3461
      %v3464 = vshrl.u32 %v3403, 16
      %v3466 = vrot.slane %v3464, 7
      %v3467 = vrot.slane %v3466, 4
      %v3469 = vshrl.u32 %v3404, 16
      %v3471 = vrot.slane %v3469, 7
      %v3472 = vshll.u32 %v3404, 16
      %v3474 = vor.u32 %v3471, %v3472
      %v3475 = vsel %vm529, %v3467, %v3474
      %v3477 = vshrl.u32 %v3405, 16
      %v3479 = vrot.slane %v3477, 7
      %v3480 = vrot.slane %v3479, 4
      %v3482 = vshrl.u32 %v3406, 16
      %v3484 = vrot.slane %v3482, 7
      %v3485 = vshll.u32 %v3406, 16
      %v3487 = vor.u32 %v3484, %v3485
      %v3488 = vsel %vm529, %v3480, %v3487
      %v3490 = vshrl.u32 %v3407, 16
      %v3492 = vrot.slane %v3490, 7
      %v3493 = vrot.slane %v3492, 4
      %v3495 = vshrl.u32 %v3408, 16
      %v3497 = vrot.slane %v3495, 7
      %v3498 = vshll.u32 %v3408, 16
      %v3500 = vor.u32 %v3497, %v3498
      %v3501 = vsel %vm529, %v3493, %v3500
      %v3503 = vshrl.u32 %v3409, 16
      %v3505 = vrot.slane %v3503, 7
      %v3506 = vrot.slane %v3505, 4
      %v3508 = vshrl.u32 %v3410, 16
      %v3510 = vrot.slane %v3508, 7
      %v3511 = vshll.u32 %v3410, 16
      %v3513 = vor.u32 %v3510, %v3511
      %v3514 = vsel %vm529, %v3506, %v3513
      %s3515 = scalar_lea.vmem %s3, 192
      %v3516 = vld [vmem:[%s3515] sm:$0xf]
      %v3517 = vld [vmem:[%s3515 + $0x4] sm:$0xf]
      %v3518 = vld [vmem:[%s3515 + $0x8] sm:$0xf]
      %v3519 = vld [vmem:[%s3515 + $0xc] sm:$0xf]
      %v3520 = vld [vmem:[%s3515 + $0x10] sm:$0xf]
      %v3521 = vld [vmem:[%s3515 + $0x14] sm:$0xf]
      %v3522 = vld [vmem:[%s3515 + $0x18] sm:$0xf]
      %v3523 = vld [vmem:[%s3515 + $0x1c] sm:$0xf]
      %v3524 = vld [vmem:[%s3515 + $0x20] sm:$0xf]
      %v3525 = vld [vmem:[%s3515 + $0x24] sm:$0xf]
      %v3526 = vld [vmem:[%s3515 + $0x28] sm:$0xf]
      %v3527 = vld [vmem:[%s3515 + $0x2c] sm:$0xf]
      %v3528 = vld [vmem:[%s3515 + $0x30] sm:$0xf]
      %v3529 = vld [vmem:[%s3515 + $0x34] sm:$0xf]
      %v3530 = vld [vmem:[%s3515 + $0x38] sm:$0xf]
      %v3531 = vld [vmem:[%s3515 + $0x3c] sm:$0xf]
      %v3532 = vunpack.c.l.b16 %v3423
      %v3533 = vunpack.c.l.b16 %v3436
      %v3534 = vunpack.c.l.b16 %v3449
      %v3535 = vunpack.c.l.b16 %v3462
      %v3536 = vunpack.c.l.b16 %v3475
      %v3537 = vunpack.c.l.b16 %v3488
      %v3538 = vunpack.c.l.b16 %v3501
      %v3539 = vunpack.c.l.b16 %v3514
      %v3540 = vpack.c.b16 %v3533, %v3532
      %v3541 = vpack.c.b16 %v3535, %v3534
      %v3542 = vpack.c.b16 %v3537, %v3536
      %v3543 = vpack.c.b16 %v3539, %v3538
      %v3564 = vunpack.c.l.b16 %v3516
      %v3565 = vunpack.c.l.b16 %v3517
      %v3566 = vunpack.c.l.b16 %v3518
      %v3567 = vunpack.c.l.b16 %v3519
      %v3568 = vunpack.c.l.b16 %v3520
      %v3569 = vunpack.c.l.b16 %v3521
      %v3570 = vunpack.c.l.b16 %v3522
      %v3571 = vunpack.c.l.b16 %v3523
      %v3572 = vunpack.c.l.b16 %v3524
      %v3573 = vunpack.c.l.b16 %v3525
      %v3574 = vunpack.c.l.b16 %v3526
      %v3575 = vunpack.c.l.b16 %v3527
      %v3576 = vunpack.c.l.b16 %v3528
      %v3577 = vunpack.c.l.b16 %v3529
      %v3578 = vunpack.c.l.b16 %v3530
      %v3579 = vunpack.c.l.b16 %v3531
      %v3580 = vpack.c.b16 %v3565, %v3564
      %v3581 = vpack.c.b16 %v3567, %v3566
      %v3582 = vpack.c.b16 %v3569, %v3568
      %v3583 = vpack.c.b16 %v3571, %v3570
      %v3584 = vpack.c.b16 %v3573, %v3572
      %v3585 = vpack.c.b16 %v3575, %v3574
      %v3586 = vpack.c.b16 %v3577, %v3576
      %v3587 = vpack.c.b16 %v3579, %v3578
      %3596 = vmatprep.subr.bf16.mxu0 0
      %3597 = vmatpush1.bf16.msra.mxu0 %v3580
      %3598 = vmatprep.subr.bf16.mxu0 0
      %3599 = vmatpush1.bf16.msra.mxu0 %v3581
      %3600 = vmatprep.subr.bf16.mxu0 0
      %3601 = vmatpush1.bf16.msra.mxu0 %v3582
      %3602 = vmatprep.subr.bf16.mxu0 0
      %3603 = vmatpush1.bf16.msra.mxu0 %v3583
      %3604 = vmatprep.subr.bf16.mxu0 0
      %3605 = vmatpush1.bf16.msra.mxu0 %v3584
      %3606 = vmatprep.subr.bf16.mxu0 0
      %3607 = vmatpush1.bf16.msra.mxu0 %v3585
      %3608 = vmatprep.subr.bf16.mxu0 0
      %3609 = vmatpush1.bf16.msra.mxu0 %v3586
      %3610 = vmatprep.subr.bf16.mxu0 0
      %3611 = vmatpush1.bf16.msra.mxu0 %v3587
      %3612 = vmatprep.subr.bf16.mxu0 0
      %3613 = vmatpush1.bf16.msra.mxu0 0
      %3614 = vmatprep.subr.bf16.mxu0 0
      %3615 = vmatpush1.bf16.msra.mxu0 0
      %3616 = vmatprep.subr.bf16.mxu0 0
      %3617 = vmatpush1.bf16.msra.mxu0 0
      %3618 = vmatprep.subr.bf16.mxu0 0
      %3619 = vmatpush1.bf16.msra.mxu0 0
      %3620 = vmatprep.subr.bf16.mxu0 0
      %3621 = vmatpush1.bf16.msra.mxu0 0
      %3622 = vmatprep.subr.bf16.mxu0 0
      %3623 = vmatpush1.bf16.msra.mxu0 0
      %3624 = vmatprep.subr.bf16.mxu0 0
      %3625 = vmatpush1.bf16.msra.mxu0 0
      %3626 = vmatprep.subr.bf16.mxu0 0
      %3627 = vmatpush1.bf16.msra.mxu0 0
      %3628 = vmatprep.mubr.bf16.mxu0 0
      %3629 = vmatmul.mubr.bf16.gmra.mrb[0].mxu0 %v3540
      %v3630 = vpop.f32.mrb[0].mxu0
      %v3631 = vadd.f32 0.0, %v3630
      %v3632 = vpop.f32.mrb[0].mxu0
      %v3633 = vpop.f32.mrb[0].mxu0
      %v3634 = vadd.f32 0.0, %v3633
      %v3635 = vpop.f32.mrb[0].mxu0
      %3636 = vmatprep.mubr.bf16.mxu0 0
      %3637 = vmatmul.mubr.bf16.gmra.mrb[0].mxu0 %v3541
      %v3638 = vpop.f32.mrb[0].mxu0
      %v3639 = vadd.f32 0.0, %v3638
      %v3640 = vpop.f32.mrb[0].mxu0
      %v3641 = vpop.f32.mrb[0].mxu0
      %v3642 = vadd.f32 0.0, %v3641
      %v3643 = vpop.f32.mrb[0].mxu0
      %3644 = vmatprep.mubr.bf16.mxu0 0
      %3645 = vmatmul.mubr.bf16.gmra.mrb[0].mxu0 %v3542
      %v3646 = vpop.f32.mrb[0].mxu0
      %v3647 = vadd.f32 0.0, %v3646
      %v3648 = vpop.f32.mrb[0].mxu0
      %v3649 = vpop.f32.mrb[0].mxu0
      %v3650 = vadd.f32 0.0, %v3649
      %v3651 = vpop.f32.mrb[0].mxu0
      %3652 = vmatprep.mubr.bf16.mxu0 0
      %3653 = vmatmul.mubr.bf16.gmra.mrb[0].mxu0 %v3543
      %v3654 = vpop.f32.mrb[0].mxu0
      %v3655 = vadd.f32 0.0, %v3654
      %v3656 = vpop.f32.mrb[0].mxu0
      %v3657 = vpop.f32.mrb[0].mxu0
      %v3658 = vadd.f32 0.0, %v3657
      %v3659 = vpop.f32.mrb[0].mxu0
      %3660 = vdwg.mxu0
      %v3661 = vadd.f32 %v3387, %v3631
      %v3662 = vadd.f32 %v3388, %v3634
      %v3663 = vadd.f32 %v3389, %v3639
      %v3664 = vadd.f32 %v3390, %v3642
      %v3665 = vadd.f32 %v3391, %v3647
      %v3666 = vadd.f32 %v3392, %v3650
      %v3667 = vadd.f32 %v3393, %v3655
      %v3668 = vadd.f32 %v3394, %v3658
      %s3669 = scalar_lea.vmem %s3, 256
      %v3670 = vld [vmem:[%s3669] sm:$0xf]
      %v3671 = vld [vmem:[%s3669 + $0x4] sm:$0xf]
      %v3672 = vld [vmem:[%s3669 + $0x8] sm:$0xf]
      %v3673 = vld [vmem:[%s3669 + $0xc] sm:$0xf]
      %v3674 = vld [vmem:[%s3669 + $0x10] sm:$0xf]
      %v3675 = vld [vmem:[%s3669 + $0x14] sm:$0xf]
      %v3676 = vld [vmem:[%s3669 + $0x18] sm:$0xf]
      %v3677 = vld [vmem:[%s3669 + $0x1c] sm:$0xf]
      %v3678 = vld [vmem:[%s3669 + $0x20] sm:$0xf]
      %v3679 = vld [vmem:[%s3669 + $0x24] sm:$0xf]
      %v3680 = vld [vmem:[%s3669 + $0x28] sm:$0xf]
      %v3681 = vld [vmem:[%s3669 + $0x2c] sm:$0xf]
      %v3682 = vld [vmem:[%s3669 + $0x30] sm:$0xf]
      %v3683 = vld [vmem:[%s3669 + $0x34] sm:$0xf]
      %v3684 = vld [vmem:[%s3669 + $0x38] sm:$0xf]
      %v3685 = vld [vmem:[%s3669 + $0x3c] sm:$0xf]
      %v3694 = vunpack.c.l.b16 %v3396
      %v3695 = vunpack.c.l.b16 %v3398
      %v3696 = vunpack.c.l.b16 %v3400
      %v3697 = vunpack.c.l.b16 %v3402
      %v3698 = vunpack.c.l.b16 %v3404
      %v3699 = vunpack.c.l.b16 %v3406
      %v3700 = vunpack.c.l.b16 %v3408
      %v3701 = vunpack.c.l.b16 %v3410
      %v3702 = vpack.c.b16 %v3695, %v3694
      %v3703 = vpack.c.b16 %v3697, %v3696
      %v3704 = vpack.c.b16 %v3699, %v3698
      %v3705 = vpack.c.b16 %v3701, %v3700
      %v3726 = vunpack.c.l.b16 %v3670
      %v3727 = vunpack.c.l.b16 %v3671
      %v3728 = vunpack.c.l.b16 %v3672
      %v3729 = vunpack.c.l.b16 %v3673
      %v3730 = vunpack.c.l.b16 %v3674
      %v3731 = vunpack.c.l.b16 %v3675
      %v3732 = vunpack.c.l.b16 %v3676
      %v3733 = vunpack.c.l.b16 %v3677
      %v3734 = vunpack.c.l.b16 %v3678
      %v3735 = vunpack.c.l.b16 %v3679
      %v3736 = vunpack.c.l.b16 %v3680
      %v3737 = vunpack.c.l.b16 %v3681
      %v3738 = vunpack.c.l.b16 %v3682
      %v3739 = vunpack.c.l.b16 %v3683
      %v3740 = vunpack.c.l.b16 %v3684
      %v3741 = vunpack.c.l.b16 %v3685
      %v3742 = vpack.c.b16 %v3727, %v3726
      %v3743 = vpack.c.b16 %v3729, %v3728
      %v3744 = vpack.c.b16 %v3731, %v3730
      %v3745 = vpack.c.b16 %v3733, %v3732
      %v3746 = vpack.c.b16 %v3735, %v3734
      %v3747 = vpack.c.b16 %v3737, %v3736
      %v3748 = vpack.c.b16 %v3739, %v3738
      %v3749 = vpack.c.b16 %v3741, %v3740
      %3758 = vmatprep.subr.bf16.mxu0 0
      %3759 = vmatpush1.bf16.msra.mxu0 %v3742
      %3760 = vmatprep.subr.bf16.mxu0 0
      %3761 = vmatpush1.bf16.msra.mxu0 %v3743
      %3762 = vmatprep.subr.bf16.mxu0 0
      %3763 = vmatpush1.bf16.msra.mxu0 %v3744
      %3764 = vmatprep.subr.bf16.mxu0 0
      %3765 = vmatpush1.bf16.msra.mxu0 %v3745
      %3766 = vmatprep.subr.bf16.mxu0 0
      %3767 = vmatpush1.bf16.msra.mxu0 %v3746
      %3768 = vmatprep.subr.bf16.mxu0 0
      %3769 = vmatpush1.bf16.msra.mxu0 %v3747
      %3770 = vmatprep.subr.bf16.mxu0 0
      %3771 = vmatpush1.bf16.msra.mxu0 %v3748
      %3772 = vmatprep.subr.bf16.mxu0 0
      %3773 = vmatpush1.bf16.msra.mxu0 %v3749
      %3774 = vmatprep.subr.bf16.mxu0 0
      %3775 = vmatpush1.bf16.msra.mxu0 0
      %3776 = vmatprep.subr.bf16.mxu0 0
      %3777 = vmatpush1.bf16.msra.mxu0 0
      %3778 = vmatprep.subr.bf16.mxu0 0
      %3779 = vmatpush1.bf16.msra.mxu0 0
      %3780 = vmatprep.subr.bf16.mxu0 0
      %3781 = vmatpush1.bf16.msra.mxu0 0
      %3782 = vmatprep.subr.bf16.mxu0 0
      %3783 = vmatpush1.bf16.msra.mxu0 0
      %3784 = vmatprep.subr.bf16.mxu0 0
      %3785 = vmatpush1.bf16.msra.mxu0 0
      %3786 = vmatprep.subr.bf16.mxu0 0
      %3787 = vmatpush1.bf16.msra.mxu0 0
      %3788 = vmatprep.subr.bf16.mxu0 0
      %3789 = vmatpush1.bf16.msra.mxu0 0
      %3790 = vmatprep.mubr.bf16.mxu0 0
      %3791 = vmatmul.mubr.bf16.gmra.mrb[0].mxu0 %v3702
      %v3792 = vpop.f32.mrb[0].mxu0
      %v3793 = vadd.f32 0.0, %v3792
      %v3794 = vpop.f32.mrb[0].mxu0
      %v3795 = vpop.f32.mrb[0].mxu0
      %v3796 = vadd.f32 0.0, %v3795
      %v3797 = vpop.f32.mrb[0].mxu0
      %3798 = vmatprep.mubr.bf16.mxu0 0
      %3799 = vmatmul.mubr.bf16.gmra.mrb[0].mxu0 %v3703
      %v3800 = vpop.f32.mrb[0].mxu0
      %v3801 = vadd.f32 0.0, %v3800
      %v3802 = vpop.f32.mrb[0].mxu0
      %v3803 = vpop.f32.mrb[0].mxu0
      %v3804 = vadd.f32 0.0, %v3803
      %v3805 = vpop.f32.mrb[0].mxu0
      %3806 = vmatprep.mubr.bf16.mxu0 0
      %3807 = vmatmul.mubr.bf16.gmra.mrb[0].mxu0 %v3704
      %v3808 = vpop.f32.mrb[0].mxu0
      %v3809 = vadd.f32 0.0, %v3808
      %v3810 = vpop.f32.mrb[0].mxu0
      %v3811 = vpop.f32.mrb[0].mxu0
      %v3812 = vadd.f32 0.0, %v3811
      %v3813 = vpop.f32.mrb[0].mxu0
      %3814 = vmatprep.mubr.bf16.mxu0 0
      %3815 = vmatmul.mubr.bf16.gmra.mrb[0].mxu0 %v3705
      %v3816 = vpop.f32.mrb[0].mxu0
      %v3817 = vadd.f32 0.0, %v3816
      %v3818 = vpop.f32.mrb[0].mxu0
      %v3819 = vpop.f32.mrb[0].mxu0
      %v3820 = vadd.f32 0.0, %v3819
      %v3821 = vpop.f32.mrb[0].mxu0
      %3822 = vdwg.mxu0
      %v3823 = vadd.f32 %v3661, %v3793
      %v3824 = vadd.f32 %v3662, %v3796
      %v3825 = vadd.f32 %v3663, %v3801
      %v3826 = vadd.f32 %v3664, %v3804
      %v3827 = vadd.f32 %v3665, %v3809
      %v3828 = vadd.f32 %v3666, %v3812
      %v3829 = vadd.f32 %v3667, %v3817
      %v3830 = vadd.f32 %v3668, %v3820
      %v3831 = vld [vmem:[%s454 + $0x4] sm:$0xf]
      %v3832 = vld [vmem:[%s454 + $0x8] sm:$0x1]
      %v3833 = vld [vmem:[%s454 + $0x10] sm:$0xf]
      %v3834 = vld [vmem:[%s454 + $0x14] sm:$0x1]
      %v3835 = vld [vmem:[%s454 + $0x1c] sm:$0xf]
      %v3836 = vld [vmem:[%s454 + $0x20] sm:$0x1]
      %v3837 = vld [vmem:[%s454 + $0x28] sm:$0xf]
      %v3838 = vld [vmem:[%s454 + $0x2c] sm:$0x1]
      %v3839 = vld [vmem:[%s454 + $0x34] sm:$0xf]
      %v3840 = vld [vmem:[%s454 + $0x38] sm:$0x1]
      %v3841 = vld [vmem:[%s454 + $0x40] sm:$0xf]
      %v3842 = vld [vmem:[%s454 + $0x44] sm:$0x1]
      %v3843 = vld [vmem:[%s454 + $0x4c] sm:$0xf]
      %v3844 = vld [vmem:[%s454 + $0x50] sm:$0x1]
      %v3845 = vld [vmem:[%s454 + $0x58] sm:$0xf]
      %v3846 = vld [vmem:[%s454 + $0x5c] sm:$0x1]
      %v3848 = vshrl.u32 %v3831, 16
      %v3850 = vrot.slane %v3848, 4
      %v3851 = vshll.u32 %v3831, 16
      %v3853 = vrot.slane %v3851, 5
      %v3854 = vor.u32 %v3850, %v3853
      %v3855 = vrot.slane %v3854, 4
      %v3857 = vshll.u32 %v3832, 16
      %v3859 = vrot.slane %v3857, 5
      %v3860 = vsel %vm951, %v3855, %v3859
      %v3862 = vshrl.u32 %v3833, 16
      %v3864 = vrot.slane %v3862, 4
      %v3865 = vshll.u32 %v3833, 16
      %v3867 = vrot.slane %v3865, 5
      %v3868 = vor.u32 %v3864, %v3867
      %v3869 = vrot.slane %v3868, 4
      %v3871 = vshll.u32 %v3834, 16
      %v3873 = vrot.slane %v3871, 5
      %v3874 = vsel %vm951, %v3869, %v3873
      %v3876 = vshrl.u32 %v3835, 16
      %v3878 = vrot.slane %v3876, 4
      %v3879 = vshll.u32 %v3835, 16
      %v3881 = vrot.slane %v3879, 5
      %v3882 = vor.u32 %v3878, %v3881
      %v3883 = vrot.slane %v3882, 4
      %v3885 = vshll.u32 %v3836, 16
      %v3887 = vrot.slane %v3885, 5
      %v3888 = vsel %vm951, %v3883, %v3887
      %v3890 = vshrl.u32 %v3837, 16
      %v3892 = vrot.slane %v3890, 4
      %v3893 = vshll.u32 %v3837, 16
      %v3895 = vrot.slane %v3893, 5
      %v3896 = vor.u32 %v3892, %v3895
      %v3897 = vrot.slane %v3896, 4
      %v3899 = vshll.u32 %v3838, 16
      %v3901 = vrot.slane %v3899, 5
      %v3902 = vsel %vm951, %v3897, %v3901
      %v3904 = vshrl.u32 %v3839, 16
      %v3906 = vrot.slane %v3904, 4
      %v3907 = vshll.u32 %v3839, 16
      %v3909 = vrot.slane %v3907, 5
      %v3910 = vor.u32 %v3906, %v3909
      %v3911 = vrot.slane %v3910, 4
      %v3913 = vshll.u32 %v3840, 16
      %v3915 = vrot.slane %v3913, 5
      %v3916 = vsel %vm951, %v3911, %v3915
      %v3918 = vshrl.u32 %v3841, 16
      %v3920 = vrot.slane %v3918, 4
      %v3921 = vshll.u32 %v3841, 16
      %v3923 = vrot.slane %v3921, 5
      %v3924 = vor.u32 %v3920, %v3923
      %v3925 = vrot.slane %v3924, 4
      %v3927 = vshll.u32 %v3842, 16
      %v3929 = vrot.slane %v3927, 5
      %v3930 = vsel %vm951, %v3925, %v3929
      %v3932 = vshrl.u32 %v3843, 16
      %v3934 = vrot.slane %v3932, 4
      %v3935 = vshll.u32 %v3843, 16
      %v3937 = vrot.slane %v3935, 5
      %v3938 = vor.u32 %v3934, %v3937
      %v3939 = vrot.slane %v3938, 4
      %v3941 = vshll.u32 %v3844, 16
      %v3943 = vrot.slane %v3941, 5
      %v3944 = vsel %vm951, %v3939, %v3943
      %v3946 = vshrl.u32 %v3845, 16
      %v3948 = vrot.slane %v3946, 4
      %v3949 = vshll.u32 %v3845, 16
      %v3951 = vrot.slane %v3949, 5
      %v3952 = vor.u32 %v3948, %v3951
      %v3953 = vrot.slane %v3952, 4
      %v3955 = vshll.u32 %v3846, 16
      %v3957 = vrot.slane %v3955, 5
      %v3958 = vsel %vm951, %v3953, %v3957
      %s3959 = scalar_lea.vmem %s3, 320
      %v3960 = vld [vmem:[%s3959] sm:$0xf]
      %v3961 = vld [vmem:[%s3959 + $0x4] sm:$0xf]
      %v3962 = vld [vmem:[%s3959 + $0x8] sm:$0xf]
      %v3963 = vld [vmem:[%s3959 + $0xc] sm:$0xf]
      %v3964 = vld [vmem:[%s3959 + $0x10] sm:$0xf]
      %v3965 = vld [vmem:[%s3959 + $0x14] sm:$0xf]
      %v3966 = vld [vmem:[%s3959 + $0x18] sm:$0xf]
      %v3967 = vld [vmem:[%s3959 + $0x1c] sm:$0xf]
      %v3968 = vld [vmem:[%s3959 + $0x20] sm:$0xf]
      %v3969 = vld [vmem:[%s3959 + $0x24] sm:$0xf]
      %v3970 = vld [vmem:[%s3959 + $0x28] sm:$0xf]
      %v3971 = vld [vmem:[%s3959 + $0x2c] sm:$0xf]
      %v3972 = vld [vmem:[%s3959 + $0x30] sm:$0xf]
      %v3973 = vld [vmem:[%s3959 + $0x34] sm:$0xf]
      %v3974 = vld [vmem:[%s3959 + $0x38] sm:$0xf]
      %v3975 = vld [vmem:[%s3959 + $0x3c] sm:$0xf]
      %v3976 = vunpack.c.l.b16 %v3860
      %v3977 = vunpack.c.l.b16 %v3874
      %v3978 = vunpack.c.l.b16 %v3888
      %v3979 = vunpack.c.l.b16 %v3902
      %v3980 = vunpack.c.l.b16 %v3916
      %v3981 = vunpack.c.l.b16 %v3930
      %v3982 = vunpack.c.l.b16 %v3944
      %v3983 = vunpack.c.l.b16 %v3958
      %v3984 = vpack.c.b16 %v3977, %v3976
      %v3985 = vpack.c.b16 %v3979, %v3978
      %v3986 = vpack.c.b16 %v3981, %v3980
      %v3987 = vpack.c.b16 %v3983, %v3982
      %v4008 = vunpack.c.l.b16 %v3960
      %v4009 = vunpack.c.l.b16 %v3961
      %v4010 = vunpack.c.l.b16 %v3962
      %v4011 = vunpack.c.l.b16 %v3963
      %v4012 = vunpack.c.l.b16 %v3964
      %v4013 = vunpack.c.l.b16 %v3965
      %v4014 = vunpack.c.l.b16 %v3966
      %v4015 = vunpack.c.l.b16 %v3967
      %v4016 = vunpack.c.l.b16 %v3968
      %v4017 = vunpack.c.l.b16 %v3969
      %v4018 = vunpack.c.l.b16 %v3970
      %v4019 = vunpack.c.l.b16 %v3971
      %v4020 = vunpack.c.l.b16 %v3972
      %v4021 = vunpack.c.l.b16 %v3973
      %v4022 = vunpack.c.l.b16 %v3974
      %v4023 = vunpack.c.l.b16 %v3975
      %v4024 = vpack.c.b16 %v4009, %v4008
      %v4025 = vpack.c.b16 %v4011, %v4010
      %v4026 = vpack.c.b16 %v4013, %v4012
      %v4027 = vpack.c.b16 %v4015, %v4014
      %v4028 = vpack.c.b16 %v4017, %v4016
      %v4029 = vpack.c.b16 %v4019, %v4018
      %v4030 = vpack.c.b16 %v4021, %v4020
      %v4031 = vpack.c.b16 %v4023, %v4022
      %4040 = vmatprep.subr.bf16.mxu0 0
      %4041 = vmatpush1.bf16.msra.mxu0 %v4024
      %4042 = vmatprep.subr.bf16.mxu0 0
      %4043 = vmatpush1.bf16.msra.mxu0 %v4025
      %4044 = vmatprep.subr.bf16.mxu0 0
      %4045 = vmatpush1.bf16.msra.mxu0 %v4026
      %4046 = vmatprep.subr.bf16.mxu0 0
      %4047 = vmatpush1.bf16.msra.mxu0 %v4027
      %4048 = vmatprep.subr.bf16.mxu0 0
      %4049 = vmatpush1.bf16.msra.mxu0 %v4028
      %4050 = vmatprep.subr.bf16.mxu0 0
      %4051 = vmatpush1.bf16.msra.mxu0 %v4029
      %4052 = vmatprep.subr.bf16.mxu0 0
      %4053 = vmatpush1.bf16.msra.mxu0 %v4030
      %4054 = vmatprep.subr.bf16.mxu0 0
      %4055 = vmatpush1.bf16.msra.mxu0 %v4031
      %4056 = vmatprep.subr.bf16.mxu0 0
      %4057 = vmatpush1.bf16.msra.mxu0 0
      %4058 = vmatprep.subr.bf16.mxu0 0
      %4059 = vmatpush1.bf16.msra.mxu0 0
      %4060 = vmatprep.subr.bf16.mxu0 0
      %4061 = vmatpush1.bf16.msra.mxu0 0
      %4062 = vmatprep.subr.bf16.mxu0 0
      %4063 = vmatpush1.bf16.msra.mxu0 0
      %4064 = vmatprep.subr.bf16.mxu0 0
      %4065 = vmatpush1.bf16.msra.mxu0 0
      %4066 = vmatprep.subr.bf16.mxu0 0
      %4067 = vmatpush1.bf16.msra.mxu0 0
      %4068 = vmatprep.subr.bf16.mxu0 0
      %4069 = vmatpush1.bf16.msra.mxu0 0
      %4070 = vmatprep.subr.bf16.mxu0 0
      %4071 = vmatpush1.bf16.msra.mxu0 0
      %4072 = vmatprep.mubr.bf16.mxu0 0
      %4073 = vmatmul.mubr.bf16.gmra.mrb[0].mxu0 %v3984
      %v4074 = vpop.f32.mrb[0].mxu0
      %v4075 = vadd.f32 0.0, %v4074
      %v4076 = vpop.f32.mrb[0].mxu0
      %v4077 = vpop.f32.mrb[0].mxu0
      %v4078 = vadd.f32 0.0, %v4077
      %v4079 = vpop.f32.mrb[0].mxu0
      %4080 = vmatprep.mubr.bf16.mxu0 0
      %4081 = vmatmul.mubr.bf16.gmra.mrb[0].mxu0 %v3985
      %v4082 = vpop.f32.mrb[0].mxu0
      %v4083 = vadd.f32 0.0, %v4082
      %v4084 = vpop.f32.mrb[0].mxu0
      %v4085 = vpop.f32.mrb[0].mxu0
      %v4086 = vadd.f32 0.0, %v4085
      %v4087 = vpop.f32.mrb[0].mxu0
      %4088 = vmatprep.mubr.bf16.mxu0 0
      %4089 = vmatmul.mubr.bf16.gmra.mrb[0].mxu0 %v3986
      %v4090 = vpop.f32.mrb[0].mxu0
      %v4091 = vadd.f32 0.0, %v4090
      %v4092 = vpop.f32.mrb[0].mxu0
      %v4093 = vpop.f32.mrb[0].mxu0
      %v4094 = vadd.f32 0.0, %v4093
      %v4095 = vpop.f32.mrb[0].mxu0
      %4096 = vmatprep.mubr.bf16.mxu0 0
      %4097 = vmatmul.mubr.bf16.gmra.mrb[0].mxu0 %v3987
      %v4098 = vpop.f32.mrb[0].mxu0
      %v4099 = vadd.f32 0.0, %v4098
      %v4100 = vpop.f32.mrb[0].mxu0
      %v4101 = vpop.f32.mrb[0].mxu0
      %v4102 = vadd.f32 0.0, %v4101
      %v4103 = vpop.f32.mrb[0].mxu0
      %4104 = vdwg.mxu0
      %v4105 = vadd.f32 %v3823, %v4075
      %v4106 = vadd.f32 %v3824, %v4078
      %v4107 = vadd.f32 %v3825, %v4083
      %v4108 = vadd.f32 %v3826, %v4086
      %v4109 = vadd.f32 %v3827, %v4091
      %v4110 = vadd.f32 %v3828, %v4094
      %v4111 = vadd.f32 %v3829, %v4099
      %v4112 = vadd.f32 %v3830, %v4102
      %v4113 = vld [vmem:[%s1936] sm:$0x8]
      %v4114 = vld [vmem:[%s1936 + $0x4] sm:$0xf]
      %v4115 = vld [vmem:[%s1936 + $0xc] sm:$0x8]
      %v4116 = vld [vmem:[%s1936 + $0x10] sm:$0xf]
      %v4117 = vld [vmem:[%s1936 + $0x18] sm:$0x8]
      %v4118 = vld [vmem:[%s1936 + $0x1c] sm:$0xf]
      %v4119 = vld [vmem:[%s1936 + $0x24] sm:$0x8]
      %v4120 = vld [vmem:[%s1936 + $0x28] sm:$0xf]
      %v4121 = vld [vmem:[%s1936 + $0x30] sm:$0x8]
      %v4122 = vld [vmem:[%s1936 + $0x34] sm:$0xf]
      %v4123 = vld [vmem:[%s1936 + $0x3c] sm:$0x8]
      %v4124 = vld [vmem:[%s1936 + $0x40] sm:$0xf]
      %v4125 = vld [vmem:[%s1936 + $0x48] sm:$0x8]
      %v4126 = vld [vmem:[%s1936 + $0x4c] sm:$0xf]
      %v4127 = vld [vmem:[%s1936 + $0x54] sm:$0x8]
      %v4128 = vld [vmem:[%s1936 + $0x58] sm:$0xf]
      %v4130 = vshrl.u32 %v4113, 16
      %v4132 = vrot.slane %v4130, 7
      %v4133 = vrot.slane %v4132, 4
      %v4135 = vshrl.u32 %v4114, 16
      %v4137 = vrot.slane %v4135, 7
      %v4138 = vshll.u32 %v4114, 16
      %v4140 = vor.u32 %v4137, %v4138
      %v4141 = vsel %vm529, %v4133, %v4140
      %v4143 = vshrl.u32 %v4115, 16
      %v4145 = vrot.slane %v4143, 7
      %v4146 = vrot.slane %v4145, 4
      %v4148 = vshrl.u32 %v4116, 16
      %v4150 = vrot.slane %v4148, 7
      %v4151 = vshll.u32 %v4116, 16
      %v4153 = vor.u32 %v4150, %v4151
      %v4154 = vsel %vm529, %v4146, %v4153
      %v4156 = vshrl.u32 %v4117, 16
      %v4158 = vrot.slane %v4156, 7
      %v4159 = vrot.slane %v4158, 4
      %v4161 = vshrl.u32 %v4118, 16
      %v4163 = vrot.slane %v4161, 7
      %v4164 = vshll.u32 %v4118, 16
      %v4166 = vor.u32 %v4163, %v4164
      %v4167 = vsel %vm529, %v4159, %v4166
      %v4169 = vshrl.u32 %v4119, 16
      %v4171 = vrot.slane %v4169, 7
      %v4172 = vrot.slane %v4171, 4
      %v4174 = vshrl.u32 %v4120, 16
      %v4176 = vrot.slane %v4174, 7
      %v4177 = vshll.u32 %v4120, 16
      %v4179 = vor.u32 %v4176, %v4177
      %v4180 = vsel %vm529, %v4172, %v4179
      %v4182 = vshrl.u32 %v4121, 16
      %v4184 = vrot.slane %v4182, 7
      %v4185 = vrot.slane %v4184, 4
      %v4187 = vshrl.u32 %v4122, 16
      %v4189 = vrot.slane %v4187, 7
      %v4190 = vshll.u32 %v4122, 16
      %v4192 = vor.u32 %v4189, %v4190
      %v4193 = vsel %vm529, %v4185, %v4192
      %v4195 = vshrl.u32 %v4123, 16
      %v4197 = vrot.slane %v4195, 7
      %v4198 = vrot.slane %v4197, 4
      %v4200 = vshrl.u32 %v4124, 16
      %v4202 = vrot.slane %v4200, 7
      %v4203 = vshll.u32 %v4124, 16
      %v4205 = vor.u32 %v4202, %v4203
      %v4206 = vsel %vm529, %v4198, %v4205
      %v4208 = vshrl.u32 %v4125, 16
      %v4210 = vrot.slane %v4208, 7
      %v4211 = vrot.slane %v4210, 4
      %v4213 = vshrl.u32 %v4126, 16
      %v4215 = vrot.slane %v4213, 7
      %v4216 = vshll.u32 %v4126, 16
      %v4218 = vor.u32 %v4215, %v4216
      %v4219 = vsel %vm529, %v4211, %v4218
      %v4221 = vshrl.u32 %v4127, 16
      %v4223 = vrot.slane %v4221, 7
      %v4224 = vrot.slane %v4223, 4
      %v4226 = vshrl.u32 %v4128, 16
      %v4228 = vrot.slane %v4226, 7
      %v4229 = vshll.u32 %v4128, 16
      %v4231 = vor.u32 %v4228, %v4229
      %v4232 = vsel %vm529, %v4224, %v4231
      %s4233 = scalar_lea.vmem %s3, 384
      %v4234 = vld [vmem:[%s4233] sm:$0xf]
      %v4235 = vld [vmem:[%s4233 + $0x4] sm:$0xf]
      %v4236 = vld [vmem:[%s4233 + $0x8] sm:$0xf]
      %v4237 = vld [vmem:[%s4233 + $0xc] sm:$0xf]
      %v4238 = vld [vmem:[%s4233 + $0x10] sm:$0xf]
      %v4239 = vld [vmem:[%s4233 + $0x14] sm:$0xf]
      %v4240 = vld [vmem:[%s4233 + $0x18] sm:$0xf]
      %v4241 = vld [vmem:[%s4233 + $0x1c] sm:$0xf]
      %v4242 = vld [vmem:[%s4233 + $0x20] sm:$0xf]
      %v4243 = vld [vmem:[%s4233 + $0x24] sm:$0xf]
      %v4244 = vld [vmem:[%s4233 + $0x28] sm:$0xf]
      %v4245 = vld [vmem:[%s4233 + $0x2c] sm:$0xf]
      %v4246 = vld [vmem:[%s4233 + $0x30] sm:$0xf]
      %v4247 = vld [vmem:[%s4233 + $0x34] sm:$0xf]
      %v4248 = vld [vmem:[%s4233 + $0x38] sm:$0xf]
      %v4249 = vld [vmem:[%s4233 + $0x3c] sm:$0xf]
      %v4250 = vunpack.c.l.b16 %v4141
      %v4251 = vunpack.c.l.b16 %v4154
      %v4252 = vunpack.c.l.b16 %v4167
      %v4253 = vunpack.c.l.b16 %v4180
      %v4254 = vunpack.c.l.b16 %v4193
      %v4255 = vunpack.c.l.b16 %v4206
      %v4256 = vunpack.c.l.b16 %v4219
      %v4257 = vunpack.c.l.b16 %v4232
      %v4258 = vpack.c.b16 %v4251, %v4250
      %v4259 = vpack.c.b16 %v4253, %v4252
      %v4260 = vpack.c.b16 %v4255, %v4254
      %v4261 = vpack.c.b16 %v4257, %v4256
      %v4282 = vunpack.c.l.b16 %v4234
      %v4283 = vunpack.c.l.b16 %v4235
      %v4284 = vunpack.c.l.b16 %v4236
      %v4285 = vunpack.c.l.b16 %v4237
      %v4286 = vunpack.c.l.b16 %v4238
      %v4287 = vunpack.c.l.b16 %v4239
      %v4288 = vunpack.c.l.b16 %v4240
      %v4289 = vunpack.c.l.b16 %v4241
      %v4290 = vunpack.c.l.b16 %v4242
      %v4291 = vunpack.c.l.b16 %v4243
      %v4292 = vunpack.c.l.b16 %v4244
      %v4293 = vunpack.c.l.b16 %v4245
      %v4294 = vunpack.c.l.b16 %v4246
      %v4295 = vunpack.c.l.b16 %v4247
      %v4296 = vunpack.c.l.b16 %v4248
      %v4297 = vunpack.c.l.b16 %v4249
      %v4298 = vpack.c.b16 %v4283, %v4282
      %v4299 = vpack.c.b16 %v4285, %v4284
      %v4300 = vpack.c.b16 %v4287, %v4286
      %v4301 = vpack.c.b16 %v4289, %v4288
      %v4302 = vpack.c.b16 %v4291, %v4290
      %v4303 = vpack.c.b16 %v4293, %v4292
      %v4304 = vpack.c.b16 %v4295, %v4294
      %v4305 = vpack.c.b16 %v4297, %v4296
      %4314 = vmatprep.subr.bf16.mxu0 0
      %4315 = vmatpush1.bf16.msra.mxu0 %v4298
      %4316 = vmatprep.subr.bf16.mxu0 0
      %4317 = vmatpush1.bf16.msra.mxu0 %v4299
      %4318 = vmatprep.subr.bf16.mxu0 0
      %4319 = vmatpush1.bf16.msra.mxu0 %v4300
      %4320 = vmatprep.subr.bf16.mxu0 0
      %4321 = vmatpush1.bf16.msra.mxu0 %v4301
      %4322 = vmatprep.subr.bf16.mxu0 0
      %4323 = vmatpush1.bf16.msra.mxu0 %v4302
      %4324 = vmatprep.subr.bf16.mxu0 0
      %4325 = vmatpush1.bf16.msra.mxu0 %v4303
      %4326 = vmatprep.subr.bf16.mxu0 0
      %4327 = vmatpush1.bf16.msra.mxu0 %v4304
      %4328 = vmatprep.subr.bf16.mxu0 0
      %4329 = vmatpush1.bf16.msra.mxu0 %v4305
      %4330 = vmatprep.subr.bf16.mxu0 0
      %4331 = vmatpush1.bf16.msra.mxu0 0
      %4332 = vmatprep.subr.bf16.mxu0 0
      %4333 = vmatpush1.bf16.msra.mxu0 0
      %4334 = vmatprep.subr.bf16.mxu0 0
      %4335 = vmatpush1.bf16.msra.mxu0 0
      %4336 = vmatprep.subr.bf16.mxu0 0
      %4337 = vmatpush1.bf16.msra.mxu0 0
      %4338 = vmatprep.subr.bf16.mxu0 0
      %4339 = vmatpush1.bf16.msra.mxu0 0
      %4340 = vmatprep.subr.bf16.mxu0 0
      %4341 = vmatpush1.bf16.msra.mxu0 0
      %4342 = vmatprep.subr.bf16.mxu0 0
      %4343 = vmatpush1.bf16.msra.mxu0 0
      %4344 = vmatprep.subr.bf16.mxu0 0
      %4345 = vmatpush1.bf16.msra.mxu0 0
      %4346 = vmatprep.mubr.bf16.mxu0 0
      %4347 = vmatmul.mubr.bf16.gmra.mrb[0].mxu0 %v4258
      %v4348 = vpop.f32.mrb[0].mxu0
      %v4349 = vadd.f32 0.0, %v4348
      %v4350 = vpop.f32.mrb[0].mxu0
      %v4351 = vpop.f32.mrb[0].mxu0
      %v4352 = vadd.f32 0.0, %v4351
      %v4353 = vpop.f32.mrb[0].mxu0
      %4354 = vmatprep.mubr.bf16.mxu0 0
      %4355 = vmatmul.mubr.bf16.gmra.mrb[0].mxu0 %v4259
      %v4356 = vpop.f32.mrb[0].mxu0
      %v4357 = vadd.f32 0.0, %v4356
      %v4358 = vpop.f32.mrb[0].mxu0
      %v4359 = vpop.f32.mrb[0].mxu0
      %v4360 = vadd.f32 0.0, %v4359
      %v4361 = vpop.f32.mrb[0].mxu0
      %4362 = vmatprep.mubr.bf16.mxu0 0
      %4363 = vmatmul.mubr.bf16.gmra.mrb[0].mxu0 %v4260
      %v4364 = vpop.f32.mrb[0].mxu0
      %v4365 = vadd.f32 0.0, %v4364
      %v4366 = vpop.f32.mrb[0].mxu0
      %v4367 = vpop.f32.mrb[0].mxu0
      %v4368 = vadd.f32 0.0, %v4367
      %v4369 = vpop.f32.mrb[0].mxu0
      %4370 = vmatprep.mubr.bf16.mxu0 0
      %4371 = vmatmul.mubr.bf16.gmra.mrb[0].mxu0 %v4261
      %v4372 = vpop.f32.mrb[0].mxu0
      %v4373 = vadd.f32 0.0, %v4372
      %v4374 = vpop.f32.mrb[0].mxu0
      %v4375 = vpop.f32.mrb[0].mxu0
      %v4376 = vadd.f32 0.0, %v4375
      %v4377 = vpop.f32.mrb[0].mxu0
      %4378 = vdwg.mxu0
      %v4379 = vadd.f32 %v4105, %v4349
      %v4380 = vadd.f32 %v4106, %v4352
      %v4381 = vadd.f32 %v4107, %v4357
      %v4382 = vadd.f32 %v4108, %v4360
      %v4383 = vadd.f32 %v4109, %v4365
      %v4384 = vadd.f32 %v4110, %v4368
      %v4385 = vadd.f32 %v4111, %v4373
      %v4386 = vadd.f32 %v4112, %v4376
      %s4387 = scalar_lea.vmem %s3, 448
      %v4388 = vld [vmem:[%s4387] sm:$0xf]
      %v4389 = vld [vmem:[%s4387 + $0x4] sm:$0xf]
      %v4390 = vld [vmem:[%s4387 + $0x8] sm:$0xf]
      %v4391 = vld [vmem:[%s4387 + $0xc] sm:$0xf]
      %v4392 = vld [vmem:[%s4387 + $0x10] sm:$0xf]
      %v4393 = vld [vmem:[%s4387 + $0x14] sm:$0xf]
      %v4394 = vld [vmem:[%s4387 + $0x18] sm:$0xf]
      %v4395 = vld [vmem:[%s4387 + $0x1c] sm:$0xf]
      %v4396 = vld [vmem:[%s4387 + $0x20] sm:$0xf]
      %v4397 = vld [vmem:[%s4387 + $0x24] sm:$0xf]
      %v4398 = vld [vmem:[%s4387 + $0x28] sm:$0xf]
      %v4399 = vld [vmem:[%s4387 + $0x2c] sm:$0xf]
      %v4400 = vld [vmem:[%s4387 + $0x30] sm:$0xf]
      %v4401 = vld [vmem:[%s4387 + $0x34] sm:$0xf]
      %v4402 = vld [vmem:[%s4387 + $0x38] sm:$0xf]
      %v4403 = vld [vmem:[%s4387 + $0x3c] sm:$0xf]
      %v4412 = vunpack.c.l.b16 %v4114
      %v4413 = vunpack.c.l.b16 %v4116
      %v4414 = vunpack.c.l.b16 %v4118
      %v4415 = vunpack.c.l.b16 %v4120
      %v4416 = vunpack.c.l.b16 %v4122
      %v4417 = vunpack.c.l.b16 %v4124
      %v4418 = vunpack.c.l.b16 %v4126
      %v4419 = vunpack.c.l.b16 %v4128
      %v4420 = vpack.c.b16 %v4413, %v4412
      %v4421 = vpack.c.b16 %v4415, %v4414
      %v4422 = vpack.c.b16 %v4417, %v4416
      %v4423 = vpack.c.b16 %v4419, %v4418
      %v4444 = vunpack.c.l.b16 %v4388
      %v4445 = vunpack.c.l.b16 %v4389
      %v4446 = vunpack.c.l.b16 %v4390
      %v4447 = vunpack.c.l.b16 %v4391
      %v4448 = vunpack.c.l.b16 %v4392
      %v4449 = vunpack.c.l.b16 %v4393
      %v4450 = vunpack.c.l.b16 %v4394
      %v4451 = vunpack.c.l.b16 %v4395
      %v4452 = vunpack.c.l.b16 %v4396
      %v4453 = vunpack.c.l.b16 %v4397
      %v4454 = vunpack.c.l.b16 %v4398
      %v4455 = vunpack.c.l.b16 %v4399
      %v4456 = vunpack.c.l.b16 %v4400
      %v4457 = vunpack.c.l.b16 %v4401
      %v4458 = vunpack.c.l.b16 %v4402
      %v4459 = vunpack.c.l.b16 %v4403
      %v4460 = vpack.c.b16 %v4445, %v4444
      %v4461 = vpack.c.b16 %v4447, %v4446
      %v4462 = vpack.c.b16 %v4449, %v4448
      %v4463 = vpack.c.b16 %v4451, %v4450
      %v4464 = vpack.c.b16 %v4453, %v4452
      %v4465 = vpack.c.b16 %v4455, %v4454
      %v4466 = vpack.c.b16 %v4457, %v4456
      %v4467 = vpack.c.b16 %v4459, %v4458
      %4476 = vmatprep.subr.bf16.mxu0 0
      %4477 = vmatpush1.bf16.msra.mxu0 %v4460
      %4478 = vmatprep.subr.bf16.mxu0 0
      %4479 = vmatpush1.bf16.msra.mxu0 %v4461
      %4480 = vmatprep.subr.bf16.mxu0 0
      %4481 = vmatpush1.bf16.msra.mxu0 %v4462
      %4482 = vmatprep.subr.bf16.mxu0 0
      %4483 = vmatpush1.bf16.msra.mxu0 %v4463
      %4484 = vmatprep.subr.bf16.mxu0 0
      %4485 = vmatpush1.bf16.msra.mxu0 %v4464
      %4486 = vmatprep.subr.bf16.mxu0 0
      %4487 = vmatpush1.bf16.msra.mxu0 %v4465
      %4488 = vmatprep.subr.bf16.mxu0 0
      %4489 = vmatpush1.bf16.msra.mxu0 %v4466
      %4490 = vmatprep.subr.bf16.mxu0 0
      %4491 = vmatpush1.bf16.msra.mxu0 %v4467
      %4492 = vmatprep.subr.bf16.mxu0 0
      %4493 = vmatpush1.bf16.msra.mxu0 0
      %4494 = vmatprep.subr.bf16.mxu0 0
      %4495 = vmatpush1.bf16.msra.mxu0 0
      %4496 = vmatprep.subr.bf16.mxu0 0
      %4497 = vmatpush1.bf16.msra.mxu0 0
      %4498 = vmatprep.subr.bf16.mxu0 0
      %4499 = vmatpush1.bf16.msra.mxu0 0
      %4500 = vmatprep.subr.bf16.mxu0 0
      %4501 = vmatpush1.bf16.msra.mxu0 0
      %4502 = vmatprep.subr.bf16.mxu0 0
      %4503 = vmatpush1.bf16.msra.mxu0 0
      %4504 = vmatprep.subr.bf16.mxu0 0
      %4505 = vmatpush1.bf16.msra.mxu0 0
      %4506 = vmatprep.subr.bf16.mxu0 0
      %4507 = vmatpush1.bf16.msra.mxu0 0
      %4508 = vmatprep.mubr.bf16.mxu0 0
      %4509 = vmatmul.mubr.bf16.gmra.mrb[0].mxu0 %v4420
      %v4510 = vpop.f32.mrb[0].mxu0
      %v4511 = vadd.f32 0.0, %v4510
      %v4512 = vpop.f32.mrb[0].mxu0
      %v4513 = vpop.f32.mrb[0].mxu0
      %v4514 = vadd.f32 0.0, %v4513
      %v4515 = vpop.f32.mrb[0].mxu0
      %4516 = vmatprep.mubr.bf16.mxu0 0
      %4517 = vmatmul.mubr.bf16.gmra.mrb[0].mxu0 %v4421
      %v4518 = vpop.f32.mrb[0].mxu0
      %v4519 = vadd.f32 0.0, %v4518
      %v4520 = vpop.f32.mrb[0].mxu0
      %v4521 = vpop.f32.mrb[0].mxu0
      %v4522 = vadd.f32 0.0, %v4521
      %v4523 = vpop.f32.mrb[0].mxu0
      %4524 = vmatprep.mubr.bf16.mxu0 0
      %4525 = vmatmul.mubr.bf16.gmra.mrb[0].mxu0 %v4422
      %v4526 = vpop.f32.mrb[0].mxu0
      %v4527 = vadd.f32 0.0, %v4526
      %v4528 = vpop.f32.mrb[0].mxu0
      %v4529 = vpop.f32.mrb[0].mxu0
      %v4530 = vadd.f32 0.0, %v4529
      %v4531 = vpop.f32.mrb[0].mxu0
      %4532 = vmatprep.mubr.bf16.mxu0 0
      %4533 = vmatmul.mubr.bf16.gmra.mrb[0].mxu0 %v4423
      %v4534 = vpop.f32.mrb[0].mxu0
      %v4535 = vadd.f32 0.0, %v4534
      %v4536 = vpop.f32.mrb[0].mxu0
      %v4537 = vpop.f32.mrb[0].mxu0
      %v4538 = vadd.f32 0.0, %v4537
      %v4539 = vpop.f32.mrb[0].mxu0
      %4540 = vdwg.mxu0
      %v4541 = vadd.f32 %v4379, %v4511
      %v4542 = vadd.f32 %v4380, %v4514
      %v4543 = vadd.f32 %v4381, %v4519
      %v4544 = vadd.f32 %v4382, %v4522
      %v4545 = vadd.f32 %v4383, %v4527
      %v4546 = vadd.f32 %v4384, %v4530
      %v4547 = vadd.f32 %v4385, %v4535
      %v4548 = vadd.f32 %v4386, %v4538
      %v4549 = vld [vmem:[%s1936 + $0x4] sm:$0xf]
      %v4550 = vld [vmem:[%s1936 + $0x8] sm:$0x1]
      %v4551 = vld [vmem:[%s1936 + $0x10] sm:$0xf]
      %v4552 = vld [vmem:[%s1936 + $0x14] sm:$0x1]
      %v4553 = vld [vmem:[%s1936 + $0x1c] sm:$0xf]
      %v4554 = vld [vmem:[%s1936 + $0x20] sm:$0x1]
      %v4555 = vld [vmem:[%s1936 + $0x28] sm:$0xf]
      %v4556 = vld [vmem:[%s1936 + $0x2c] sm:$0x1]
      %v4557 = vld [vmem:[%s1936 + $0x34] sm:$0xf]
      %v4558 = vld [vmem:[%s1936 + $0x38] sm:$0x1]
      %v4559 = vld [vmem:[%s1936 + $0x40] sm:$0xf]
      %v4560 = vld [vmem:[%s1936 + $0x44] sm:$0x1]
      %v4561 = vld [vmem:[%s1936 + $0x4c] sm:$0xf]
      %v4562 = vld [vmem:[%s1936 + $0x50] sm:$0x1]
      %v4563 = vld [vmem:[%s1936 + $0x58] sm:$0xf]
      %v4564 = vld [vmem:[%s1936 + $0x5c] sm:$0x1]
      %v4566 = vshrl.u32 %v4549, 16
      %v4568 = vrot.slane %v4566, 4
      %v4569 = vshll.u32 %v4549, 16
      %v4571 = vrot.slane %v4569, 5
      %v4572 = vor.u32 %v4568, %v4571
      %v4573 = vrot.slane %v4572, 4
      %v4575 = vshll.u32 %v4550, 16
      %v4577 = vrot.slane %v4575, 5
      %v4578 = vsel %vm951, %v4573, %v4577
      %v4580 = vshrl.u32 %v4551, 16
      %v4582 = vrot.slane %v4580, 4
      %v4583 = vshll.u32 %v4551, 16
      %v4585 = vrot.slane %v4583, 5
      %v4586 = vor.u32 %v4582, %v4585
      %v4587 = vrot.slane %v4586, 4
      %v4589 = vshll.u32 %v4552, 16
      %v4591 = vrot.slane %v4589, 5
      %v4592 = vsel %vm951, %v4587, %v4591
      %v4594 = vshrl.u32 %v4553, 16
      %v4596 = vrot.slane %v4594, 4
      %v4597 = vshll.u32 %v4553, 16
      %v4599 = vrot.slane %v4597, 5
      %v4600 = vor.u32 %v4596, %v4599
      %v4601 = vrot.slane %v4600, 4
      %v4603 = vshll.u32 %v4554, 16
      %v4605 = vrot.slane %v4603, 5
      %v4606 = vsel %vm951, %v4601, %v4605
      %v4608 = vshrl.u32 %v4555, 16
      %v4610 = vrot.slane %v4608, 4
      %v4611 = vshll.u32 %v4555, 16
      %v4613 = vrot.slane %v4611, 5
      %v4614 = vor.u32 %v4610, %v4613
      %v4615 = vrot.slane %v4614, 4
      %v4617 = vshll.u32 %v4556, 16
      %v4619 = vrot.slane %v4617, 5
      %v4620 = vsel %vm951, %v4615, %v4619
      %v4622 = vshrl.u32 %v4557, 16
      %v4624 = vrot.slane %v4622, 4
      %v4625 = vshll.u32 %v4557, 16
      %v4627 = vrot.slane %v4625, 5
      %v4628 = vor.u32 %v4624, %v4627
      %v4629 = vrot.slane %v4628, 4
      %v4631 = vshll.u32 %v4558, 16
      %v4633 = vrot.slane %v4631, 5
      %v4634 = vsel %vm951, %v4629, %v4633
      %v4636 = vshrl.u32 %v4559, 16
      %v4638 = vrot.slane %v4636, 4
      %v4639 = vshll.u32 %v4559, 16
      %v4641 = vrot.slane %v4639, 5
      %v4642 = vor.u32 %v4638, %v4641
      %v4643 = vrot.slane %v4642, 4
      %v4645 = vshll.u32 %v4560, 16
      %v4647 = vrot.slane %v4645, 5
      %v4648 = vsel %vm951, %v4643, %v4647
      %v4650 = vshrl.u32 %v4561, 16
      %v4652 = vrot.slane %v4650, 4
      %v4653 = vshll.u32 %v4561, 16
      %v4655 = vrot.slane %v4653, 5
      %v4656 = vor.u32 %v4652, %v4655
      %v4657 = vrot.slane %v4656, 4
      %v4659 = vshll.u32 %v4562, 16
      %v4661 = vrot.slane %v4659, 5
      %v4662 = vsel %vm951, %v4657, %v4661
      %v4664 = vshrl.u32 %v4563, 16
      %v4666 = vrot.slane %v4664, 4
      %v4667 = vshll.u32 %v4563, 16
      %v4669 = vrot.slane %v4667, 5
      %v4670 = vor.u32 %v4666, %v4669
      %v4671 = vrot.slane %v4670, 4
      %v4673 = vshll.u32 %v4564, 16
      %v4675 = vrot.slane %v4673, 5
      %v4676 = vsel %vm951, %v4671, %v4675
      %s4677 = scalar_lea.vmem %s3, 512
      %v4678 = vld [vmem:[%s4677] sm:$0xf]
      %v4679 = vld [vmem:[%s4677 + $0x4] sm:$0xf]
      %v4680 = vld [vmem:[%s4677 + $0x8] sm:$0xf]
      %v4681 = vld [vmem:[%s4677 + $0xc] sm:$0xf]
      %v4682 = vld [vmem:[%s4677 + $0x10] sm:$0xf]
      %v4683 = vld [vmem:[%s4677 + $0x14] sm:$0xf]
      %v4684 = vld [vmem:[%s4677 + $0x18] sm:$0xf]
      %v4685 = vld [vmem:[%s4677 + $0x1c] sm:$0xf]
      %v4686 = vld [vmem:[%s4677 + $0x20] sm:$0xf]
      %v4687 = vld [vmem:[%s4677 + $0x24] sm:$0xf]
      %v4688 = vld [vmem:[%s4677 + $0x28] sm:$0xf]
      %v4689 = vld [vmem:[%s4677 + $0x2c] sm:$0xf]
      %v4690 = vld [vmem:[%s4677 + $0x30] sm:$0xf]
      %v4691 = vld [vmem:[%s4677 + $0x34] sm:$0xf]
      %v4692 = vld [vmem:[%s4677 + $0x38] sm:$0xf]
      %v4693 = vld [vmem:[%s4677 + $0x3c] sm:$0xf]
      %v4694 = vunpack.c.l.b16 %v4578
      %v4695 = vunpack.c.l.b16 %v4592
      %v4696 = vunpack.c.l.b16 %v4606
      %v4697 = vunpack.c.l.b16 %v4620
      %v4698 = vunpack.c.l.b16 %v4634
      %v4699 = vunpack.c.l.b16 %v4648
      %v4700 = vunpack.c.l.b16 %v4662
      %v4701 = vunpack.c.l.b16 %v4676
      %v4702 = vpack.c.b16 %v4695, %v4694
      %v4703 = vpack.c.b16 %v4697, %v4696
      %v4704 = vpack.c.b16 %v4699, %v4698
      %v4705 = vpack.c.b16 %v4701, %v4700
      %v4726 = vunpack.c.l.b16 %v4678
      %v4727 = vunpack.c.l.b16 %v4679
      %v4728 = vunpack.c.l.b16 %v4680
      %v4729 = vunpack.c.l.b16 %v4681
      %v4730 = vunpack.c.l.b16 %v4682
      %v4731 = vunpack.c.l.b16 %v4683
      %v4732 = vunpack.c.l.b16 %v4684
      %v4733 = vunpack.c.l.b16 %v4685
      %v4734 = vunpack.c.l.b16 %v4686
      %v4735 = vunpack.c.l.b16 %v4687
      %v4736 = vunpack.c.l.b16 %v4688
      %v4737 = vunpack.c.l.b16 %v4689
      %v4738 = vunpack.c.l.b16 %v4690
      %v4739 = vunpack.c.l.b16 %v4691
      %v4740 = vunpack.c.l.b16 %v4692
      %v4741 = vunpack.c.l.b16 %v4693
      %v4742 = vpack.c.b16 %v4727, %v4726
      %v4743 = vpack.c.b16 %v4729, %v4728
      %v4744 = vpack.c.b16 %v4731, %v4730
      %v4745 = vpack.c.b16 %v4733, %v4732
      %v4746 = vpack.c.b16 %v4735, %v4734
      %v4747 = vpack.c.b16 %v4737, %v4736
      %v4748 = vpack.c.b16 %v4739, %v4738
      %v4749 = vpack.c.b16 %v4741, %v4740
      %4758 = vmatprep.subr.bf16.mxu0 0
      %4759 = vmatpush1.bf16.msra.mxu0 %v4742
      %4760 = vmatprep.subr.bf16.mxu0 0
      %4761 = vmatpush1.bf16.msra.mxu0 %v4743
      %4762 = vmatprep.subr.bf16.mxu0 0
      %4763 = vmatpush1.bf16.msra.mxu0 %v4744
      %4764 = vmatprep.subr.bf16.mxu0 0
      %4765 = vmatpush1.bf16.msra.mxu0 %v4745
      %4766 = vmatprep.subr.bf16.mxu0 0
      %4767 = vmatpush1.bf16.msra.mxu0 %v4746
      %4768 = vmatprep.subr.bf16.mxu0 0
      %4769 = vmatpush1.bf16.msra.mxu0 %v4747
      %4770 = vmatprep.subr.bf16.mxu0 0
      %4771 = vmatpush1.bf16.msra.mxu0 %v4748
      %4772 = vmatprep.subr.bf16.mxu0 0
      %4773 = vmatpush1.bf16.msra.mxu0 %v4749
      %4774 = vmatprep.subr.bf16.mxu0 0
      %4775 = vmatpush1.bf16.msra.mxu0 0
      %4776 = vmatprep.subr.bf16.mxu0 0
      %4777 = vmatpush1.bf16.msra.mxu0 0
      %4778 = vmatprep.subr.bf16.mxu0 0
      %4779 = vmatpush1.bf16.msra.mxu0 0
      %4780 = vmatprep.subr.bf16.mxu0 0
      %4781 = vmatpush1.bf16.msra.mxu0 0
      %4782 = vmatprep.subr.bf16.mxu0 0
      %4783 = vmatpush1.bf16.msra.mxu0 0
      %4784 = vmatprep.subr.bf16.mxu0 0
      %4785 = vmatpush1.bf16.msra.mxu0 0
      %4786 = vmatprep.subr.bf16.mxu0 0
      %4787 = vmatpush1.bf16.msra.mxu0 0
      %4788 = vmatprep.subr.bf16.mxu0 0
      %4789 = vmatpush1.bf16.msra.mxu0 0
      %4790 = vmatprep.mubr.bf16.mxu0 0
      %4791 = vmatmul.mubr.bf16.gmra.mrb[0].mxu0 %v4702
      %v4792 = vpop.f32.mrb[0].mxu0
      %v4793 = vadd.f32 0.0, %v4792
      %v4794 = vpop.f32.mrb[0].mxu0
      %v4795 = vpop.f32.mrb[0].mxu0
      %v4796 = vadd.f32 0.0, %v4795
      %v4797 = vpop.f32.mrb[0].mxu0
      %4798 = vmatprep.mubr.bf16.mxu0 0
      %4799 = vmatmul.mubr.bf16.gmra.mrb[0].mxu0 %v4703
      %v4800 = vpop.f32.mrb[0].mxu0
      %v4801 = vadd.f32 0.0, %v4800
      %v4802 = vpop.f32.mrb[0].mxu0
      %v4803 = vpop.f32.mrb[0].mxu0
      %v4804 = vadd.f32 0.0, %v4803
      %v4805 = vpop.f32.mrb[0].mxu0
      %4806 = vmatprep.mubr.bf16.mxu0 0
      %4807 = vmatmul.mubr.bf16.gmra.mrb[0].mxu0 %v4704
      %v4808 = vpop.f32.mrb[0].mxu0
      %v4809 = vadd.f32 0.0, %v4808
      %v4810 = vpop.f32.mrb[0].mxu0
      %v4811 = vpop.f32.mrb[0].mxu0
      %v4812 = vadd.f32 0.0, %v4811
      %v4813 = vpop.f32.mrb[0].mxu0
      %4814 = vmatprep.mubr.bf16.mxu0 0
      %4815 = vmatmul.mubr.bf16.gmra.mrb[0].mxu0 %v4705
      %v4816 = vpop.f32.mrb[0].mxu0
      %v4817 = vadd.f32 0.0, %v4816
      %v4818 = vpop.f32.mrb[0].mxu0
      %v4819 = vpop.f32.mrb[0].mxu0
      %v4820 = vadd.f32 0.0, %v4819
      %v4821 = vpop.f32.mrb[0].mxu0
      %4822 = vdwg.mxu0
      %v4823 = vadd.f32 %v4541, %v4793
      %v4824 = vadd.f32 %v4542, %v4796
      %v4825 = vadd.f32 %v4543, %v4801
      %v4826 = vadd.f32 %v4544, %v4804
      %v4827 = vadd.f32 %v4545, %v4809
      %v4828 = vadd.f32 %v4546, %v4812
      %v4829 = vadd.f32 %v4547, %v4817
      %v4830 = vadd.f32 %v4548, %v4820
      %v4831 = vld [vmem:[%s4] sm:$0x1]
      %v4833 = vlaneseq
      %v4834 = vshrl.u32 %v4833, 7
      %v4835 = vsub.s32 0, %v4834
      %v4836 = vrot.slane %v4831, %v4835
      %v4838 = vadd.f32 %v4823, %v4836
      %v4839 = vadd.f32 %v4824, %v4836
      %v4840 = vadd.f32 %v4825, %v4836
      %v4841 = vadd.f32 %v4826, %v4836
      %v4842 = vadd.f32 %v4827, %v4836
      %v4843 = vadd.f32 %v4828, %v4836
      %v4844 = vadd.f32 %v4829, %v4836
      %v4845 = vadd.f32 %v4830, %v4836
      %v4846 = vadd.f32 %v4838, %v439
      %v4847 = vadd.f32 %v4839, %v440
      %v4848 = vadd.f32 %v4840, %v441
      %v4849 = vadd.f32 %v4841, %v442
      %v4850 = vadd.f32 %v4842, %v443
      %v4851 = vadd.f32 %v4843, %v444
      %v4852 = vadd.f32 %v4844, %v445
      %v4853 = vadd.f32 %v4845, %v446
      %v4854 = vmax.f32 %v4846, 0.0
      %v4855 = vmax.f32 %v4847, 0.0
      %v4856 = vmax.f32 %v4848, 0.0
      %v4857 = vmax.f32 %v4849, 0.0
      %v4858 = vmax.f32 %v4850, 0.0
      %v4859 = vmax.f32 %v4851, 0.0
      %v4860 = vmax.f32 %v4852, 0.0
      %v4861 = vmax.f32 %v4853, 0.0
      %v4862 = vpack.c.bf16 %v4855, %v4854
      %v4863 = vpack.c.bf16 %v4857, %v4856
      %v4864 = vpack.c.bf16 %v4859, %v4858
      %v4865 = vpack.c.bf16 %v4861, %v4860
      %v4866 = vld [vmem:[%s5] sm:$0xf]
      %v4867 = vld [vmem:[%s5 + $0x4] sm:$0xf]
      %v4868 = vld [vmem:[%s5 + $0x8] sm:$0xf]
      %v4869 = vld [vmem:[%s5 + $0xc] sm:$0xf]
      %v4870 = vld [vmem:[%s5 + $0x10] sm:$0xf]
      %v4871 = vld [vmem:[%s5 + $0x14] sm:$0xf]
      %v4872 = vld [vmem:[%s5 + $0x18] sm:$0xf]
      %v4873 = vld [vmem:[%s5 + $0x1c] sm:$0xf]
      %v4874 = vld [vmem:[%s5 + $0x20] sm:$0xf]
      %v4875 = vld [vmem:[%s5 + $0x24] sm:$0xf]
      %v4876 = vld [vmem:[%s5 + $0x28] sm:$0xf]
      %v4877 = vld [vmem:[%s5 + $0x2c] sm:$0xf]
      %v4878 = vld [vmem:[%s5 + $0x30] sm:$0xf]
      %v4879 = vld [vmem:[%s5 + $0x34] sm:$0xf]
      %v4880 = vld [vmem:[%s5 + $0x38] sm:$0xf]
      %v4881 = vld [vmem:[%s5 + $0x3c] sm:$0xf]
      %v4882 = vld [vmem:[%s6] sm:$0x1]
      %v4884 = vlaneseq
      %v4885 = vshrl.u32 %v4884, 7
      %v4886 = vsub.s32 0, %v4885
      %v4887 = vrot.slane %v4882, %v4886
      %v4905 = vunpack.c.l.b16 %v4866
      %v4906 = vunpack.c.l.b16 %v4867
      %v4907 = vunpack.c.l.b16 %v4868
      %v4908 = vunpack.c.l.b16 %v4869
      %v4909 = vunpack.c.l.b16 %v4870
      %v4910 = vunpack.c.l.b16 %v4871
      %v4911 = vunpack.c.l.b16 %v4872
      %v4912 = vunpack.c.l.b16 %v4873
      %v4913 = vunpack.c.l.b16 %v4874
      %v4914 = vunpack.c.l.b16 %v4875
      %v4915 = vunpack.c.l.b16 %v4876
      %v4916 = vunpack.c.l.b16 %v4877
      %v4917 = vunpack.c.l.b16 %v4878
      %v4918 = vunpack.c.l.b16 %v4879
      %v4919 = vunpack.c.l.b16 %v4880
      %v4920 = vunpack.c.l.b16 %v4881
      %v4921 = vpack.c.b16 %v4906, %v4905
      %v4922 = vpack.c.b16 %v4908, %v4907
      %v4923 = vpack.c.b16 %v4910, %v4909
      %v4924 = vpack.c.b16 %v4912, %v4911
      %v4925 = vpack.c.b16 %v4914, %v4913
      %v4926 = vpack.c.b16 %v4916, %v4915
      %v4927 = vpack.c.b16 %v4918, %v4917
      %v4928 = vpack.c.b16 %v4920, %v4919
      %4937 = vmatprep.subr.bf16.mxu0 0
      %4938 = vmatpush1.bf16.msra.mxu0 %v4921
      %4939 = vmatprep.subr.bf16.mxu0 0
      %4940 = vmatpush1.bf16.msra.mxu0 %v4922
      %4941 = vmatprep.subr.bf16.mxu0 0
      %4942 = vmatpush1.bf16.msra.mxu0 %v4923
      %4943 = vmatprep.subr.bf16.mxu0 0
      %4944 = vmatpush1.bf16.msra.mxu0 %v4924
      %4945 = vmatprep.subr.bf16.mxu0 0
      %4946 = vmatpush1.bf16.msra.mxu0 %v4925
      %4947 = vmatprep.subr.bf16.mxu0 0
      %4948 = vmatpush1.bf16.msra.mxu0 %v4926
      %4949 = vmatprep.subr.bf16.mxu0 0
      %4950 = vmatpush1.bf16.msra.mxu0 %v4927
      %4951 = vmatprep.subr.bf16.mxu0 0
      %4952 = vmatpush1.bf16.msra.mxu0 %v4928
      %4953 = vmatprep.subr.bf16.mxu0 0
      %4954 = vmatpush1.bf16.msra.mxu0 0
      %4955 = vmatprep.subr.bf16.mxu0 0
      %4956 = vmatpush1.bf16.msra.mxu0 0
      %4957 = vmatprep.subr.bf16.mxu0 0
      %4958 = vmatpush1.bf16.msra.mxu0 0
      %4959 = vmatprep.subr.bf16.mxu0 0
      %4960 = vmatpush1.bf16.msra.mxu0 0
      %4961 = vmatprep.subr.bf16.mxu0 0
      %4962 = vmatpush1.bf16.msra.mxu0 0
      %4963 = vmatprep.subr.bf16.mxu0 0
      %4964 = vmatpush1.bf16.msra.mxu0 0
      %4965 = vmatprep.subr.bf16.mxu0 0
      %4966 = vmatpush1.bf16.msra.mxu0 0
      %4967 = vmatprep.subr.bf16.mxu0 0
      %4968 = vmatpush1.bf16.msra.mxu0 0
      %4969 = vmatprep.mubr.bf16.mxu0 0
      %4970 = vmatmul.mubr.bf16.gmra.mrb[0].mxu0 %v4862
      %v4971 = vpop.f32.mrb[0].mxu0
      %v4972 = vadd.f32 %v4887, %v4971
      %v4973 = vpop.f32.mrb[0].mxu0
      %v4974 = vpop.f32.mrb[0].mxu0
      %v4975 = vadd.f32 %v4887, %v4974
      %v4976 = vpop.f32.mrb[0].mxu0
      %4977 = vmatprep.mubr.bf16.mxu0 0
      %4978 = vmatmul.mubr.bf16.gmra.mrb[0].mxu0 %v4863
      %v4979 = vpop.f32.mrb[0].mxu0
      %v4980 = vadd.f32 %v4887, %v4979
      %v4981 = vpop.f32.mrb[0].mxu0
      %v4982 = vpop.f32.mrb[0].mxu0
      %v4983 = vadd.f32 %v4887, %v4982
      %v4984 = vpop.f32.mrb[0].mxu0
      %4985 = vmatprep.mubr.bf16.mxu0 0
      %4986 = vmatmul.mubr.bf16.gmra.mrb[0].mxu0 %v4864
      %v4987 = vpop.f32.mrb[0].mxu0
      %v4988 = vadd.f32 %v4887, %v4987
      %v4989 = vpop.f32.mrb[0].mxu0
      %v4990 = vpop.f32.mrb[0].mxu0
      %v4991 = vadd.f32 %v4887, %v4990
      %v4992 = vpop.f32.mrb[0].mxu0
      %4993 = vmatprep.mubr.bf16.mxu0 0
      %4994 = vmatmul.mubr.bf16.gmra.mrb[0].mxu0 %v4865
      %v4995 = vpop.f32.mrb[0].mxu0
      %v4996 = vadd.f32 %v4887, %v4995
      %v4997 = vpop.f32.mrb[0].mxu0
      %v4998 = vpop.f32.mrb[0].mxu0
      %v4999 = vadd.f32 %v4887, %v4998
      %v5000 = vpop.f32.mrb[0].mxu0
      %5001 = vdwg.mxu0
      %v5002 = vpack.c.bf16 %v4972, %v4972
      %v5003 = vpack.c.bf16 %v4975, %v4975
      %v5004 = vpack.c.bf16 %v4980, %v4980
      %v5005 = vpack.c.bf16 %v4983, %v4983
      %v5006 = vpack.c.bf16 %v4988, %v4988
      %v5007 = vpack.c.bf16 %v4991, %v4991
      %v5008 = vpack.c.bf16 %v4996, %v4996
      %v5009 = vpack.c.bf16 %v4999, %v4999
      %5010 = vst [vmem:[%s478 + $0x4] sm:$0xf] %v5002
      %5011 = vst [vmem:[%s478 + $0x10] sm:$0xf] %v5003
      %5012 = vst [vmem:[%s478 + $0x1c] sm:$0xf] %v5004
      %5013 = vst [vmem:[%s478 + $0x28] sm:$0xf] %v5005
      %5014 = vst [vmem:[%s478 + $0x34] sm:$0xf] %v5006
      %5015 = vst [vmem:[%s478 + $0x40] sm:$0xf] %v5007
      %5016 = vst [vmem:[%s478 + $0x4c] sm:$0xf] %v5008
      %5017 = vst [vmem:[%s478 + $0x58] sm:$0xf] %v5009
      %v5018 = vld [vmem:[#allocation3] sm:$0x8]
      %v5019 = vld [vmem:[#allocation3 + $0x4] sm:$0xf]
      %v5020 = vld [vmem:[#allocation3 + $0xc] sm:$0x8]
      %v5021 = vld [vmem:[#allocation3 + $0x10] sm:$0xf]
      %v5022 = vld [vmem:[#allocation3 + $0x18] sm:$0x8]
      %v5023 = vld [vmem:[#allocation3 + $0x1c] sm:$0xf]
      %v5024 = vld [vmem:[#allocation3 + $0x24] sm:$0x8]
      %v5025 = vld [vmem:[#allocation3 + $0x28] sm:$0xf]
      %v5026 = vld [vmem:[#allocation3 + $0x30] sm:$0x8]
      %v5027 = vld [vmem:[#allocation3 + $0x34] sm:$0xf]
      %v5028 = vld [vmem:[#allocation3 + $0x3c] sm:$0x8]
      %v5029 = vld [vmem:[#allocation3 + $0x40] sm:$0xf]
      %v5030 = vld [vmem:[#allocation3 + $0x48] sm:$0x8]
      %v5031 = vld [vmem:[#allocation3 + $0x4c] sm:$0xf]
      %v5032 = vld [vmem:[#allocation3 + $0x54] sm:$0x8]
      %v5033 = vld [vmem:[#allocation3 + $0x58] sm:$0xf]
      %v5035 = vshrl.u32 %v5018, 16
      %v5037 = vrot.slane %v5035, 7
      %v5038 = vrot.slane %v5037, 4
      %v5040 = vshrl.u32 %v5019, 16
      %v5042 = vrot.slane %v5040, 7
      %v5043 = vshll.u32 %v5019, 16
      %v5045 = vor.u32 %v5042, %v5043
      %v5046 = vsel %vm529, %v5038, %v5045
      %v5048 = vshrl.u32 %v5020, 16
      %v5050 = vrot.slane %v5048, 7
      %v5051 = vrot.slane %v5050, 4
      %v5053 = vshrl.u32 %v5021, 16
      %v5055 = vrot.slane %v5053, 7
      %v5056 = vshll.u32 %v5021, 16
      %v5058 = vor.u32 %v5055, %v5056
      %v5059 = vsel %vm529, %v5051, %v5058
      %v5061 = vshrl.u32 %v5022, 16
      %v5063 = vrot.slane %v5061, 7
      %v5064 = vrot.slane %v5063, 4
      %v5066 = vshrl.u32 %v5023, 16
      %v5068 = vrot.slane %v5066, 7
      %v5069 = vshll.u32 %v5023, 16
      %v5071 = vor.u32 %v5068, %v5069
      %v5072 = vsel %vm529, %v5064, %v5071
      %v5074 = vshrl.u32 %v5024, 16
      %v5076 = vrot.slane %v5074, 7
      %v5077 = vrot.slane %v5076, 4
      %v5079 = vshrl.u32 %v5025, 16
      %v5081 = vrot.slane %v5079, 7
      %v5082 = vshll.u32 %v5025, 16
      %v5084 = vor.u32 %v5081, %v5082
      %v5085 = vsel %vm529, %v5077, %v5084
      %v5087 = vshrl.u32 %v5026, 16
      %v5089 = vrot.slane %v5087, 7
      %v5090 = vrot.slane %v5089, 4
      %v5092 = vshrl.u32 %v5027, 16
      %v5094 = vrot.slane %v5092, 7
      %v5095 = vshll.u32 %v5027, 16
      %v5097 = vor.u32 %v5094, %v5095
      %v5098 = vsel %vm529, %v5090, %v5097
      %v5100 = vshrl.u32 %v5028, 16
      %v5102 = vrot.slane %v5100, 7
      %v5103 = vrot.slane %v5102, 4
      %v5105 = vshrl.u32 %v5029, 16
      %v5107 = vrot.slane %v5105, 7
      %v5108 = vshll.u32 %v5029, 16
      %v5110 = vor.u32 %v5107, %v5108
      %v5111 = vsel %vm529, %v5103, %v5110
      %v5113 = vshrl.u32 %v5030, 16
      %v5115 = vrot.slane %v5113, 7
      %v5116 = vrot.slane %v5115, 4
      %v5118 = vshrl.u32 %v5031, 16
      %v5120 = vrot.slane %v5118, 7
      %v5121 = vshll.u32 %v5031, 16
      %v5123 = vor.u32 %v5120, %v5121
      %v5124 = vsel %vm529, %v5116, %v5123
      %v5126 = vshrl.u32 %v5032, 16
      %v5128 = vrot.slane %v5126, 7
      %v5129 = vrot.slane %v5128, 4
      %v5131 = vshrl.u32 %v5033, 16
      %v5133 = vrot.slane %v5131, 7
      %v5134 = vshll.u32 %v5033, 16
      %v5136 = vor.u32 %v5133, %v5134
      %v5137 = vsel %vm529, %v5129, %v5136
      %v5138 = vld [vmem:[%s7] sm:$0xf]
      %v5139 = vld [vmem:[%s7 + $0x4] sm:$0xf]
      %v5140 = vld [vmem:[%s7 + $0x8] sm:$0xf]
      %v5141 = vld [vmem:[%s7 + $0xc] sm:$0xf]
      %v5142 = vld [vmem:[%s7 + $0x10] sm:$0xf]
      %v5143 = vld [vmem:[%s7 + $0x14] sm:$0xf]
      %v5144 = vld [vmem:[%s7 + $0x18] sm:$0xf]
      %v5145 = vld [vmem:[%s7 + $0x1c] sm:$0xf]
      %v5146 = vld [vmem:[%s7 + $0x20] sm:$0xf]
      %v5147 = vld [vmem:[%s7 + $0x24] sm:$0xf]
      %v5148 = vld [vmem:[%s7 + $0x28] sm:$0xf]
      %v5149 = vld [vmem:[%s7 + $0x2c] sm:$0xf]
      %v5150 = vld [vmem:[%s7 + $0x30] sm:$0xf]
      %v5151 = vld [vmem:[%s7 + $0x34] sm:$0xf]
      %v5152 = vld [vmem:[%s7 + $0x38] sm:$0xf]
      %v5153 = vld [vmem:[%s7 + $0x3c] sm:$0xf]
      %s5154 = scalar_lea.vmem %s7, 64
      %v5155 = vld [vmem:[%s5154] sm:$0xf]
      %v5156 = vld [vmem:[%s5154 + $0x4] sm:$0xf]
      %v5157 = vld [vmem:[%s5154 + $0x8] sm:$0xf]
      %v5158 = vld [vmem:[%s5154 + $0xc] sm:$0xf]
      %v5159 = vld [vmem:[%s5154 + $0x10] sm:$0xf]
      %v5160 = vld [vmem:[%s5154 + $0x14] sm:$0xf]
      %v5161 = vld [vmem:[%s5154 + $0x18] sm:$0xf]
      %v5162 = vld [vmem:[%s5154 + $0x1c] sm:$0xf]
      %v5163 = vld [vmem:[%s5154 + $0x20] sm:$0xf]
      %v5164 = vld [vmem:[%s5154 + $0x24] sm:$0xf]
      %v5165 = vld [vmem:[%s5154 + $0x28] sm:$0xf]
      %v5166 = vld [vmem:[%s5154 + $0x2c] sm:$0xf]
      %v5167 = vld [vmem:[%s5154 + $0x30] sm:$0xf]
      %v5168 = vld [vmem:[%s5154 + $0x34] sm:$0xf]
      %v5169 = vld [vmem:[%s5154 + $0x38] sm:$0xf]
      %v5170 = vld [vmem:[%s5154 + $0x3c] sm:$0xf]
      %v5179 = vunpack.c.l.b16 %v5019
      %v5180 = vunpack.c.l.b16 %v5021
      %v5181 = vunpack.c.l.b16 %v5023
      %v5182 = vunpack.c.l.b16 %v5025
      %v5183 = vunpack.c.l.b16 %v5027
      %v5184 = vunpack.c.l.b16 %v5029
      %v5185 = vunpack.c.l.b16 %v5031
      %v5186 = vunpack.c.l.b16 %v5033
      %v5187 = vpack.c.b16 %v5180, %v5179
      %v5188 = vpack.c.b16 %v5182, %v5181
      %v5189 = vpack.c.b16 %v5184, %v5183
      %v5190 = vpack.c.b16 %v5186, %v5185
      %v5211 = vunpack.c.l.b16 %v5155
      %v5212 = vunpack.c.l.b16 %v5156
      %v5213 = vunpack.c.l.b16 %v5157
      %v5214 = vunpack.c.l.b16 %v5158
      %v5215 = vunpack.c.l.b16 %v5159
      %v5216 = vunpack.c.l.b16 %v5160
      %v5217 = vunpack.c.l.b16 %v5161
      %v5218 = vunpack.c.l.b16 %v5162
      %v5219 = vunpack.c.l.b16 %v5163
      %v5220 = vunpack.c.l.b16 %v5164
      %v5221 = vunpack.c.l.b16 %v5165
      %v5222 = vunpack.c.l.b16 %v5166
      %v5223 = vunpack.c.l.b16 %v5167
      %v5224 = vunpack.c.l.b16 %v5168
      %v5225 = vunpack.c.l.b16 %v5169
      %v5226 = vunpack.c.l.b16 %v5170
      %v5227 = vpack.c.b16 %v5212, %v5211
      %v5228 = vpack.c.b16 %v5214, %v5213
      %v5229 = vpack.c.b16 %v5216, %v5215
      %v5230 = vpack.c.b16 %v5218, %v5217
      %v5231 = vpack.c.b16 %v5220, %v5219
      %v5232 = vpack.c.b16 %v5222, %v5221
      %v5233 = vpack.c.b16 %v5224, %v5223
      %v5234 = vpack.c.b16 %v5226, %v5225
      %5243 = vmatprep.subr.bf16.mxu0 0
      %5244 = vmatpush1.bf16.msra.mxu0 %v5227
      %5245 = vmatprep.subr.bf16.mxu0 0
      %5246 = vmatpush1.bf16.msra.mxu0 %v5228
      %5247 = vmatprep.subr.bf16.mxu0 0
      %5248 = vmatpush1.bf16.msra.mxu0 %v5229
      %5249 = vmatprep.subr.bf16.mxu0 0
      %5250 = vmatpush1.bf16.msra.mxu0 %v5230
      %5251 = vmatprep.subr.bf16.mxu0 0
      %5252 = vmatpush1.bf16.msra.mxu0 %v5231
      %5253 = vmatprep.subr.bf16.mxu0 0
      %5254 = vmatpush1.bf16.msra.mxu0 %v5232
      %5255 = vmatprep.subr.bf16.mxu0 0
      %5256 = vmatpush1.bf16.msra.mxu0 %v5233
      %5257 = vmatprep.subr.bf16.mxu0 0
      %5258 = vmatpush1.bf16.msra.mxu0 %v5234
      %5259 = vmatprep.subr.bf16.mxu0 0
      %5260 = vmatpush1.bf16.msra.mxu0 0
      %5261 = vmatprep.subr.bf16.mxu0 0
      %5262 = vmatpush1.bf16.msra.mxu0 0
      %5263 = vmatprep.subr.bf16.mxu0 0
      %5264 = vmatpush1.bf16.msra.mxu0 0
      %5265 = vmatprep.subr.bf16.mxu0 0
      %5266 = vmatpush1.bf16.msra.mxu0 0
      %5267 = vmatprep.subr.bf16.mxu0 0
      %5268 = vmatpush1.bf16.msra.mxu0 0
      %5269 = vmatprep.subr.bf16.mxu0 0
      %5270 = vmatpush1.bf16.msra.mxu0 0
      %5271 = vmatprep.subr.bf16.mxu0 0
      %5272 = vmatpush1.bf16.msra.mxu0 0
      %5273 = vmatprep.subr.bf16.mxu0 0
      %5274 = vmatpush1.bf16.msra.mxu0 0
      %5275 = vmatprep.mubr.bf16.mxu0 0
      %5276 = vmatmul.mubr.bf16.gmra.mrb[0].mxu0 %v5187
      %v5277 = vpop.f32.mrb[0].mxu0
      %v5278 = vadd.f32 0.0, %v5277
      %v5279 = vpop.f32.mrb[0].mxu0
      %v5280 = vpop.f32.mrb[0].mxu0
      %v5281 = vadd.f32 0.0, %v5280
      %v5282 = vpop.f32.mrb[0].mxu0
      %5283 = vmatprep.mubr.bf16.mxu0 0
      %5284 = vmatmul.mubr.bf16.gmra.mrb[0].mxu0 %v5188
      %v5285 = vpop.f32.mrb[0].mxu0
      %v5286 = vadd.f32 0.0, %v5285
      %v5287 = vpop.f32.mrb[0].mxu0
      %v5288 = vpop.f32.mrb[0].mxu0
      %v5289 = vadd.f32 0.0, %v5288
      %v5290 = vpop.f32.mrb[0].mxu0
      %5291 = vmatprep.mubr.bf16.mxu0 0
      %5292 = vmatmul.mubr.bf16.gmra.mrb[0].mxu0 %v5189
      %v5293 = vpop.f32.mrb[0].mxu0
      %v5294 = vadd.f32 0.0, %v5293
      %v5295 = vpop.f32.mrb[0].mxu0
      %v5296 = vpop.f32.mrb[0].mxu0
      %v5297 = vadd.f32 0.0, %v5296
      %v5298 = vpop.f32.mrb[0].mxu0
      %5299 = vmatprep.mubr.bf16.mxu0 0
      %5300 = vmatmul.mubr.bf16.gmra.mrb[0].mxu0 %v5190
      %v5301 = vpop.f32.mrb[0].mxu0
      %v5302 = vadd.f32 0.0, %v5301
      %v5303 = vpop.f32.mrb[0].mxu0
      %v5304 = vpop.f32.mrb[0].mxu0
      %v5305 = vadd.f32 0.0, %v5304
      %v5306 = vpop.f32.mrb[0].mxu0
      %5307 = vdwg.mxu0
      %v5308 = vunpack.c.l.b16 %v5046
      %v5309 = vunpack.c.l.b16 %v5059
      %v5310 = vunpack.c.l.b16 %v5072
      %v5311 = vunpack.c.l.b16 %v5085
      %v5312 = vunpack.c.l.b16 %v5098
      %v5313 = vunpack.c.l.b16 %v5111
      %v5314 = vunpack.c.l.b16 %v5124
      %v5315 = vunpack.c.l.b16 %v5137
      %v5316 = vpack.c.b16 %v5309, %v5308
      %v5317 = vpack.c.b16 %v5311, %v5310
      %v5318 = vpack.c.b16 %v5313, %v5312
      %v5319 = vpack.c.b16 %v5315, %v5314
      %v5340 = vunpack.c.l.b16 %v5138
      %v5341 = vunpack.c.l.b16 %v5139
      %v5342 = vunpack.c.l.b16 %v5140
      %v5343 = vunpack.c.l.b16 %v5141
      %v5344 = vunpack.c.l.b16 %v5142
      %v5345 = vunpack.c.l.b16 %v5143
      %v5346 = vunpack.c.l.b16 %v5144
      %v5347 = vunpack.c.l.b16 %v5145
      %v5348 = vunpack.c.l.b16 %v5146
      %v5349 = vunpack.c.l.b16 %v5147
      %v5350 = vunpack.c.l.b16 %v5148
      %v5351 = vunpack.c.l.b16 %v5149
      %v5352 = vunpack.c.l.b16 %v5150
      %v5353 = vunpack.c.l.b16 %v5151
      %v5354 = vunpack.c.l.b16 %v5152
      %v5355 = vunpack.c.l.b16 %v5153
      %v5356 = vpack.c.b16 %v5341, %v5340
      %v5357 = vpack.c.b16 %v5343, %v5342
      %v5358 = vpack.c.b16 %v5345, %v5344
      %v5359 = vpack.c.b16 %v5347, %v5346
      %v5360 = vpack.c.b16 %v5349, %v5348
      %v5361 = vpack.c.b16 %v5351, %v5350
      %v5362 = vpack.c.b16 %v5353, %v5352
      %v5363 = vpack.c.b16 %v5355, %v5354
      %5372 = vmatprep.subr.bf16.mxu0 0
      %5373 = vmatpush1.bf16.msra.mxu0 %v5356
      %5374 = vmatprep.subr.bf16.mxu0 0
      %5375 = vmatpush1.bf16.msra.mxu0 %v5357
      %5376 = vmatprep.subr.bf16.mxu0 0
      %5377 = vmatpush1.bf16.msra.mxu0 %v5358
      %5378 = vmatprep.subr.bf16.mxu0 0
      %5379 = vmatpush1.bf16.msra.mxu0 %v5359
      %5380 = vmatprep.subr.bf16.mxu0 0
      %5381 = vmatpush1.bf16.msra.mxu0 %v5360
      %5382 = vmatprep.subr.bf16.mxu0 0
      %5383 = vmatpush1.bf16.msra.mxu0 %v5361
      %5384 = vmatprep.subr.bf16.mxu0 0
      %5385 = vmatpush1.bf16.msra.mxu0 %v5362
      %5386 = vmatprep.subr.bf16.mxu0 0
      %5387 = vmatpush1.bf16.msra.mxu0 %v5363
      %5388 = vmatprep.subr.bf16.mxu0 0
      %5389 = vmatpush1.bf16.msra.mxu0 0
      %5390 = vmatprep.subr.bf16.mxu0 0
      %5391 = vmatpush1.bf16.msra.mxu0 0
      %5392 = vmatprep.subr.bf16.mxu0 0
      %5393 = vmatpush1.bf16.msra.mxu0 0
      %5394 = vmatprep.subr.bf16.mxu0 0
      %5395 = vmatpush1.bf16.msra.mxu0 0
      %5396 = vmatprep.subr.bf16.mxu0 0
      %5397 = vmatpush1.bf16.msra.mxu0 0
      %5398 = vmatprep.subr.bf16.mxu0 0
      %5399 = vmatpush1.bf16.msra.mxu0 0
      %5400 = vmatprep.subr.bf16.mxu0 0
      %5401 = vmatpush1.bf16.msra.mxu0 0
      %5402 = vmatprep.subr.bf16.mxu0 0
      %5403 = vmatpush1.bf16.msra.mxu0 0
      %5404 = vmatprep.mubr.bf16.mxu0 0
      %5405 = vmatmul.mubr.bf16.gmra.mrb[0].mxu0 %v5316
      %v5406 = vpop.f32.mrb[0].mxu0
      %v5407 = vadd.f32 %v5278, %v5406
      %v5408 = vpop.f32.mrb[0].mxu0
      %v5409 = vpop.f32.mrb[0].mxu0
      %v5410 = vadd.f32 %v5281, %v5409
      %v5411 = vpop.f32.mrb[0].mxu0
      %5412 = vmatprep.mubr.bf16.mxu0 0
      %5413 = vmatmul.mubr.bf16.gmra.mrb[0].mxu0 %v5317
      %v5414 = vpop.f32.mrb[0].mxu0
      %v5415 = vadd.f32 %v5286, %v5414
      %v5416 = vpop.f32.mrb[0].mxu0
      %v5417 = vpop.f32.mrb[0].mxu0
      %v5418 = vadd.f32 %v5289, %v5417
      %v5419 = vpop.f32.mrb[0].mxu0
      %5420 = vmatprep.mubr.bf16.mxu0 0
      %5421 = vmatmul.mubr.bf16.gmra.mrb[0].mxu0 %v5318
      %v5422 = vpop.f32.mrb[0].mxu0
      %v5423 = vadd.f32 %v5294, %v5422
      %v5424 = vpop.f32.mrb[0].mxu0
      %v5425 = vpop.f32.mrb[0].mxu0
      %v5426 = vadd.f32 %v5297, %v5425
      %v5427 = vpop.f32.mrb[0].mxu0
      %5428 = vmatprep.mubr.bf16.mxu0 0
      %5429 = vmatmul.mubr.bf16.gmra.mrb[0].mxu0 %v5319
      %v5430 = vpop.f32.mrb[0].mxu0
      %v5431 = vadd.f32 %v5302, %v5430
      %v5432 = vpop.f32.mrb[0].mxu0
      %v5433 = vpop.f32.mrb[0].mxu0
      %v5434 = vadd.f32 %v5305, %v5433
      %v5435 = vpop.f32.mrb[0].mxu0
      %5436 = vdwg.mxu0
      %v5437 = vld [vmem:[#allocation3 + $0x4] sm:$0xf]
      %v5438 = vld [vmem:[#allocation3 + $0x8] sm:$0x1]
      %v5439 = vld [vmem:[#allocation3 + $0x10] sm:$0xf]
      %v5440 = vld [vmem:[#allocation3 + $0x14] sm:$0x1]
      %v5441 = vld [vmem:[#allocation3 + $0x1c] sm:$0xf]
      %v5442 = vld [vmem:[#allocation3 + $0x20] sm:$0x1]
      %v5443 = vld [vmem:[#allocation3 + $0x28] sm:$0xf]
      %v5444 = vld [vmem:[#allocation3 + $0x2c] sm:$0x1]
      %v5445 = vld [vmem:[#allocation3 + $0x34] sm:$0xf]
      %v5446 = vld [vmem:[#allocation3 + $0x38] sm:$0x1]
      %v5447 = vld [vmem:[#allocation3 + $0x40] sm:$0xf]
      %v5448 = vld [vmem:[#allocation3 + $0x44] sm:$0x1]
      %v5449 = vld [vmem:[#allocation3 + $0x4c] sm:$0xf]
      %v5450 = vld [vmem:[#allocation3 + $0x50] sm:$0x1]
      %v5451 = vld [vmem:[#allocation3 + $0x58] sm:$0xf]
      %v5452 = vld [vmem:[#allocation3 + $0x5c] sm:$0x1]
      %v5454 = vshrl.u32 %v5437, 16
      %v5456 = vrot.slane %v5454, 4
      %v5457 = vshll.u32 %v5437, 16
      %v5459 = vrot.slane %v5457, 5
      %v5460 = vor.u32 %v5456, %v5459
      %v5461 = vrot.slane %v5460, 4
      %v5463 = vshll.u32 %v5438, 16
      %v5465 = vrot.slane %v5463, 5
      %v5466 = vsel %vm951, %v5461, %v5465
      %v5468 = vshrl.u32 %v5439, 16
      %v5470 = vrot.slane %v5468, 4
      %v5471 = vshll.u32 %v5439, 16
      %v5473 = vrot.slane %v5471, 5
      %v5474 = vor.u32 %v5470, %v5473
      %v5475 = vrot.slane %v5474, 4
      %v5477 = vshll.u32 %v5440, 16
      %v5479 = vrot.slane %v5477, 5
      %v5480 = vsel %vm951, %v5475, %v5479
      %v5482 = vshrl.u32 %v5441, 16
      %v5484 = vrot.slane %v5482, 4
      %v5485 = vshll.u32 %v5441, 16
      %v5487 = vrot.slane %v5485, 5
      %v5488 = vor.u32 %v5484, %v5487
      %v5489 = vrot.slane %v5488, 4
      %v5491 = vshll.u32 %v5442, 16
      %v5493 = vrot.slane %v5491, 5
      %v5494 = vsel %vm951, %v5489, %v5493
      %v5496 = vshrl.u32 %v5443, 16
      %v5498 = vrot.slane %v5496, 4
      %v5499 = vshll.u32 %v5443, 16
      %v5501 = vrot.slane %v5499, 5
      %v5502 = vor.u32 %v5498, %v5501
      %v5503 = vrot.slane %v5502, 4
      %v5505 = vshll.u32 %v5444, 16
      %v5507 = vrot.slane %v5505, 5
      %v5508 = vsel %vm951, %v5503, %v5507
      %v5510 = vshrl.u32 %v5445, 16
      %v5512 = vrot.slane %v5510, 4
      %v5513 = vshll.u32 %v5445, 16
      %v5515 = vrot.slane %v5513, 5
      %v5516 = vor.u32 %v5512, %v5515
      %v5517 = vrot.slane %v5516, 4
      %v5519 = vshll.u32 %v5446, 16
      %v5521 = vrot.slane %v5519, 5
      %v5522 = vsel %vm951, %v5517, %v5521
      %v5524 = vshrl.u32 %v5447, 16
      %v5526 = vrot.slane %v5524, 4
      %v5527 = vshll.u32 %v5447, 16
      %v5529 = vrot.slane %v5527, 5
      %v5530 = vor.u32 %v5526, %v5529
      %v5531 = vrot.slane %v5530, 4
      %v5533 = vshll.u32 %v5448, 16
      %v5535 = vrot.slane %v5533, 5
      %v5536 = vsel %vm951, %v5531, %v5535
      %v5538 = vshrl.u32 %v5449, 16
      %v5540 = vrot.slane %v5538, 4
      %v5541 = vshll.u32 %v5449, 16
      %v5543 = vrot.slane %v5541, 5
      %v5544 = vor.u32 %v5540, %v5543
      %v5545 = vrot.slane %v5544, 4
      %v5547 = vshll.u32 %v5450, 16
      %v5549 = vrot.slane %v5547, 5
      %v5550 = vsel %vm951, %v5545, %v5549
      %v5552 = vshrl.u32 %v5451, 16
      %v5554 = vrot.slane %v5552, 4
      %v5555 = vshll.u32 %v5451, 16
      %v5557 = vrot.slane %v5555, 5
      %v5558 = vor.u32 %v5554, %v5557
      %v5559 = vrot.slane %v5558, 4
      %v5561 = vshll.u32 %v5452, 16
      %v5563 = vrot.slane %v5561, 5
      %v5564 = vsel %vm951, %v5559, %v5563
      %s5565 = scalar_lea.vmem %s7, 128
      %v5566 = vld [vmem:[%s5565] sm:$0xf]
      %v5567 = vld [vmem:[%s5565 + $0x4] sm:$0xf]
      %v5568 = vld [vmem:[%s5565 + $0x8] sm:$0xf]
      %v5569 = vld [vmem:[%s5565 + $0xc] sm:$0xf]
      %v5570 = vld [vmem:[%s5565 + $0x10] sm:$0xf]
      %v5571 = vld [vmem:[%s5565 + $0x14] sm:$0xf]
      %v5572 = vld [vmem:[%s5565 + $0x18] sm:$0xf]
      %v5573 = vld [vmem:[%s5565 + $0x1c] sm:$0xf]
      %v5574 = vld [vmem:[%s5565 + $0x20] sm:$0xf]
      %v5575 = vld [vmem:[%s5565 + $0x24] sm:$0xf]
      %v5576 = vld [vmem:[%s5565 + $0x28] sm:$0xf]
      %v5577 = vld [vmem:[%s5565 + $0x2c] sm:$0xf]
      %v5578 = vld [vmem:[%s5565 + $0x30] sm:$0xf]
      %v5579 = vld [vmem:[%s5565 + $0x34] sm:$0xf]
      %v5580 = vld [vmem:[%s5565 + $0x38] sm:$0xf]
      %v5581 = vld [vmem:[%s5565 + $0x3c] sm:$0xf]
      %v5582 = vunpack.c.l.b16 %v5466
      %v5583 = vunpack.c.l.b16 %v5480
      %v5584 = vunpack.c.l.b16 %v5494
      %v5585 = vunpack.c.l.b16 %v5508
      %v5586 = vunpack.c.l.b16 %v5522
      %v5587 = vunpack.c.l.b16 %v5536
      %v5588 = vunpack.c.l.b16 %v5550
      %v5589 = vunpack.c.l.b16 %v5564
      %v5590 = vpack.c.b16 %v5583, %v5582
      %v5591 = vpack.c.b16 %v5585, %v5584
      %v5592 = vpack.c.b16 %v5587, %v5586
      %v5593 = vpack.c.b16 %v5589, %v5588
      %v5614 = vunpack.c.l.b16 %v5566
      %v5615 = vunpack.c.l.b16 %v5567
      %v5616 = vunpack.c.l.b16 %v5568
      %v5617 = vunpack.c.l.b16 %v5569
      %v5618 = vunpack.c.l.b16 %v5570
      %v5619 = vunpack.c.l.b16 %v5571
      %v5620 = vunpack.c.l.b16 %v5572
      %v5621 = vunpack.c.l.b16 %v5573
      %v5622 = vunpack.c.l.b16 %v5574
      %v5623 = vunpack.c.l.b16 %v5575
      %v5624 = vunpack.c.l.b16 %v5576
      %v5625 = vunpack.c.l.b16 %v5577
      %v5626 = vunpack.c.l.b16 %v5578
      %v5627 = vunpack.c.l.b16 %v5579
      %v5628 = vunpack.c.l.b16 %v5580
      %v5629 = vunpack.c.l.b16 %v5581
      %v5630 = vpack.c.b16 %v5615, %v5614
      %v5631 = vpack.c.b16 %v5617, %v5616
      %v5632 = vpack.c.b16 %v5619, %v5618
      %v5633 = vpack.c.b16 %v5621, %v5620
      %v5634 = vpack.c.b16 %v5623, %v5622
      %v5635 = vpack.c.b16 %v5625, %v5624
      %v5636 = vpack.c.b16 %v5627, %v5626
      %v5637 = vpack.c.b16 %v5629, %v5628
      %5646 = vmatprep.subr.bf16.mxu0 0
      %5647 = vmatpush1.bf16.msra.mxu0 %v5630
      %5648 = vmatprep.subr.bf16.mxu0 0
      %5649 = vmatpush1.bf16.msra.mxu0 %v5631
      %5650 = vmatprep.subr.bf16.mxu0 0
      %5651 = vmatpush1.bf16.msra.mxu0 %v5632
      %5652 = vmatprep.subr.bf16.mxu0 0
      %5653 = vmatpush1.bf16.msra.mxu0 %v5633
      %5654 = vmatprep.subr.bf16.mxu0 0
      %5655 = vmatpush1.bf16.msra.mxu0 %v5634
      %5656 = vmatprep.subr.bf16.mxu0 0
      %5657 = vmatpush1.bf16.msra.mxu0 %v5635
      %5658 = vmatprep.subr.bf16.mxu0 0
      %5659 = vmatpush1.bf16.msra.mxu0 %v5636
      %5660 = vmatprep.subr.bf16.mxu0 0
      %5661 = vmatpush1.bf16.msra.mxu0 %v5637
      %5662 = vmatprep.subr.bf16.mxu0 0
      %5663 = vmatpush1.bf16.msra.mxu0 0
      %5664 = vmatprep.subr.bf16.mxu0 0
      %5665 = vmatpush1.bf16.msra.mxu0 0
      %5666 = vmatprep.subr.bf16.mxu0 0
      %5667 = vmatpush1.bf16.msra.mxu0 0
      %5668 = vmatprep.subr.bf16.mxu0 0
      %5669 = vmatpush1.bf16.msra.mxu0 0
      %5670 = vmatprep.subr.bf16.mxu0 0
      %5671 = vmatpush1.bf16.msra.mxu0 0
      %5672 = vmatprep.subr.bf16.mxu0 0
      %5673 = vmatpush1.bf16.msra.mxu0 0
      %5674 = vmatprep.subr.bf16.mxu0 0
      %5675 = vmatpush1.bf16.msra.mxu0 0
      %5676 = vmatprep.subr.bf16.mxu0 0
      %5677 = vmatpush1.bf16.msra.mxu0 0
      %5678 = vmatprep.mubr.bf16.mxu0 0
      %5679 = vmatmul.mubr.bf16.gmra.mrb[0].mxu0 %v5590
      %v5680 = vpop.f32.mrb[0].mxu0
      %v5681 = vadd.f32 0.0, %v5680
      %v5682 = vpop.f32.mrb[0].mxu0
      %v5683 = vpop.f32.mrb[0].mxu0
      %v5684 = vadd.f32 0.0, %v5683
      %v5685 = vpop.f32.mrb[0].mxu0
      %5686 = vmatprep.mubr.bf16.mxu0 0
      %5687 = vmatmul.mubr.bf16.gmra.mrb[0].mxu0 %v5591
      %v5688 = vpop.f32.mrb[0].mxu0
      %v5689 = vadd.f32 0.0, %v5688
      %v5690 = vpop.f32.mrb[0].mxu0
      %v5691 = vpop.f32.mrb[0].mxu0
      %v5692 = vadd.f32 0.0, %v5691
      %v5693 = vpop.f32.mrb[0].mxu0
      %5694 = vmatprep.mubr.bf16.mxu0 0
      %5695 = vmatmul.mubr.bf16.gmra.mrb[0].mxu0 %v5592
      %v5696 = vpop.f32.mrb[0].mxu0
      %v5697 = vadd.f32 0.0, %v5696
      %v5698 = vpop.f32.mrb[0].mxu0
      %v5699 = vpop.f32.mrb[0].mxu0
      %v5700 = vadd.f32 0.0, %v5699
      %v5701 = vpop.f32.mrb[0].mxu0
      %5702 = vmatprep.mubr.bf16.mxu0 0
      %5703 = vmatmul.mubr.bf16.gmra.mrb[0].mxu0 %v5593
      %v5704 = vpop.f32.mrb[0].mxu0
      %v5705 = vadd.f32 0.0, %v5704
      %v5706 = vpop.f32.mrb[0].mxu0
      %v5707 = vpop.f32.mrb[0].mxu0
      %v5708 = vadd.f32 0.0, %v5707
      %v5709 = vpop.f32.mrb[0].mxu0
      %5710 = vdwg.mxu0
      %v5711 = vadd.f32 %v5407, %v5681
      %v5712 = vadd.f32 %v5410, %v5684
      %v5713 = vadd.f32 %v5415, %v5689
      %v5714 = vadd.f32 %v5418, %v5692
      %v5715 = vadd.f32 %v5423, %v5697
      %v5716 = vadd.f32 %v5426, %v5700
      %v5717 = vadd.f32 %v5431, %v5705
      %v5718 = vadd.f32 %v5434, %v5708
      %v5719 = vld [vmem:[%s478] sm:$0x8]
      %v5720 = vld [vmem:[%s478 + $0x4] sm:$0xf]
      %v5721 = vld [vmem:[%s478 + $0xc] sm:$0x8]
      %v5722 = vld [vmem:[%s478 + $0x10] sm:$0xf]
      %v5723 = vld [vmem:[%s478 + $0x18] sm:$0x8]
      %v5724 = vld [vmem:[%s478 + $0x1c] sm:$0xf]
      %v5725 = vld [vmem:[%s478 + $0x24] sm:$0x8]
      %v5726 = vld [vmem:[%s478 + $0x28] sm:$0xf]
      %v5727 = vld [vmem:[%s478 + $0x30] sm:$0x8]
      %v5728 = vld [vmem:[%s478 + $0x34] sm:$0xf]
      %v5729 = vld [vmem:[%s478 + $0x3c] sm:$0x8]
      %v5730 = vld [vmem:[%s478 + $0x40] sm:$0xf]
      %v5731 = vld [vmem:[%s478 + $0x48] sm:$0x8]
      %v5732 = vld [vmem:[%s478 + $0x4c] sm:$0xf]
      %v5733 = vld [vmem:[%s478 + $0x54] sm:$0x8]
      %v5734 = vld [vmem:[%s478 + $0x58] sm:$0xf]
      %v5736 = vshrl.u32 %v5719, 16
      %v5738 = vrot.slane %v5736, 7
      %v5739 = vrot.slane %v5738, 4
      %v5741 = vshrl.u32 %v5720, 16
      %v5743 = vrot.slane %v5741, 7
      %v5744 = vshll.u32 %v5720, 16
      %v5746 = vor.u32 %v5743, %v5744
      %v5747 = vsel %vm529, %v5739, %v5746
      %v5749 = vshrl.u32 %v5721, 16
      %v5751 = vrot.slane %v5749, 7
      %v5752 = vrot.slane %v5751, 4
      %v5754 = vshrl.u32 %v5722, 16
      %v5756 = vrot.slane %v5754, 7
      %v5757 = vshll.u32 %v5722, 16
      %v5759 = vor.u32 %v5756, %v5757
      %v5760 = vsel %vm529, %v5752, %v5759
      %v5762 = vshrl.u32 %v5723, 16
      %v5764 = vrot.slane %v5762, 7
      %v5765 = vrot.slane %v5764, 4
      %v5767 = vshrl.u32 %v5724, 16
      %v5769 = vrot.slane %v5767, 7
      %v5770 = vshll.u32 %v5724, 16
      %v5772 = vor.u32 %v5769, %v5770
      %v5773 = vsel %vm529, %v5765, %v5772
      %v5775 = vshrl.u32 %v5725, 16
      %v5777 = vrot.slane %v5775, 7
      %v5778 = vrot.slane %v5777, 4
      %v5780 = vshrl.u32 %v5726, 16
      %v5782 = vrot.slane %v5780, 7
      %v5783 = vshll.u32 %v5726, 16
      %v5785 = vor.u32 %v5782, %v5783
      %v5786 = vsel %vm529, %v5778, %v5785
      %v5788 = vshrl.u32 %v5727, 16
      %v5790 = vrot.slane %v5788, 7
      %v5791 = vrot.slane %v5790, 4
      %v5793 = vshrl.u32 %v5728, 16
      %v5795 = vrot.slane %v5793, 7
      %v5796 = vshll.u32 %v5728, 16
      %v5798 = vor.u32 %v5795, %v5796
      %v5799 = vsel %vm529, %v5791, %v5798
      %v5801 = vshrl.u32 %v5729, 16
      %v5803 = vrot.slane %v5801, 7
      %v5804 = vrot.slane %v5803, 4
      %v5806 = vshrl.u32 %v5730, 16
      %v5808 = vrot.slane %v5806, 7
      %v5809 = vshll.u32 %v5730, 16
      %v5811 = vor.u32 %v5808, %v5809
      %v5812 = vsel %vm529, %v5804, %v5811
      %v5814 = vshrl.u32 %v5731, 16
      %v5816 = vrot.slane %v5814, 7
      %v5817 = vrot.slane %v5816, 4
      %v5819 = vshrl.u32 %v5732, 16
      %v5821 = vrot.slane %v5819, 7
      %v5822 = vshll.u32 %v5732, 16
      %v5824 = vor.u32 %v5821, %v5822
      %v5825 = vsel %vm529, %v5817, %v5824
      %v5827 = vshrl.u32 %v5733, 16
      %v5829 = vrot.slane %v5827, 7
      %v5830 = vrot.slane %v5829, 4
      %v5832 = vshrl.u32 %v5734, 16
      %v5834 = vrot.slane %v5832, 7
      %v5835 = vshll.u32 %v5734, 16
      %v5837 = vor.u32 %v5834, %v5835
      %v5838 = vsel %vm529, %v5830, %v5837
      %s5839 = scalar_lea.vmem %s7, 192
      %v5840 = vld [vmem:[%s5839] sm:$0xf]
      %v5841 = vld [vmem:[%s5839 + $0x4] sm:$0xf]
      %v5842 = vld [vmem:[%s5839 + $0x8] sm:$0xf]
      %v5843 = vld [vmem:[%s5839 + $0xc] sm:$0xf]
      %v5844 = vld [vmem:[%s5839 + $0x10] sm:$0xf]
      %v5845 = vld [vmem:[%s5839 + $0x14] sm:$0xf]
      %v5846 = vld [vmem:[%s5839 + $0x18] sm:$0xf]
      %v5847 = vld [vmem:[%s5839 + $0x1c] sm:$0xf]
      %v5848 = vld [vmem:[%s5839 + $0x20] sm:$0xf]
      %v5849 = vld [vmem:[%s5839 + $0x24] sm:$0xf]
      %v5850 = vld [vmem:[%s5839 + $0x28] sm:$0xf]
      %v5851 = vld [vmem:[%s5839 + $0x2c] sm:$0xf]
      %v5852 = vld [vmem:[%s5839 + $0x30] sm:$0xf]
      %v5853 = vld [vmem:[%s5839 + $0x34] sm:$0xf]
      %v5854 = vld [vmem:[%s5839 + $0x38] sm:$0xf]
      %v5855 = vld [vmem:[%s5839 + $0x3c] sm:$0xf]
      %v5856 = vunpack.c.l.b16 %v5747
      %v5857 = vunpack.c.l.b16 %v5760
      %v5858 = vunpack.c.l.b16 %v5773
      %v5859 = vunpack.c.l.b16 %v5786
      %v5860 = vunpack.c.l.b16 %v5799
      %v5861 = vunpack.c.l.b16 %v5812
      %v5862 = vunpack.c.l.b16 %v5825
      %v5863 = vunpack.c.l.b16 %v5838
      %v5864 = vpack.c.b16 %v5857, %v5856
      %v5865 = vpack.c.b16 %v5859, %v5858
      %v5866 = vpack.c.b16 %v5861, %v5860
      %v5867 = vpack.c.b16 %v5863, %v5862
      %v5888 = vunpack.c.l.b16 %v5840
      %v5889 = vunpack.c.l.b16 %v5841
      %v5890 = vunpack.c.l.b16 %v5842
      %v5891 = vunpack.c.l.b16 %v5843
      %v5892 = vunpack.c.l.b16 %v5844
      %v5893 = vunpack.c.l.b16 %v5845
      %v5894 = vunpack.c.l.b16 %v5846
      %v5895 = vunpack.c.l.b16 %v5847
      %v5896 = vunpack.c.l.b16 %v5848
      %v5897 = vunpack.c.l.b16 %v5849
      %v5898 = vunpack.c.l.b16 %v5850
      %v5899 = vunpack.c.l.b16 %v5851
      %v5900 = vunpack.c.l.b16 %v5852
      %v5901 = vunpack.c.l.b16 %v5853
      %v5902 = vunpack.c.l.b16 %v5854
      %v5903 = vunpack.c.l.b16 %v5855
      %v5904 = vpack.c.b16 %v5889, %v5888
      %v5905 = vpack.c.b16 %v5891, %v5890
      %v5906 = vpack.c.b16 %v5893, %v5892
      %v5907 = vpack.c.b16 %v5895, %v5894
      %v5908 = vpack.c.b16 %v5897, %v5896
      %v5909 = vpack.c.b16 %v5899, %v5898
      %v5910 = vpack.c.b16 %v5901, %v5900
      %v5911 = vpack.c.b16 %v5903, %v5902
      %5920 = vmatprep.subr.bf16.mxu0 0
      %5921 = vmatpush1.bf16.msra.mxu0 %v5904
      %5922 = vmatprep.subr.bf16.mxu0 0
      %5923 = vmatpush1.bf16.msra.mxu0 %v5905
      %5924 = vmatprep.subr.bf16.mxu0 0
      %5925 = vmatpush1.bf16.msra.mxu0 %v5906
      %5926 = vmatprep.subr.bf16.mxu0 0
      %5927 = vmatpush1.bf16.msra.mxu0 %v5907
      %5928 = vmatprep.subr.bf16.mxu0 0
      %5929 = vmatpush1.bf16.msra.mxu0 %v5908
      %5930 = vmatprep.subr.bf16.mxu0 0
      %5931 = vmatpush1.bf16.msra.mxu0 %v5909
      %5932 = vmatprep.subr.bf16.mxu0 0
      %5933 = vmatpush1.bf16.msra.mxu0 %v5910
      %5934 = vmatprep.subr.bf16.mxu0 0
      %5935 = vmatpush1.bf16.msra.mxu0 %v5911
      %5936 = vmatprep.subr.bf16.mxu0 0
      %5937 = vmatpush1.bf16.msra.mxu0 0
      %5938 = vmatprep.subr.bf16.mxu0 0
      %5939 = vmatpush1.bf16.msra.mxu0 0
      %5940 = vmatprep.subr.bf16.mxu0 0
      %5941 = vmatpush1.bf16.msra.mxu0 0
      %5942 = vmatprep.subr.bf16.mxu0 0
      %5943 = vmatpush1.bf16.msra.mxu0 0
      %5944 = vmatprep.subr.bf16.mxu0 0
      %5945 = vmatpush1.bf16.msra.mxu0 0
      %5946 = vmatprep.subr.bf16.mxu0 0
      %5947 = vmatpush1.bf16.msra.mxu0 0
      %5948 = vmatprep.subr.bf16.mxu0 0
      %5949 = vmatpush1.bf16.msra.mxu0 0
      %5950 = vmatprep.subr.bf16.mxu0 0
      %5951 = vmatpush1.bf16.msra.mxu0 0
      %5952 = vmatprep.mubr.bf16.mxu0 0
      %5953 = vmatmul.mubr.bf16.gmra.mrb[0].mxu0 %v5864
      %v5954 = vpop.f32.mrb[0].mxu0
      %v5955 = vadd.f32 0.0, %v5954
      %v5956 = vpop.f32.mrb[0].mxu0
      %v5957 = vpop.f32.mrb[0].mxu0
      %v5958 = vadd.f32 0.0, %v5957
      %v5959 = vpop.f32.mrb[0].mxu0
      %5960 = vmatprep.mubr.bf16.mxu0 0
      %5961 = vmatmul.mubr.bf16.gmra.mrb[0].mxu0 %v5865
      %v5962 = vpop.f32.mrb[0].mxu0
      %v5963 = vadd.f32 0.0, %v5962
      %v5964 = vpop.f32.mrb[0].mxu0
      %v5965 = vpop.f32.mrb[0].mxu0
      %v5966 = vadd.f32 0.0, %v5965
      %v5967 = vpop.f32.mrb[0].mxu0
      %5968 = vmatprep.mubr.bf16.mxu0 0
      %5969 = vmatmul.mubr.bf16.gmra.mrb[0].mxu0 %v5866
      %v5970 = vpop.f32.mrb[0].mxu0
      %v5971 = vadd.f32 0.0, %v5970
      %v5972 = vpop.f32.mrb[0].mxu0
      %v5973 = vpop.f32.mrb[0].mxu0
      %v5974 = vadd.f32 0.0, %v5973
      %v5975 = vpop.f32.mrb[0].mxu0
      %5976 = vmatprep.mubr.bf16.mxu0 0
      %5977 = vmatmul.mubr.bf16.gmra.mrb[0].mxu0 %v5867
      %v5978 = vpop.f32.mrb[0].mxu0
      %v5979 = vadd.f32 0.0, %v5978
      %v5980 = vpop.f32.mrb[0].mxu0
      %v5981 = vpop.f32.mrb[0].mxu0
      %v5982 = vadd.f32 0.0, %v5981
      %v5983 = vpop.f32.mrb[0].mxu0
      %5984 = vdwg.mxu0
      %v5985 = vadd.f32 %v5711, %v5955
      %v5986 = vadd.f32 %v5712, %v5958
      %v5987 = vadd.f32 %v5713, %v5963
      %v5988 = vadd.f32 %v5714, %v5966
      %v5989 = vadd.f32 %v5715, %v5971
      %v5990 = vadd.f32 %v5716, %v5974
      %v5991 = vadd.f32 %v5717, %v5979
      %v5992 = vadd.f32 %v5718, %v5982
      %s5993 = scalar_lea.vmem %s7, 256
      %v5994 = vld [vmem:[%s5993] sm:$0xf]
      %v5995 = vld [vmem:[%s5993 + $0x4] sm:$0xf]
      %v5996 = vld [vmem:[%s5993 + $0x8] sm:$0xf]
      %v5997 = vld [vmem:[%s5993 + $0xc] sm:$0xf]
      %v5998 = vld [vmem:[%s5993 + $0x10] sm:$0xf]
      %v5999 = vld [vmem:[%s5993 + $0x14] sm:$0xf]
      %v6000 = vld [vmem:[%s5993 + $0x18] sm:$0xf]
      %v6001 = vld [vmem:[%s5993 + $0x1c] sm:$0xf]
      %v6002 = vld [vmem:[%s5993 + $0x20] sm:$0xf]
      %v6003 = vld [vmem:[%s5993 + $0x24] sm:$0xf]
      %v6004 = vld [vmem:[%s5993 + $0x28] sm:$0xf]
      %v6005 = vld [vmem:[%s5993 + $0x2c] sm:$0xf]
      %v6006 = vld [vmem:[%s5993 + $0x30] sm:$0xf]
      %v6007 = vld [vmem:[%s5993 + $0x34] sm:$0xf]
      %v6008 = vld [vmem:[%s5993 + $0x38] sm:$0xf]
      %v6009 = vld [vmem:[%s5993 + $0x3c] sm:$0xf]
      %v6018 = vunpack.c.l.b16 %v5720
      %v6019 = vunpack.c.l.b16 %v5722
      %v6020 = vunpack.c.l.b16 %v5724
      %v6021 = vunpack.c.l.b16 %v5726
      %v6022 = vunpack.c.l.b16 %v5728
      %v6023 = vunpack.c.l.b16 %v5730
      %v6024 = vunpack.c.l.b16 %v5732
      %v6025 = vunpack.c.l.b16 %v5734
      %v6026 = vpack.c.b16 %v6019, %v6018
      %v6027 = vpack.c.b16 %v6021, %v6020
      %v6028 = vpack.c.b16 %v6023, %v6022
      %v6029 = vpack.c.b16 %v6025, %v6024
      %v6050 = vunpack.c.l.b16 %v5994
      %v6051 = vunpack.c.l.b16 %v5995
      %v6052 = vunpack.c.l.b16 %v5996
      %v6053 = vunpack.c.l.b16 %v5997
      %v6054 = vunpack.c.l.b16 %v5998
      %v6055 = vunpack.c.l.b16 %v5999
      %v6056 = vunpack.c.l.b16 %v6000
      %v6057 = vunpack.c.l.b16 %v6001
      %v6058 = vunpack.c.l.b16 %v6002
      %v6059 = vunpack.c.l.b16 %v6003
      %v6060 = vunpack.c.l.b16 %v6004
      %v6061 = vunpack.c.l.b16 %v6005
      %v6062 = vunpack.c.l.b16 %v6006
      %v6063 = vunpack.c.l.b16 %v6007
      %v6064 = vunpack.c.l.b16 %v6008
      %v6065 = vunpack.c.l.b16 %v6009
      %v6066 = vpack.c.b16 %v6051, %v6050
      %v6067 = vpack.c.b16 %v6053, %v6052
      %v6068 = vpack.c.b16 %v6055, %v6054
      %v6069 = vpack.c.b16 %v6057, %v6056
      %v6070 = vpack.c.b16 %v6059, %v6058
      %v6071 = vpack.c.b16 %v6061, %v6060
      %v6072 = vpack.c.b16 %v6063, %v6062
      %v6073 = vpack.c.b16 %v6065, %v6064
      %6082 = vmatprep.subr.bf16.mxu0 0
      %6083 = vmatpush1.bf16.msra.mxu0 %v6066
      %6084 = vmatprep.subr.bf16.mxu0 0
      %6085 = vmatpush1.bf16.msra.mxu0 %v6067
      %6086 = vmatprep.subr.bf16.mxu0 0
      %6087 = vmatpush1.bf16.msra.mxu0 %v6068
      %6088 = vmatprep.subr.bf16.mxu0 0
      %6089 = vmatpush1.bf16.msra.mxu0 %v6069
      %6090 = vmatprep.subr.bf16.mxu0 0
      %6091 = vmatpush1.bf16.msra.mxu0 %v6070
      %6092 = vmatprep.subr.bf16.mxu0 0
      %6093 = vmatpush1.bf16.msra.mxu0 %v6071
      %6094 = vmatprep.subr.bf16.mxu0 0
      %6095 = vmatpush1.bf16.msra.mxu0 %v6072
      %6096 = vmatprep.subr.bf16.mxu0 0
      %6097 = vmatpush1.bf16.msra.mxu0 %v6073
      %6098 = vmatprep.subr.bf16.mxu0 0
      %6099 = vmatpush1.bf16.msra.mxu0 0
      %6100 = vmatprep.subr.bf16.mxu0 0
      %6101 = vmatpush1.bf16.msra.mxu0 0
      %6102 = vmatprep.subr.bf16.mxu0 0
      %6103 = vmatpush1.bf16.msra.mxu0 0
      %6104 = vmatprep.subr.bf16.mxu0 0
      %6105 = vmatpush1.bf16.msra.mxu0 0
      %6106 = vmatprep.subr.bf16.mxu0 0
      %6107 = vmatpush1.bf16.msra.mxu0 0
      %6108 = vmatprep.subr.bf16.mxu0 0
      %6109 = vmatpush1.bf16.msra.mxu0 0
      %6110 = vmatprep.subr.bf16.mxu0 0
      %6111 = vmatpush1.bf16.msra.mxu0 0
      %6112 = vmatprep.subr.bf16.mxu0 0
      %6113 = vmatpush1.bf16.msra.mxu0 0
      %6114 = vmatprep.mubr.bf16.mxu0 0
      %6115 = vmatmul.mubr.bf16.gmra.mrb[0].mxu0 %v6026
      %v6116 = vpop.f32.mrb[0].mxu0
      %v6117 = vadd.f32 0.0, %v6116
      %v6118 = vpop.f32.mrb[0].mxu0
      %v6119 = vpop.f32.mrb[0].mxu0
      %v6120 = vadd.f32 0.0, %v6119
      %v6121 = vpop.f32.mrb[0].mxu0
      %6122 = vmatprep.mubr.bf16.mxu0 0
      %6123 = vmatmul.mubr.bf16.gmra.mrb[0].mxu0 %v6027
      %v6124 = vpop.f32.mrb[0].mxu0
      %v6125 = vadd.f32 0.0, %v6124
      %v6126 = vpop.f32.mrb[0].mxu0
      %v6127 = vpop.f32.mrb[0].mxu0
      %v6128 = vadd.f32 0.0, %v6127
      %v6129 = vpop.f32.mrb[0].mxu0
      %6130 = vmatprep.mubr.bf16.mxu0 0
      %6131 = vmatmul.mubr.bf16.gmra.mrb[0].mxu0 %v6028
      %v6132 = vpop.f32.mrb[0].mxu0
      %v6133 = vadd.f32 0.0, %v6132
      %v6134 = vpop.f32.mrb[0].mxu0
      %v6135 = vpop.f32.mrb[0].mxu0
      %v6136 = vadd.f32 0.0, %v6135
      %v6137 = vpop.f32.mrb[0].mxu0
      %6138 = vmatprep.mubr.bf16.mxu0 0
      %6139 = vmatmul.mubr.bf16.gmra.mrb[0].mxu0 %v6029
      %v6140 = vpop.f32.mrb[0].mxu0
      %v6141 = vadd.f32 0.0, %v6140
      %v6142 = vpop.f32.mrb[0].mxu0
      %v6143 = vpop.f32.mrb[0].mxu0
      %v6144 = vadd.f32 0.0, %v6143
      %v6145 = vpop.f32.mrb[0].mxu0
      %6146 = vdwg.mxu0
      %v6147 = vadd.f32 %v5985, %v6117
      %v6148 = vadd.f32 %v5986, %v6120
      %v6149 = vadd.f32 %v5987, %v6125
      %v6150 = vadd.f32 %v5988, %v6128
      %v6151 = vadd.f32 %v5989, %v6133
      %v6152 = vadd.f32 %v5990, %v6136
      %v6153 = vadd.f32 %v5991, %v6141
      %v6154 = vadd.f32 %v5992, %v6144
      %v6155 = vld [vmem:[%s478 + $0x4] sm:$0xf]
      %v6156 = vld [vmem:[%s478 + $0x8] sm:$0x1]
      %v6157 = vld [vmem:[%s478 + $0x10] sm:$0xf]
      %v6158 = vld [vmem:[%s478 + $0x14] sm:$0x1]
      %v6159 = vld [vmem:[%s478 + $0x1c] sm:$0xf]
      %v6160 = vld [vmem:[%s478 + $0x20] sm:$0x1]
      %v6161 = vld [vmem:[%s478 + $0x28] sm:$0xf]
      %v6162 = vld [vmem:[%s478 + $0x2c] sm:$0x1]
      %v6163 = vld [vmem:[%s478 + $0x34] sm:$0xf]
      %v6164 = vld [vmem:[%s478 + $0x38] sm:$0x1]
      %v6165 = vld [vmem:[%s478 + $0x40] sm:$0xf]
      %v6166 = vld [vmem:[%s478 + $0x44] sm:$0x1]
      %v6167 = vld [vmem:[%s478 + $0x4c] sm:$0xf]
      %v6168 = vld [vmem:[%s478 + $0x50] sm:$0x1]
      %v6169 = vld [vmem:[%s478 + $0x58] sm:$0xf]
      %v6170 = vld [vmem:[%s478 + $0x5c] sm:$0x1]
      %v6172 = vshrl.u32 %v6155, 16
      %v6174 = vrot.slane %v6172, 4
      %v6175 = vshll.u32 %v6155, 16
      %v6177 = vrot.slane %v6175, 5
      %v6178 = vor.u32 %v6174, %v6177
      %v6179 = vrot.slane %v6178, 4
      %v6181 = vshll.u32 %v6156, 16
      %v6183 = vrot.slane %v6181, 5
      %v6184 = vsel %vm951, %v6179, %v6183
      %v6186 = vshrl.u32 %v6157, 16
      %v6188 = vrot.slane %v6186, 4
      %v6189 = vshll.u32 %v6157, 16
      %v6191 = vrot.slane %v6189, 5
      %v6192 = vor.u32 %v6188, %v6191
      %v6193 = vrot.slane %v6192, 4
      %v6195 = vshll.u32 %v6158, 16
      %v6197 = vrot.slane %v6195, 5
      %v6198 = vsel %vm951, %v6193, %v6197
      %v6200 = vshrl.u32 %v6159, 16
      %v6202 = vrot.slane %v6200, 4
      %v6203 = vshll.u32 %v6159, 16
      %v6205 = vrot.slane %v6203, 5
      %v6206 = vor.u32 %v6202, %v6205
      %v6207 = vrot.slane %v6206, 4
      %v6209 = vshll.u32 %v6160, 16
      %v6211 = vrot.slane %v6209, 5
      %v6212 = vsel %vm951, %v6207, %v6211
      %v6214 = vshrl.u32 %v6161, 16
      %v6216 = vrot.slane %v6214, 4
      %v6217 = vshll.u32 %v6161, 16
      %v6219 = vrot.slane %v6217, 5
      %v6220 = vor.u32 %v6216, %v6219
      %v6221 = vrot.slane %v6220, 4
      %v6223 = vshll.u32 %v6162, 16
      %v6225 = vrot.slane %v6223, 5
      %v6226 = vsel %vm951, %v6221, %v6225
      %v6228 = vshrl.u32 %v6163, 16
      %v6230 = vrot.slane %v6228, 4
      %v6231 = vshll.u32 %v6163, 16
      %v6233 = vrot.slane %v6231, 5
      %v6234 = vor.u32 %v6230, %v6233
      %v6235 = vrot.slane %v6234, 4
      %v6237 = vshll.u32 %v6164, 16
      %v6239 = vrot.slane %v6237, 5
      %v6240 = vsel %vm951, %v6235, %v6239
      %v6242 = vshrl.u32 %v6165, 16
      %v6244 = vrot.slane %v6242, 4
      %v6245 = vshll.u32 %v6165, 16
      %v6247 = vrot.slane %v6245, 5
      %v6248 = vor.u32 %v6244, %v6247
      %v6249 = vrot.slane %v6248, 4
      %v6251 = vshll.u32 %v6166, 16
      %v6253 = vrot.slane %v6251, 5
      %v6254 = vsel %vm951, %v6249, %v6253
      %v6256 = vshrl.u32 %v6167, 16
      %v6258 = vrot.slane %v6256, 4
      %v6259 = vshll.u32 %v6167, 16
      %v6261 = vrot.slane %v6259, 5
      %v6262 = vor.u32 %v6258, %v6261
      %v6263 = vrot.slane %v6262, 4
      %v6265 = vshll.u32 %v6168, 16
      %v6267 = vrot.slane %v6265, 5
      %v6268 = vsel %vm951, %v6263, %v6267
      %v6270 = vshrl.u32 %v6169, 16
      %v6272 = vrot.slane %v6270, 4
      %v6273 = vshll.u32 %v6169, 16
      %v6275 = vrot.slane %v6273, 5
      %v6276 = vor.u32 %v6272, %v6275
      %v6277 = vrot.slane %v6276, 4
      %v6279 = vshll.u32 %v6170, 16
      %v6281 = vrot.slane %v6279, 5
      %v6282 = vsel %vm951, %v6277, %v6281
      %s6283 = scalar_lea.vmem %s7, 320
      %v6284 = vld [vmem:[%s6283] sm:$0xf]
      %v6285 = vld [vmem:[%s6283 + $0x4] sm:$0xf]
      %v6286 = vld [vmem:[%s6283 + $0x8] sm:$0xf]
      %v6287 = vld [vmem:[%s6283 + $0xc] sm:$0xf]
      %v6288 = vld [vmem:[%s6283 + $0x10] sm:$0xf]
      %v6289 = vld [vmem:[%s6283 + $0x14] sm:$0xf]
      %v6290 = vld [vmem:[%s6283 + $0x18] sm:$0xf]
      %v6291 = vld [vmem:[%s6283 + $0x1c] sm:$0xf]
      %v6292 = vld [vmem:[%s6283 + $0x20] sm:$0xf]
      %v6293 = vld [vmem:[%s6283 + $0x24] sm:$0xf]
      %v6294 = vld [vmem:[%s6283 + $0x28] sm:$0xf]
      %v6295 = vld [vmem:[%s6283 + $0x2c] sm:$0xf]
      %v6296 = vld [vmem:[%s6283 + $0x30] sm:$0xf]
      %v6297 = vld [vmem:[%s6283 + $0x34] sm:$0xf]
      %v6298 = vld [vmem:[%s6283 + $0x38] sm:$0xf]
      %v6299 = vld [vmem:[%s6283 + $0x3c] sm:$0xf]
      %v6300 = vunpack.c.l.b16 %v6184
      %v6301 = vunpack.c.l.b16 %v6198
      %v6302 = vunpack.c.l.b16 %v6212
      %v6303 = vunpack.c.l.b16 %v6226
      %v6304 = vunpack.c.l.b16 %v6240
      %v6305 = vunpack.c.l.b16 %v6254
      %v6306 = vunpack.c.l.b16 %v6268
      %v6307 = vunpack.c.l.b16 %v6282
      %v6308 = vpack.c.b16 %v6301, %v6300
      %v6309 = vpack.c.b16 %v6303, %v6302
      %v6310 = vpack.c.b16 %v6305, %v6304
      %v6311 = vpack.c.b16 %v6307, %v6306
      %v6332 = vunpack.c.l.b16 %v6284
      %v6333 = vunpack.c.l.b16 %v6285
      %v6334 = vunpack.c.l.b16 %v6286
      %v6335 = vunpack.c.l.b16 %v6287
      %v6336 = vunpack.c.l.b16 %v6288
      %v6337 = vunpack.c.l.b16 %v6289
      %v6338 = vunpack.c.l.b16 %v6290
      %v6339 = vunpack.c.l.b16 %v6291
      %v6340 = vunpack.c.l.b16 %v6292
      %v6341 = vunpack.c.l.b16 %v6293
      %v6342 = vunpack.c.l.b16 %v6294
      %v6343 = vunpack.c.l.b16 %v6295
      %v6344 = vunpack.c.l.b16 %v6296
      %v6345 = vunpack.c.l.b16 %v6297
      %v6346 = vunpack.c.l.b16 %v6298
      %v6347 = vunpack.c.l.b16 %v6299
      %v6348 = vpack.c.b16 %v6333, %v6332
      %v6349 = vpack.c.b16 %v6335, %v6334
      %v6350 = vpack.c.b16 %v6337, %v6336
      %v6351 = vpack.c.b16 %v6339, %v6338
      %v6352 = vpack.c.b16 %v6341, %v6340
      %v6353 = vpack.c.b16 %v6343, %v6342
      %v6354 = vpack.c.b16 %v6345, %v6344
      %v6355 = vpack.c.b16 %v6347, %v6346
      %6364 = vmatprep.subr.bf16.mxu0 0
      %6365 = vmatpush1.bf16.msra.mxu0 %v6348
      %6366 = vmatprep.subr.bf16.mxu0 0
      %6367 = vmatpush1.bf16.msra.mxu0 %v6349
      %6368 = vmatprep.subr.bf16.mxu0 0
      %6369 = vmatpush1.bf16.msra.mxu0 %v6350
      %6370 = vmatprep.subr.bf16.mxu0 0
      %6371 = vmatpush1.bf16.msra.mxu0 %v6351
      %6372 = vmatprep.subr.bf16.mxu0 0
      %6373 = vmatpush1.bf16.msra.mxu0 %v6352
      %6374 = vmatprep.subr.bf16.mxu0 0
      %6375 = vmatpush1.bf16.msra.mxu0 %v6353
      %6376 = vmatprep.subr.bf16.mxu0 0
      %6377 = vmatpush1.bf16.msra.mxu0 %v6354
      %6378 = vmatprep.subr.bf16.mxu0 0
      %6379 = vmatpush1.bf16.msra.mxu0 %v6355
      %6380 = vmatprep.subr.bf16.mxu0 0
      %6381 = vmatpush1.bf16.msra.mxu0 0
      %6382 = vmatprep.subr.bf16.mxu0 0
      %6383 = vmatpush1.bf16.msra.mxu0 0
      %6384 = vmatprep.subr.bf16.mxu0 0
      %6385 = vmatpush1.bf16.msra.mxu0 0
      %6386 = vmatprep.subr.bf16.mxu0 0
      %6387 = vmatpush1.bf16.msra.mxu0 0
      %6388 = vmatprep.subr.bf16.mxu0 0
      %6389 = vmatpush1.bf16.msra.mxu0 0
      %6390 = vmatprep.subr.bf16.mxu0 0
      %6391 = vmatpush1.bf16.msra.mxu0 0
      %6392 = vmatprep.subr.bf16.mxu0 0
      %6393 = vmatpush1.bf16.msra.mxu0 0
      %6394 = vmatprep.subr.bf16.mxu0 0
      %6395 = vmatpush1.bf16.msra.mxu0 0
      %6396 = vmatprep.mubr.bf16.mxu0 0
      %6397 = vmatmul.mubr.bf16.gmra.mrb[0].mxu0 %v6308
      %v6398 = vpop.f32.mrb[0].mxu0
      %v6399 = vadd.f32 0.0, %v6398
      %v6400 = vpop.f32.mrb[0].mxu0
      %v6401 = vpop.f32.mrb[0].mxu0
      %v6402 = vadd.f32 0.0, %v6401
      %v6403 = vpop.f32.mrb[0].mxu0
      %6404 = vmatprep.mubr.bf16.mxu0 0
      %6405 = vmatmul.mubr.bf16.gmra.mrb[0].mxu0 %v6309
      %v6406 = vpop.f32.mrb[0].mxu0
      %v6407 = vadd.f32 0.0, %v6406
      %v6408 = vpop.f32.mrb[0].mxu0
      %v6409 = vpop.f32.mrb[0].mxu0
      %v6410 = vadd.f32 0.0, %v6409
      %v6411 = vpop.f32.mrb[0].mxu0
      %6412 = vmatprep.mubr.bf16.mxu0 0
      %6413 = vmatmul.mubr.bf16.gmra.mrb[0].mxu0 %v6310
      %v6414 = vpop.f32.mrb[0].mxu0
      %v6415 = vadd.f32 0.0, %v6414
      %v6416 = vpop.f32.mrb[0].mxu0
      %v6417 = vpop.f32.mrb[0].mxu0
      %v6418 = vadd.f32 0.0, %v6417
      %v6419 = vpop.f32.mrb[0].mxu0
      %6420 = vmatprep.mubr.bf16.mxu0 0
      %6421 = vmatmul.mubr.bf16.gmra.mrb[0].mxu0 %v6311
      %v6422 = vpop.f32.mrb[0].mxu0
      %v6423 = vadd.f32 0.0, %v6422
      %v6424 = vpop.f32.mrb[0].mxu0
      %v6425 = vpop.f32.mrb[0].mxu0
      %v6426 = vadd.f32 0.0, %v6425
      %v6427 = vpop.f32.mrb[0].mxu0
      %6428 = vdwg.mxu0
      %v6429 = vadd.f32 %v6147, %v6399
      %v6430 = vadd.f32 %v6148, %v6402
      %v6431 = vadd.f32 %v6149, %v6407
      %v6432 = vadd.f32 %v6150, %v6410
      %v6433 = vadd.f32 %v6151, %v6415
      %v6434 = vadd.f32 %v6152, %v6418
      %v6435 = vadd.f32 %v6153, %v6423
      %v6436 = vadd.f32 %v6154, %v6426
      %s6437 = scalar_lea.vmem [#allocation3], 24
      %v6438 = vld [vmem:[%s6437] sm:$0x8]
      %v6439 = vld [vmem:[%s6437 + $0x4] sm:$0xf]
      %v6440 = vld [vmem:[%s6437 + $0xc] sm:$0x8]
      %v6441 = vld [vmem:[%s6437 + $0x10] sm:$0xf]
      %v6442 = vld [vmem:[%s6437 + $0x18] sm:$0x8]
      %v6443 = vld [vmem:[%s6437 + $0x1c] sm:$0xf]
      %v6444 = vld [vmem:[%s6437 + $0x24] sm:$0x8]
      %v6445 = vld [vmem:[%s6437 + $0x28] sm:$0xf]
      %v6446 = vld [vmem:[%s6437 + $0x30] sm:$0x8]
      %v6447 = vld [vmem:[%s6437 + $0x34] sm:$0xf]
      %v6448 = vld [vmem:[%s6437 + $0x3c] sm:$0x8]
      %v6449 = vld [vmem:[%s6437 + $0x40] sm:$0xf]
      %v6450 = vld [vmem:[%s6437 + $0x48] sm:$0x8]
      %v6451 = vld [vmem:[%s6437 + $0x4c] sm:$0xf]
      %v6452 = vld [vmem:[%s6437 + $0x54] sm:$0x8]
      %v6453 = vld [vmem:[%s6437 + $0x58] sm:$0xf]
      %v6455 = vshrl.u32 %v6438, 16
      %v6457 = vrot.slane %v6455, 7
      %v6458 = vrot.slane %v6457, 4
      %v6460 = vshrl.u32 %v6439, 16
      %v6462 = vrot.slane %v6460, 7
      %v6463 = vshll.u32 %v6439, 16
      %v6465 = vor.u32 %v6462, %v6463
      %v6466 = vsel %vm529, %v6458, %v6465
      %v6468 = vshrl.u32 %v6440, 16
      %v6470 = vrot.slane %v6468, 7
      %v6471 = vrot.slane %v6470, 4
      %v6473 = vshrl.u32 %v6441, 16
      %v6475 = vrot.slane %v6473, 7
      %v6476 = vshll.u32 %v6441, 16
      %v6478 = vor.u32 %v6475, %v6476
      %v6479 = vsel %vm529, %v6471, %v6478
      %v6481 = vshrl.u32 %v6442, 16
      %v6483 = vrot.slane %v6481, 7
      %v6484 = vrot.slane %v6483, 4
      %v6486 = vshrl.u32 %v6443, 16
      %v6488 = vrot.slane %v6486, 7
      %v6489 = vshll.u32 %v6443, 16
      %v6491 = vor.u32 %v6488, %v6489
      %v6492 = vsel %vm529, %v6484, %v6491
      %v6494 = vshrl.u32 %v6444, 16
      %v6496 = vrot.slane %v6494, 7
      %v6497 = vrot.slane %v6496, 4
      %v6499 = vshrl.u32 %v6445, 16
      %v6501 = vrot.slane %v6499, 7
      %v6502 = vshll.u32 %v6445, 16
      %v6504 = vor.u32 %v6501, %v6502
      %v6505 = vsel %vm529, %v6497, %v6504
      %v6507 = vshrl.u32 %v6446, 16
      %v6509 = vrot.slane %v6507, 7
      %v6510 = vrot.slane %v6509, 4
      %v6512 = vshrl.u32 %v6447, 16
      %v6514 = vrot.slane %v6512, 7
      %v6515 = vshll.u32 %v6447, 16
      %v6517 = vor.u32 %v6514, %v6515
      %v6518 = vsel %vm529, %v6510, %v6517
      %v6520 = vshrl.u32 %v6448, 16
      %v6522 = vrot.slane %v6520, 7
      %v6523 = vrot.slane %v6522, 4
      %v6525 = vshrl.u32 %v6449, 16
      %v6527 = vrot.slane %v6525, 7
      %v6528 = vshll.u32 %v6449, 16
      %v6530 = vor.u32 %v6527, %v6528
      %v6531 = vsel %vm529, %v6523, %v6530
      %v6533 = vshrl.u32 %v6450, 16
      %v6535 = vrot.slane %v6533, 7
      %v6536 = vrot.slane %v6535, 4
      %v6538 = vshrl.u32 %v6451, 16
      %v6540 = vrot.slane %v6538, 7
      %v6541 = vshll.u32 %v6451, 16
      %v6543 = vor.u32 %v6540, %v6541
      %v6544 = vsel %vm529, %v6536, %v6543
      %v6546 = vshrl.u32 %v6452, 16
      %v6548 = vrot.slane %v6546, 7
      %v6549 = vrot.slane %v6548, 4
      %v6551 = vshrl.u32 %v6453, 16
      %v6553 = vrot.slane %v6551, 7
      %v6554 = vshll.u32 %v6453, 16
      %v6556 = vor.u32 %v6553, %v6554
      %v6557 = vsel %vm529, %v6549, %v6556
      %s6558 = scalar_lea.vmem %s7, 384
      %v6559 = vld [vmem:[%s6558] sm:$0xf]
      %v6560 = vld [vmem:[%s6558 + $0x4] sm:$0xf]
      %v6561 = vld [vmem:[%s6558 + $0x8] sm:$0xf]
      %v6562 = vld [vmem:[%s6558 + $0xc] sm:$0xf]
      %v6563 = vld [vmem:[%s6558 + $0x10] sm:$0xf]
      %v6564 = vld [vmem:[%s6558 + $0x14] sm:$0xf]
      %v6565 = vld [vmem:[%s6558 + $0x18] sm:$0xf]
      %v6566 = vld [vmem:[%s6558 + $0x1c] sm:$0xf]
      %v6567 = vld [vmem:[%s6558 + $0x20] sm:$0xf]
      %v6568 = vld [vmem:[%s6558 + $0x24] sm:$0xf]
      %v6569 = vld [vmem:[%s6558 + $0x28] sm:$0xf]
      %v6570 = vld [vmem:[%s6558 + $0x2c] sm:$0xf]
      %v6571 = vld [vmem:[%s6558 + $0x30] sm:$0xf]
      %v6572 = vld [vmem:[%s6558 + $0x34] sm:$0xf]
      %v6573 = vld [vmem:[%s6558 + $0x38] sm:$0xf]
      %v6574 = vld [vmem:[%s6558 + $0x3c] sm:$0xf]
      %v6575 = vunpack.c.l.b16 %v6466
      %v6576 = vunpack.c.l.b16 %v6479
      %v6577 = vunpack.c.l.b16 %v6492
      %v6578 = vunpack.c.l.b16 %v6505
      %v6579 = vunpack.c.l.b16 %v6518
      %v6580 = vunpack.c.l.b16 %v6531
      %v6581 = vunpack.c.l.b16 %v6544
      %v6582 = vunpack.c.l.b16 %v6557
      %v6583 = vpack.c.b16 %v6576, %v6575
      %v6584 = vpack.c.b16 %v6578, %v6577
      %v6585 = vpack.c.b16 %v6580, %v6579
      %v6586 = vpack.c.b16 %v6582, %v6581
      %v6607 = vunpack.c.l.b16 %v6559
      %v6608 = vunpack.c.l.b16 %v6560
      %v6609 = vunpack.c.l.b16 %v6561
      %v6610 = vunpack.c.l.b16 %v6562
      %v6611 = vunpack.c.l.b16 %v6563
      %v6612 = vunpack.c.l.b16 %v6564
      %v6613 = vunpack.c.l.b16 %v6565
      %v6614 = vunpack.c.l.b16 %v6566
      %v6615 = vunpack.c.l.b16 %v6567
      %v6616 = vunpack.c.l.b16 %v6568
      %v6617 = vunpack.c.l.b16 %v6569
      %v6618 = vunpack.c.l.b16 %v6570
      %v6619 = vunpack.c.l.b16 %v6571
      %v6620 = vunpack.c.l.b16 %v6572
      %v6621 = vunpack.c.l.b16 %v6573
      %v6622 = vunpack.c.l.b16 %v6574
      %v6623 = vpack.c.b16 %v6608, %v6607
      %v6624 = vpack.c.b16 %v6610, %v6609
      %v6625 = vpack.c.b16 %v6612, %v6611
      %v6626 = vpack.c.b16 %v6614, %v6613
      %v6627 = vpack.c.b16 %v6616, %v6615
      %v6628 = vpack.c.b16 %v6618, %v6617
      %v6629 = vpack.c.b16 %v6620, %v6619
      %v6630 = vpack.c.b16 %v6622, %v6621
      %6639 = vmatprep.subr.bf16.mxu0 0
      %6640 = vmatpush1.bf16.msra.mxu0 %v6623
      %6641 = vmatprep.subr.bf16.mxu0 0
      %6642 = vmatpush1.bf16.msra.mxu0 %v6624
      %6643 = vmatprep.subr.bf16.mxu0 0
      %6644 = vmatpush1.bf16.msra.mxu0 %v6625
      %6645 = vmatprep.subr.bf16.mxu0 0
      %6646 = vmatpush1.bf16.msra.mxu0 %v6626
      %6647 = vmatprep.subr.bf16.mxu0 0
      %6648 = vmatpush1.bf16.msra.mxu0 %v6627
      %6649 = vmatprep.subr.bf16.mxu0 0
      %6650 = vmatpush1.bf16.msra.mxu0 %v6628
      %6651 = vmatprep.subr.bf16.mxu0 0
      %6652 = vmatpush1.bf16.msra.mxu0 %v6629
      %6653 = vmatprep.subr.bf16.mxu0 0
      %6654 = vmatpush1.bf16.msra.mxu0 %v6630
      %6655 = vmatprep.subr.bf16.mxu0 0
      %6656 = vmatpush1.bf16.msra.mxu0 0
      %6657 = vmatprep.subr.bf16.mxu0 0
      %6658 = vmatpush1.bf16.msra.mxu0 0
      %6659 = vmatprep.subr.bf16.mxu0 0
      %6660 = vmatpush1.bf16.msra.mxu0 0
      %6661 = vmatprep.subr.bf16.mxu0 0
      %6662 = vmatpush1.bf16.msra.mxu0 0
      %6663 = vmatprep.subr.bf16.mxu0 0
      %6664 = vmatpush1.bf16.msra.mxu0 0
      %6665 = vmatprep.subr.bf16.mxu0 0
      %6666 = vmatpush1.bf16.msra.mxu0 0
      %6667 = vmatprep.subr.bf16.mxu0 0
      %6668 = vmatpush1.bf16.msra.mxu0 0
      %6669 = vmatprep.subr.bf16.mxu0 0
      %6670 = vmatpush1.bf16.msra.mxu0 0
      %6671 = vmatprep.mubr.bf16.mxu0 0
      %6672 = vmatmul.mubr.bf16.gmra.mrb[0].mxu0 %v6583
      %v6673 = vpop.f32.mrb[0].mxu0
      %v6674 = vadd.f32 0.0, %v6673
      %v6675 = vpop.f32.mrb[0].mxu0
      %v6676 = vpop.f32.mrb[0].mxu0
      %v6677 = vadd.f32 0.0, %v6676
      %v6678 = vpop.f32.mrb[0].mxu0
      %6679 = vmatprep.mubr.bf16.mxu0 0
      %6680 = vmatmul.mubr.bf16.gmra.mrb[0].mxu0 %v6584
      %v6681 = vpop.f32.mrb[0].mxu0
      %v6682 = vadd.f32 0.0, %v6681
      %v6683 = vpop.f32.mrb[0].mxu0
      %v6684 = vpop.f32.mrb[0].mxu0
      %v6685 = vadd.f32 0.0, %v6684
      %v6686 = vpop.f32.mrb[0].mxu0
      %6687 = vmatprep.mubr.bf16.mxu0 0
      %6688 = vmatmul.mubr.bf16.gmra.mrb[0].mxu0 %v6585
      %v6689 = vpop.f32.mrb[0].mxu0
      %v6690 = vadd.f32 0.0, %v6689
      %v6691 = vpop.f32.mrb[0].mxu0
      %v6692 = vpop.f32.mrb[0].mxu0
      %v6693 = vadd.f32 0.0, %v6692
      %v6694 = vpop.f32.mrb[0].mxu0
      %6695 = vmatprep.mubr.bf16.mxu0 0
      %6696 = vmatmul.mubr.bf16.gmra.mrb[0].mxu0 %v6586
      %v6697 = vpop.f32.mrb[0].mxu0
      %v6698 = vadd.f32 0.0, %v6697
      %v6699 = vpop.f32.mrb[0].mxu0
      %v6700 = vpop.f32.mrb[0].mxu0
      %v6701 = vadd.f32 0.0, %v6700
      %v6702 = vpop.f32.mrb[0].mxu0
      %6703 = vdwg.mxu0
      %v6704 = vadd.f32 %v6429, %v6674
      %v6705 = vadd.f32 %v6430, %v6677
      %v6706 = vadd.f32 %v6431, %v6682
      %v6707 = vadd.f32 %v6432, %v6685
      %v6708 = vadd.f32 %v6433, %v6690
      %v6709 = vadd.f32 %v6434, %v6693
      %v6710 = vadd.f32 %v6435, %v6698
      %v6711 = vadd.f32 %v6436, %v6701
      %s6712 = scalar_lea.vmem %s7, 448
      %v6713 = vld [vmem:[%s6712] sm:$0xf]
      %v6714 = vld [vmem:[%s6712 + $0x4] sm:$0xf]
      %v6715 = vld [vmem:[%s6712 + $0x8] sm:$0xf]
      %v6716 = vld [vmem:[%s6712 + $0xc] sm:$0xf]
      %v6717 = vld [vmem:[%s6712 + $0x10] sm:$0xf]
      %v6718 = vld [vmem:[%s6712 + $0x14] sm:$0xf]
      %v6719 = vld [vmem:[%s6712 + $0x18] sm:$0xf]
      %v6720 = vld [vmem:[%s6712 + $0x1c] sm:$0xf]
      %v6721 = vld [vmem:[%s6712 + $0x20] sm:$0xf]
      %v6722 = vld [vmem:[%s6712 + $0x24] sm:$0xf]
      %v6723 = vld [vmem:[%s6712 + $0x28] sm:$0xf]
      %v6724 = vld [vmem:[%s6712 + $0x2c] sm:$0xf]
      %v6725 = vld [vmem:[%s6712 + $0x30] sm:$0xf]
      %v6726 = vld [vmem:[%s6712 + $0x34] sm:$0xf]
      %v6727 = vld [vmem:[%s6712 + $0x38] sm:$0xf]
      %v6728 = vld [vmem:[%s6712 + $0x3c] sm:$0xf]
      %v6737 = vunpack.c.l.b16 %v6439
      %v6738 = vunpack.c.l.b16 %v6441
      %v6739 = vunpack.c.l.b16 %v6443
      %v6740 = vunpack.c.l.b16 %v6445
      %v6741 = vunpack.c.l.b16 %v6447
      %v6742 = vunpack.c.l.b16 %v6449
      %v6743 = vunpack.c.l.b16 %v6451
      %v6744 = vunpack.c.l.b16 %v6453
      %v6745 = vpack.c.b16 %v6738, %v6737
      %v6746 = vpack.c.b16 %v6740, %v6739
      %v6747 = vpack.c.b16 %v6742, %v6741
      %v6748 = vpack.c.b16 %v6744, %v6743
      %v6769 = vunpack.c.l.b16 %v6713
      %v6770 = vunpack.c.l.b16 %v6714
      %v6771 = vunpack.c.l.b16 %v6715
      %v6772 = vunpack.c.l.b16 %v6716
      %v6773 = vunpack.c.l.b16 %v6717
      %v6774 = vunpack.c.l.b16 %v6718
      %v6775 = vunpack.c.l.b16 %v6719
      %v6776 = vunpack.c.l.b16 %v6720
      %v6777 = vunpack.c.l.b16 %v6721
      %v6778 = vunpack.c.l.b16 %v6722
      %v6779 = vunpack.c.l.b16 %v6723
      %v6780 = vunpack.c.l.b16 %v6724
      %v6781 = vunpack.c.l.b16 %v6725
      %v6782 = vunpack.c.l.b16 %v6726
      %v6783 = vunpack.c.l.b16 %v6727
      %v6784 = vunpack.c.l.b16 %v6728
      %v6785 = vpack.c.b16 %v6770, %v6769
      %v6786 = vpack.c.b16 %v6772, %v6771
      %v6787 = vpack.c.b16 %v6774, %v6773
      %v6788 = vpack.c.b16 %v6776, %v6775
      %v6789 = vpack.c.b16 %v6778, %v6777
      %v6790 = vpack.c.b16 %v6780, %v6779
      %v6791 = vpack.c.b16 %v6782, %v6781
      %v6792 = vpack.c.b16 %v6784, %v6783
      %6801 = vmatprep.subr.bf16.mxu0 0
      %6802 = vmatpush1.bf16.msra.mxu0 %v6785
      %6803 = vmatprep.subr.bf16.mxu0 0
      %6804 = vmatpush1.bf16.msra.mxu0 %v6786
      %6805 = vmatprep.subr.bf16.mxu0 0
      %6806 = vmatpush1.bf16.msra.mxu0 %v6787
      %6807 = vmatprep.subr.bf16.mxu0 0
      %6808 = vmatpush1.bf16.msra.mxu0 %v6788
      %6809 = vmatprep.subr.bf16.mxu0 0
      %6810 = vmatpush1.bf16.msra.mxu0 %v6789
      %6811 = vmatprep.subr.bf16.mxu0 0
      %6812 = vmatpush1.bf16.msra.mxu0 %v6790
      %6813 = vmatprep.subr.bf16.mxu0 0
      %6814 = vmatpush1.bf16.msra.mxu0 %v6791
      %6815 = vmatprep.subr.bf16.mxu0 0
      %6816 = vmatpush1.bf16.msra.mxu0 %v6792
      %6817 = vmatprep.subr.bf16.mxu0 0
      %6818 = vmatpush1.bf16.msra.mxu0 0
      %6819 = vmatprep.subr.bf16.mxu0 0
      %6820 = vmatpush1.bf16.msra.mxu0 0
      %6821 = vmatprep.subr.bf16.mxu0 0
      %6822 = vmatpush1.bf16.msra.mxu0 0
      %6823 = vmatprep.subr.bf16.mxu0 0
      %6824 = vmatpush1.bf16.msra.mxu0 0
      %6825 = vmatprep.subr.bf16.mxu0 0
      %6826 = vmatpush1.bf16.msra.mxu0 0
      %6827 = vmatprep.subr.bf16.mxu0 0
      %6828 = vmatpush1.bf16.msra.mxu0 0
      %6829 = vmatprep.subr.bf16.mxu0 0
      %6830 = vmatpush1.bf16.msra.mxu0 0
      %6831 = vmatprep.subr.bf16.mxu0 0
      %6832 = vmatpush1.bf16.msra.mxu0 0
      %6833 = vmatprep.mubr.bf16.mxu0 0
      %6834 = vmatmul.mubr.bf16.gmra.mrb[0].mxu0 %v6745
      %v6835 = vpop.f32.mrb[0].mxu0
      %v6836 = vadd.f32 0.0, %v6835
      %v6837 = vpop.f32.mrb[0].mxu0
      %v6838 = vpop.f32.mrb[0].mxu0
      %v6839 = vadd.f32 0.0, %v6838
      %v6840 = vpop.f32.mrb[0].mxu0
      %6841 = vmatprep.mubr.bf16.mxu0 0
      %6842 = vmatmul.mubr.bf16.gmra.mrb[0].mxu0 %v6746
      %v6843 = vpop.f32.mrb[0].mxu0
      %v6844 = vadd.f32 0.0, %v6843
      %v6845 = vpop.f32.mrb[0].mxu0
      %v6846 = vpop.f32.mrb[0].mxu0
      %v6847 = vadd.f32 0.0, %v6846
      %v6848 = vpop.f32.mrb[0].mxu0
      %6849 = vmatprep.mubr.bf16.mxu0 0
      %6850 = vmatmul.mubr.bf16.gmra.mrb[0].mxu0 %v6747
      %v6851 = vpop.f32.mrb[0].mxu0
      %v6852 = vadd.f32 0.0, %v6851
      %v6853 = vpop.f32.mrb[0].mxu0
      %v6854 = vpop.f32.mrb[0].mxu0
      %v6855 = vadd.f32 0.0, %v6854
      %v6856 = vpop.f32.mrb[0].mxu0
      %6857 = vmatprep.mubr.bf16.mxu0 0
      %6858 = vmatmul.mubr.bf16.gmra.mrb[0].mxu0 %v6748
      %v6859 = vpop.f32.mrb[0].mxu0
      %v6860 = vadd.f32 0.0, %v6859
      %v6861 = vpop.f32.mrb[0].mxu0
      %v6862 = vpop.f32.mrb[0].mxu0
      %v6863 = vadd.f32 0.0, %v6862
      %v6864 = vpop.f32.mrb[0].mxu0
      %6865 = vdwg.mxu0
      %v6866 = vadd.f32 %v6704, %v6836
      %v6867 = vadd.f32 %v6705, %v6839
      %v6868 = vadd.f32 %v6706, %v6844
      %v6869 = vadd.f32 %v6707, %v6847
      %v6870 = vadd.f32 %v6708, %v6852
      %v6871 = vadd.f32 %v6709, %v6855
      %v6872 = vadd.f32 %v6710, %v6860
      %v6873 = vadd.f32 %v6711, %v6863
      %v6874 = vld [vmem:[%s6437 + $0x4] sm:$0xf]
      %v6875 = vld [vmem:[%s6437 + $0x8] sm:$0x1]
      %v6876 = vld [vmem:[%s6437 + $0x10] sm:$0xf]
      %v6877 = vld [vmem:[%s6437 + $0x14] sm:$0x1]
      %v6878 = vld [vmem:[%s6437 + $0x1c] sm:$0xf]
      %v6879 = vld [vmem:[%s6437 + $0x20] sm:$0x1]
      %v6880 = vld [vmem:[%s6437 + $0x28] sm:$0xf]
      %v6881 = vld [vmem:[%s6437 + $0x2c] sm:$0x1]
      %v6882 = vld [vmem:[%s6437 + $0x34] sm:$0xf]
      %v6883 = vld [vmem:[%s6437 + $0x38] sm:$0x1]
      %v6884 = vld [vmem:[%s6437 + $0x40] sm:$0xf]
      %v6885 = vld [vmem:[%s6437 + $0x44] sm:$0x1]
      %v6886 = vld [vmem:[%s6437 + $0x4c] sm:$0xf]
      %v6887 = vld [vmem:[%s6437 + $0x50] sm:$0x1]
      %v6888 = vld [vmem:[%s6437 + $0x58] sm:$0xf]
      %v6889 = vld [vmem:[%s6437 + $0x5c] sm:$0x1]
      %v6891 = vshrl.u32 %v6874, 16
      %v6893 = vrot.slane %v6891, 4
      %v6894 = vshll.u32 %v6874, 16
      %v6896 = vrot.slane %v6894, 5
      %v6897 = vor.u32 %v6893, %v6896
      %v6898 = vrot.slane %v6897, 4
      %v6900 = vshll.u32 %v6875, 16
      %v6902 = vrot.slane %v6900, 5
      %v6903 = vsel %vm951, %v6898, %v6902
      %v6905 = vshrl.u32 %v6876, 16
      %v6907 = vrot.slane %v6905, 4
      %v6908 = vshll.u32 %v6876, 16
      %v6910 = vrot.slane %v6908, 5
      %v6911 = vor.u32 %v6907, %v6910
      %v6912 = vrot.slane %v6911, 4
      %v6914 = vshll.u32 %v6877, 16
      %v6916 = vrot.slane %v6914, 5
      %v6917 = vsel %vm951, %v6912, %v6916
      %v6919 = vshrl.u32 %v6878, 16
      %v6921 = vrot.slane %v6919, 4
      %v6922 = vshll.u32 %v6878, 16
      %v6924 = vrot.slane %v6922, 5
      %v6925 = vor.u32 %v6921, %v6924
      %v6926 = vrot.slane %v6925, 4
      %v6928 = vshll.u32 %v6879, 16
      %v6930 = vrot.slane %v6928, 5
      %v6931 = vsel %vm951, %v6926, %v6930
      %v6933 = vshrl.u32 %v6880, 16
      %v6935 = vrot.slane %v6933, 4
      %v6936 = vshll.u32 %v6880, 16
      %v6938 = vrot.slane %v6936, 5
      %v6939 = vor.u32 %v6935, %v6938
      %v6940 = vrot.slane %v6939, 4
      %v6942 = vshll.u32 %v6881, 16
      %v6944 = vrot.slane %v6942, 5
      %v6945 = vsel %vm951, %v6940, %v6944
      %v6947 = vshrl.u32 %v6882, 16
      %v6949 = vrot.slane %v6947, 4
      %v6950 = vshll.u32 %v6882, 16
      %v6952 = vrot.slane %v6950, 5
      %v6953 = vor.u32 %v6949, %v6952
      %v6954 = vrot.slane %v6953, 4
      %v6956 = vshll.u32 %v6883, 16
      %v6958 = vrot.slane %v6956, 5
      %v6959 = vsel %vm951, %v6954, %v6958
      %v6961 = vshrl.u32 %v6884, 16
      %v6963 = vrot.slane %v6961, 4
      %v6964 = vshll.u32 %v6884, 16
      %v6966 = vrot.slane %v6964, 5
      %v6967 = vor.u32 %v6963, %v6966
      %v6968 = vrot.slane %v6967, 4
      %v6970 = vshll.u32 %v6885, 16
      %v6972 = vrot.slane %v6970, 5
      %v6973 = vsel %vm951, %v6968, %v6972
      %v6975 = vshrl.u32 %v6886, 16
      %v6977 = vrot.slane %v6975, 4
      %v6978 = vshll.u32 %v6886, 16
      %v6980 = vrot.slane %v6978, 5
      %v6981 = vor.u32 %v6977, %v6980
      %v6982 = vrot.slane %v6981, 4
      %v6984 = vshll.u32 %v6887, 16
      %v6986 = vrot.slane %v6984, 5
      %v6987 = vsel %vm951, %v6982, %v6986
      %v6989 = vshrl.u32 %v6888, 16
      %v6991 = vrot.slane %v6989, 4
      %v6992 = vshll.u32 %v6888, 16
      %v6994 = vrot.slane %v6992, 5
      %v6995 = vor.u32 %v6991, %v6994
      %v6996 = vrot.slane %v6995, 4
      %v6998 = vshll.u32 %v6889, 16
      %v7000 = vrot.slane %v6998, 5
      %v7001 = vsel %vm951, %v6996, %v7000
      %s7002 = scalar_lea.vmem %s7, 512
      %v7003 = vld [vmem:[%s7002] sm:$0xf]
      %v7004 = vld [vmem:[%s7002 + $0x4] sm:$0xf]
      %v7005 = vld [vmem:[%s7002 + $0x8] sm:$0xf]
      %v7006 = vld [vmem:[%s7002 + $0xc] sm:$0xf]
      %v7007 = vld [vmem:[%s7002 + $0x10] sm:$0xf]
      %v7008 = vld [vmem:[%s7002 + $0x14] sm:$0xf]
      %v7009 = vld [vmem:[%s7002 + $0x18] sm:$0xf]
      %v7010 = vld [vmem:[%s7002 + $0x1c] sm:$0xf]
      %v7011 = vld [vmem:[%s7002 + $0x20] sm:$0xf]
      %v7012 = vld [vmem:[%s7002 + $0x24] sm:$0xf]
      %v7013 = vld [vmem:[%s7002 + $0x28] sm:$0xf]
      %v7014 = vld [vmem:[%s7002 + $0x2c] sm:$0xf]
      %v7015 = vld [vmem:[%s7002 + $0x30] sm:$0xf]
      %v7016 = vld [vmem:[%s7002 + $0x34] sm:$0xf]
      %v7017 = vld [vmem:[%s7002 + $0x38] sm:$0xf]
      %v7018 = vld [vmem:[%s7002 + $0x3c] sm:$0xf]
      %v7019 = vunpack.c.l.b16 %v6903
      %v7020 = vunpack.c.l.b16 %v6917
      %v7021 = vunpack.c.l.b16 %v6931
      %v7022 = vunpack.c.l.b16 %v6945
      %v7023 = vunpack.c.l.b16 %v6959
      %v7024 = vunpack.c.l.b16 %v6973
      %v7025 = vunpack.c.l.b16 %v6987
      %v7026 = vunpack.c.l.b16 %v7001
      %v7027 = vpack.c.b16 %v7020, %v7019
      %v7028 = vpack.c.b16 %v7022, %v7021
      %v7029 = vpack.c.b16 %v7024, %v7023
      %v7030 = vpack.c.b16 %v7026, %v7025
      %v7051 = vunpack.c.l.b16 %v7003
      %v7052 = vunpack.c.l.b16 %v7004
      %v7053 = vunpack.c.l.b16 %v7005
      %v7054 = vunpack.c.l.b16 %v7006
      %v7055 = vunpack.c.l.b16 %v7007
      %v7056 = vunpack.c.l.b16 %v7008
      %v7057 = vunpack.c.l.b16 %v7009
      %v7058 = vunpack.c.l.b16 %v7010
      %v7059 = vunpack.c.l.b16 %v7011
      %v7060 = vunpack.c.l.b16 %v7012
      %v7061 = vunpack.c.l.b16 %v7013
      %v7062 = vunpack.c.l.b16 %v7014
      %v7063 = vunpack.c.l.b16 %v7015
      %v7064 = vunpack.c.l.b16 %v7016
      %v7065 = vunpack.c.l.b16 %v7017
      %v7066 = vunpack.c.l.b16 %v7018
      %v7067 = vpack.c.b16 %v7052, %v7051
      %v7068 = vpack.c.b16 %v7054, %v7053
      %v7069 = vpack.c.b16 %v7056, %v7055
      %v7070 = vpack.c.b16 %v7058, %v7057
      %v7071 = vpack.c.b16 %v7060, %v7059
      %v7072 = vpack.c.b16 %v7062, %v7061
      %v7073 = vpack.c.b16 %v7064, %v7063
      %v7074 = vpack.c.b16 %v7066, %v7065
      %7083 = vmatprep.subr.bf16.mxu0 0
      %7084 = vmatpush1.bf16.msra.mxu0 %v7067
      %7085 = vmatprep.subr.bf16.mxu0 0
      %7086 = vmatpush1.bf16.msra.mxu0 %v7068
      %7087 = vmatprep.subr.bf16.mxu0 0
      %7088 = vmatpush1.bf16.msra.mxu0 %v7069
      %7089 = vmatprep.subr.bf16.mxu0 0
      %7090 = vmatpush1.bf16.msra.mxu0 %v7070
      %7091 = vmatprep.subr.bf16.mxu0 0
      %7092 = vmatpush1.bf16.msra.mxu0 %v7071
      %7093 = vmatprep.subr.bf16.mxu0 0
      %7094 = vmatpush1.bf16.msra.mxu0 %v7072
      %7095 = vmatprep.subr.bf16.mxu0 0
      %7096 = vmatpush1.bf16.msra.mxu0 %v7073
      %7097 = vmatprep.subr.bf16.mxu0 0
      %7098 = vmatpush1.bf16.msra.mxu0 %v7074
      %7099 = vmatprep.subr.bf16.mxu0 0
      %7100 = vmatpush1.bf16.msra.mxu0 0
      %7101 = vmatprep.subr.bf16.mxu0 0
      %7102 = vmatpush1.bf16.msra.mxu0 0
      %7103 = vmatprep.subr.bf16.mxu0 0
      %7104 = vmatpush1.bf16.msra.mxu0 0
      %7105 = vmatprep.subr.bf16.mxu0 0
      %7106 = vmatpush1.bf16.msra.mxu0 0
      %7107 = vmatprep.subr.bf16.mxu0 0
      %7108 = vmatpush1.bf16.msra.mxu0 0
      %7109 = vmatprep.subr.bf16.mxu0 0
      %7110 = vmatpush1.bf16.msra.mxu0 0
      %7111 = vmatprep.subr.bf16.mxu0 0
      %7112 = vmatpush1.bf16.msra.mxu0 0
      %7113 = vmatprep.subr.bf16.mxu0 0
      %7114 = vmatpush1.bf16.msra.mxu0 0
      %7115 = vmatprep.mubr.bf16.mxu0 0
      %7116 = vmatmul.mubr.bf16.gmra.mrb[0].mxu0 %v7027
      %v7117 = vpop.f32.mrb[0].mxu0
      %v7118 = vadd.f32 0.0, %v7117
      %v7119 = vpop.f32.mrb[0].mxu0
      %v7120 = vpop.f32.mrb[0].mxu0
      %v7121 = vadd.f32 0.0, %v7120
      %v7122 = vpop.f32.mrb[0].mxu0
      %7123 = vmatprep.mubr.bf16.mxu0 0
      %7124 = vmatmul.mubr.bf16.gmra.mrb[0].mxu0 %v7028
      %v7125 = vpop.f32.mrb[0].mxu0
      %v7126 = vadd.f32 0.0, %v7125
      %v7127 = vpop.f32.mrb[0].mxu0
      %v7128 = vpop.f32.mrb[0].mxu0
      %v7129 = vadd.f32 0.0, %v7128
      %v7130 = vpop.f32.mrb[0].mxu0
      %7131 = vmatprep.mubr.bf16.mxu0 0
      %7132 = vmatmul.mubr.bf16.gmra.mrb[0].mxu0 %v7029
      %v7133 = vpop.f32.mrb[0].mxu0
      %v7134 = vadd.f32 0.0, %v7133
      %v7135 = vpop.f32.mrb[0].mxu0
      %v7136 = vpop.f32.mrb[0].mxu0
      %v7137 = vadd.f32 0.0, %v7136
      %v7138 = vpop.f32.mrb[0].mxu0
      %7139 = vmatprep.mubr.bf16.mxu0 0
      %7140 = vmatmul.mubr.bf16.gmra.mrb[0].mxu0 %v7030
      %v7141 = vpop.f32.mrb[0].mxu0
      %v7142 = vadd.f32 0.0, %v7141
      %v7143 = vpop.f32.mrb[0].mxu0
      %v7144 = vpop.f32.mrb[0].mxu0
      %v7145 = vadd.f32 0.0, %v7144
      %v7146 = vpop.f32.mrb[0].mxu0
      %7147 = vdwg.mxu0
      %v7148 = vadd.f32 %v6866, %v7118
      %v7149 = vadd.f32 %v6867, %v7121
      %v7150 = vadd.f32 %v6868, %v7126
      %v7151 = vadd.f32 %v6869, %v7129
      %v7152 = vadd.f32 %v6870, %v7134
      %v7153 = vadd.f32 %v6871, %v7137
      %v7154 = vadd.f32 %v6872, %v7142
      %v7155 = vadd.f32 %v6873, %v7145
      %v7156 = vld [vmem:[%s8] sm:$0x1]
      %v7158 = vlaneseq
      %v7159 = vshrl.u32 %v7158, 7
      %v7160 = vsub.s32 0, %v7159
      %v7161 = vrot.slane %v7156, %v7160
      %v7163 = vadd.f32 %v7148, %v7161
      %v7164 = vadd.f32 %v7149, %v7161
      %v7165 = vadd.f32 %v7150, %v7161
      %v7166 = vadd.f32 %v7151, %v7161
      %v7167 = vadd.f32 %v7152, %v7161
      %v7168 = vadd.f32 %v7153, %v7161
      %v7169 = vadd.f32 %v7154, %v7161
      %v7170 = vadd.f32 %v7155, %v7161
      %v7171 = vmax.f32 %v7163, 0.0
      %v7172 = vmax.f32 %v7164, 0.0
      %v7173 = vmax.f32 %v7165, 0.0
      %v7174 = vmax.f32 %v7166, 0.0
      %v7175 = vmax.f32 %v7167, 0.0
      %v7176 = vmax.f32 %v7168, 0.0
      %v7177 = vmax.f32 %v7169, 0.0
      %v7178 = vmax.f32 %v7170, 0.0
      %v7179 = vpack.c.bf16 %v7171, %v7171
      %v7180 = vpack.c.bf16 %v7172, %v7172
      %v7181 = vpack.c.bf16 %v7173, %v7173
      %v7182 = vpack.c.bf16 %v7174, %v7174
      %v7183 = vpack.c.bf16 %v7175, %v7175
      %v7184 = vpack.c.bf16 %v7176, %v7176
      %v7185 = vpack.c.bf16 %v7177, %v7177
      %v7186 = vpack.c.bf16 %v7178, %v7178
      %7187 = vst [vmem:[%s478 + $0x4] sm:$0xf] %v7179
      %7188 = vst [vmem:[%s478 + $0x10] sm:$0xf] %v7180
      %7189 = vst [vmem:[%s478 + $0x1c] sm:$0xf] %v7181
      %7190 = vst [vmem:[%s478 + $0x28] sm:$0xf] %v7182
      %7191 = vst [vmem:[%s478 + $0x34] sm:$0xf] %v7183
      %7192 = vst [vmem:[%s478 + $0x40] sm:$0xf] %v7184
      %7193 = vst [vmem:[%s478 + $0x4c] sm:$0xf] %v7185
      %7194 = vst [vmem:[%s478 + $0x58] sm:$0xf] %v7186
      %v7195 = vld [vmem:[#allocation3] sm:$0x8]
      %v7196 = vld [vmem:[#allocation3 + $0x4] sm:$0xf]
      %v7197 = vld [vmem:[#allocation3 + $0xc] sm:$0x8]
      %v7198 = vld [vmem:[#allocation3 + $0x10] sm:$0xf]
      %v7199 = vld [vmem:[#allocation3 + $0x18] sm:$0x8]
      %v7200 = vld [vmem:[#allocation3 + $0x1c] sm:$0xf]
      %v7201 = vld [vmem:[#allocation3 + $0x24] sm:$0x8]
      %v7202 = vld [vmem:[#allocation3 + $0x28] sm:$0xf]
      %v7203 = vld [vmem:[#allocation3 + $0x30] sm:$0x8]
      %v7204 = vld [vmem:[#allocation3 + $0x34] sm:$0xf]
      %v7205 = vld [vmem:[#allocation3 + $0x3c] sm:$0x8]
      %v7206 = vld [vmem:[#allocation3 + $0x40] sm:$0xf]
      %v7207 = vld [vmem:[#allocation3 + $0x48] sm:$0x8]
      %v7208 = vld [vmem:[#allocation3 + $0x4c] sm:$0xf]
      %v7209 = vld [vmem:[#allocation3 + $0x54] sm:$0x8]
      %v7210 = vld [vmem:[#allocation3 + $0x58] sm:$0xf]
      %v7212 = vshrl.u32 %v7195, 16
      %v7214 = vrot.slane %v7212, 7
      %v7215 = vrot.slane %v7214, 4
      %v7217 = vshrl.u32 %v7196, 16
      %v7219 = vrot.slane %v7217, 7
      %v7220 = vshll.u32 %v7196, 16
      %v7222 = vor.u32 %v7219, %v7220
      %v7223 = vsel %vm529, %v7215, %v7222
      %v7225 = vshrl.u32 %v7197, 16
      %v7227 = vrot.slane %v7225, 7
      %v7228 = vrot.slane %v7227, 4
      %v7230 = vshrl.u32 %v7198, 16
      %v7232 = vrot.slane %v7230, 7
      %v7233 = vshll.u32 %v7198, 16
      %v7235 = vor.u32 %v7232, %v7233
      %v7236 = vsel %vm529, %v7228, %v7235
      %v7238 = vshrl.u32 %v7199, 16
      %v7240 = vrot.slane %v7238, 7
      %v7241 = vrot.slane %v7240, 4
      %v7243 = vshrl.u32 %v7200, 16
      %v7245 = vrot.slane %v7243, 7
      %v7246 = vshll.u32 %v7200, 16
      %v7248 = vor.u32 %v7245, %v7246
      %v7249 = vsel %vm529, %v7241, %v7248
      %v7251 = vshrl.u32 %v7201, 16
      %v7253 = vrot.slane %v7251, 7
      %v7254 = vrot.slane %v7253, 4
      %v7256 = vshrl.u32 %v7202, 16
      %v7258 = vrot.slane %v7256, 7
      %v7259 = vshll.u32 %v7202, 16
      %v7261 = vor.u32 %v7258, %v7259
      %v7262 = vsel %vm529, %v7254, %v7261
      %v7264 = vshrl.u32 %v7203, 16
      %v7266 = vrot.slane %v7264, 7
      %v7267 = vrot.slane %v7266, 4
      %v7269 = vshrl.u32 %v7204, 16
      %v7271 = vrot.slane %v7269, 7
      %v7272 = vshll.u32 %v7204, 16
      %v7274 = vor.u32 %v7271, %v7272
      %v7275 = vsel %vm529, %v7267, %v7274
      %v7277 = vshrl.u32 %v7205, 16
      %v7279 = vrot.slane %v7277, 7
      %v7280 = vrot.slane %v7279, 4
      %v7282 = vshrl.u32 %v7206, 16
      %v7284 = vrot.slane %v7282, 7
      %v7285 = vshll.u32 %v7206, 16
      %v7287 = vor.u32 %v7284, %v7285
      %v7288 = vsel %vm529, %v7280, %v7287
      %v7290 = vshrl.u32 %v7207, 16
      %v7292 = vrot.slane %v7290, 7
      %v7293 = vrot.slane %v7292, 4
      %v7295 = vshrl.u32 %v7208, 16
      %v7297 = vrot.slane %v7295, 7
      %v7298 = vshll.u32 %v7208, 16
      %v7300 = vor.u32 %v7297, %v7298
      %v7301 = vsel %vm529, %v7293, %v7300
      %v7303 = vshrl.u32 %v7209, 16
      %v7305 = vrot.slane %v7303, 7
      %v7306 = vrot.slane %v7305, 4
      %v7308 = vshrl.u32 %v7210, 16
      %v7310 = vrot.slane %v7308, 7
      %v7311 = vshll.u32 %v7210, 16
      %v7313 = vor.u32 %v7310, %v7311
      %v7314 = vsel %vm529, %v7306, %v7313
      %v7315 = vld [vmem:[%s9] sm:$0xf]
      %v7316 = vld [vmem:[%s9 + $0x4] sm:$0xf]
      %v7317 = vld [vmem:[%s9 + $0x8] sm:$0xf]
      %v7318 = vld [vmem:[%s9 + $0xc] sm:$0xf]
      %v7319 = vld [vmem:[%s9 + $0x10] sm:$0xf]
      %v7320 = vld [vmem:[%s9 + $0x14] sm:$0xf]
      %v7321 = vld [vmem:[%s9 + $0x18] sm:$0xf]
      %v7322 = vld [vmem:[%s9 + $0x1c] sm:$0xf]
      %v7323 = vld [vmem:[%s9 + $0x20] sm:$0xf]
      %v7324 = vld [vmem:[%s9 + $0x24] sm:$0xf]
      %v7325 = vld [vmem:[%s9 + $0x28] sm:$0xf]
      %v7326 = vld [vmem:[%s9 + $0x2c] sm:$0xf]
      %v7327 = vld [vmem:[%s9 + $0x30] sm:$0xf]
      %v7328 = vld [vmem:[%s9 + $0x34] sm:$0xf]
      %v7329 = vld [vmem:[%s9 + $0x38] sm:$0xf]
      %v7330 = vld [vmem:[%s9 + $0x3c] sm:$0xf]
      %s7331 = scalar_lea.vmem %s9, 64
      %v7332 = vld [vmem:[%s7331] sm:$0xf]
      %v7333 = vld [vmem:[%s7331 + $0x4] sm:$0xf]
      %v7334 = vld [vmem:[%s7331 + $0x8] sm:$0xf]
      %v7335 = vld [vmem:[%s7331 + $0xc] sm:$0xf]
      %v7336 = vld [vmem:[%s7331 + $0x10] sm:$0xf]
      %v7337 = vld [vmem:[%s7331 + $0x14] sm:$0xf]
      %v7338 = vld [vmem:[%s7331 + $0x18] sm:$0xf]
      %v7339 = vld [vmem:[%s7331 + $0x1c] sm:$0xf]
      %v7340 = vld [vmem:[%s7331 + $0x20] sm:$0xf]
      %v7341 = vld [vmem:[%s7331 + $0x24] sm:$0xf]
      %v7342 = vld [vmem:[%s7331 + $0x28] sm:$0xf]
      %v7343 = vld [vmem:[%s7331 + $0x2c] sm:$0xf]
      %v7344 = vld [vmem:[%s7331 + $0x30] sm:$0xf]
      %v7345 = vld [vmem:[%s7331 + $0x34] sm:$0xf]
      %v7346 = vld [vmem:[%s7331 + $0x38] sm:$0xf]
      %v7347 = vld [vmem:[%s7331 + $0x3c] sm:$0xf]
      %v7356 = vunpack.c.l.b16 %v7196
      %v7357 = vunpack.c.l.b16 %v7198
      %v7358 = vunpack.c.l.b16 %v7200
      %v7359 = vunpack.c.l.b16 %v7202
      %v7360 = vunpack.c.l.b16 %v7204
      %v7361 = vunpack.c.l.b16 %v7206
      %v7362 = vunpack.c.l.b16 %v7208
      %v7363 = vunpack.c.l.b16 %v7210
      %v7364 = vpack.c.b16 %v7357, %v7356
      %v7365 = vpack.c.b16 %v7359, %v7358
      %v7366 = vpack.c.b16 %v7361, %v7360
      %v7367 = vpack.c.b16 %v7363, %v7362
      %v7388 = vunpack.c.l.b16 %v7332
      %v7389 = vunpack.c.l.b16 %v7333
      %v7390 = vunpack.c.l.b16 %v7334
      %v7391 = vunpack.c.l.b16 %v7335
      %v7392 = vunpack.c.l.b16 %v7336
      %v7393 = vunpack.c.l.b16 %v7337
      %v7394 = vunpack.c.l.b16 %v7338
      %v7395 = vunpack.c.l.b16 %v7339
      %v7396 = vunpack.c.l.b16 %v7340
      %v7397 = vunpack.c.l.b16 %v7341
      %v7398 = vunpack.c.l.b16 %v7342
      %v7399 = vunpack.c.l.b16 %v7343
      %v7400 = vunpack.c.l.b16 %v7344
      %v7401 = vunpack.c.l.b16 %v7345
      %v7402 = vunpack.c.l.b16 %v7346
      %v7403 = vunpack.c.l.b16 %v7347
      %v7404 = vpack.c.b16 %v7389, %v7388
      %v7405 = vpack.c.b16 %v7391, %v7390
      %v7406 = vpack.c.b16 %v7393, %v7392
      %v7407 = vpack.c.b16 %v7395, %v7394
      %v7408 = vpack.c.b16 %v7397, %v7396
      %v7409 = vpack.c.b16 %v7399, %v7398
      %v7410 = vpack.c.b16 %v7401, %v7400
      %v7411 = vpack.c.b16 %v7403, %v7402
      %7420 = vmatprep.subr.bf16.mxu0 0
      %7421 = vmatpush1.bf16.msra.mxu0 %v7404
      %7422 = vmatprep.subr.bf16.mxu0 0
      %7423 = vmatpush1.bf16.msra.mxu0 %v7405
      %7424 = vmatprep.subr.bf16.mxu0 0
      %7425 = vmatpush1.bf16.msra.mxu0 %v7406
      %7426 = vmatprep.subr.bf16.mxu0 0
      %7427 = vmatpush1.bf16.msra.mxu0 %v7407
      %7428 = vmatprep.subr.bf16.mxu0 0
      %7429 = vmatpush1.bf16.msra.mxu0 %v7408
      %7430 = vmatprep.subr.bf16.mxu0 0
      %7431 = vmatpush1.bf16.msra.mxu0 %v7409
      %7432 = vmatprep.subr.bf16.mxu0 0
      %7433 = vmatpush1.bf16.msra.mxu0 %v7410
      %7434 = vmatprep.subr.bf16.mxu0 0
      %7435 = vmatpush1.bf16.msra.mxu0 %v7411
      %7436 = vmatprep.subr.bf16.mxu0 0
      %7437 = vmatpush1.bf16.msra.mxu0 0
      %7438 = vmatprep.subr.bf16.mxu0 0
      %7439 = vmatpush1.bf16.msra.mxu0 0
      %7440 = vmatprep.subr.bf16.mxu0 0
      %7441 = vmatpush1.bf16.msra.mxu0 0
      %7442 = vmatprep.subr.bf16.mxu0 0
      %7443 = vmatpush1.bf16.msra.mxu0 0
      %7444 = vmatprep.subr.bf16.mxu0 0
      %7445 = vmatpush1.bf16.msra.mxu0 0
      %7446 = vmatprep.subr.bf16.mxu0 0
      %7447 = vmatpush1.bf16.msra.mxu0 0
      %7448 = vmatprep.subr.bf16.mxu0 0
      %7449 = vmatpush1.bf16.msra.mxu0 0
      %7450 = vmatprep.subr.bf16.mxu0 0
      %7451 = vmatpush1.bf16.msra.mxu0 0
      %7452 = vmatprep.mubr.bf16.mxu0 0
      %7453 = vmatmul.mubr.bf16.gmra.mrb[0].mxu0 %v7364
      %v7454 = vpop.f32.mrb[0].mxu0
      %v7455 = vadd.f32 0.0, %v7454
      %v7456 = vpop.f32.mrb[0].mxu0
      %v7457 = vpop.f32.mrb[0].mxu0
      %v7458 = vadd.f32 0.0, %v7457
      %v7459 = vpop.f32.mrb[0].mxu0
      %7460 = vmatprep.mubr.bf16.mxu0 0
      %7461 = vmatmul.mubr.bf16.gmra.mrb[0].mxu0 %v7365
      %v7462 = vpop.f32.mrb[0].mxu0
      %v7463 = vadd.f32 0.0, %v7462
      %v7464 = vpop.f32.mrb[0].mxu0
      %v7465 = vpop.f32.mrb[0].mxu0
      %v7466 = vadd.f32 0.0, %v7465
      %v7467 = vpop.f32.mrb[0].mxu0
      %7468 = vmatprep.mubr.bf16.mxu0 0
      %7469 = vmatmul.mubr.bf16.gmra.mrb[0].mxu0 %v7366
      %v7470 = vpop.f32.mrb[0].mxu0
      %v7471 = vadd.f32 0.0, %v7470
      %v7472 = vpop.f32.mrb[0].mxu0
      %v7473 = vpop.f32.mrb[0].mxu0
      %v7474 = vadd.f32 0.0, %v7473
      %v7475 = vpop.f32.mrb[0].mxu0
      %7476 = vmatprep.mubr.bf16.mxu0 0
      %7477 = vmatmul.mubr.bf16.gmra.mrb[0].mxu0 %v7367
      %v7478 = vpop.f32.mrb[0].mxu0
      %v7479 = vadd.f32 0.0, %v7478
      %v7480 = vpop.f32.mrb[0].mxu0
      %v7481 = vpop.f32.mrb[0].mxu0
      %v7482 = vadd.f32 0.0, %v7481
      %v7483 = vpop.f32.mrb[0].mxu0
      %7484 = vdwg.mxu0
      %v7485 = vunpack.c.l.b16 %v7223
      %v7486 = vunpack.c.l.b16 %v7236
      %v7487 = vunpack.c.l.b16 %v7249
      %v7488 = vunpack.c.l.b16 %v7262
      %v7489 = vunpack.c.l.b16 %v7275
      %v7490 = vunpack.c.l.b16 %v7288
      %v7491 = vunpack.c.l.b16 %v7301
      %v7492 = vunpack.c.l.b16 %v7314
      %v7493 = vpack.c.b16 %v7486, %v7485
      %v7494 = vpack.c.b16 %v7488, %v7487
      %v7495 = vpack.c.b16 %v7490, %v7489
      %v7496 = vpack.c.b16 %v7492, %v7491
      %v7517 = vunpack.c.l.b16 %v7315
      %v7518 = vunpack.c.l.b16 %v7316
      %v7519 = vunpack.c.l.b16 %v7317
      %v7520 = vunpack.c.l.b16 %v7318
      %v7521 = vunpack.c.l.b16 %v7319
      %v7522 = vunpack.c.l.b16 %v7320
      %v7523 = vunpack.c.l.b16 %v7321
      %v7524 = vunpack.c.l.b16 %v7322
      %v7525 = vunpack.c.l.b16 %v7323
      %v7526 = vunpack.c.l.b16 %v7324
      %v7527 = vunpack.c.l.b16 %v7325
      %v7528 = vunpack.c.l.b16 %v7326
      %v7529 = vunpack.c.l.b16 %v7327
      %v7530 = vunpack.c.l.b16 %v7328
      %v7531 = vunpack.c.l.b16 %v7329
      %v7532 = vunpack.c.l.b16 %v7330
      %v7533 = vpack.c.b16 %v7518, %v7517
      %v7534 = vpack.c.b16 %v7520, %v7519
      %v7535 = vpack.c.b16 %v7522, %v7521
      %v7536 = vpack.c.b16 %v7524, %v7523
      %v7537 = vpack.c.b16 %v7526, %v7525
      %v7538 = vpack.c.b16 %v7528, %v7527
      %v7539 = vpack.c.b16 %v7530, %v7529
      %v7540 = vpack.c.b16 %v7532, %v7531
      %7549 = vmatprep.subr.bf16.mxu0 0
      %7550 = vmatpush1.bf16.msra.mxu0 %v7533
      %7551 = vmatprep.subr.bf16.mxu0 0
      %7552 = vmatpush1.bf16.msra.mxu0 %v7534
      %7553 = vmatprep.subr.bf16.mxu0 0
      %7554 = vmatpush1.bf16.msra.mxu0 %v7535
      %7555 = vmatprep.subr.bf16.mxu0 0
      %7556 = vmatpush1.bf16.msra.mxu0 %v7536
      %7557 = vmatprep.subr.bf16.mxu0 0
      %7558 = vmatpush1.bf16.msra.mxu0 %v7537
      %7559 = vmatprep.subr.bf16.mxu0 0
      %7560 = vmatpush1.bf16.msra.mxu0 %v7538
      %7561 = vmatprep.subr.bf16.mxu0 0
      %7562 = vmatpush1.bf16.msra.mxu0 %v7539
      %7563 = vmatprep.subr.bf16.mxu0 0
      %7564 = vmatpush1.bf16.msra.mxu0 %v7540
      %7565 = vmatprep.subr.bf16.mxu0 0
      %7566 = vmatpush1.bf16.msra.mxu0 0
      %7567 = vmatprep.subr.bf16.mxu0 0
      %7568 = vmatpush1.bf16.msra.mxu0 0
      %7569 = vmatprep.subr.bf16.mxu0 0
      %7570 = vmatpush1.bf16.msra.mxu0 0
      %7571 = vmatprep.subr.bf16.mxu0 0
      %7572 = vmatpush1.bf16.msra.mxu0 0
      %7573 = vmatprep.subr.bf16.mxu0 0
      %7574 = vmatpush1.bf16.msra.mxu0 0
      %7575 = vmatprep.subr.bf16.mxu0 0
      %7576 = vmatpush1.bf16.msra.mxu0 0
      %7577 = vmatprep.subr.bf16.mxu0 0
      %7578 = vmatpush1.bf16.msra.mxu0 0
      %7579 = vmatprep.subr.bf16.mxu0 0
      %7580 = vmatpush1.bf16.msra.mxu0 0
      %7581 = vmatprep.mubr.bf16.mxu0 0
      %7582 = vmatmul.mubr.bf16.gmra.mrb[0].mxu0 %v7493
      %v7583 = vpop.f32.mrb[0].mxu0
      %v7584 = vadd.f32 %v7455, %v7583
      %v7585 = vpop.f32.mrb[0].mxu0
      %v7586 = vpop.f32.mrb[0].mxu0
      %v7587 = vadd.f32 %v7458, %v7586
      %v7588 = vpop.f32.mrb[0].mxu0
      %7589 = vmatprep.mubr.bf16.mxu0 0
      %7590 = vmatmul.mubr.bf16.gmra.mrb[0].mxu0 %v7494
      %v7591 = vpop.f32.mrb[0].mxu0
      %v7592 = vadd.f32 %v7463, %v7591
      %v7593 = vpop.f32.mrb[0].mxu0
      %v7594 = vpop.f32.mrb[0].mxu0
      %v7595 = vadd.f32 %v7466, %v7594
      %v7596 = vpop.f32.mrb[0].mxu0
      %7597 = vmatprep.mubr.bf16.mxu0 0
      %7598 = vmatmul.mubr.bf16.gmra.mrb[0].mxu0 %v7495
      %v7599 = vpop.f32.mrb[0].mxu0
      %v7600 = vadd.f32 %v7471, %v7599
      %v7601 = vpop.f32.mrb[0].mxu0
      %v7602 = vpop.f32.mrb[0].mxu0
      %v7603 = vadd.f32 %v7474, %v7602
      %v7604 = vpop.f32.mrb[0].mxu0
      %7605 = vmatprep.mubr.bf16.mxu0 0
      %7606 = vmatmul.mubr.bf16.gmra.mrb[0].mxu0 %v7496
      %v7607 = vpop.f32.mrb[0].mxu0
      %v7608 = vadd.f32 %v7479, %v7607
      %v7609 = vpop.f32.mrb[0].mxu0
      %v7610 = vpop.f32.mrb[0].mxu0
      %v7611 = vadd.f32 %v7482, %v7610
      %v7612 = vpop.f32.mrb[0].mxu0
      %7613 = vdwg.mxu0
      %v7614 = vld [vmem:[#allocation3 + $0x4] sm:$0xf]
      %v7615 = vld [vmem:[#allocation3 + $0x8] sm:$0x1]
      %v7616 = vld [vmem:[#allocation3 + $0x10] sm:$0xf]
      %v7617 = vld [vmem:[#allocation3 + $0x14] sm:$0x1]
      %v7618 = vld [vmem:[#allocation3 + $0x1c] sm:$0xf]
      %v7619 = vld [vmem:[#allocation3 + $0x20] sm:$0x1]
      %v7620 = vld [vmem:[#allocation3 + $0x28] sm:$0xf]
      %v7621 = vld [vmem:[#allocation3 + $0x2c] sm:$0x1]
      %v7622 = vld [vmem:[#allocation3 + $0x34] sm:$0xf]
      %v7623 = vld [vmem:[#allocation3 + $0x38] sm:$0x1]
      %v7624 = vld [vmem:[#allocation3 + $0x40] sm:$0xf]
      %v7625 = vld [vmem:[#allocation3 + $0x44] sm:$0x1]
      %v7626 = vld [vmem:[#allocation3 + $0x4c] sm:$0xf]
      %v7627 = vld [vmem:[#allocation3 + $0x50] sm:$0x1]
      %v7628 = vld [vmem:[#allocation3 + $0x58] sm:$0xf]
      %v7629 = vld [vmem:[#allocation3 + $0x5c] sm:$0x1]
      %v7631 = vshrl.u32 %v7614, 16
      %v7633 = vrot.slane %v7631, 4
      %v7634 = vshll.u32 %v7614, 16
      %v7636 = vrot.slane %v7634, 5
      %v7637 = vor.u32 %v7633, %v7636
      %v7638 = vrot.slane %v7637, 4
      %v7640 = vshll.u32 %v7615, 16
      %v7642 = vrot.slane %v7640, 5
      %v7643 = vsel %vm951, %v7638, %v7642
      %v7645 = vshrl.u32 %v7616, 16
      %v7647 = vrot.slane %v7645, 4
      %v7648 = vshll.u32 %v7616, 16
      %v7650 = vrot.slane %v7648, 5
      %v7651 = vor.u32 %v7647, %v7650
      %v7652 = vrot.slane %v7651, 4
      %v7654 = vshll.u32 %v7617, 16
      %v7656 = vrot.slane %v7654, 5
      %v7657 = vsel %vm951, %v7652, %v7656
      %v7659 = vshrl.u32 %v7618, 16
      %v7661 = vrot.slane %v7659, 4
      %v7662 = vshll.u32 %v7618, 16
      %v7664 = vrot.slane %v7662, 5
      %v7665 = vor.u32 %v7661, %v7664
      %v7666 = vrot.slane %v7665, 4
      %v7668 = vshll.u32 %v7619, 16
      %v7670 = vrot.slane %v7668, 5
      %v7671 = vsel %vm951, %v7666, %v7670
      %v7673 = vshrl.u32 %v7620, 16
      %v7675 = vrot.slane %v7673, 4
      %v7676 = vshll.u32 %v7620, 16
      %v7678 = vrot.slane %v7676, 5
      %v7679 = vor.u32 %v7675, %v7678
      %v7680 = vrot.slane %v7679, 4
      %v7682 = vshll.u32 %v7621, 16
      %v7684 = vrot.slane %v7682, 5
      %v7685 = vsel %vm951, %v7680, %v7684
      %v7687 = vshrl.u32 %v7622, 16
      %v7689 = vrot.slane %v7687, 4
      %v7690 = vshll.u32 %v7622, 16
      %v7692 = vrot.slane %v7690, 5
      %v7693 = vor.u32 %v7689, %v7692
      %v7694 = vrot.slane %v7693, 4
      %v7696 = vshll.u32 %v7623, 16
      %v7698 = vrot.slane %v7696, 5
      %v7699 = vsel %vm951, %v7694, %v7698
      %v7701 = vshrl.u32 %v7624, 16
      %v7703 = vrot.slane %v7701, 4
      %v7704 = vshll.u32 %v7624, 16
      %v7706 = vrot.slane %v7704, 5
      %v7707 = vor.u32 %v7703, %v7706
      %v7708 = vrot.slane %v7707, 4
      %v7710 = vshll.u32 %v7625, 16
      %v7712 = vrot.slane %v7710, 5
      %v7713 = vsel %vm951, %v7708, %v7712
      %v7715 = vshrl.u32 %v7626, 16
      %v7717 = vrot.slane %v7715, 4
      %v7718 = vshll.u32 %v7626, 16
      %v7720 = vrot.slane %v7718, 5
      %v7721 = vor.u32 %v7717, %v7720
      %v7722 = vrot.slane %v7721, 4
      %v7724 = vshll.u32 %v7627, 16
      %v7726 = vrot.slane %v7724, 5
      %v7727 = vsel %vm951, %v7722, %v7726
      %v7729 = vshrl.u32 %v7628, 16
      %v7731 = vrot.slane %v7729, 4
      %v7732 = vshll.u32 %v7628, 16
      %v7734 = vrot.slane %v7732, 5
      %v7735 = vor.u32 %v7731, %v7734
      %v7736 = vrot.slane %v7735, 4
      %v7738 = vshll.u32 %v7629, 16
      %v7740 = vrot.slane %v7738, 5
      %v7741 = vsel %vm951, %v7736, %v7740
      %s7742 = scalar_lea.vmem %s9, 128
      %v7743 = vld [vmem:[%s7742] sm:$0xf]
      %v7744 = vld [vmem:[%s7742 + $0x4] sm:$0xf]
      %v7745 = vld [vmem:[%s7742 + $0x8] sm:$0xf]
      %v7746 = vld [vmem:[%s7742 + $0xc] sm:$0xf]
      %v7747 = vld [vmem:[%s7742 + $0x10] sm:$0xf]
      %v7748 = vld [vmem:[%s7742 + $0x14] sm:$0xf]
      %v7749 = vld [vmem:[%s7742 + $0x18] sm:$0xf]
      %v7750 = vld [vmem:[%s7742 + $0x1c] sm:$0xf]
      %v7751 = vld [vmem:[%s7742 + $0x20] sm:$0xf]
      %v7752 = vld [vmem:[%s7742 + $0x24] sm:$0xf]
      %v7753 = vld [vmem:[%s7742 + $0x28] sm:$0xf]
      %v7754 = vld [vmem:[%s7742 + $0x2c] sm:$0xf]
      %v7755 = vld [vmem:[%s7742 + $0x30] sm:$0xf]
      %v7756 = vld [vmem:[%s7742 + $0x34] sm:$0xf]
      %v7757 = vld [vmem:[%s7742 + $0x38] sm:$0xf]
      %v7758 = vld [vmem:[%s7742 + $0x3c] sm:$0xf]
      %v7759 = vunpack.c.l.b16 %v7643
      %v7760 = vunpack.c.l.b16 %v7657
      %v7761 = vunpack.c.l.b16 %v7671
      %v7762 = vunpack.c.l.b16 %v7685
      %v7763 = vunpack.c.l.b16 %v7699
      %v7764 = vunpack.c.l.b16 %v7713
      %v7765 = vunpack.c.l.b16 %v7727
      %v7766 = vunpack.c.l.b16 %v7741
      %v7767 = vpack.c.b16 %v7760, %v7759
      %v7768 = vpack.c.b16 %v7762, %v7761
      %v7769 = vpack.c.b16 %v7764, %v7763
      %v7770 = vpack.c.b16 %v7766, %v7765
      %v7791 = vunpack.c.l.b16 %v7743
      %v7792 = vunpack.c.l.b16 %v7744
      %v7793 = vunpack.c.l.b16 %v7745
      %v7794 = vunpack.c.l.b16 %v7746
      %v7795 = vunpack.c.l.b16 %v7747
      %v7796 = vunpack.c.l.b16 %v7748
      %v7797 = vunpack.c.l.b16 %v7749
      %v7798 = vunpack.c.l.b16 %v7750
      %v7799 = vunpack.c.l.b16 %v7751
      %v7800 = vunpack.c.l.b16 %v7752
      %v7801 = vunpack.c.l.b16 %v7753
      %v7802 = vunpack.c.l.b16 %v7754
      %v7803 = vunpack.c.l.b16 %v7755
      %v7804 = vunpack.c.l.b16 %v7756
      %v7805 = vunpack.c.l.b16 %v7757
      %v7806 = vunpack.c.l.b16 %v7758
      %v7807 = vpack.c.b16 %v7792, %v7791
      %v7808 = vpack.c.b16 %v7794, %v7793
      %v7809 = vpack.c.b16 %v7796, %v7795
      %v7810 = vpack.c.b16 %v7798, %v7797
      %v7811 = vpack.c.b16 %v7800, %v7799
      %v7812 = vpack.c.b16 %v7802, %v7801
      %v7813 = vpack.c.b16 %v7804, %v7803
      %v7814 = vpack.c.b16 %v7806, %v7805
      %7823 = vmatprep.subr.bf16.mxu0 0
      %7824 = vmatpush1.bf16.msra.mxu0 %v7807
      %7825 = vmatprep.subr.bf16.mxu0 0
      %7826 = vmatpush1.bf16.msra.mxu0 %v7808
      %7827 = vmatprep.subr.bf16.mxu0 0
      %7828 = vmatpush1.bf16.msra.mxu0 %v7809
      %7829 = vmatprep.subr.bf16.mxu0 0
      %7830 = vmatpush1.bf16.msra.mxu0 %v7810
      %7831 = vmatprep.subr.bf16.mxu0 0
      %7832 = vmatpush1.bf16.msra.mxu0 %v7811
      %7833 = vmatprep.subr.bf16.mxu0 0
      %7834 = vmatpush1.bf16.msra.mxu0 %v7812
      %7835 = vmatprep.subr.bf16.mxu0 0
      %7836 = vmatpush1.bf16.msra.mxu0 %v7813
      %7837 = vmatprep.subr.bf16.mxu0 0
      %7838 = vmatpush1.bf16.msra.mxu0 %v7814
      %7839 = vmatprep.subr.bf16.mxu0 0
      %7840 = vmatpush1.bf16.msra.mxu0 0
      %7841 = vmatprep.subr.bf16.mxu0 0
      %7842 = vmatpush1.bf16.msra.mxu0 0
      %7843 = vmatprep.subr.bf16.mxu0 0
      %7844 = vmatpush1.bf16.msra.mxu0 0
      %7845 = vmatprep.subr.bf16.mxu0 0
      %7846 = vmatpush1.bf16.msra.mxu0 0
      %7847 = vmatprep.subr.bf16.mxu0 0
      %7848 = vmatpush1.bf16.msra.mxu0 0
      %7849 = vmatprep.subr.bf16.mxu0 0
      %7850 = vmatpush1.bf16.msra.mxu0 0
      %7851 = vmatprep.subr.bf16.mxu0 0
      %7852 = vmatpush1.bf16.msra.mxu0 0
      %7853 = vmatprep.subr.bf16.mxu0 0
      %7854 = vmatpush1.bf16.msra.mxu0 0
      %7855 = vmatprep.mubr.bf16.mxu0 0
      %7856 = vmatmul.mubr.bf16.gmra.mrb[0].mxu0 %v7767
      %v7857 = vpop.f32.mrb[0].mxu0
      %v7858 = vadd.f32 0.0, %v7857
      %v7859 = vpop.f32.mrb[0].mxu0
      %v7860 = vpop.f32.mrb[0].mxu0
      %v7861 = vadd.f32 0.0, %v7860
      %v7862 = vpop.f32.mrb[0].mxu0
      %7863 = vmatprep.mubr.bf16.mxu0 0
      %7864 = vmatmul.mubr.bf16.gmra.mrb[0].mxu0 %v7768
      %v7865 = vpop.f32.mrb[0].mxu0
      %v7866 = vadd.f32 0.0, %v7865
      %v7867 = vpop.f32.mrb[0].mxu0
      %v7868 = vpop.f32.mrb[0].mxu0
      %v7869 = vadd.f32 0.0, %v7868
      %v7870 = vpop.f32.mrb[0].mxu0
      %7871 = vmatprep.mubr.bf16.mxu0 0
      %7872 = vmatmul.mubr.bf16.gmra.mrb[0].mxu0 %v7769
      %v7873 = vpop.f32.mrb[0].mxu0
      %v7874 = vadd.f32 0.0, %v7873
      %v7875 = vpop.f32.mrb[0].mxu0
      %v7876 = vpop.f32.mrb[0].mxu0
      %v7877 = vadd.f32 0.0, %v7876
      %v7878 = vpop.f32.mrb[0].mxu0
      %7879 = vmatprep.mubr.bf16.mxu0 0
      %7880 = vmatmul.mubr.bf16.gmra.mrb[0].mxu0 %v7770
      %v7881 = vpop.f32.mrb[0].mxu0
      %v7882 = vadd.f32 0.0, %v7881
      %v7883 = vpop.f32.mrb[0].mxu0
      %v7884 = vpop.f32.mrb[0].mxu0
      %v7885 = vadd.f32 0.0, %v7884
      %v7886 = vpop.f32.mrb[0].mxu0
      %7887 = vdwg.mxu0
      %v7888 = vadd.f32 %v7584, %v7858
      %v7889 = vadd.f32 %v7587, %v7861
      %v7890 = vadd.f32 %v7592, %v7866
      %v7891 = vadd.f32 %v7595, %v7869
      %v7892 = vadd.f32 %v7600, %v7874
      %v7893 = vadd.f32 %v7603, %v7877
      %v7894 = vadd.f32 %v7608, %v7882
      %v7895 = vadd.f32 %v7611, %v7885
      %v7896 = vld [vmem:[%s478] sm:$0x8]
      %v7897 = vld [vmem:[%s478 + $0x4] sm:$0xf]
      %v7898 = vld [vmem:[%s478 + $0xc] sm:$0x8]
      %v7899 = vld [vmem:[%s478 + $0x10] sm:$0xf]
      %v7900 = vld [vmem:[%s478 + $0x18] sm:$0x8]
      %v7901 = vld [vmem:[%s478 + $0x1c] sm:$0xf]
      %v7902 = vld [vmem:[%s478 + $0x24] sm:$0x8]
      %v7903 = vld [vmem:[%s478 + $0x28] sm:$0xf]
      %v7904 = vld [vmem:[%s478 + $0x30] sm:$0x8]
      %v7905 = vld [vmem:[%s478 + $0x34] sm:$0xf]
      %v7906 = vld [vmem:[%s478 + $0x3c] sm:$0x8]
      %v7907 = vld [vmem:[%s478 + $0x40] sm:$0xf]
      %v7908 = vld [vmem:[%s478 + $0x48] sm:$0x8]
      %v7909 = vld [vmem:[%s478 + $0x4c] sm:$0xf]
      %v7910 = vld [vmem:[%s478 + $0x54] sm:$0x8]
      %v7911 = vld [vmem:[%s478 + $0x58] sm:$0xf]
      %v7913 = vshrl.u32 %v7896, 16
      %v7915 = vrot.slane %v7913, 7
      %v7916 = vrot.slane %v7915, 4
      %v7918 = vshrl.u32 %v7897, 16
      %v7920 = vrot.slane %v7918, 7
      %v7921 = vshll.u32 %v7897, 16
      %v7923 = vor.u32 %v7920, %v7921
      %v7924 = vsel %vm529, %v7916, %v7923
      %v7926 = vshrl.u32 %v7898, 16
      %v7928 = vrot.slane %v7926, 7
      %v7929 = vrot.slane %v7928, 4
      %v7931 = vshrl.u32 %v7899, 16
      %v7933 = vrot.slane %v7931, 7
      %v7934 = vshll.u32 %v7899, 16
      %v7936 = vor.u32 %v7933, %v7934
      %v7937 = vsel %vm529, %v7929, %v7936
      %v7939 = vshrl.u32 %v7900, 16
      %v7941 = vrot.slane %v7939, 7
      %v7942 = vrot.slane %v7941, 4
      %v7944 = vshrl.u32 %v7901, 16
      %v7946 = vrot.slane %v7944, 7
      %v7947 = vshll.u32 %v7901, 16
      %v7949 = vor.u32 %v7946, %v7947
      %v7950 = vsel %vm529, %v7942, %v7949
      %v7952 = vshrl.u32 %v7902, 16
      %v7954 = vrot.slane %v7952, 7
      %v7955 = vrot.slane %v7954, 4
      %v7957 = vshrl.u32 %v7903, 16
      %v7959 = vrot.slane %v7957, 7
      %v7960 = vshll.u32 %v7903, 16
      %v7962 = vor.u32 %v7959, %v7960
      %v7963 = vsel %vm529, %v7955, %v7962
      %v7965 = vshrl.u32 %v7904, 16
      %v7967 = vrot.slane %v7965, 7
      %v7968 = vrot.slane %v7967, 4
      %v7970 = vshrl.u32 %v7905, 16
      %v7972 = vrot.slane %v7970, 7
      %v7973 = vshll.u32 %v7905, 16
      %v7975 = vor.u32 %v7972, %v7973
      %v7976 = vsel %vm529, %v7968, %v7975
      %v7978 = vshrl.u32 %v7906, 16
      %v7980 = vrot.slane %v7978, 7
      %v7981 = vrot.slane %v7980, 4
      %v7983 = vshrl.u32 %v7907, 16
      %v7985 = vrot.slane %v7983, 7
      %v7986 = vshll.u32 %v7907, 16
      %v7988 = vor.u32 %v7985, %v7986
      %v7989 = vsel %vm529, %v7981, %v7988
      %v7991 = vshrl.u32 %v7908, 16
      %v7993 = vrot.slane %v7991, 7
      %v7994 = vrot.slane %v7993, 4
      %v7996 = vshrl.u32 %v7909, 16
      %v7998 = vrot.slane %v7996, 7
      %v7999 = vshll.u32 %v7909, 16
      %v8001 = vor.u32 %v7998, %v7999
      %v8002 = vsel %vm529, %v7994, %v8001
      %v8004 = vshrl.u32 %v7910, 16
      %v8006 = vrot.slane %v8004, 7
      %v8007 = vrot.slane %v8006, 4
      %v8009 = vshrl.u32 %v7911, 16
      %v8011 = vrot.slane %v8009, 7
      %v8012 = vshll.u32 %v7911, 16
      %v8014 = vor.u32 %v8011, %v8012
      %v8015 = vsel %vm529, %v8007, %v8014
      %s8016 = scalar_lea.vmem %s9, 192
      %v8017 = vld [vmem:[%s8016] sm:$0xf]
      %v8018 = vld [vmem:[%s8016 + $0x4] sm:$0xf]
      %v8019 = vld [vmem:[%s8016 + $0x8] sm:$0xf]
      %v8020 = vld [vmem:[%s8016 + $0xc] sm:$0xf]
      %v8021 = vld [vmem:[%s8016 + $0x10] sm:$0xf]
      %v8022 = vld [vmem:[%s8016 + $0x14] sm:$0xf]
      %v8023 = vld [vmem:[%s8016 + $0x18] sm:$0xf]
      %v8024 = vld [vmem:[%s8016 + $0x1c] sm:$0xf]
      %v8025 = vld [vmem:[%s8016 + $0x20] sm:$0xf]
      %v8026 = vld [vmem:[%s8016 + $0x24] sm:$0xf]
      %v8027 = vld [vmem:[%s8016 + $0x28] sm:$0xf]
      %v8028 = vld [vmem:[%s8016 + $0x2c] sm:$0xf]
      %v8029 = vld [vmem:[%s8016 + $0x30] sm:$0xf]
      %v8030 = vld [vmem:[%s8016 + $0x34] sm:$0xf]
      %v8031 = vld [vmem:[%s8016 + $0x38] sm:$0xf]
      %v8032 = vld [vmem:[%s8016 + $0x3c] sm:$0xf]
      %v8033 = vunpack.c.l.b16 %v7924
      %v8034 = vunpack.c.l.b16 %v7937
      %v8035 = vunpack.c.l.b16 %v7950
      %v8036 = vunpack.c.l.b16 %v7963
      %v8037 = vunpack.c.l.b16 %v7976
      %v8038 = vunpack.c.l.b16 %v7989
      %v8039 = vunpack.c.l.b16 %v8002
      %v8040 = vunpack.c.l.b16 %v8015
      %v8041 = vpack.c.b16 %v8034, %v8033
      %v8042 = vpack.c.b16 %v8036, %v8035
      %v8043 = vpack.c.b16 %v8038, %v8037
      %v8044 = vpack.c.b16 %v8040, %v8039
      %v8065 = vunpack.c.l.b16 %v8017
      %v8066 = vunpack.c.l.b16 %v8018
      %v8067 = vunpack.c.l.b16 %v8019
      %v8068 = vunpack.c.l.b16 %v8020
      %v8069 = vunpack.c.l.b16 %v8021
      %v8070 = vunpack.c.l.b16 %v8022
      %v8071 = vunpack.c.l.b16 %v8023
      %v8072 = vunpack.c.l.b16 %v8024
      %v8073 = vunpack.c.l.b16 %v8025
      %v8074 = vunpack.c.l.b16 %v8026
      %v8075 = vunpack.c.l.b16 %v8027
      %v8076 = vunpack.c.l.b16 %v8028
      %v8077 = vunpack.c.l.b16 %v8029
      %v8078 = vunpack.c.l.b16 %v8030
      %v8079 = vunpack.c.l.b16 %v8031
      %v8080 = vunpack.c.l.b16 %v8032
      %v8081 = vpack.c.b16 %v8066, %v8065
      %v8082 = vpack.c.b16 %v8068, %v8067
      %v8083 = vpack.c.b16 %v8070, %v8069
      %v8084 = vpack.c.b16 %v8072, %v8071
      %v8085 = vpack.c.b16 %v8074, %v8073
      %v8086 = vpack.c.b16 %v8076, %v8075
      %v8087 = vpack.c.b16 %v8078, %v8077
      %v8088 = vpack.c.b16 %v8080, %v8079
      %8097 = vmatprep.subr.bf16.mxu0 0
      %8098 = vmatpush1.bf16.msra.mxu0 %v8081
      %8099 = vmatprep.subr.bf16.mxu0 0
      %8100 = vmatpush1.bf16.msra.mxu0 %v8082
      %8101 = vmatprep.subr.bf16.mxu0 0
      %8102 = vmatpush1.bf16.msra.mxu0 %v8083
      %8103 = vmatprep.subr.bf16.mxu0 0
      %8104 = vmatpush1.bf16.msra.mxu0 %v8084
      %8105 = vmatprep.subr.bf16.mxu0 0
      %8106 = vmatpush1.bf16.msra.mxu0 %v8085
      %8107 = vmatprep.subr.bf16.mxu0 0
      %8108 = vmatpush1.bf16.msra.mxu0 %v8086
      %8109 = vmatprep.subr.bf16.mxu0 0
      %8110 = vmatpush1.bf16.msra.mxu0 %v8087
      %8111 = vmatprep.subr.bf16.mxu0 0
      %8112 = vmatpush1.bf16.msra.mxu0 %v8088
      %8113 = vmatprep.subr.bf16.mxu0 0
      %8114 = vmatpush1.bf16.msra.mxu0 0
      %8115 = vmatprep.subr.bf16.mxu0 0
      %8116 = vmatpush1.bf16.msra.mxu0 0
      %8117 = vmatprep.subr.bf16.mxu0 0
      %8118 = vmatpush1.bf16.msra.mxu0 0
      %8119 = vmatprep.subr.bf16.mxu0 0
      %8120 = vmatpush1.bf16.msra.mxu0 0
      %8121 = vmatprep.subr.bf16.mxu0 0
      %8122 = vmatpush1.bf16.msra.mxu0 0
      %8123 = vmatprep.subr.bf16.mxu0 0
      %8124 = vmatpush1.bf16.msra.mxu0 0
      %8125 = vmatprep.subr.bf16.mxu0 0
      %8126 = vmatpush1.bf16.msra.mxu0 0
      %8127 = vmatprep.subr.bf16.mxu0 0
      %8128 = vmatpush1.bf16.msra.mxu0 0
      %8129 = vmatprep.mubr.bf16.mxu0 0
      %8130 = vmatmul.mubr.bf16.gmra.mrb[0].mxu0 %v8041
      %v8131 = vpop.f32.mrb[0].mxu0
      %v8132 = vadd.f32 0.0, %v8131
      %v8133 = vpop.f32.mrb[0].mxu0
      %v8134 = vpop.f32.mrb[0].mxu0
      %v8135 = vadd.f32 0.0, %v8134
      %v8136 = vpop.f32.mrb[0].mxu0
      %8137 = vmatprep.mubr.bf16.mxu0 0
      %8138 = vmatmul.mubr.bf16.gmra.mrb[0].mxu0 %v8042
      %v8139 = vpop.f32.mrb[0].mxu0
      %v8140 = vadd.f32 0.0, %v8139
      %v8141 = vpop.f32.mrb[0].mxu0
      %v8142 = vpop.f32.mrb[0].mxu0
      %v8143 = vadd.f32 0.0, %v8142
      %v8144 = vpop.f32.mrb[0].mxu0
      %8145 = vmatprep.mubr.bf16.mxu0 0
      %8146 = vmatmul.mubr.bf16.gmra.mrb[0].mxu0 %v8043
      %v8147 = vpop.f32.mrb[0].mxu0
      %v8148 = vadd.f32 0.0, %v8147
      %v8149 = vpop.f32.mrb[0].mxu0
      %v8150 = vpop.f32.mrb[0].mxu0
      %v8151 = vadd.f32 0.0, %v8150
      %v8152 = vpop.f32.mrb[0].mxu0
      %8153 = vmatprep.mubr.bf16.mxu0 0
      %8154 = vmatmul.mubr.bf16.gmra.mrb[0].mxu0 %v8044
      %v8155 = vpop.f32.mrb[0].mxu0
      %v8156 = vadd.f32 0.0, %v8155
      %v8157 = vpop.f32.mrb[0].mxu0
      %v8158 = vpop.f32.mrb[0].mxu0
      %v8159 = vadd.f32 0.0, %v8158
      %v8160 = vpop.f32.mrb[0].mxu0
      %8161 = vdwg.mxu0
      %v8162 = vadd.f32 %v7888, %v8132
      %v8163 = vadd.f32 %v7889, %v8135
      %v8164 = vadd.f32 %v7890, %v8140
      %v8165 = vadd.f32 %v7891, %v8143
      %v8166 = vadd.f32 %v7892, %v8148
      %v8167 = vadd.f32 %v7893, %v8151
      %v8168 = vadd.f32 %v7894, %v8156
      %v8169 = vadd.f32 %v7895, %v8159
      %s8170 = scalar_lea.vmem %s9, 256
      %v8171 = vld [vmem:[%s8170] sm:$0xf]
      %v8172 = vld [vmem:[%s8170 + $0x4] sm:$0xf]
      %v8173 = vld [vmem:[%s8170 + $0x8] sm:$0xf]
      %v8174 = vld [vmem:[%s8170 + $0xc] sm:$0xf]
      %v8175 = vld [vmem:[%s8170 + $0x10] sm:$0xf]
      %v8176 = vld [vmem:[%s8170 + $0x14] sm:$0xf]
      %v8177 = vld [vmem:[%s8170 + $0x18] sm:$0xf]
      %v8178 = vld [vmem:[%s8170 + $0x1c] sm:$0xf]
      %v8179 = vld [vmem:[%s8170 + $0x20] sm:$0xf]
      %v8180 = vld [vmem:[%s8170 + $0x24] sm:$0xf]
      %v8181 = vld [vmem:[%s8170 + $0x28] sm:$0xf]
      %v8182 = vld [vmem:[%s8170 + $0x2c] sm:$0xf]
      %v8183 = vld [vmem:[%s8170 + $0x30] sm:$0xf]
      %v8184 = vld [vmem:[%s8170 + $0x34] sm:$0xf]
      %v8185 = vld [vmem:[%s8170 + $0x38] sm:$0xf]
      %v8186 = vld [vmem:[%s8170 + $0x3c] sm:$0xf]
      %v8195 = vunpack.c.l.b16 %v7897
      %v8196 = vunpack.c.l.b16 %v7899
      %v8197 = vunpack.c.l.b16 %v7901
      %v8198 = vunpack.c.l.b16 %v7903
      %v8199 = vunpack.c.l.b16 %v7905
      %v8200 = vunpack.c.l.b16 %v7907
      %v8201 = vunpack.c.l.b16 %v7909
      %v8202 = vunpack.c.l.b16 %v7911
      %v8203 = vpack.c.b16 %v8196, %v8195
      %v8204 = vpack.c.b16 %v8198, %v8197
      %v8205 = vpack.c.b16 %v8200, %v8199
      %v8206 = vpack.c.b16 %v8202, %v8201
      %v8227 = vunpack.c.l.b16 %v8171
      %v8228 = vunpack.c.l.b16 %v8172
      %v8229 = vunpack.c.l.b16 %v8173
      %v8230 = vunpack.c.l.b16 %v8174
      %v8231 = vunpack.c.l.b16 %v8175
      %v8232 = vunpack.c.l.b16 %v8176
      %v8233 = vunpack.c.l.b16 %v8177
      %v8234 = vunpack.c.l.b16 %v8178
      %v8235 = vunpack.c.l.b16 %v8179
      %v8236 = vunpack.c.l.b16 %v8180
      %v8237 = vunpack.c.l.b16 %v8181
      %v8238 = vunpack.c.l.b16 %v8182
      %v8239 = vunpack.c.l.b16 %v8183
      %v8240 = vunpack.c.l.b16 %v8184
      %v8241 = vunpack.c.l.b16 %v8185
      %v8242 = vunpack.c.l.b16 %v8186
      %v8243 = vpack.c.b16 %v8228, %v8227
      %v8244 = vpack.c.b16 %v8230, %v8229
      %v8245 = vpack.c.b16 %v8232, %v8231
      %v8246 = vpack.c.b16 %v8234, %v8233
      %v8247 = vpack.c.b16 %v8236, %v8235
      %v8248 = vpack.c.b16 %v8238, %v8237
      %v8249 = vpack.c.b16 %v8240, %v8239
      %v8250 = vpack.c.b16 %v8242, %v8241
      %8259 = vmatprep.subr.bf16.mxu0 0
      %8260 = vmatpush1.bf16.msra.mxu0 %v8243
      %8261 = vmatprep.subr.bf16.mxu0 0
      %8262 = vmatpush1.bf16.msra.mxu0 %v8244
      %8263 = vmatprep.subr.bf16.mxu0 0
      %8264 = vmatpush1.bf16.msra.mxu0 %v8245
      %8265 = vmatprep.subr.bf16.mxu0 0
      %8266 = vmatpush1.bf16.msra.mxu0 %v8246
      %8267 = vmatprep.subr.bf16.mxu0 0
      %8268 = vmatpush1.bf16.msra.mxu0 %v8247
      %8269 = vmatprep.subr.bf16.mxu0 0
      %8270 = vmatpush1.bf16.msra.mxu0 %v8248
      %8271 = vmatprep.subr.bf16.mxu0 0
      %8272 = vmatpush1.bf16.msra.mxu0 %v8249
      %8273 = vmatprep.subr.bf16.mxu0 0
      %8274 = vmatpush1.bf16.msra.mxu0 %v8250
      %8275 = vmatprep.subr.bf16.mxu0 0
      %8276 = vmatpush1.bf16.msra.mxu0 0
      %8277 = vmatprep.subr.bf16.mxu0 0
      %8278 = vmatpush1.bf16.msra.mxu0 0
      %8279 = vmatprep.subr.bf16.mxu0 0
      %8280 = vmatpush1.bf16.msra.mxu0 0
      %8281 = vmatprep.subr.bf16.mxu0 0
      %8282 = vmatpush1.bf16.msra.mxu0 0
      %8283 = vmatprep.subr.bf16.mxu0 0
      %8284 = vmatpush1.bf16.msra.mxu0 0
      %8285 = vmatprep.subr.bf16.mxu0 0
      %8286 = vmatpush1.bf16.msra.mxu0 0
      %8287 = vmatprep.subr.bf16.mxu0 0
      %8288 = vmatpush1.bf16.msra.mxu0 0
      %8289 = vmatprep.subr.bf16.mxu0 0
      %8290 = vmatpush1.bf16.msra.mxu0 0
      %8291 = vmatprep.mubr.bf16.mxu0 0
      %8292 = vmatmul.mubr.bf16.gmra.mrb[0].mxu0 %v8203
      %v8293 = vpop.f32.mrb[0].mxu0
      %v8294 = vadd.f32 0.0, %v8293
      %v8295 = vpop.f32.mrb[0].mxu0
      %v8296 = vpop.f32.mrb[0].mxu0
      %v8297 = vadd.f32 0.0, %v8296
      %v8298 = vpop.f32.mrb[0].mxu0
      %8299 = vmatprep.mubr.bf16.mxu0 0
      %8300 = vmatmul.mubr.bf16.gmra.mrb[0].mxu0 %v8204
      %v8301 = vpop.f32.mrb[0].mxu0
      %v8302 = vadd.f32 0.0, %v8301
      %v8303 = vpop.f32.mrb[0].mxu0
      %v8304 = vpop.f32.mrb[0].mxu0
      %v8305 = vadd.f32 0.0, %v8304
      %v8306 = vpop.f32.mrb[0].mxu0
      %8307 = vmatprep.mubr.bf16.mxu0 0
      %8308 = vmatmul.mubr.bf16.gmra.mrb[0].mxu0 %v8205
      %v8309 = vpop.f32.mrb[0].mxu0
      %v8310 = vadd.f32 0.0, %v8309
      %v8311 = vpop.f32.mrb[0].mxu0
      %v8312 = vpop.f32.mrb[0].mxu0
      %v8313 = vadd.f32 0.0, %v8312
      %v8314 = vpop.f32.mrb[0].mxu0
      %8315 = vmatprep.mubr.bf16.mxu0 0
      %8316 = vmatmul.mubr.bf16.gmra.mrb[0].mxu0 %v8206
      %v8317 = vpop.f32.mrb[0].mxu0
      %v8318 = vadd.f32 0.0, %v8317
      %v8319 = vpop.f32.mrb[0].mxu0
      %v8320 = vpop.f32.mrb[0].mxu0
      %v8321 = vadd.f32 0.0, %v8320
      %v8322 = vpop.f32.mrb[0].mxu0
      %8323 = vdwg.mxu0
      %v8324 = vadd.f32 %v8162, %v8294
      %v8325 = vadd.f32 %v8163, %v8297
      %v8326 = vadd.f32 %v8164, %v8302
      %v8327 = vadd.f32 %v8165, %v8305
      %v8328 = vadd.f32 %v8166, %v8310
      %v8329 = vadd.f32 %v8167, %v8313
      %v8330 = vadd.f32 %v8168, %v8318
      %v8331 = vadd.f32 %v8169, %v8321
      %v8332 = vld [vmem:[%s478 + $0x4] sm:$0xf]
      %v8333 = vld [vmem:[%s478 + $0x8] sm:$0x1]
      %v8334 = vld [vmem:[%s478 + $0x10] sm:$0xf]
      %v8335 = vld [vmem:[%s478 + $0x14] sm:$0x1]
      %v8336 = vld [vmem:[%s478 + $0x1c] sm:$0xf]
      %v8337 = vld [vmem:[%s478 + $0x20] sm:$0x1]
      %v8338 = vld [vmem:[%s478 + $0x28] sm:$0xf]
      %v8339 = vld [vmem:[%s478 + $0x2c] sm:$0x1]
      %v8340 = vld [vmem:[%s478 + $0x34] sm:$0xf]
      %v8341 = vld [vmem:[%s478 + $0x38] sm:$0x1]
      %v8342 = vld [vmem:[%s478 + $0x40] sm:$0xf]
      %v8343 = vld [vmem:[%s478 + $0x44] sm:$0x1]
      %v8344 = vld [vmem:[%s478 + $0x4c] sm:$0xf]
      %v8345 = vld [vmem:[%s478 + $0x50] sm:$0x1]
      %v8346 = vld [vmem:[%s478 + $0x58] sm:$0xf]
      %v8347 = vld [vmem:[%s478 + $0x5c] sm:$0x1]
      %v8349 = vshrl.u32 %v8332, 16
      %v8351 = vrot.slane %v8349, 4
      %v8352 = vshll.u32 %v8332, 16
      %v8354 = vrot.slane %v8352, 5
      %v8355 = vor.u32 %v8351, %v8354
      %v8356 = vrot.slane %v8355, 4
      %v8358 = vshll.u32 %v8333, 16
      %v8360 = vrot.slane %v8358, 5
      %v8361 = vsel %vm951, %v8356, %v8360
      %v8363 = vshrl.u32 %v8334, 16
      %v8365 = vrot.slane %v8363, 4
      %v8366 = vshll.u32 %v8334, 16
      %v8368 = vrot.slane %v8366, 5
      %v8369 = vor.u32 %v8365, %v8368
      %v8370 = vrot.slane %v8369, 4
      %v8372 = vshll.u32 %v8335, 16
      %v8374 = vrot.slane %v8372, 5
      %v8375 = vsel %vm951, %v8370, %v8374
      %v8377 = vshrl.u32 %v8336, 16
      %v8379 = vrot.slane %v8377, 4
      %v8380 = vshll.u32 %v8336, 16
      %v8382 = vrot.slane %v8380, 5
      %v8383 = vor.u32 %v8379, %v8382
      %v8384 = vrot.slane %v8383, 4
      %v8386 = vshll.u32 %v8337, 16
      %v8388 = vrot.slane %v8386, 5
      %v8389 = vsel %vm951, %v8384, %v8388
      %v8391 = vshrl.u32 %v8338, 16
      %v8393 = vrot.slane %v8391, 4
      %v8394 = vshll.u32 %v8338, 16
      %v8396 = vrot.slane %v8394, 5
      %v8397 = vor.u32 %v8393, %v8396
      %v8398 = vrot.slane %v8397, 4
      %v8400 = vshll.u32 %v8339, 16
      %v8402 = vrot.slane %v8400, 5
      %v8403 = vsel %vm951, %v8398, %v8402
      %v8405 = vshrl.u32 %v8340, 16
      %v8407 = vrot.slane %v8405, 4
      %v8408 = vshll.u32 %v8340, 16
      %v8410 = vrot.slane %v8408, 5
      %v8411 = vor.u32 %v8407, %v8410
      %v8412 = vrot.slane %v8411, 4
      %v8414 = vshll.u32 %v8341, 16
      %v8416 = vrot.slane %v8414, 5
      %v8417 = vsel %vm951, %v8412, %v8416
      %v8419 = vshrl.u32 %v8342, 16
      %v8421 = vrot.slane %v8419, 4
      %v8422 = vshll.u32 %v8342, 16
      %v8424 = vrot.slane %v8422, 5
      %v8425 = vor.u32 %v8421, %v8424
      %v8426 = vrot.slane %v8425, 4
      %v8428 = vshll.u32 %v8343, 16
      %v8430 = vrot.slane %v8428, 5
      %v8431 = vsel %vm951, %v8426, %v8430
      %v8433 = vshrl.u32 %v8344, 16
      %v8435 = vrot.slane %v8433, 4
      %v8436 = vshll.u32 %v8344, 16
      %v8438 = vrot.slane %v8436, 5
      %v8439 = vor.u32 %v8435, %v8438
      %v8440 = vrot.slane %v8439, 4
      %v8442 = vshll.u32 %v8345, 16
      %v8444 = vrot.slane %v8442, 5
      %v8445 = vsel %vm951, %v8440, %v8444
      %v8447 = vshrl.u32 %v8346, 16
      %v8449 = vrot.slane %v8447, 4
      %v8450 = vshll.u32 %v8346, 16
      %v8452 = vrot.slane %v8450, 5
      %v8453 = vor.u32 %v8449, %v8452
      %v8454 = vrot.slane %v8453, 4
      %v8456 = vshll.u32 %v8347, 16
      %v8458 = vrot.slane %v8456, 5
      %v8459 = vsel %vm951, %v8454, %v8458
      %s8460 = scalar_lea.vmem %s9, 320
      %v8461 = vld [vmem:[%s8460] sm:$0xf]
      %v8462 = vld [vmem:[%s8460 + $0x4] sm:$0xf]
      %v8463 = vld [vmem:[%s8460 + $0x8] sm:$0xf]
      %v8464 = vld [vmem:[%s8460 + $0xc] sm:$0xf]
      %v8465 = vld [vmem:[%s8460 + $0x10] sm:$0xf]
      %v8466 = vld [vmem:[%s8460 + $0x14] sm:$0xf]
      %v8467 = vld [vmem:[%s8460 + $0x18] sm:$0xf]
      %v8468 = vld [vmem:[%s8460 + $0x1c] sm:$0xf]
      %v8469 = vld [vmem:[%s8460 + $0x20] sm:$0xf]
      %v8470 = vld [vmem:[%s8460 + $0x24] sm:$0xf]
      %v8471 = vld [vmem:[%s8460 + $0x28] sm:$0xf]
      %v8472 = vld [vmem:[%s8460 + $0x2c] sm:$0xf]
      %v8473 = vld [vmem:[%s8460 + $0x30] sm:$0xf]
      %v8474 = vld [vmem:[%s8460 + $0x34] sm:$0xf]
      %v8475 = vld [vmem:[%s8460 + $0x38] sm:$0xf]
      %v8476 = vld [vmem:[%s8460 + $0x3c] sm:$0xf]
      %v8477 = vunpack.c.l.b16 %v8361
      %v8478 = vunpack.c.l.b16 %v8375
      %v8479 = vunpack.c.l.b16 %v8389
      %v8480 = vunpack.c.l.b16 %v8403
      %v8481 = vunpack.c.l.b16 %v8417
      %v8482 = vunpack.c.l.b16 %v8431
      %v8483 = vunpack.c.l.b16 %v8445
      %v8484 = vunpack.c.l.b16 %v8459
      %v8485 = vpack.c.b16 %v8478, %v8477
      %v8486 = vpack.c.b16 %v8480, %v8479
      %v8487 = vpack.c.b16 %v8482, %v8481
      %v8488 = vpack.c.b16 %v8484, %v8483
      %v8509 = vunpack.c.l.b16 %v8461
      %v8510 = vunpack.c.l.b16 %v8462
      %v8511 = vunpack.c.l.b16 %v8463
      %v8512 = vunpack.c.l.b16 %v8464
      %v8513 = vunpack.c.l.b16 %v8465
      %v8514 = vunpack.c.l.b16 %v8466
      %v8515 = vunpack.c.l.b16 %v8467
      %v8516 = vunpack.c.l.b16 %v8468
      %v8517 = vunpack.c.l.b16 %v8469
      %v8518 = vunpack.c.l.b16 %v8470
      %v8519 = vunpack.c.l.b16 %v8471
      %v8520 = vunpack.c.l.b16 %v8472
      %v8521 = vunpack.c.l.b16 %v8473
      %v8522 = vunpack.c.l.b16 %v8474
      %v8523 = vunpack.c.l.b16 %v8475
      %v8524 = vunpack.c.l.b16 %v8476
      %v8525 = vpack.c.b16 %v8510, %v8509
      %v8526 = vpack.c.b16 %v8512, %v8511
      %v8527 = vpack.c.b16 %v8514, %v8513
      %v8528 = vpack.c.b16 %v8516, %v8515
      %v8529 = vpack.c.b16 %v8518, %v8517
      %v8530 = vpack.c.b16 %v8520, %v8519
      %v8531 = vpack.c.b16 %v8522, %v8521
      %v8532 = vpack.c.b16 %v8524, %v8523
      %8541 = vmatprep.subr.bf16.mxu0 0
      %8542 = vmatpush1.bf16.msra.mxu0 %v8525
      %8543 = vmatprep.subr.bf16.mxu0 0
      %8544 = vmatpush1.bf16.msra.mxu0 %v8526
      %8545 = vmatprep.subr.bf16.mxu0 0
      %8546 = vmatpush1.bf16.msra.mxu0 %v8527
      %8547 = vmatprep.subr.bf16.mxu0 0
      %8548 = vmatpush1.bf16.msra.mxu0 %v8528
      %8549 = vmatprep.subr.bf16.mxu0 0
      %8550 = vmatpush1.bf16.msra.mxu0 %v8529
      %8551 = vmatprep.subr.bf16.mxu0 0
      %8552 = vmatpush1.bf16.msra.mxu0 %v8530
      %8553 = vmatprep.subr.bf16.mxu0 0
      %8554 = vmatpush1.bf16.msra.mxu0 %v8531
      %8555 = vmatprep.subr.bf16.mxu0 0
      %8556 = vmatpush1.bf16.msra.mxu0 %v8532
      %8557 = vmatprep.subr.bf16.mxu0 0
      %8558 = vmatpush1.bf16.msra.mxu0 0
      %8559 = vmatprep.subr.bf16.mxu0 0
      %8560 = vmatpush1.bf16.msra.mxu0 0
      %8561 = vmatprep.subr.bf16.mxu0 0
      %8562 = vmatpush1.bf16.msra.mxu0 0
      %8563 = vmatprep.subr.bf16.mxu0 0
      %8564 = vmatpush1.bf16.msra.mxu0 0
      %8565 = vmatprep.subr.bf16.mxu0 0
      %8566 = vmatpush1.bf16.msra.mxu0 0
      %8567 = vmatprep.subr.bf16.mxu0 0
      %8568 = vmatpush1.bf16.msra.mxu0 0
      %8569 = vmatprep.subr.bf16.mxu0 0
      %8570 = vmatpush1.bf16.msra.mxu0 0
      %8571 = vmatprep.subr.bf16.mxu0 0
      %8572 = vmatpush1.bf16.msra.mxu0 0
      %8573 = vmatprep.mubr.bf16.mxu0 0
      %8574 = vmatmul.mubr.bf16.gmra.mrb[0].mxu0 %v8485
      %v8575 = vpop.f32.mrb[0].mxu0
      %v8576 = vadd.f32 0.0, %v8575
      %v8577 = vpop.f32.mrb[0].mxu0
      %v8578 = vpop.f32.mrb[0].mxu0
      %v8579 = vadd.f32 0.0, %v8578
      %v8580 = vpop.f32.mrb[0].mxu0
      %8581 = vmatprep.mubr.bf16.mxu0 0
      %8582 = vmatmul.mubr.bf16.gmra.mrb[0].mxu0 %v8486
      %v8583 = vpop.f32.mrb[0].mxu0
      %v8584 = vadd.f32 0.0, %v8583
      %v8585 = vpop.f32.mrb[0].mxu0
      %v8586 = vpop.f32.mrb[0].mxu0
      %v8587 = vadd.f32 0.0, %v8586
      %v8588 = vpop.f32.mrb[0].mxu0
      %8589 = vmatprep.mubr.bf16.mxu0 0
      %8590 = vmatmul.mubr.bf16.gmra.mrb[0].mxu0 %v8487
      %v8591 = vpop.f32.mrb[0].mxu0
      %v8592 = vadd.f32 0.0, %v8591
      %v8593 = vpop.f32.mrb[0].mxu0
      %v8594 = vpop.f32.mrb[0].mxu0
      %v8595 = vadd.f32 0.0, %v8594
      %v8596 = vpop.f32.mrb[0].mxu0
      %8597 = vmatprep.mubr.bf16.mxu0 0
      %8598 = vmatmul.mubr.bf16.gmra.mrb[0].mxu0 %v8488
      %v8599 = vpop.f32.mrb[0].mxu0
      %v8600 = vadd.f32 0.0, %v8599
      %v8601 = vpop.f32.mrb[0].mxu0
      %v8602 = vpop.f32.mrb[0].mxu0
      %v8603 = vadd.f32 0.0, %v8602
      %v8604 = vpop.f32.mrb[0].mxu0
      %8605 = vdwg.mxu0
      %v8606 = vadd.f32 %v8324, %v8576
      %v8607 = vadd.f32 %v8325, %v8579
      %v8608 = vadd.f32 %v8326, %v8584
      %v8609 = vadd.f32 %v8327, %v8587
      %v8610 = vadd.f32 %v8328, %v8592
      %v8611 = vadd.f32 %v8329, %v8595
      %v8612 = vadd.f32 %v8330, %v8600
      %v8613 = vadd.f32 %v8331, %v8603
      %v8614 = vld [vmem:[%s6437] sm:$0x8]
      %v8615 = vld [vmem:[%s6437 + $0x4] sm:$0xf]
      %v8616 = vld [vmem:[%s6437 + $0xc] sm:$0x8]
      %v8617 = vld [vmem:[%s6437 + $0x10] sm:$0xf]
      %v8618 = vld [vmem:[%s6437 + $0x18] sm:$0x8]
      %v8619 = vld [vmem:[%s6437 + $0x1c] sm:$0xf]
      %v8620 = vld [vmem:[%s6437 + $0x24] sm:$0x8]
      %v8621 = vld [vmem:[%s6437 + $0x28] sm:$0xf]
      %v8622 = vld [vmem:[%s6437 + $0x30] sm:$0x8]
      %v8623 = vld [vmem:[%s6437 + $0x34] sm:$0xf]
      %v8624 = vld [vmem:[%s6437 + $0x3c] sm:$0x8]
      %v8625 = vld [vmem:[%s6437 + $0x40] sm:$0xf]
      %v8626 = vld [vmem:[%s6437 + $0x48] sm:$0x8]
      %v8627 = vld [vmem:[%s6437 + $0x4c] sm:$0xf]
      %v8628 = vld [vmem:[%s6437 + $0x54] sm:$0x8]
      %v8629 = vld [vmem:[%s6437 + $0x58] sm:$0xf]
      %v8631 = vshrl.u32 %v8614, 16
      %v8633 = vrot.slane %v8631, 7
      %v8634 = vrot.slane %v8633, 4
      %v8636 = vshrl.u32 %v8615, 16
      %v8638 = vrot.slane %v8636, 7
      %v8639 = vshll.u32 %v8615, 16
      %v8641 = vor.u32 %v8638, %v8639
      %v8642 = vsel %vm529, %v8634, %v8641
      %v8644 = vshrl.u32 %v8616, 16
      %v8646 = vrot.slane %v8644, 7
      %v8647 = vrot.slane %v8646, 4
      %v8649 = vshrl.u32 %v8617, 16
      %v8651 = vrot.slane %v8649, 7
      %v8652 = vshll.u32 %v8617, 16
      %v8654 = vor.u32 %v8651, %v8652
      %v8655 = vsel %vm529, %v8647, %v8654
      %v8657 = vshrl.u32 %v8618, 16
      %v8659 = vrot.slane %v8657, 7
      %v8660 = vrot.slane %v8659, 4
      %v8662 = vshrl.u32 %v8619, 16
      %v8664 = vrot.slane %v8662, 7
      %v8665 = vshll.u32 %v8619, 16
      %v8667 = vor.u32 %v8664, %v8665
      %v8668 = vsel %vm529, %v8660, %v8667
      %v8670 = vshrl.u32 %v8620, 16
      %v8672 = vrot.slane %v8670, 7
      %v8673 = vrot.slane %v8672, 4
      %v8675 = vshrl.u32 %v8621, 16
      %v8677 = vrot.slane %v8675, 7
      %v8678 = vshll.u32 %v8621, 16
      %v8680 = vor.u32 %v8677, %v8678
      %v8681 = vsel %vm529, %v8673, %v8680
      %v8683 = vshrl.u32 %v8622, 16
      %v8685 = vrot.slane %v8683, 7
      %v8686 = vrot.slane %v8685, 4
      %v8688 = vshrl.u32 %v8623, 16
      %v8690 = vrot.slane %v8688, 7
      %v8691 = vshll.u32 %v8623, 16
      %v8693 = vor.u32 %v8690, %v8691
      %v8694 = vsel %vm529, %v8686, %v8693
      %v8696 = vshrl.u32 %v8624, 16
      %v8698 = vrot.slane %v8696, 7
      %v8699 = vrot.slane %v8698, 4
      %v8701 = vshrl.u32 %v8625, 16
      %v8703 = vrot.slane %v8701, 7
      %v8704 = vshll.u32 %v8625, 16
      %v8706 = vor.u32 %v8703, %v8704
      %v8707 = vsel %vm529, %v8699, %v8706
      %v8709 = vshrl.u32 %v8626, 16
      %v8711 = vrot.slane %v8709, 7
      %v8712 = vrot.slane %v8711, 4
      %v8714 = vshrl.u32 %v8627, 16
      %v8716 = vrot.slane %v8714, 7
      %v8717 = vshll.u32 %v8627, 16
      %v8719 = vor.u32 %v8716, %v8717
      %v8720 = vsel %vm529, %v8712, %v8719
      %v8722 = vshrl.u32 %v8628, 16
      %v8724 = vrot.slane %v8722, 7
      %v8725 = vrot.slane %v8724, 4
      %v8727 = vshrl.u32 %v8629, 16
      %v8729 = vrot.slane %v8727, 7
      %v8730 = vshll.u32 %v8629, 16
      %v8732 = vor.u32 %v8729, %v8730
      %v8733 = vsel %vm529, %v8725, %v8732
      %s8734 = scalar_lea.vmem %s9, 384
      %v8735 = vld [vmem:[%s8734] sm:$0xf]
      %v8736 = vld [vmem:[%s8734 + $0x4] sm:$0xf]
      %v8737 = vld [vmem:[%s8734 + $0x8] sm:$0xf]
      %v8738 = vld [vmem:[%s8734 + $0xc] sm:$0xf]
      %v8739 = vld [vmem:[%s8734 + $0x10] sm:$0xf]
      %v8740 = vld [vmem:[%s8734 + $0x14] sm:$0xf]
      %v8741 = vld [vmem:[%s8734 + $0x18] sm:$0xf]
      %v8742 = vld [vmem:[%s8734 + $0x1c] sm:$0xf]
      %v8743 = vld [vmem:[%s8734 + $0x20] sm:$0xf]
      %v8744 = vld [vmem:[%s8734 + $0x24] sm:$0xf]
      %v8745 = vld [vmem:[%s8734 + $0x28] sm:$0xf]
      %v8746 = vld [vmem:[%s8734 + $0x2c] sm:$0xf]
      %v8747 = vld [vmem:[%s8734 + $0x30] sm:$0xf]
      %v8748 = vld [vmem:[%s8734 + $0x34] sm:$0xf]
      %v8749 = vld [vmem:[%s8734 + $0x38] sm:$0xf]
      %v8750 = vld [vmem:[%s8734 + $0x3c] sm:$0xf]
      %v8751 = vunpack.c.l.b16 %v8642
      %v8752 = vunpack.c.l.b16 %v8655
      %v8753 = vunpack.c.l.b16 %v8668
      %v8754 = vunpack.c.l.b16 %v8681
      %v8755 = vunpack.c.l.b16 %v8694
      %v8756 = vunpack.c.l.b16 %v8707
      %v8757 = vunpack.c.l.b16 %v8720
      %v8758 = vunpack.c.l.b16 %v8733
      %v8759 = vpack.c.b16 %v8752, %v8751
      %v8760 = vpack.c.b16 %v8754, %v8753
      %v8761 = vpack.c.b16 %v8756, %v8755
      %v8762 = vpack.c.b16 %v8758, %v8757
      %v8783 = vunpack.c.l.b16 %v8735
      %v8784 = vunpack.c.l.b16 %v8736
      %v8785 = vunpack.c.l.b16 %v8737
      %v8786 = vunpack.c.l.b16 %v8738
      %v8787 = vunpack.c.l.b16 %v8739
      %v8788 = vunpack.c.l.b16 %v8740
      %v8789 = vunpack.c.l.b16 %v8741
      %v8790 = vunpack.c.l.b16 %v8742
      %v8791 = vunpack.c.l.b16 %v8743
      %v8792 = vunpack.c.l.b16 %v8744
      %v8793 = vunpack.c.l.b16 %v8745
      %v8794 = vunpack.c.l.b16 %v8746
      %v8795 = vunpack.c.l.b16 %v8747
      %v8796 = vunpack.c.l.b16 %v8748
      %v8797 = vunpack.c.l.b16 %v8749
      %v8798 = vunpack.c.l.b16 %v8750
      %v8799 = vpack.c.b16 %v8784, %v8783
      %v8800 = vpack.c.b16 %v8786, %v8785
      %v8801 = vpack.c.b16 %v8788, %v8787
      %v8802 = vpack.c.b16 %v8790, %v8789
      %v8803 = vpack.c.b16 %v8792, %v8791
      %v8804 = vpack.c.b16 %v8794, %v8793
      %v8805 = vpack.c.b16 %v8796, %v8795
      %v8806 = vpack.c.b16 %v8798, %v8797
      %8815 = vmatprep.subr.bf16.mxu0 0
      %8816 = vmatpush1.bf16.msra.mxu0 %v8799
      %8817 = vmatprep.subr.bf16.mxu0 0
      %8818 = vmatpush1.bf16.msra.mxu0 %v8800
      %8819 = vmatprep.subr.bf16.mxu0 0
      %8820 = vmatpush1.bf16.msra.mxu0 %v8801
      %8821 = vmatprep.subr.bf16.mxu0 0
      %8822 = vmatpush1.bf16.msra.mxu0 %v8802
      %8823 = vmatprep.subr.bf16.mxu0 0
      %8824 = vmatpush1.bf16.msra.mxu0 %v8803
      %8825 = vmatprep.subr.bf16.mxu0 0
      %8826 = vmatpush1.bf16.msra.mxu0 %v8804
      %8827 = vmatprep.subr.bf16.mxu0 0
      %8828 = vmatpush1.bf16.msra.mxu0 %v8805
      %8829 = vmatprep.subr.bf16.mxu0 0
      %8830 = vmatpush1.bf16.msra.mxu0 %v8806
      %8831 = vmatprep.subr.bf16.mxu0 0
      %8832 = vmatpush1.bf16.msra.mxu0 0
      %8833 = vmatprep.subr.bf16.mxu0 0
      %8834 = vmatpush1.bf16.msra.mxu0 0
      %8835 = vmatprep.subr.bf16.mxu0 0
      %8836 = vmatpush1.bf16.msra.mxu0 0
      %8837 = vmatprep.subr.bf16.mxu0 0
      %8838 = vmatpush1.bf16.msra.mxu0 0
      %8839 = vmatprep.subr.bf16.mxu0 0
      %8840 = vmatpush1.bf16.msra.mxu0 0
      %8841 = vmatprep.subr.bf16.mxu0 0
      %8842 = vmatpush1.bf16.msra.mxu0 0
      %8843 = vmatprep.subr.bf16.mxu0 0
      %8844 = vmatpush1.bf16.msra.mxu0 0
      %8845 = vmatprep.subr.bf16.mxu0 0
      %8846 = vmatpush1.bf16.msra.mxu0 0
      %8847 = vmatprep.mubr.bf16.mxu0 0
      %8848 = vmatmul.mubr.bf16.gmra.mrb[0].mxu0 %v8759
      %v8849 = vpop.f32.mrb[0].mxu0
      %v8850 = vadd.f32 0.0, %v8849
      %v8851 = vpop.f32.mrb[0].mxu0
      %v8852 = vpop.f32.mrb[0].mxu0
      %v8853 = vadd.f32 0.0, %v8852
      %v8854 = vpop.f32.mrb[0].mxu0
      %8855 = vmatprep.mubr.bf16.mxu0 0
      %8856 = vmatmul.mubr.bf16.gmra.mrb[0].mxu0 %v8760
      %v8857 = vpop.f32.mrb[0].mxu0
      %v8858 = vadd.f32 0.0, %v8857
      %v8859 = vpop.f32.mrb[0].mxu0
      %v8860 = vpop.f32.mrb[0].mxu0
      %v8861 = vadd.f32 0.0, %v8860
      %v8862 = vpop.f32.mrb[0].mxu0
      %8863 = vmatprep.mubr.bf16.mxu0 0
      %8864 = vmatmul.mubr.bf16.gmra.mrb[0].mxu0 %v8761
      %v8865 = vpop.f32.mrb[0].mxu0
      %v8866 = vadd.f32 0.0, %v8865
      %v8867 = vpop.f32.mrb[0].mxu0
      %v8868 = vpop.f32.mrb[0].mxu0
      %v8869 = vadd.f32 0.0, %v8868
      %v8870 = vpop.f32.mrb[0].mxu0
      %8871 = vmatprep.mubr.bf16.mxu0 0
      %8872 = vmatmul.mubr.bf16.gmra.mrb[0].mxu0 %v8762
      %v8873 = vpop.f32.mrb[0].mxu0
      %v8874 = vadd.f32 0.0, %v8873
      %v8875 = vpop.f32.mrb[0].mxu0
      %v8876 = vpop.f32.mrb[0].mxu0
      %v8877 = vadd.f32 0.0, %v8876
      %v8878 = vpop.f32.mrb[0].mxu0
      %8879 = vdwg.mxu0
      %v8880 = vadd.f32 %v8606, %v8850
      %v8881 = vadd.f32 %v8607, %v8853
      %v8882 = vadd.f32 %v8608, %v8858
      %v8883 = vadd.f32 %v8609, %v8861
      %v8884 = vadd.f32 %v8610, %v8866
      %v8885 = vadd.f32 %v8611, %v8869
      %v8886 = vadd.f32 %v8612, %v8874
      %v8887 = vadd.f32 %v8613, %v8877
      %s8888 = scalar_lea.vmem %s9, 448
      %v8889 = vld [vmem:[%s8888] sm:$0xf]
      %v8890 = vld [vmem:[%s8888 + $0x4] sm:$0xf]
      %v8891 = vld [vmem:[%s8888 + $0x8] sm:$0xf]
      %v8892 = vld [vmem:[%s8888 + $0xc] sm:$0xf]
      %v8893 = vld [vmem:[%s8888 + $0x10] sm:$0xf]
      %v8894 = vld [vmem:[%s8888 + $0x14] sm:$0xf]
      %v8895 = vld [vmem:[%s8888 + $0x18] sm:$0xf]
      %v8896 = vld [vmem:[%s8888 + $0x1c] sm:$0xf]
      %v8897 = vld [vmem:[%s8888 + $0x20] sm:$0xf]
      %v8898 = vld [vmem:[%s8888 + $0x24] sm:$0xf]
      %v8899 = vld [vmem:[%s8888 + $0x28] sm:$0xf]
      %v8900 = vld [vmem:[%s8888 + $0x2c] sm:$0xf]
      %v8901 = vld [vmem:[%s8888 + $0x30] sm:$0xf]
      %v8902 = vld [vmem:[%s8888 + $0x34] sm:$0xf]
      %v8903 = vld [vmem:[%s8888 + $0x38] sm:$0xf]
      %v8904 = vld [vmem:[%s8888 + $0x3c] sm:$0xf]
      %v8913 = vunpack.c.l.b16 %v8615
      %v8914 = vunpack.c.l.b16 %v8617
      %v8915 = vunpack.c.l.b16 %v8619
      %v8916 = vunpack.c.l.b16 %v8621
      %v8917 = vunpack.c.l.b16 %v8623
      %v8918 = vunpack.c.l.b16 %v8625
      %v8919 = vunpack.c.l.b16 %v8627
      %v8920 = vunpack.c.l.b16 %v8629
      %v8921 = vpack.c.b16 %v8914, %v8913
      %v8922 = vpack.c.b16 %v8916, %v8915
      %v8923 = vpack.c.b16 %v8918, %v8917
      %v8924 = vpack.c.b16 %v8920, %v8919
      %v8945 = vunpack.c.l.b16 %v8889
      %v8946 = vunpack.c.l.b16 %v8890
      %v8947 = vunpack.c.l.b16 %v8891
      %v8948 = vunpack.c.l.b16 %v8892
      %v8949 = vunpack.c.l.b16 %v8893
      %v8950 = vunpack.c.l.b16 %v8894
      %v8951 = vunpack.c.l.b16 %v8895
      %v8952 = vunpack.c.l.b16 %v8896
      %v8953 = vunpack.c.l.b16 %v8897
      %v8954 = vunpack.c.l.b16 %v8898
      %v8955 = vunpack.c.l.b16 %v8899
      %v8956 = vunpack.c.l.b16 %v8900
      %v8957 = vunpack.c.l.b16 %v8901
      %v8958 = vunpack.c.l.b16 %v8902
      %v8959 = vunpack.c.l.b16 %v8903
      %v8960 = vunpack.c.l.b16 %v8904
      %v8961 = vpack.c.b16 %v8946, %v8945
      %v8962 = vpack.c.b16 %v8948, %v8947
      %v8963 = vpack.c.b16 %v8950, %v8949
      %v8964 = vpack.c.b16 %v8952, %v8951
      %v8965 = vpack.c.b16 %v8954, %v8953
      %v8966 = vpack.c.b16 %v8956, %v8955
      %v8967 = vpack.c.b16 %v8958, %v8957
      %v8968 = vpack.c.b16 %v8960, %v8959
      %8977 = vmatprep.subr.bf16.mxu0 0
      %8978 = vmatpush1.bf16.msra.mxu0 %v8961
      %8979 = vmatprep.subr.bf16.mxu0 0
      %8980 = vmatpush1.bf16.msra.mxu0 %v8962
      %8981 = vmatprep.subr.bf16.mxu0 0
      %8982 = vmatpush1.bf16.msra.mxu0 %v8963
      %8983 = vmatprep.subr.bf16.mxu0 0
      %8984 = vmatpush1.bf16.msra.mxu0 %v8964
      %8985 = vmatprep.subr.bf16.mxu0 0
      %8986 = vmatpush1.bf16.msra.mxu0 %v8965
      %8987 = vmatprep.subr.bf16.mxu0 0
      %8988 = vmatpush1.bf16.msra.mxu0 %v8966
      %8989 = vmatprep.subr.bf16.mxu0 0
      %8990 = vmatpush1.bf16.msra.mxu0 %v8967
      %8991 = vmatprep.subr.bf16.mxu0 0
      %8992 = vmatpush1.bf16.msra.mxu0 %v8968
      %8993 = vmatprep.subr.bf16.mxu0 0
      %8994 = vmatpush1.bf16.msra.mxu0 0
      %8995 = vmatprep.subr.bf16.mxu0 0
      %8996 = vmatpush1.bf16.msra.mxu0 0
      %8997 = vmatprep.subr.bf16.mxu0 0
      %8998 = vmatpush1.bf16.msra.mxu0 0
      %8999 = vmatprep.subr.bf16.mxu0 0
      %9000 = vmatpush1.bf16.msra.mxu0 0
      %9001 = vmatprep.subr.bf16.mxu0 0
      %9002 = vmatpush1.bf16.msra.mxu0 0
      %9003 = vmatprep.subr.bf16.mxu0 0
      %9004 = vmatpush1.bf16.msra.mxu0 0
      %9005 = vmatprep.subr.bf16.mxu0 0
      %9006 = vmatpush1.bf16.msra.mxu0 0
      %9007 = vmatprep.subr.bf16.mxu0 0
      %9008 = vmatpush1.bf16.msra.mxu0 0
      %9009 = vmatprep.mubr.bf16.mxu0 0
      %9010 = vmatmul.mubr.bf16.gmra.mrb[0].mxu0 %v8921
      %v9011 = vpop.f32.mrb[0].mxu0
      %v9012 = vadd.f32 0.0, %v9011
      %v9013 = vpop.f32.mrb[0].mxu0
      %v9014 = vpop.f32.mrb[0].mxu0
      %v9015 = vadd.f32 0.0, %v9014
      %v9016 = vpop.f32.mrb[0].mxu0
      %9017 = vmatprep.mubr.bf16.mxu0 0
      %9018 = vmatmul.mubr.bf16.gmra.mrb[0].mxu0 %v8922
      %v9019 = vpop.f32.mrb[0].mxu0
      %v9020 = vadd.f32 0.0, %v9019
      %v9021 = vpop.f32.mrb[0].mxu0
      %v9022 = vpop.f32.mrb[0].mxu0
      %v9023 = vadd.f32 0.0, %v9022
      %v9024 = vpop.f32.mrb[0].mxu0
      %9025 = vmatprep.mubr.bf16.mxu0 0
      %9026 = vmatmul.mubr.bf16.gmra.mrb[0].mxu0 %v8923
      %v9027 = vpop.f32.mrb[0].mxu0
      %v9028 = vadd.f32 0.0, %v9027
      %v9029 = vpop.f32.mrb[0].mxu0
      %v9030 = vpop.f32.mrb[0].mxu0
      %v9031 = vadd.f32 0.0, %v9030
      %v9032 = vpop.f32.mrb[0].mxu0
      %9033 = vmatprep.mubr.bf16.mxu0 0
      %9034 = vmatmul.mubr.bf16.gmra.mrb[0].mxu0 %v8924
      %v9035 = vpop.f32.mrb[0].mxu0
      %v9036 = vadd.f32 0.0, %v9035
      %v9037 = vpop.f32.mrb[0].mxu0
      %v9038 = vpop.f32.mrb[0].mxu0
      %v9039 = vadd.f32 0.0, %v9038
      %v9040 = vpop.f32.mrb[0].mxu0
      %9041 = vdwg.mxu0
      %v9042 = vadd.f32 %v8880, %v9012
      %v9043 = vadd.f32 %v8881, %v9015
      %v9044 = vadd.f32 %v8882, %v9020
      %v9045 = vadd.f32 %v8883, %v9023
      %v9046 = vadd.f32 %v8884, %v9028
      %v9047 = vadd.f32 %v8885, %v9031
      %v9048 = vadd.f32 %v8886, %v9036
      %v9049 = vadd.f32 %v8887, %v9039
      %v9050 = vld [vmem:[%s6437 + $0x4] sm:$0xf]
      %v9051 = vld [vmem:[%s6437 + $0x8] sm:$0x1]
      %v9052 = vld [vmem:[%s6437 + $0x10] sm:$0xf]
      %v9053 = vld [vmem:[%s6437 + $0x14] sm:$0x1]
      %v9054 = vld [vmem:[%s6437 + $0x1c] sm:$0xf]
      %v9055 = vld [vmem:[%s6437 + $0x20] sm:$0x1]
      %v9056 = vld [vmem:[%s6437 + $0x28] sm:$0xf]
      %v9057 = vld [vmem:[%s6437 + $0x2c] sm:$0x1]
      %v9058 = vld [vmem:[%s6437 + $0x34] sm:$0xf]
      %v9059 = vld [vmem:[%s6437 + $0x38] sm:$0x1]
      %v9060 = vld [vmem:[%s6437 + $0x40] sm:$0xf]
      %v9061 = vld [vmem:[%s6437 + $0x44] sm:$0x1]
      %v9062 = vld [vmem:[%s6437 + $0x4c] sm:$0xf]
      %v9063 = vld [vmem:[%s6437 + $0x50] sm:$0x1]
      %v9064 = vld [vmem:[%s6437 + $0x58] sm:$0xf]
      %v9065 = vld [vmem:[%s6437 + $0x5c] sm:$0x1]
      %v9067 = vshrl.u32 %v9050, 16
      %v9069 = vrot.slane %v9067, 4
      %v9070 = vshll.u32 %v9050, 16
      %v9072 = vrot.slane %v9070, 5
      %v9073 = vor.u32 %v9069, %v9072
      %v9074 = vrot.slane %v9073, 4
      %v9076 = vshll.u32 %v9051, 16
      %v9078 = vrot.slane %v9076, 5
      %v9079 = vsel %vm951, %v9074, %v9078
      %v9081 = vshrl.u32 %v9052, 16
      %v9083 = vrot.slane %v9081, 4
      %v9084 = vshll.u32 %v9052, 16
      %v9086 = vrot.slane %v9084, 5
      %v9087 = vor.u32 %v9083, %v9086
      %v9088 = vrot.slane %v9087, 4
      %v9090 = vshll.u32 %v9053, 16
      %v9092 = vrot.slane %v9090, 5
      %v9093 = vsel %vm951, %v9088, %v9092
      %v9095 = vshrl.u32 %v9054, 16
      %v9097 = vrot.slane %v9095, 4
      %v9098 = vshll.u32 %v9054, 16
      %v9100 = vrot.slane %v9098, 5
      %v9101 = vor.u32 %v9097, %v9100
      %v9102 = vrot.slane %v9101, 4
      %v9104 = vshll.u32 %v9055, 16
      %v9106 = vrot.slane %v9104, 5
      %v9107 = vsel %vm951, %v9102, %v9106
      %v9109 = vshrl.u32 %v9056, 16
      %v9111 = vrot.slane %v9109, 4
      %v9112 = vshll.u32 %v9056, 16
      %v9114 = vrot.slane %v9112, 5
      %v9115 = vor.u32 %v9111, %v9114
      %v9116 = vrot.slane %v9115, 4
      %v9118 = vshll.u32 %v9057, 16
      %v9120 = vrot.slane %v9118, 5
      %v9121 = vsel %vm951, %v9116, %v9120
      %v9123 = vshrl.u32 %v9058, 16
      %v9125 = vrot.slane %v9123, 4
      %v9126 = vshll.u32 %v9058, 16
      %v9128 = vrot.slane %v9126, 5
      %v9129 = vor.u32 %v9125, %v9128
      %v9130 = vrot.slane %v9129, 4
      %v9132 = vshll.u32 %v9059, 16
      %v9134 = vrot.slane %v9132, 5
      %v9135 = vsel %vm951, %v9130, %v9134
      %v9137 = vshrl.u32 %v9060, 16
      %v9139 = vrot.slane %v9137, 4
      %v9140 = vshll.u32 %v9060, 16
      %v9142 = vrot.slane %v9140, 5
      %v9143 = vor.u32 %v9139, %v9142
      %v9144 = vrot.slane %v9143, 4
      %v9146 = vshll.u32 %v9061, 16
      %v9148 = vrot.slane %v9146, 5
      %v9149 = vsel %vm951, %v9144, %v9148
      %v9151 = vshrl.u32 %v9062, 16
      %v9153 = vrot.slane %v9151, 4
      %v9154 = vshll.u32 %v9062, 16
      %v9156 = vrot.slane %v9154, 5
      %v9157 = vor.u32 %v9153, %v9156
      %v9158 = vrot.slane %v9157, 4
      %v9160 = vshll.u32 %v9063, 16
      %v9162 = vrot.slane %v9160, 5
      %v9163 = vsel %vm951, %v9158, %v9162
      %v9165 = vshrl.u32 %v9064, 16
      %v9167 = vrot.slane %v9165, 4
      %v9168 = vshll.u32 %v9064, 16
      %v9170 = vrot.slane %v9168, 5
      %v9171 = vor.u32 %v9167, %v9170
      %v9172 = vrot.slane %v9171, 4
      %v9174 = vshll.u32 %v9065, 16
      %v9176 = vrot.slane %v9174, 5
      %v9177 = vsel %vm951, %v9172, %v9176
      %s9178 = scalar_lea.vmem %s9, 512
      %v9179 = vld [vmem:[%s9178] sm:$0xf]
      %v9180 = vld [vmem:[%s9178 + $0x4] sm:$0xf]
      %v9181 = vld [vmem:[%s9178 + $0x8] sm:$0xf]
      %v9182 = vld [vmem:[%s9178 + $0xc] sm:$0xf]
      %v9183 = vld [vmem:[%s9178 + $0x10] sm:$0xf]
      %v9184 = vld [vmem:[%s9178 + $0x14] sm:$0xf]
      %v9185 = vld [vmem:[%s9178 + $0x18] sm:$0xf]
      %v9186 = vld [vmem:[%s9178 + $0x1c] sm:$0xf]
      %v9187 = vld [vmem:[%s9178 + $0x20] sm:$0xf]
      %v9188 = vld [vmem:[%s9178 + $0x24] sm:$0xf]
      %v9189 = vld [vmem:[%s9178 + $0x28] sm:$0xf]
      %v9190 = vld [vmem:[%s9178 + $0x2c] sm:$0xf]
      %v9191 = vld [vmem:[%s9178 + $0x30] sm:$0xf]
      %v9192 = vld [vmem:[%s9178 + $0x34] sm:$0xf]
      %v9193 = vld [vmem:[%s9178 + $0x38] sm:$0xf]
      %v9194 = vld [vmem:[%s9178 + $0x3c] sm:$0xf]
      %v9195 = vunpack.c.l.b16 %v9079
      %v9196 = vunpack.c.l.b16 %v9093
      %v9197 = vunpack.c.l.b16 %v9107
      %v9198 = vunpack.c.l.b16 %v9121
      %v9199 = vunpack.c.l.b16 %v9135
      %v9200 = vunpack.c.l.b16 %v9149
      %v9201 = vunpack.c.l.b16 %v9163
      %v9202 = vunpack.c.l.b16 %v9177
      %v9203 = vpack.c.b16 %v9196, %v9195
      %v9204 = vpack.c.b16 %v9198, %v9197
      %v9205 = vpack.c.b16 %v9200, %v9199
      %v9206 = vpack.c.b16 %v9202, %v9201
      %v9227 = vunpack.c.l.b16 %v9179
      %v9228 = vunpack.c.l.b16 %v9180
      %v9229 = vunpack.c.l.b16 %v9181
      %v9230 = vunpack.c.l.b16 %v9182
      %v9231 = vunpack.c.l.b16 %v9183
      %v9232 = vunpack.c.l.b16 %v9184
      %v9233 = vunpack.c.l.b16 %v9185
      %v9234 = vunpack.c.l.b16 %v9186
      %v9235 = vunpack.c.l.b16 %v9187
      %v9236 = vunpack.c.l.b16 %v9188
      %v9237 = vunpack.c.l.b16 %v9189
      %v9238 = vunpack.c.l.b16 %v9190
      %v9239 = vunpack.c.l.b16 %v9191
      %v9240 = vunpack.c.l.b16 %v9192
      %v9241 = vunpack.c.l.b16 %v9193
      %v9242 = vunpack.c.l.b16 %v9194
      %v9243 = vpack.c.b16 %v9228, %v9227
      %v9244 = vpack.c.b16 %v9230, %v9229
      %v9245 = vpack.c.b16 %v9232, %v9231
      %v9246 = vpack.c.b16 %v9234, %v9233
      %v9247 = vpack.c.b16 %v9236, %v9235
      %v9248 = vpack.c.b16 %v9238, %v9237
      %v9249 = vpack.c.b16 %v9240, %v9239
      %v9250 = vpack.c.b16 %v9242, %v9241
      %9259 = vmatprep.subr.bf16.mxu0 0
      %9260 = vmatpush1.bf16.msra.mxu0 %v9243
      %9261 = vmatprep.subr.bf16.mxu0 0
      %9262 = vmatpush1.bf16.msra.mxu0 %v9244
      %9263 = vmatprep.subr.bf16.mxu0 0
      %9264 = vmatpush1.bf16.msra.mxu0 %v9245
      %9265 = vmatprep.subr.bf16.mxu0 0
      %9266 = vmatpush1.bf16.msra.mxu0 %v9246
      %9267 = vmatprep.subr.bf16.mxu0 0
      %9268 = vmatpush1.bf16.msra.mxu0 %v9247
      %9269 = vmatprep.subr.bf16.mxu0 0
      %9270 = vmatpush1.bf16.msra.mxu0 %v9248
      %9271 = vmatprep.subr.bf16.mxu0 0
      %9272 = vmatpush1.bf16.msra.mxu0 %v9249
      %9273 = vmatprep.subr.bf16.mxu0 0
      %9274 = vmatpush1.bf16.msra.mxu0 %v9250
      %9275 = vmatprep.subr.bf16.mxu0 0
      %9276 = vmatpush1.bf16.msra.mxu0 0
      %9277 = vmatprep.subr.bf16.mxu0 0
      %9278 = vmatpush1.bf16.msra.mxu0 0
      %9279 = vmatprep.subr.bf16.mxu0 0
      %9280 = vmatpush1.bf16.msra.mxu0 0
      %9281 = vmatprep.subr.bf16.mxu0 0
      %9282 = vmatpush1.bf16.msra.mxu0 0
      %9283 = vmatprep.subr.bf16.mxu0 0
      %9284 = vmatpush1.bf16.msra.mxu0 0
      %9285 = vmatprep.subr.bf16.mxu0 0
      %9286 = vmatpush1.bf16.msra.mxu0 0
      %9287 = vmatprep.subr.bf16.mxu0 0
      %9288 = vmatpush1.bf16.msra.mxu0 0
      %9289 = vmatprep.subr.bf16.mxu0 0
      %9290 = vmatpush1.bf16.msra.mxu0 0
      %9291 = vmatprep.mubr.bf16.mxu0 0
      %9292 = vmatmul.mubr.bf16.gmra.mrb[0].mxu0 %v9203
      %v9293 = vpop.f32.mrb[0].mxu0
      %v9294 = vadd.f32 0.0, %v9293
      %v9295 = vpop.f32.mrb[0].mxu0
      %v9296 = vpop.f32.mrb[0].mxu0
      %v9297 = vadd.f32 0.0, %v9296
      %v9298 = vpop.f32.mrb[0].mxu0
      %9299 = vmatprep.mubr.bf16.mxu0 0
      %9300 = vmatmul.mubr.bf16.gmra.mrb[0].mxu0 %v9204
      %v9301 = vpop.f32.mrb[0].mxu0
      %v9302 = vadd.f32 0.0, %v9301
      %v9303 = vpop.f32.mrb[0].mxu0
      %v9304 = vpop.f32.mrb[0].mxu0
      %v9305 = vadd.f32 0.0, %v9304
      %v9306 = vpop.f32.mrb[0].mxu0
      %9307 = vmatprep.mubr.bf16.mxu0 0
      %9308 = vmatmul.mubr.bf16.gmra.mrb[0].mxu0 %v9205
      %v9309 = vpop.f32.mrb[0].mxu0
      %v9310 = vadd.f32 0.0, %v9309
      %v9311 = vpop.f32.mrb[0].mxu0
      %v9312 = vpop.f32.mrb[0].mxu0
      %v9313 = vadd.f32 0.0, %v9312
      %v9314 = vpop.f32.mrb[0].mxu0
      %9315 = vmatprep.mubr.bf16.mxu0 0
      %9316 = vmatmul.mubr.bf16.gmra.mrb[0].mxu0 %v9206
      %v9317 = vpop.f32.mrb[0].mxu0
      %v9318 = vadd.f32 0.0, %v9317
      %v9319 = vpop.f32.mrb[0].mxu0
      %v9320 = vpop.f32.mrb[0].mxu0
      %v9321 = vadd.f32 0.0, %v9320
      %v9322 = vpop.f32.mrb[0].mxu0
      %9323 = vdwg.mxu0
      %v9324 = vadd.f32 %v9042, %v9294
      %v9325 = vadd.f32 %v9043, %v9297
      %v9326 = vadd.f32 %v9044, %v9302
      %v9327 = vadd.f32 %v9045, %v9305
      %v9328 = vadd.f32 %v9046, %v9310
      %v9329 = vadd.f32 %v9047, %v9313
      %v9330 = vadd.f32 %v9048, %v9318
      %v9331 = vadd.f32 %v9049, %v9321
      %v9332 = vld [vmem:[%s10] sm:$0x1]
      %v9334 = vlaneseq
      %v9335 = vshrl.u32 %v9334, 7
      %v9336 = vsub.s32 0, %v9335
      %v9337 = vrot.slane %v9332, %v9336
      %v9339 = vadd.f32 %v9324, %v9337
      %v9340 = vadd.f32 %v9325, %v9337
      %v9341 = vadd.f32 %v9326, %v9337
      %v9342 = vadd.f32 %v9327, %v9337
      %v9343 = vadd.f32 %v9328, %v9337
      %v9344 = vadd.f32 %v9329, %v9337
      %v9345 = vadd.f32 %v9330, %v9337
      %v9346 = vadd.f32 %v9331, %v9337
      %v9347 = vadd.f32 %v9339, %v4972
      %v9348 = vadd.f32 %v9340, %v4975
      %v9349 = vadd.f32 %v9341, %v4980
      %v9350 = vadd.f32 %v9342, %v4983
      %v9351 = vadd.f32 %v9343, %v4988
      %v9352 = vadd.f32 %v9344, %v4991
      %v9353 = vadd.f32 %v9345, %v4996
      %v9354 = vadd.f32 %v9346, %v4999
      %v9355 = vmax.f32 %v9347, 0.0
      %v9356 = vmax.f32 %v9348, 0.0
      %v9357 = vmax.f32 %v9349, 0.0
      %v9358 = vmax.f32 %v9350, 0.0
      %v9359 = vmax.f32 %v9351, 0.0
      %v9360 = vmax.f32 %v9352, 0.0
      %v9361 = vmax.f32 %v9353, 0.0
      %v9362 = vmax.f32 %v9354, 0.0
      %9363 = vst [vmem:[%s386] sm:$0xff] %v9355
      %9364 = vst [vmem:[%s386 + $0x8] sm:$0xff] %v9356
      %9365 = vst [vmem:[%s386 + $0x10] sm:$0xff] %v9357
      %9366 = vst [vmem:[%s386 + $0x18] sm:$0xff] %v9358
      %9367 = vst [vmem:[%s386 + $0x20] sm:$0xff] %v9359
      %9368 = vst [vmem:[%s386 + $0x28] sm:$0xff] %v9360
      %9369 = vst [vmem:[%s386 + $0x30] sm:$0xff] %v9361
      %9370 = vst [vmem:[%s386 + $0x38] sm:$0xff] %v9362
      %p9371 = scmp.lt.s32.totalorder %s22, 1
      %s9372 = scalar_select %p9371, %s22, 1
      %s9373 = smul.addr %s9372, 8
      %s9374 = smul.addr %s9373, 8
      %s9375 = scalar_lea.vmem %s11, %s9374
      // Predicated region
      $region65: #{down_forward.1} parent=63 // pred_check
        %p9376 = pneg %p276
      $region66: #{down_forward.1} parent=63 // pred_check_branch
        %9378 = sbr.rel (%p9376) target = $region68
      $region67: #{down_forward.1} parent=63 // pred_region
        _
      $region68: #{down_forward.1} parent=63 // pred_fallthru
        _
    $region64: #{down_forward.1} parent=5 // pred_fallthru
      _
    %p9379 = scmp.le.s32.totalorder 2, %s17
    // Predicated region
    $region69: #{down_forward.1} parent=5 // pred_check
      %p9380 = pneg %p9379
    $region70: #{down_forward.1} parent=5 // pred_check_branch
      %9382 = sbr.rel (%p9380) target = $region72
    $region71: #{down_forward.1} parent=5 // pred_region
      %s9383 = ssub.s32 %s17, 2
      // Predicated region
      $region73: #{down_forward.1} parent=71 // pred_check
        %p9384 = pneg %p282
      $region74: #{down_forward.1} parent=71 // pred_check_branch
        %9386 = sbr.rel (%p9384) target = $region76
      $region75: #{down_forward.1} parent=71 // pred_region
        %p9387 = scmp.lt.s32.totalorder %s23, 1
        %s9388 = scalar_select %p9387, %s23, 1
        %s9389 = smul.addr %s9388, 8
        %s9390 = smul.addr %s9389, 8
        %s9391 = scalar_lea.vmem %s11, %s9390
      $region76: #{down_forward.1} parent=71 // pred_fallthru
        _
    $region72: #{down_forward.1} parent=5 // pred_fallthru
      _
  $region6: #{down_forward.1} parent=0 // loop_footer
    %s21 = sadd.s32 1, %s17
  $region7: #{down_forward.1} parent=0 // loop_footer_branch
    %16 = sbr.rel target = $region3
  $region8: #{down_forward.1} parent=0 // loop_exit
    _

</llo_original>
